<compile_context>
chip_gen: v7x
topology: tpu7x:2x2x1
jax: 0.10.0
libtpu: 0.0.40
codegen_flags: <defaults>
</compile_context>

<pallas_src>
import functools
import math

import jax
import jax.numpy as jnp
from jax.experimental import pallas as pl
from jax.experimental.pallas import tpu as pltpu

LANE = 128
SUB = 8            # sublanes per compute slice -> full (8,128) vreg occupancy
NPARAMS = 10       # per (layer, qubit): cos/sin of w0/2, w1/2, w2/2, tanh(w3)/2, tanh(w4)/2


def _quantum_generator_kernel(params_ref, feats_ref, out_ref, *,
                              n_qubits, n_layers, gen_update_step, inner):
    """Simulates the variational circuit for `inner` (SUB, LANE) slabs of samples.

    params_ref : SMEM f32[L * NQ * 10]            precomputed scalar cos/sin values
    feats_ref  : VMEM f32[4 + 2*NQ, inner*SUB, LANE]
                 rows 0..3  = cos(x0/2), sin(x0/2), cos(x1/2), sin(x1/2)
                 rows 4+2q  = cos(p_q/2), sin(p_q/2)
    out_ref    : VMEM f32[inner*SUB, LANE]        ((<Z_0> + 1) / 2)
    """
    dim = 2 ** n_qubits
    n_rows = 4 + 2 * n_qubits
    vec_shape = (SUB, LANE)

    # ---- trace-time zero/one tracked arithmetic (specializes layer 0 for free) ----
    def _is_const(v, val):
        return isinstance(v, (int, float)) and v == val

    def mul(a, b):
        if _is_const(a, 0.0) or _is_const(b, 0.0):
            return 0.0
        if _is_const(a, 1.0):
            return b
        if _is_const(b, 1.0):
            return a
        return a * b

    def add(a, b):
        if _is_const(a, 0.0):
            return b
        if _is_const(b, 0.0):
            return a
        return a + b

    def neg(a):
        if _is_const(a, 0.0):
            return 0.0
        return -a

    def sub_(a, b):
        if _is_const(b, 0.0):
            return a
        if _is_const(a, 0.0):
            return neg(b)
        return a - b

    def wparam(layer, qubit, k):
        return params_ref[(layer * n_qubits + qubit) * NPARAMS + k]

    def wsplat(layer, qubit, k):
        # Hoisted SMEM-scalar -> (8,128) splat: one broadcast per gate operand
        # (per-use splats would nearly double VALU issue in the weight-only gates).
        return jnp.broadcast_to(wparam(layer, qubit, k), vec_shape)

    def pairs(target_wire, control_wire=None):
        stride = 1 << (n_qubits - 1 - target_wire)
        out = []
        for i0 in range(dim):
            if (i0 // stride) % 2 != 0:
                continue
            if control_wire is not None:
                if ((i0 >> (n_qubits - 1 - control_wire)) & 1) != 1:
                    continue
            out.append((i0, i0 + stride))
        return out

    def slab(j):
        if isinstance(j, int):                 # inner == 1 fast path (static offset)
            s0 = j * SUB
        else:
            s0 = pl.multiple_of(j * SUB, SUB)

        f = [feats_ref[r, pl.ds(s0, SUB), :] for r in range(n_rows)]

        # Statevector |0...0>; wire 0 is the MSB of the basis index (PennyLane order).
        sr = [1.0 if i == 0 else 0.0 for i in range(dim)]   # real parts
        si = [0.0 for _ in range(dim)]                      # imag parts

        def apply_rx(wire, c, s, control=None):
            # RX(theta): [[c, -i s], [-i s, c]] with c=cos(theta/2), s=sin(theta/2)
            for i0, i1 in pairs(wire, control):
                ar, ai, br, bi = sr[i0], si[i0], sr[i1], si[i1]
                sr[i0] = add(mul(c, ar), mul(s, bi))
                si[i0] = sub_(mul(c, ai), mul(s, br))
                sr[i1] = add(mul(c, br), mul(s, ai))
                si[i1] = sub_(mul(c, bi), mul(s, ar))

        def apply_ry(wire, c, s):
            # RY(theta): [[c, -s], [s, c]]
            for i0, i1 in pairs(wire):
                ar, ai, br, bi = sr[i0], si[i0], sr[i1], si[i1]
                sr[i0] = sub_(mul(c, ar), mul(s, br))
                si[i0] = sub_(mul(c, ai), mul(s, bi))
                sr[i1] = add(mul(s, ar), mul(c, br))
                si[i1] = add(mul(s, ai), mul(c, bi))

        def apply_rz(wire, c, s):
            # RZ(theta): diag(e^{-i theta/2}, e^{+i theta/2})
            for i in range(dim):
                bit = (i >> (n_qubits - 1 - wire)) & 1
                re, im = sr[i], si[i]
                if bit == 1:
                    sr[i] = sub_(mul(re, c), mul(s, im))
                    si[i] = add(mul(im, c), mul(s, re))
                else:
                    sr[i] = add(mul(re, c), mul(s, im))
                    si[i] = sub_(mul(im, c), mul(s, re))

        def vqc(layer):
            for q in range(n_qubits):
                apply_rx(q, wsplat(layer, q, 0), wsplat(layer, q, 1))
                apply_rz(q, wsplat(layer, q, 2), wsplat(layer, q, 3))
            for q in range(n_qubits):
                ctrl = n_qubits - q - 1
                tgt = (n_qubits - q) % n_qubits
                apply_rx(tgt, wsplat(layer, q, 4), wsplat(layer, q, 5), control=ctrl)

        def vqc_final(layer):
            # Light-cone pruning for expval(PauliZ(0)): after CRX(nq-1 -> 0) every
            # remaining gate of this layer either does not touch wire 0 or is
            # Z-diagonal/control on it, hence commutes with Z_0 -> drop it.
            if n_qubits < 2:
                vqc(layer)
                return
            qn = n_qubits - 1
            apply_rx(0, wsplat(layer, 0, 0), wsplat(layer, 0, 1))
            apply_rz(0, wsplat(layer, 0, 2), wsplat(layer, 0, 3))
            apply_rx(qn, wsplat(layer, qn, 0), wsplat(layer, qn, 1))
            apply_rx(0, wsplat(layer, 0, 4), wsplat(layer, 0, 5), control=qn)

        # ---- circuit (matches Generator.circuit) ----
        for layer in range(n_layers - 1):
            if layer % gen_update_step == 0:
                # nec: RZ(p_q) on wire q; cos/sin(p_q/2) precomputed as feature rows.
                for q in range(n_qubits):
                    apply_rz(q, f[4 + 2 * q], f[5 + 2 * q])
            vqc(layer)
            # iec: RX(x0 + tanh(w3)) on every wire, then RY(x1 + tanh(w4)).
            # (RX/RY on distinct wires commute, so doing all RX first is identical
            #  to the per-qubit RX,RY order and keeps fewer feature rows live.)
            cx0, sx0 = f[0], f[1]
            for q in range(n_qubits):
                ct, st = wsplat(layer, q, 6), wsplat(layer, q, 7)
                apply_rx(q, cx0 * ct - sx0 * st, sx0 * ct + cx0 * st)
            cx1, sx1 = f[2], f[3]
            for q in range(n_qubits):
                ct, st = wsplat(layer, q, 8), wsplat(layer, q, 9)
                apply_ry(q, cx1 * ct - sx1 * st, sx1 * ct + cx1 * st)
        vqc_final(n_layers - 1)

        # expval(PauliZ(0)); wire 0 is the MSB of the basis index
        z = 0.0
        for i in range(dim):
            prob = add(mul(sr[i], sr[i]), mul(si[i], si[i]))
            if ((i >> (n_qubits - 1)) & 1) == 0:
                z = add(z, prob)
            else:
                z = sub_(z, prob)
        zval = (z + 1.0) * 0.5
        if isinstance(zval, (int, float)):
            zval = jnp.full(vec_shape, zval, jnp.float32)
        elif zval.shape != vec_shape:
            zval = jnp.broadcast_to(zval, vec_shape)
        out_ref[pl.ds(s0, SUB), :] = zval

    if inner == 1:
        slab(0)
    else:
        pl.loop(0, inner)(slab)


def quantum_generator_forward(p, x, weights, gen_update_step):
    """p: [B, NQ] noise, x: [B, IS, IS, 2] coords, weights: [L, NQ, 6].
    Returns z: [B, IS*IS] in [0, 1]."""
    B, IS = x.shape[0], x.shape[1]
    n_qubits = p.shape[1]
    n_layers = weights.shape[0]
    n = B * IS * IS
    n_rows = 4 + 2 * n_qubits

    # ---- per-sample features (all per-sample transcendentals live here) ----
    x32 = x.astype(jnp.float32).reshape(n, 2)
    x0, x1 = x32[:, 0], x32[:, 1]
    p32 = p.astype(jnp.float32)
    cp, sp = jnp.cos(0.5 * p32), jnp.sin(0.5 * p32)            # trig on [B, NQ] only
    rows = [jnp.cos(0.5 * x0), jnp.sin(0.5 * x0),
            jnp.cos(0.5 * x1), jnp.sin(0.5 * x1)]
    for q in range(n_qubits):
        rows.append(jnp.broadcast_to(cp[:, q, None], (B, IS * IS)).reshape(n))
        rows.append(jnp.broadcast_to(sp[:, q, None], (B, IS * IS)).reshape(n))
    feats = jnp.stack(rows, axis=0)                            # [n_rows, N]

    # ---- tiling: (8,128) compute slices, up to 8 slices per grid step ----
    # Keeps the per-iteration live set at the 32-vreg statevector (no spills)
    # while amortizing grid-step overhead; grid_len >= 2 whenever there are
    # >= 2 slices so both v7x TensorCores get work on the "parallel" axis.
    n_slices = pl.cdiv(n, SUB * LANE)
    if n_slices <= 1:
        inner = 1
    else:
        inner = min(8, pl.cdiv(n_slices, 2))
    grid_len = pl.cdiv(n_slices, inner)
    block_sub = inner * SUB
    n_pad = grid_len * block_sub * LANE
    if n_pad != n:
        feats = jnp.pad(feats, ((0, 0), (0, n_pad - n)))
    # Sample-tile-major layout -> each grid step's input DMA is one contiguous block.
    feats = (feats.reshape(n_rows, grid_len, block_sub, LANE)
                  .transpose(1, 0, 2, 3)
                  .reshape(grid_len * n_rows, block_sub, LANE))

    # ---- scalar weights: all trig/tanh precomputed, packed for SMEM ----
    w = weights.astype(jnp.float32)
    t3 = jnp.tanh(w[..., 3])
    t4 = jnp.tanh(w[..., 4])
    params = jnp.stack([
        jnp.cos(0.5 * w[..., 0]), jnp.sin(0.5 * w[..., 0]),
        jnp.cos(0.5 * w[..., 1]), jnp.sin(0.5 * w[..., 1]),
        jnp.cos(0.5 * w[..., 2]), jnp.sin(0.5 * w[..., 2]),
        jnp.cos(0.5 * t3), jnp.sin(0.5 * t3),
        jnp.cos(0.5 * t4), jnp.sin(0.5 * t4),
    ], axis=-1).reshape(-1)                                    # [L*NQ*10]

    kernel = functools.partial(
        _quantum_generator_kernel,
        n_qubits=n_qubits, n_layers=n_layers,
        gen_update_step=gen_update_step, inner=inner)

    out = pl.pallas_call(
        kernel,
        out_shape=jax.ShapeDtypeStruct((grid_len * block_sub, LANE), jnp.float32),
        grid=(grid_len,),
        in_specs=[
            pl.BlockSpec(memory_space=pltpu.MemorySpace.SMEM),               # scalars
            pl.BlockSpec((n_rows, block_sub, LANE), lambda i: (i, 0, 0)),    # features
        ],
        out_specs=pl.BlockSpec((block_sub, LANE), lambda i: (i, 0)),
        compiler_params=pltpu.CompilerParams(dimension_semantics=("parallel",)),
    )(params, feats)

    return out.reshape(-1)[:n].reshape(B, IS * IS)


def reference_forward(p, x, weights, gen_update_step):
    """Pure-JAX statevector reference (full, un-pruned circuit) for validation."""
    B, IS = x.shape[0], x.shape[1]
    nq = p.shape[1]
    L = weights.shape[0]
    n = B * IS * IS
    dim = 2 ** nq

    x_in = x.reshape(B, IS * IS, 2)
    p_in = jnp.broadcast_to(p[:, None, :], (B, IS * IS, nq))
    inputs = jnp.concatenate([x_in, p_in], axis=2).reshape(n, 2 + nq)
    xs, ps = inputs[:, :2], inputs[:, 2:]

    state = jnp.zeros((n, dim), jnp.complex64).at[:, 0].set(1.0)

    def apply_1q(state, wire, m00, m01, m10, m11):
        m = [jnp.broadcast_to(jnp.asarray(v, jnp.complex64), (n,)).reshape(n, 1, 1)
             for v in (m00, m01, m10, m11)]
        s = state.reshape(n, 2 ** wire, 2, 2 ** (nq - 1 - wire))
        a, b = s[:, :, 0, :], s[:, :, 1, :]
        na = m[0] * a + m[1] * b
        nb = m[2] * a + m[3] * b
        return jnp.stack([na, nb], axis=2).reshape(n, dim)

    def rx(state, wire, theta):
        c, s = jnp.cos(theta / 2), jnp.sin(theta / 2)
        return apply_1q(state, wire, c, -1j * s, -1j * s, c)

    def ry(state, wire, theta):
        c, s = jnp.cos(theta / 2), jnp.sin(theta / 2)
        return apply_1q(state, wire, c, -s, s, c)

    def rz(state, wire, theta):
        return apply_1q(state, wire, jnp.exp(-0.5j * theta), 0.0, 0.0,
                        jnp.exp(0.5j * theta))

    def crx(state, ctrl, tgt, theta):
        c, s = jnp.cos(theta / 2), jnp.sin(theta / 2)
        idx = jnp.arange(dim)
        ctrl_bit = (idx >> (nq - 1 - ctrl)) & 1
        partner = idx ^ (1 << (nq - 1 - tgt))
        mixed = c * state + (-1j * s) * state[:, partner]
        return jnp.where((ctrl_bit == 1)[None, :], mixed, state)

    def vqc(state, lw):
        for q in range(nq):
            state = rx(state, q, lw[q, 0])
            state = rz(state, q, lw[q, 1])
        for q in range(nq):
            state = crx(state, nq - q - 1, (nq - q) % nq, lw[q, 2])
        return state

    for layer in range(L - 1):
        if layer % gen_update_step == 0:
            for q in range(nq):
                state = rz(state, q, ps[:, q])
        state = vqc(state, weights[layer])
        for q in range(nq):
            state = rx(state, q, xs[:, 0] + jnp.tanh(weights[layer, q, 3]))
            state = ry(state, q, xs[:, 1] + jnp.tanh(weights[layer, q, 4]))
    state = vqc(state, weights[L - 1])

    sign = 1.0 - 2.0 * ((jnp.arange(dim) >> (nq - 1)) & 1)
    z = jnp.sum(jnp.abs(state) ** 2 * sign[None, :], axis=-1)
    return ((z + 1.0) / 2.0).reshape(B, IS * IS)


if __name__ == "__main__":
    # Generator(n_qubits=4, n_layers=2, generator_update_step=2)
    N_QUBITS = 4
    N_LAYERS_ARG = 2                       # module stores n_layers + 1 total layers
    GEN_UPDATE_STEP = 2
    n_layers_total = N_LAYERS_ARG + 1

    key = jax.random.PRNGKey(0)
    k_w, k_p = jax.random.split(key, 2)
    # TorchLayer default init: uniform in [0, 2*pi)
    weights = jax.random.uniform(
        k_w, (n_layers_total, N_QUBITS, 6),
        minval=0.0, maxval=2.0 * math.pi, dtype=jnp.float32)

    # Shapes exercise: single-step grid, 2-step grid (slab fast path), and a
    # padded multi-slab-per-step grid (in-kernel pl.loop + light-cone pruning).
    for (B, IS) in [(2, 16), (2, 32), (2, 48)]:
        k_p, k_use = jax.random.split(k_p)
        p = jax.random.uniform(k_use, (B, N_QUBITS),
                               minval=0.0, maxval=math.pi, dtype=jnp.float32)
        coords = jnp.linspace(-1.0, 1.0, IS, dtype=jnp.float32)
        gy, gx = jnp.meshgrid(coords, coords, indexing="ij")
        x = jnp.broadcast_to(jnp.stack([gx, gy], axis=-1)[None], (B, IS, IS, 2))

        z = quantum_generator_forward(p, x, weights, GEN_UPDATE_STEP)
        z = jax.block_until_ready(z)
        assert z.shape == (B, IS * IS)

        z_ref = jax.block_until_ready(reference_forward(p, x, weights, GEN_UPDATE_STEP))
        max_err = float(jnp.max(jnp.abs(z - z_ref)))
        assert jnp.allclose(z, z_ref, atol=1e-3, rtol=1e-3), max_err

    print("KERNEL_OK")
</pallas_src>

<mosaic_0001>
module attributes {stable_mosaic.version = 11 : i64} {
  func.func @_quantum_generator_kernel(%arg0: i32, %arg1: memref<120xf32, #tpu.memory_space<smem>>, %arg2: memref<12x8x128xf32, #tpu.memory_space<vmem>>, %arg3: memref<8x128xf32, #tpu.memory_space<vmem>>) attributes {dimension_semantics = [#tpu.dimension_semantics<parallel>], iteration_bounds = array<i64: 1>, scalar_prefetch = 0 : i64, scratch_operands = 0 : i64, tpu.core_type = #tpu.core_type<tc>, window_params = [{transform_indices = @transform_0, window_bounds = array<i64: 120>}, {transform_indices = @transform_1, window_bounds = array<i64: 12, 8, 128>}, {transform_indices = @transform_2, window_bounds = array<i64: 8, 128>}]} {
    %c0 = arith.constant 0 : index
    %c0_0 = arith.constant 0 : index
    %c0_1 = arith.constant 0 : index
    %0 = vector.load %arg2[%c0, %c0_0, %c0_1] : memref<12x8x128xf32, #tpu.memory_space<vmem>>, vector<1x8x128xf32>
    %1 = vector.shape_cast %0 : vector<1x8x128xf32> to vector<8x128xf32>
    %c1 = arith.constant 1 : index
    %c0_2 = arith.constant 0 : index
    %c0_3 = arith.constant 0 : index
    %2 = vector.load %arg2[%c1, %c0_2, %c0_3] : memref<12x8x128xf32, #tpu.memory_space<vmem>>, vector<1x8x128xf32>
    %3 = vector.shape_cast %2 : vector<1x8x128xf32> to vector<8x128xf32>
    %c2 = arith.constant 2 : index
    %c0_4 = arith.constant 0 : index
    %c0_5 = arith.constant 0 : index
    %4 = vector.load %arg2[%c2, %c0_4, %c0_5] : memref<12x8x128xf32, #tpu.memory_space<vmem>>, vector<1x8x128xf32>
    %5 = vector.shape_cast %4 : vector<1x8x128xf32> to vector<8x128xf32>
    %c3 = arith.constant 3 : index
    %c0_6 = arith.constant 0 : index
    %c0_7 = arith.constant 0 : index
    %6 = vector.load %arg2[%c3, %c0_6, %c0_7] : memref<12x8x128xf32, #tpu.memory_space<vmem>>, vector<1x8x128xf32>
    %7 = vector.shape_cast %6 : vector<1x8x128xf32> to vector<8x128xf32>
    %c4 = arith.constant 4 : index
    %c0_8 = arith.constant 0 : index
    %c0_9 = arith.constant 0 : index
    %8 = vector.load %arg2[%c4, %c0_8, %c0_9] : memref<12x8x128xf32, #tpu.memory_space<vmem>>, vector<1x8x128xf32>
    %9 = vector.shape_cast %8 : vector<1x8x128xf32> to vector<8x128xf32>
    %c5 = arith.constant 5 : index
    %c0_10 = arith.constant 0 : index
    %c0_11 = arith.constant 0 : index
    %10 = vector.load %arg2[%c5, %c0_10, %c0_11] : memref<12x8x128xf32, #tpu.memory_space<vmem>>, vector<1x8x128xf32>
    %11 = vector.shape_cast %10 : vector<1x8x128xf32> to vector<8x128xf32>
    %c6 = arith.constant 6 : index
    %c0_12 = arith.constant 0 : index
    %c0_13 = arith.constant 0 : index
    %12 = vector.load %arg2[%c6, %c0_12, %c0_13] : memref<12x8x128xf32, #tpu.memory_space<vmem>>, vector<1x8x128xf32>
    %13 = vector.shape_cast %12 : vector<1x8x128xf32> to vector<8x128xf32>
    %c7 = arith.constant 7 : index
    %c0_14 = arith.constant 0 : index
    %c0_15 = arith.constant 0 : index
    %14 = vector.load %arg2[%c7, %c0_14, %c0_15] : memref<12x8x128xf32, #tpu.memory_space<vmem>>, vector<1x8x128xf32>
    %15 = vector.shape_cast %14 : vector<1x8x128xf32> to vector<8x128xf32>
    %c8 = arith.constant 8 : index
    %c0_16 = arith.constant 0 : index
    %c0_17 = arith.constant 0 : index
    %16 = vector.load %arg2[%c8, %c0_16, %c0_17] : memref<12x8x128xf32, #tpu.memory_space<vmem>>, vector<1x8x128xf32>
    %17 = vector.shape_cast %16 : vector<1x8x128xf32> to vector<8x128xf32>
    %c9 = arith.constant 9 : index
    %c0_18 = arith.constant 0 : index
    %c0_19 = arith.constant 0 : index
    %18 = vector.load %arg2[%c9, %c0_18, %c0_19] : memref<12x8x128xf32, #tpu.memory_space<vmem>>, vector<1x8x128xf32>
    %19 = vector.shape_cast %18 : vector<1x8x128xf32> to vector<8x128xf32>
    %c10 = arith.constant 10 : index
    %c0_20 = arith.constant 0 : index
    %c0_21 = arith.constant 0 : index
    %20 = vector.load %arg2[%c10, %c0_20, %c0_21] : memref<12x8x128xf32, #tpu.memory_space<vmem>>, vector<1x8x128xf32>
    %21 = vector.shape_cast %20 : vector<1x8x128xf32> to vector<8x128xf32>
    %c11 = arith.constant 11 : index
    %c0_22 = arith.constant 0 : index
    %c0_23 = arith.constant 0 : index
    %22 = vector.load %arg2[%c11, %c0_22, %c0_23] : memref<12x8x128xf32, #tpu.memory_space<vmem>>, vector<1x8x128xf32>
    %23 = vector.shape_cast %22 : vector<1x8x128xf32> to vector<8x128xf32>
    %cst = arith.constant 0.000000e+00 : f32
    %24 = vector.broadcast %cst : f32 to vector<8x128xf32>
    %25 = arith.subf %24, %11 : vector<8x128xf32>
    %26 = arith.mulf %9, %13 : vector<8x128xf32>
    %27 = arith.mulf %15, %25 : vector<8x128xf32>
    %28 = arith.addf %26, %27 : vector<8x128xf32>
    %29 = arith.mulf %25, %13 : vector<8x128xf32>
    %30 = arith.mulf %15, %9 : vector<8x128xf32>
    %31 = arith.subf %29, %30 : vector<8x128xf32>
    %32 = arith.mulf %28, %17 : vector<8x128xf32>
    %33 = arith.mulf %19, %31 : vector<8x128xf32>
    %34 = arith.addf %32, %33 : vector<8x128xf32>
    %35 = arith.mulf %31, %17 : vector<8x128xf32>
    %36 = arith.mulf %19, %28 : vector<8x128xf32>
    %37 = arith.subf %35, %36 : vector<8x128xf32>
    %38 = arith.mulf %34, %21 : vector<8x128xf32>
    %39 = arith.mulf %23, %37 : vector<8x128xf32>
    %40 = arith.addf %38, %39 : vector<8x128xf32>
    %41 = arith.mulf %37, %21 : vector<8x128xf32>
    %42 = arith.mulf %23, %34 : vector<8x128xf32>
    %43 = arith.subf %41, %42 : vector<8x128xf32>
    %c0_24 = arith.constant 0 : index
    %44 = memref.load %arg1[%c0_24] : memref<120xf32, #tpu.memory_space<smem>>
    %45 = vector.broadcast %44 : f32 to vector<8x128xf32>
    %c1_25 = arith.constant 1 : index
    %46 = memref.load %arg1[%c1_25] : memref<120xf32, #tpu.memory_space<smem>>
    %47 = vector.broadcast %46 : f32 to vector<8x128xf32>
    %48 = arith.mulf %45, %40 : vector<8x128xf32>
    %49 = arith.mulf %45, %43 : vector<8x128xf32>
    %50 = arith.mulf %47, %43 : vector<8x128xf32>
    %51 = arith.mulf %47, %40 : vector<8x128xf32>
    %cst_26 = arith.constant 0.000000e+00 : f32
    %52 = vector.broadcast %cst_26 : f32 to vector<8x128xf32>
    %53 = arith.subf %52, %51 : vector<8x128xf32>
    %c2_27 = arith.constant 2 : index
    %54 = memref.load %arg1[%c2_27] : memref<120xf32, #tpu.memory_space<smem>>
    %55 = vector.broadcast %54 : f32 to vector<8x128xf32>
    %c3_28 = arith.constant 3 : index
    %56 = memref.load %arg1[%c3_28] : memref<120xf32, #tpu.memory_space<smem>>
    %57 = vector.broadcast %56 : f32 to vector<8x128xf32>
    %58 = arith.mulf %48, %55 : vector<8x128xf32>
    %59 = arith.mulf %57, %49 : vector<8x128xf32>
    %60 = arith.addf %58, %59 : vector<8x128xf32>
    %61 = arith.mulf %49, %55 : vector<8x128xf32>
    %62 = arith.mulf %57, %48 : vector<8x128xf32>
    %63 = arith.subf %61, %62 : vector<8x128xf32>
    %64 = arith.mulf %50, %55 : vector<8x128xf32>
    %65 = arith.mulf %57, %53 : vector<8x128xf32>
    %66 = arith.subf %64, %65 : vector<8x128xf32>
    %67 = arith.mulf %53, %55 : vector<8x128xf32>
    %68 = arith.mulf %57, %50 : vector<8x128xf32>
    %69 = arith.addf %67, %68 : vector<8x128xf32>
    %c10_29 = arith.constant 10 : index
    %70 = memref.load %arg1[%c10_29] : memref<120xf32, #tpu.memory_space<smem>>
    %71 = vector.broadcast %70 : f32 to vector<8x128xf32>
    %c11_30 = arith.constant 11 : index
    %72 = memref.load %arg1[%c11_30] : memref<120xf32, #tpu.memory_space<smem>>
    %73 = vector.broadcast %72 : f32 to vector<8x128xf32>
    %74 = arith.mulf %71, %60 : vector<8x128xf32>
    %75 = arith.mulf %71, %63 : vector<8x128xf32>
    %76 = arith.mulf %73, %63 : vector<8x128xf32>
    %77 = arith.mulf %73, %60 : vector<8x128xf32>
    %cst_31 = arith.constant 0.000000e+00 : f32
    %78 = vector.broadcast %cst_31 : f32 to vector<8x128xf32>
    %79 = arith.subf %78, %77 : vector<8x128xf32>
    %80 = arith.mulf %71, %66 : vector<8x128xf32>
    %81 = arith.mulf %71, %69 : vector<8x128xf32>
    %82 = arith.mulf %73, %69 : vector<8x128xf32>
    %83 = arith.mulf %73, %66 : vector<8x128xf32>
    %cst_32 = arith.constant 0.000000e+00 : f32
    %84 = vector.broadcast %cst_32 : f32 to vector<8x128xf32>
    %85 = arith.subf %84, %83 : vector<8x128xf32>
    %c12 = arith.constant 12 : index
    %86 = memref.load %arg1[%c12] : memref<120xf32, #tpu.memory_space<smem>>
    %87 = vector.broadcast %86 : f32 to vector<8x128xf32>
    %c13 = arith.constant 13 : index
    %88 = memref.load %arg1[%c13] : memref<120xf32, #tpu.memory_space<smem>>
    %89 = vector.broadcast %88 : f32 to vector<8x128xf32>
    %90 = arith.mulf %74, %87 : vector<8x128xf32>
    %91 = arith.mulf %89, %75 : vector<8x128xf32>
    %92 = arith.addf %90, %91 : vector<8x128xf32>
    %93 = arith.mulf %75, %87 : vector<8x128xf32>
    %94 = arith.mulf %89, %74 : vector<8x128xf32>
    %95 = arith.subf %93, %94 : vector<8x128xf32>
    %96 = arith.mulf %76, %87 : vector<8x128xf32>
    %97 = arith.mulf %89, %79 : vector<8x128xf32>
    %98 = arith.subf %96, %97 : vector<8x128xf32>
    %99 = arith.mulf %79, %87 : vector<8x128xf32>
    %100 = arith.mulf %89, %76 : vector<8x128xf32>
    %101 = arith.addf %99, %100 : vector<8x128xf32>
    %102 = arith.mulf %80, %87 : vector<8x128xf32>
    %103 = arith.mulf %89, %81 : vector<8x128xf32>
    %104 = arith.addf %102, %103 : vector<8x128xf32>
    %105 = arith.mulf %81, %87 : vector<8x128xf32>
    %106 = arith.mulf %89, %80 : vector<8x128xf32>
    %107 = arith.subf %105, %106 : vector<8x128xf32>
    %108 = arith.mulf %82, %87 : vector<8x128xf32>
    %109 = arith.mulf %89, %85 : vector<8x128xf32>
    %110 = arith.subf %108, %109 : vector<8x128xf32>
    %111 = arith.mulf %85, %87 : vector<8x128xf32>
    %112 = arith.mulf %89, %82 : vector<8x128xf32>
    %113 = arith.addf %111, %112 : vector<8x128xf32>
    %c20 = arith.constant 20 : index
    %114 = memref.load %arg1[%c20] : memref<120xf32, #tpu.memory_space<smem>>
    %115 = vector.broadcast %114 : f32 to vector<8x128xf32>
    %c21 = arith.constant 21 : index
    %116 = memref.load %arg1[%c21] : memref<120xf32, #tpu.memory_space<smem>>
    %117 = vector.broadcast %116 : f32 to vector<8x128xf32>
    %118 = arith.mulf %115, %92 : vector<8x128xf32>
    %119 = arith.mulf %115, %95 : vector<8x128xf32>
    %120 = arith.mulf %117, %95 : vector<8x128xf32>
    %121 = arith.mulf %117, %92 : vector<8x128xf32>
    %cst_33 = arith.constant 0.000000e+00 : f32
    %122 = vector.broadcast %cst_33 : f32 to vector<8x128xf32>
    %123 = arith.subf %122, %121 : vector<8x128xf32>
    %124 = arith.mulf %115, %98 : vector<8x128xf32>
    %125 = arith.mulf %115, %101 : vector<8x128xf32>
    %126 = arith.mulf %117, %101 : vector<8x128xf32>
    %127 = arith.mulf %117, %98 : vector<8x128xf32>
    %cst_34 = arith.constant 0.000000e+00 : f32
    %128 = vector.broadcast %cst_34 : f32 to vector<8x128xf32>
    %129 = arith.subf %128, %127 : vector<8x128xf32>
    %130 = arith.mulf %115, %104 : vector<8x128xf32>
    %131 = arith.mulf %115, %107 : vector<8x128xf32>
    %132 = arith.mulf %117, %107 : vector<8x128xf32>
    %133 = arith.mulf %117, %104 : vector<8x128xf32>
    %cst_35 = arith.constant 0.000000e+00 : f32
    %134 = vector.broadcast %cst_35 : f32 to vector<8x128xf32>
    %135 = arith.subf %134, %133 : vector<8x128xf32>
    %136 = arith.mulf %115, %110 : vector<8x128xf32>
    %137 = arith.mulf %115, %113 : vector<8x128xf32>
    %138 = arith.mulf %117, %113 : vector<8x128xf32>
    %139 = arith.mulf %117, %110 : vector<8x128xf32>
    %cst_36 = arith.constant 0.000000e+00 : f32
    %140 = vector.broadcast %cst_36 : f32 to vector<8x128xf32>
    %141 = arith.subf %140, %139 : vector<8x128xf32>
    %c22 = arith.constant 22 : index
    %142 = memref.load %arg1[%c22] : memref<120xf32, #tpu.memory_space<smem>>
    %143 = vector.broadcast %142 : f32 to vector<8x128xf32>
    %c23 = arith.constant 23 : index
    %144 = memref.load %arg1[%c23] : memref<120xf32, #tpu.memory_space<smem>>
    %145 = vector.broadcast %144 : f32 to vector<8x128xf32>
    %146 = arith.mulf %118, %143 : vector<8x128xf32>
    %147 = arith.mulf %145, %119 : vector<8x128xf32>
    %148 = arith.addf %146, %147 : vector<8x128xf32>
    %149 = arith.mulf %119, %143 : vector<8x128xf32>
    %150 = arith.mulf %145, %118 : vector<8x128xf32>
    %151 = arith.subf %149, %150 : vector<8x128xf32>
    %152 = arith.mulf %120, %143 : vector<8x128xf32>
    %153 = arith.mulf %145, %123 : vector<8x128xf32>
    %154 = arith.subf %152, %153 : vector<8x128xf32>
    %155 = arith.mulf %123, %143 : vector<8x128xf32>
    %156 = arith.mulf %145, %120 : vector<8x128xf32>
    %157 = arith.addf %155, %156 : vector<8x128xf32>
    %158 = arith.mulf %124, %143 : vector<8x128xf32>
    %159 = arith.mulf %145, %125 : vector<8x128xf32>
    %160 = arith.addf %158, %159 : vector<8x128xf32>
    %161 = arith.mulf %125, %143 : vector<8x128xf32>
    %162 = arith.mulf %145, %124 : vector<8x128xf32>
    %163 = arith.subf %161, %162 : vector<8x128xf32>
    %164 = arith.mulf %126, %143 : vector<8x128xf32>
    %165 = arith.mulf %145, %129 : vector<8x128xf32>
    %166 = arith.subf %164, %165 : vector<8x128xf32>
    %167 = arith.mulf %129, %143 : vector<8x128xf32>
    %168 = arith.mulf %145, %126 : vector<8x128xf32>
    %169 = arith.addf %167, %168 : vector<8x128xf32>
    %170 = arith.mulf %130, %143 : vector<8x128xf32>
    %171 = arith.mulf %145, %131 : vector<8x128xf32>
    %172 = arith.addf %170, %171 : vector<8x128xf32>
    %173 = arith.mulf %131, %143 : vector<8x128xf32>
    %174 = arith.mulf %145, %130 : vector<8x128xf32>
    %175 = arith.subf %173, %174 : vector<8x128xf32>
    %176 = arith.mulf %132, %143 : vector<8x128xf32>
    %177 = arith.mulf %145, %135 : vector<8x128xf32>
    %178 = arith.subf %176, %177 : vector<8x128xf32>
    %179 = arith.mulf %135, %143 : vector<8x128xf32>
    %180 = arith.mulf %145, %132 : vector<8x128xf32>
    %181 = arith.addf %179, %180 : vector<8x128xf32>
    %182 = arith.mulf %136, %143 : vector<8x128xf32>
    %183 = arith.mulf %145, %137 : vector<8x128xf32>
    %184 = arith.addf %182, %183 : vector<8x128xf32>
    %185 = arith.mulf %137, %143 : vector<8x128xf32>
    %186 = arith.mulf %145, %136 : vector<8x128xf32>
    %187 = arith.subf %185, %186 : vector<8x128xf32>
    %188 = arith.mulf %138, %143 : vector<8x128xf32>
    %189 = arith.mulf %145, %141 : vector<8x128xf32>
    %190 = arith.subf %188, %189 : vector<8x128xf32>
    %191 = arith.mulf %141, %143 : vector<8x128xf32>
    %192 = arith.mulf %145, %138 : vector<8x128xf32>
    %193 = arith.addf %191, %192 : vector<8x128xf32>
    %c30 = arith.constant 30 : index
    %194 = memref.load %arg1[%c30] : memref<120xf32, #tpu.memory_space<smem>>
    %195 = vector.broadcast %194 : f32 to vector<8x128xf32>
    %c31 = arith.constant 31 : index
    %196 = memref.load %arg1[%c31] : memref<120xf32, #tpu.memory_space<smem>>
    %197 = vector.broadcast %196 : f32 to vector<8x128xf32>
    %198 = arith.mulf %195, %148 : vector<8x128xf32>
    %199 = arith.mulf %195, %151 : vector<8x128xf32>
    %200 = arith.mulf %197, %151 : vector<8x128xf32>
    %201 = arith.mulf %197, %148 : vector<8x128xf32>
    %cst_37 = arith.constant 0.000000e+00 : f32
    %202 = vector.broadcast %cst_37 : f32 to vector<8x128xf32>
    %203 = arith.subf %202, %201 : vector<8x128xf32>
    %204 = arith.mulf %195, %154 : vector<8x128xf32>
    %205 = arith.mulf %195, %157 : vector<8x128xf32>
    %206 = arith.mulf %197, %157 : vector<8x128xf32>
    %207 = arith.mulf %197, %154 : vector<8x128xf32>
    %cst_38 = arith.constant 0.000000e+00 : f32
    %208 = vector.broadcast %cst_38 : f32 to vector<8x128xf32>
    %209 = arith.subf %208, %207 : vector<8x128xf32>
    %210 = arith.mulf %195, %160 : vector<8x128xf32>
    %211 = arith.mulf %195, %163 : vector<8x128xf32>
    %212 = arith.mulf %197, %163 : vector<8x128xf32>
    %213 = arith.mulf %197, %160 : vector<8x128xf32>
    %cst_39 = arith.constant 0.000000e+00 : f32
    %214 = vector.broadcast %cst_39 : f32 to vector<8x128xf32>
    %215 = arith.subf %214, %213 : vector<8x128xf32>
    %216 = arith.mulf %195, %166 : vector<8x128xf32>
    %217 = arith.mulf %195, %169 : vector<8x128xf32>
    %218 = arith.mulf %197, %169 : vector<8x128xf32>
    %219 = arith.mulf %197, %166 : vector<8x128xf32>
    %cst_40 = arith.constant 0.000000e+00 : f32
    %220 = vector.broadcast %cst_40 : f32 to vector<8x128xf32>
    %221 = arith.subf %220, %219 : vector<8x128xf32>
    %222 = arith.mulf %195, %172 : vector<8x128xf32>
    %223 = arith.mulf %195, %175 : vector<8x128xf32>
    %224 = arith.mulf %197, %175 : vector<8x128xf32>
    %225 = arith.mulf %197, %172 : vector<8x128xf32>
    %cst_41 = arith.constant 0.000000e+00 : f32
    %226 = vector.broadcast %cst_41 : f32 to vector<8x128xf32>
    %227 = arith.subf %226, %225 : vector<8x128xf32>
    %228 = arith.mulf %195, %178 : vector<8x128xf32>
    %229 = arith.mulf %195, %181 : vector<8x128xf32>
    %230 = arith.mulf %197, %181 : vector<8x128xf32>
    %231 = arith.mulf %197, %178 : vector<8x128xf32>
    %cst_42 = arith.constant 0.000000e+00 : f32
    %232 = vector.broadcast %cst_42 : f32 to vector<8x128xf32>
    %233 = arith.subf %232, %231 : vector<8x128xf32>
    %234 = arith.mulf %195, %184 : vector<8x128xf32>
    %235 = arith.mulf %195, %187 : vector<8x128xf32>
    %236 = arith.mulf %197, %187 : vector<8x128xf32>
    %237 = arith.mulf %197, %184 : vector<8x128xf32>
    %cst_43 = arith.constant 0.000000e+00 : f32
    %238 = vector.broadcast %cst_43 : f32 to vector<8x128xf32>
    %239 = arith.subf %238, %237 : vector<8x128xf32>
    %240 = arith.mulf %195, %190 : vector<8x128xf32>
    %241 = arith.mulf %195, %193 : vector<8x128xf32>
    %242 = arith.mulf %197, %193 : vector<8x128xf32>
    %243 = arith.mulf %197, %190 : vector<8x128xf32>
    %cst_44 = arith.constant 0.000000e+00 : f32
    %244 = vector.broadcast %cst_44 : f32 to vector<8x128xf32>
    %245 = arith.subf %244, %243 : vector<8x128xf32>
    %c32 = arith.constant 32 : index
    %246 = memref.load %arg1[%c32] : memref<120xf32, #tpu.memory_space<smem>>
    %247 = vector.broadcast %246 : f32 to vector<8x128xf32>
    %c33 = arith.constant 33 : index
    %248 = memref.load %arg1[%c33] : memref<120xf32, #tpu.memory_space<smem>>
    %249 = vector.broadcast %248 : f32 to vector<8x128xf32>
    %250 = arith.mulf %198, %247 : vector<8x128xf32>
    %251 = arith.mulf %249, %199 : vector<8x128xf32>
    %252 = arith.addf %250, %251 : vector<8x128xf32>
    %253 = arith.mulf %199, %247 : vector<8x128xf32>
    %254 = arith.mulf %249, %198 : vector<8x128xf32>
    %255 = arith.subf %253, %254 : vector<8x128xf32>
    %256 = arith.mulf %200, %247 : vector<8x128xf32>
    %257 = arith.mulf %249, %203 : vector<8x128xf32>
    %258 = arith.subf %256, %257 : vector<8x128xf32>
    %259 = arith.mulf %203, %247 : vector<8x128xf32>
    %260 = arith.mulf %249, %200 : vector<8x128xf32>
    %261 = arith.addf %259, %260 : vector<8x128xf32>
    %262 = arith.mulf %204, %247 : vector<8x128xf32>
    %263 = arith.mulf %249, %205 : vector<8x128xf32>
    %264 = arith.addf %262, %263 : vector<8x128xf32>
    %265 = arith.mulf %205, %247 : vector<8x128xf32>
    %266 = arith.mulf %249, %204 : vector<8x128xf32>
    %267 = arith.subf %265, %266 : vector<8x128xf32>
    %268 = arith.mulf %206, %247 : vector<8x128xf32>
    %269 = arith.mulf %249, %209 : vector<8x128xf32>
    %270 = arith.subf %268, %269 : vector<8x128xf32>
    %271 = arith.mulf %209, %247 : vector<8x128xf32>
    %272 = arith.mulf %249, %206 : vector<8x128xf32>
    %273 = arith.addf %271, %272 : vector<8x128xf32>
    %274 = arith.mulf %210, %247 : vector<8x128xf32>
    %275 = arith.mulf %249, %211 : vector<8x128xf32>
    %276 = arith.addf %274, %275 : vector<8x128xf32>
    %277 = arith.mulf %211, %247 : vector<8x128xf32>
    %278 = arith.mulf %249, %210 : vector<8x128xf32>
    %279 = arith.subf %277, %278 : vector<8x128xf32>
    %280 = arith.mulf %212, %247 : vector<8x128xf32>
    %281 = arith.mulf %249, %215 : vector<8x128xf32>
    %282 = arith.subf %280, %281 : vector<8x128xf32>
    %283 = arith.mulf %215, %247 : vector<8x128xf32>
    %284 = arith.mulf %249, %212 : vector<8x128xf32>
    %285 = arith.addf %283, %284 : vector<8x128xf32>
    %286 = arith.mulf %216, %247 : vector<8x128xf32>
    %287 = arith.mulf %249, %217 : vector<8x128xf32>
    %288 = arith.addf %286, %287 : vector<8x128xf32>
    %289 = arith.mulf %217, %247 : vector<8x128xf32>
    %290 = arith.mulf %249, %216 : vector<8x128xf32>
    %291 = arith.subf %289, %290 : vector<8x128xf32>
    %292 = arith.mulf %218, %247 : vector<8x128xf32>
    %293 = arith.mulf %249, %221 : vector<8x128xf32>
    %294 = arith.subf %292, %293 : vector<8x128xf32>
    %295 = arith.mulf %221, %247 : vector<8x128xf32>
    %296 = arith.mulf %249, %218 : vector<8x128xf32>
    %297 = arith.addf %295, %296 : vector<8x128xf32>
    %298 = arith.mulf %222, %247 : vector<8x128xf32>
    %299 = arith.mulf %249, %223 : vector<8x128xf32>
    %300 = arith.addf %298, %299 : vector<8x128xf32>
    %301 = arith.mulf %223, %247 : vector<8x128xf32>
    %302 = arith.mulf %249, %222 : vector<8x128xf32>
    %303 = arith.subf %301, %302 : vector<8x128xf32>
    %304 = arith.mulf %224, %247 : vector<8x128xf32>
    %305 = arith.mulf %249, %227 : vector<8x128xf32>
    %306 = arith.subf %304, %305 : vector<8x128xf32>
    %307 = arith.mulf %227, %247 : vector<8x128xf32>
    %308 = arith.mulf %249, %224 : vector<8x128xf32>
    %309 = arith.addf %307, %308 : vector<8x128xf32>
    %310 = arith.mulf %228, %247 : vector<8x128xf32>
    %311 = arith.mulf %249, %229 : vector<8x128xf32>
    %312 = arith.addf %310, %311 : vector<8x128xf32>
    %313 = arith.mulf %229, %247 : vector<8x128xf32>
    %314 = arith.mulf %249, %228 : vector<8x128xf32>
    %315 = arith.subf %313, %314 : vector<8x128xf32>
    %316 = arith.mulf %230, %247 : vector<8x128xf32>
    %317 = arith.mulf %249, %233 : vector<8x128xf32>
    %318 = arith.subf %316, %317 : vector<8x128xf32>
    %319 = arith.mulf %233, %247 : vector<8x128xf32>
    %320 = arith.mulf %249, %230 : vector<8x128xf32>
    %321 = arith.addf %319, %320 : vector<8x128xf32>
    %322 = arith.mulf %234, %247 : vector<8x128xf32>
    %323 = arith.mulf %249, %235 : vector<8x128xf32>
    %324 = arith.addf %322, %323 : vector<8x128xf32>
    %325 = arith.mulf %235, %247 : vector<8x128xf32>
    %326 = arith.mulf %249, %234 : vector<8x128xf32>
    %327 = arith.subf %325, %326 : vector<8x128xf32>
    %328 = arith.mulf %236, %247 : vector<8x128xf32>
    %329 = arith.mulf %249, %239 : vector<8x128xf32>
    %330 = arith.subf %328, %329 : vector<8x128xf32>
    %331 = arith.mulf %239, %247 : vector<8x128xf32>
    %332 = arith.mulf %249, %236 : vector<8x128xf32>
    %333 = arith.addf %331, %332 : vector<8x128xf32>
    %334 = arith.mulf %240, %247 : vector<8x128xf32>
    %335 = arith.mulf %249, %241 : vector<8x128xf32>
    %336 = arith.addf %334, %335 : vector<8x128xf32>
    %337 = arith.mulf %241, %247 : vector<8x128xf32>
    %338 = arith.mulf %249, %240 : vector<8x128xf32>
    %339 = arith.subf %337, %338 : vector<8x128xf32>
    %340 = arith.mulf %242, %247 : vector<8x128xf32>
    %341 = arith.mulf %249, %245 : vector<8x128xf32>
    %342 = arith.subf %340, %341 : vector<8x128xf32>
    %343 = arith.mulf %245, %247 : vector<8x128xf32>
    %344 = arith.mulf %249, %242 : vector<8x128xf32>
    %345 = arith.addf %343, %344 : vector<8x128xf32>
    %c4_45 = arith.constant 4 : index
    %346 = memref.load %arg1[%c4_45] : memref<120xf32, #tpu.memory_space<smem>>
    %347 = vector.broadcast %346 : f32 to vector<8x128xf32>
    %c5_46 = arith.constant 5 : index
    %348 = memref.load %arg1[%c5_46] : memref<120xf32, #tpu.memory_space<smem>>
    %349 = vector.broadcast %348 : f32 to vector<8x128xf32>
    %350 = arith.mulf %347, %258 : vector<8x128xf32>
    %351 = arith.mulf %349, %309 : vector<8x128xf32>
    %352 = arith.addf %350, %351 : vector<8x128xf32>
    %353 = arith.mulf %347, %261 : vector<8x128xf32>
    %354 = arith.mulf %349, %306 : vector<8x128xf32>
    %355 = arith.subf %353, %354 : vector<8x128xf32>
    %356 = arith.mulf %347, %306 : vector<8x128xf32>
    %357 = arith.mulf %349, %261 : vector<8x128xf32>
    %358 = arith.addf %356, %357 : vector<8x128xf32>
    %359 = arith.mulf %347, %309 : vector<8x128xf32>
    %360 = arith.mulf %349, %258 : vector<8x128xf32>
    %361 = arith.subf %359, %360 : vector<8x128xf32>
    %362 = arith.mulf %347, %270 : vector<8x128xf32>
    %363 = arith.mulf %349, %321 : vector<8x128xf32>
    %364 = arith.addf %362, %363 : vector<8x128xf32>
    %365 = arith.mulf %347, %273 : vector<8x128xf32>
    %366 = arith.mulf %349, %318 : vector<8x128xf32>
    %367 = arith.subf %365, %366 : vector<8x128xf32>
    %368 = arith.mulf %347, %318 : vector<8x128xf32>
    %369 = arith.mulf %349, %273 : vector<8x128xf32>
    %370 = arith.addf %368, %369 : vector<8x128xf32>
    %371 = arith.mulf %347, %321 : vector<8x128xf32>
    %372 = arith.mulf %349, %270 : vector<8x128xf32>
    %373 = arith.subf %371, %372 : vector<8x128xf32>
    %374 = arith.mulf %347, %282 : vector<8x128xf32>
    %375 = arith.mulf %349, %333 : vector<8x128xf32>
    %376 = arith.addf %374, %375 : vector<8x128xf32>
    %377 = arith.mulf %347, %285 : vector<8x128xf32>
    %378 = arith.mulf %349, %330 : vector<8x128xf32>
    %379 = arith.subf %377, %378 : vector<8x128xf32>
    %380 = arith.mulf %347, %330 : vector<8x128xf32>
    %381 = arith.mulf %349, %285 : vector<8x128xf32>
    %382 = arith.addf %380, %381 : vector<8x128xf32>
    %383 = arith.mulf %347, %333 : vector<8x128xf32>
    %384 = arith.mulf %349, %282 : vector<8x128xf32>
    %385 = arith.subf %383, %384 : vector<8x128xf32>
    %386 = arith.mulf %347, %294 : vector<8x128xf32>
    %387 = arith.mulf %349, %345 : vector<8x128xf32>
    %388 = arith.addf %386, %387 : vector<8x128xf32>
    %389 = arith.mulf %347, %297 : vector<8x128xf32>
    %390 = arith.mulf %349, %342 : vector<8x128xf32>
    %391 = arith.subf %389, %390 : vector<8x128xf32>
    %392 = arith.mulf %347, %342 : vector<8x128xf32>
    %393 = arith.mulf %349, %297 : vector<8x128xf32>
    %394 = arith.addf %392, %393 : vector<8x128xf32>
    %395 = arith.mulf %347, %345 : vector<8x128xf32>
    %396 = arith.mulf %349, %294 : vector<8x128xf32>
    %397 = arith.subf %395, %396 : vector<8x128xf32>
    %c14 = arith.constant 14 : index
    %398 = memref.load %arg1[%c14] : memref<120xf32, #tpu.memory_space<smem>>
    %399 = vector.broadcast %398 : f32 to vector<8x128xf32>
    %c15 = arith.constant 15 : index
    %400 = memref.load %arg1[%c15] : memref<120xf32, #tpu.memory_space<smem>>
    %401 = vector.broadcast %400 : f32 to vector<8x128xf32>
    %402 = arith.mulf %399, %264 : vector<8x128xf32>
    %403 = arith.mulf %401, %367 : vector<8x128xf32>
    %404 = arith.addf %402, %403 : vector<8x128xf32>
    %405 = arith.mulf %399, %267 : vector<8x128xf32>
    %406 = arith.mulf %401, %364 : vector<8x128xf32>
    %407 = arith.subf %405, %406 : vector<8x128xf32>
    %408 = arith.mulf %399, %364 : vector<8x128xf32>
    %409 = arith.mulf %401, %267 : vector<8x128xf32>
    %410 = arith.addf %408, %409 : vector<8x128xf32>
    %411 = arith.mulf %399, %367 : vector<8x128xf32>
    %412 = arith.mulf %401, %264 : vector<8x128xf32>
    %413 = arith.subf %411, %412 : vector<8x128xf32>
    %414 = arith.mulf %399, %288 : vector<8x128xf32>
    %415 = arith.mulf %401, %391 : vector<8x128xf32>
    %416 = arith.addf %414, %415 : vector<8x128xf32>
    %417 = arith.mulf %399, %291 : vector<8x128xf32>
    %418 = arith.mulf %401, %388 : vector<8x128xf32>
    %419 = arith.subf %417, %418 : vector<8x128xf32>
    %420 = arith.mulf %399, %388 : vector<8x128xf32>
    %421 = arith.mulf %401, %291 : vector<8x128xf32>
    %422 = arith.addf %420, %421 : vector<8x128xf32>
    %423 = arith.mulf %399, %391 : vector<8x128xf32>
    %424 = arith.mulf %401, %288 : vector<8x128xf32>
    %425 = arith.subf %423, %424 : vector<8x128xf32>
    %426 = arith.mulf %399, %312 : vector<8x128xf32>
    %427 = arith.mulf %401, %373 : vector<8x128xf32>
    %428 = arith.addf %426, %427 : vector<8x128xf32>
    %429 = arith.mulf %399, %315 : vector<8x128xf32>
    %430 = arith.mulf %401, %370 : vector<8x128xf32>
    %431 = arith.subf %429, %430 : vector<8x128xf32>
    %432 = arith.mulf %399, %370 : vector<8x128xf32>
    %433 = arith.mulf %401, %315 : vector<8x128xf32>
    %434 = arith.addf %432, %433 : vector<8x128xf32>
    %435 = arith.mulf %399, %373 : vector<8x128xf32>
    %436 = arith.mulf %401, %312 : vector<8x128xf32>
    %437 = arith.subf %435, %436 : vector<8x128xf32>
    %438 = arith.mulf %399, %336 : vector<8x128xf32>
    %439 = arith.mulf %401, %397 : vector<8x128xf32>
    %440 = arith.addf %438, %439 : vector<8x128xf32>
    %441 = arith.mulf %399, %339 : vector<8x128xf32>
    %442 = arith.mulf %401, %394 : vector<8x128xf32>
    %443 = arith.subf %441, %442 : vector<8x128xf32>
    %444 = arith.mulf %399, %394 : vector<8x128xf32>
    %445 = arith.mulf %401, %339 : vector<8x128xf32>
    %446 = arith.addf %444, %445 : vector<8x128xf32>
    %447 = arith.mulf %399, %397 : vector<8x128xf32>
    %448 = arith.mulf %401, %336 : vector<8x128xf32>
    %449 = arith.subf %447, %448 : vector<8x128xf32>
    %c24 = arith.constant 24 : index
    %450 = memref.load %arg1[%c24] : memref<120xf32, #tpu.memory_space<smem>>
    %451 = vector.broadcast %450 : f32 to vector<8x128xf32>
    %c25 = arith.constant 25 : index
    %452 = memref.load %arg1[%c25] : memref<120xf32, #tpu.memory_space<smem>>
    %453 = vector.broadcast %452 : f32 to vector<8x128xf32>
    %454 = arith.mulf %451, %276 : vector<8x128xf32>
    %455 = arith.mulf %453, %419 : vector<8x128xf32>
    %456 = arith.addf %454, %455 : vector<8x128xf32>
    %457 = arith.mulf %451, %279 : vector<8x128xf32>
    %458 = arith.mulf %453, %416 : vector<8x128xf32>
    %459 = arith.subf %457, %458 : vector<8x128xf32>
    %460 = arith.mulf %451, %416 : vector<8x128xf32>
    %461 = arith.mulf %453, %279 : vector<8x128xf32>
    %462 = arith.addf %460, %461 : vector<8x128xf32>
    %463 = arith.mulf %451, %419 : vector<8x128xf32>
    %464 = arith.mulf %453, %276 : vector<8x128xf32>
    %465 = arith.subf %463, %464 : vector<8x128xf32>
    %466 = arith.mulf %451, %376 : vector<8x128xf32>
    %467 = arith.mulf %453, %425 : vector<8x128xf32>
    %468 = arith.addf %466, %467 : vector<8x128xf32>
    %469 = arith.mulf %451, %379 : vector<8x128xf32>
    %470 = arith.mulf %453, %422 : vector<8x128xf32>
    %471 = arith.subf %469, %470 : vector<8x128xf32>
    %472 = arith.mulf %451, %422 : vector<8x128xf32>
    %473 = arith.mulf %453, %379 : vector<8x128xf32>
    %474 = arith.addf %472, %473 : vector<8x128xf32>
    %475 = arith.mulf %451, %425 : vector<8x128xf32>
    %476 = arith.mulf %453, %376 : vector<8x128xf32>
    %477 = arith.subf %475, %476 : vector<8x128xf32>
    %478 = arith.mulf %451, %324 : vector<8x128xf32>
    %479 = arith.mulf %453, %443 : vector<8x128xf32>
    %480 = arith.addf %478, %479 : vector<8x128xf32>
    %481 = arith.mulf %451, %327 : vector<8x128xf32>
    %482 = arith.mulf %453, %440 : vector<8x128xf32>
    %483 = arith.subf %481, %482 : vector<8x128xf32>
    %484 = arith.mulf %451, %440 : vector<8x128xf32>
    %485 = arith.mulf %453, %327 : vector<8x128xf32>
    %486 = arith.addf %484, %485 : vector<8x128xf32>
    %487 = arith.mulf %451, %443 : vector<8x128xf32>
    %488 = arith.mulf %453, %324 : vector<8x128xf32>
    %489 = arith.subf %487, %488 : vector<8x128xf32>
    %490 = arith.mulf %451, %382 : vector<8x128xf32>
    %491 = arith.mulf %453, %449 : vector<8x128xf32>
    %492 = arith.addf %490, %491 : vector<8x128xf32>
    %493 = arith.mulf %451, %385 : vector<8x128xf32>
    %494 = arith.mulf %453, %446 : vector<8x128xf32>
    %495 = arith.subf %493, %494 : vector<8x128xf32>
    %496 = arith.mulf %451, %446 : vector<8x128xf32>
    %497 = arith.mulf %453, %385 : vector<8x128xf32>
    %498 = arith.addf %496, %497 : vector<8x128xf32>
    %499 = arith.mulf %451, %449 : vector<8x128xf32>
    %500 = arith.mulf %453, %382 : vector<8x128xf32>
    %501 = arith.subf %499, %500 : vector<8x128xf32>
    %c34 = arith.constant 34 : index
    %502 = memref.load %arg1[%c34] : memref<120xf32, #tpu.memory_space<smem>>
    %503 = vector.broadcast %502 : f32 to vector<8x128xf32>
    %c35 = arith.constant 35 : index
    %504 = memref.load %arg1[%c35] : memref<120xf32, #tpu.memory_space<smem>>
    %505 = vector.broadcast %504 : f32 to vector<8x128xf32>
    %506 = arith.mulf %503, %300 : vector<8x128xf32>
    %507 = arith.mulf %505, %483 : vector<8x128xf32>
    %508 = arith.addf %506, %507 : vector<8x128xf32>
    %509 = arith.mulf %503, %303 : vector<8x128xf32>
    %510 = arith.mulf %505, %480 : vector<8x128xf32>
    %511 = arith.subf %509, %510 : vector<8x128xf32>
    %512 = arith.mulf %503, %480 : vector<8x128xf32>
    %513 = arith.mulf %505, %303 : vector<8x128xf32>
    %514 = arith.addf %512, %513 : vector<8x128xf32>
    %515 = arith.mulf %503, %483 : vector<8x128xf32>
    %516 = arith.mulf %505, %300 : vector<8x128xf32>
    %517 = arith.subf %515, %516 : vector<8x128xf32>
    %518 = arith.mulf %503, %358 : vector<8x128xf32>
    %519 = arith.mulf %505, %495 : vector<8x128xf32>
    %520 = arith.addf %518, %519 : vector<8x128xf32>
    %521 = arith.mulf %503, %361 : vector<8x128xf32>
    %522 = arith.mulf %505, %492 : vector<8x128xf32>
    %523 = arith.subf %521, %522 : vector<8x128xf32>
    %524 = arith.mulf %503, %492 : vector<8x128xf32>
    %525 = arith.mulf %505, %361 : vector<8x128xf32>
    %526 = arith.addf %524, %525 : vector<8x128xf32>
    %527 = arith.mulf %503, %495 : vector<8x128xf32>
    %528 = arith.mulf %505, %358 : vector<8x128xf32>
    %529 = arith.subf %527, %528 : vector<8x128xf32>
    %530 = arith.mulf %503, %428 : vector<8x128xf32>
    %531 = arith.mulf %505, %489 : vector<8x128xf32>
    %532 = arith.addf %530, %531 : vector<8x128xf32>
    %533 = arith.mulf %503, %431 : vector<8x128xf32>
    %534 = arith.mulf %505, %486 : vector<8x128xf32>
    %535 = arith.subf %533, %534 : vector<8x128xf32>
    %536 = arith.mulf %503, %486 : vector<8x128xf32>
    %537 = arith.mulf %505, %431 : vector<8x128xf32>
    %538 = arith.addf %536, %537 : vector<8x128xf32>
    %539 = arith.mulf %503, %489 : vector<8x128xf32>
    %540 = arith.mulf %505, %428 : vector<8x128xf32>
    %541 = arith.subf %539, %540 : vector<8x128xf32>
    %542 = arith.mulf %503, %434 : vector<8x128xf32>
    %543 = arith.mulf %505, %501 : vector<8x128xf32>
    %544 = arith.addf %542, %543 : vector<8x128xf32>
    %545 = arith.mulf %503, %437 : vector<8x128xf32>
    %546 = arith.mulf %505, %498 : vector<8x128xf32>
    %547 = arith.subf %545, %546 : vector<8x128xf32>
    %548 = arith.mulf %503, %498 : vector<8x128xf32>
    %549 = arith.mulf %505, %437 : vector<8x128xf32>
    %550 = arith.addf %548, %549 : vector<8x128xf32>
    %551 = arith.mulf %503, %501 : vector<8x128xf32>
    %552 = arith.mulf %505, %434 : vector<8x128xf32>
    %553 = arith.subf %551, %552 : vector<8x128xf32>
    %c6_47 = arith.constant 6 : index
    %554 = memref.load %arg1[%c6_47] : memref<120xf32, #tpu.memory_space<smem>>
    %555 = vector.broadcast %554 : f32 to vector<8x128xf32>
    %c7_48 = arith.constant 7 : index
    %556 = memref.load %arg1[%c7_48] : memref<120xf32, #tpu.memory_space<smem>>
    %557 = vector.broadcast %556 : f32 to vector<8x128xf32>
    %558 = arith.mulf %1, %555 : vector<8x128xf32>
    %559 = arith.mulf %3, %557 : vector<8x128xf32>
    %560 = arith.subf %558, %559 : vector<8x128xf32>
    %561 = arith.mulf %3, %555 : vector<8x128xf32>
    %562 = arith.mulf %1, %557 : vector<8x128xf32>
    %563 = arith.addf %561, %562 : vector<8x128xf32>
    %564 = arith.mulf %560, %252 : vector<8x128xf32>
    %565 = arith.mulf %563, %511 : vector<8x128xf32>
    %566 = arith.addf %564, %565 : vector<8x128xf32>
    %567 = arith.mulf %560, %255 : vector<8x128xf32>
    %568 = arith.mulf %563, %508 : vector<8x128xf32>
    %569 = arith.subf %567, %568 : vector<8x128xf32>
    %570 = arith.mulf %560, %508 : vector<8x128xf32>
    %571 = arith.mulf %563, %255 : vector<8x128xf32>
    %572 = arith.addf %570, %571 : vector<8x128xf32>
    %573 = arith.mulf %560, %511 : vector<8x128xf32>
    %574 = arith.mulf %563, %252 : vector<8x128xf32>
    %575 = arith.subf %573, %574 : vector<8x128xf32>
    %576 = arith.mulf %560, %352 : vector<8x128xf32>
    %577 = arith.mulf %563, %523 : vector<8x128xf32>
    %578 = arith.addf %576, %577 : vector<8x128xf32>
    %579 = arith.mulf %560, %355 : vector<8x128xf32>
    %580 = arith.mulf %563, %520 : vector<8x128xf32>
    %581 = arith.subf %579, %580 : vector<8x128xf32>
    %582 = arith.mulf %560, %520 : vector<8x128xf32>
    %583 = arith.mulf %563, %355 : vector<8x128xf32>
    %584 = arith.addf %582, %583 : vector<8x128xf32>
    %585 = arith.mulf %560, %523 : vector<8x128xf32>
    %586 = arith.mulf %563, %352 : vector<8x128xf32>
    %587 = arith.subf %585, %586 : vector<8x128xf32>
    %588 = arith.mulf %560, %404 : vector<8x128xf32>
    %589 = arith.mulf %563, %535 : vector<8x128xf32>
    %590 = arith.addf %588, %589 : vector<8x128xf32>
    %591 = arith.mulf %560, %407 : vector<8x128xf32>
    %592 = arith.mulf %563, %532 : vector<8x128xf32>
    %593 = arith.subf %591, %592 : vector<8x128xf32>
    %594 = arith.mulf %560, %532 : vector<8x128xf32>
    %595 = arith.mulf %563, %407 : vector<8x128xf32>
    %596 = arith.addf %594, %595 : vector<8x128xf32>
    %597 = arith.mulf %560, %535 : vector<8x128xf32>
    %598 = arith.mulf %563, %404 : vector<8x128xf32>
    %599 = arith.subf %597, %598 : vector<8x128xf32>
    %600 = arith.mulf %560, %410 : vector<8x128xf32>
    %601 = arith.mulf %563, %547 : vector<8x128xf32>
    %602 = arith.addf %600, %601 : vector<8x128xf32>
    %603 = arith.mulf %560, %413 : vector<8x128xf32>
    %604 = arith.mulf %563, %544 : vector<8x128xf32>
    %605 = arith.subf %603, %604 : vector<8x128xf32>
    %606 = arith.mulf %560, %544 : vector<8x128xf32>
    %607 = arith.mulf %563, %413 : vector<8x128xf32>
    %608 = arith.addf %606, %607 : vector<8x128xf32>
    %609 = arith.mulf %560, %547 : vector<8x128xf32>
    %610 = arith.mulf %563, %410 : vector<8x128xf32>
    %611 = arith.subf %609, %610 : vector<8x128xf32>
    %612 = arith.mulf %560, %456 : vector<8x128xf32>
    %613 = arith.mulf %563, %517 : vector<8x128xf32>
    %614 = arith.addf %612, %613 : vector<8x128xf32>
    %615 = arith.mulf %560, %459 : vector<8x128xf32>
    %616 = arith.mulf %563, %514 : vector<8x128xf32>
    %617 = arith.subf %615, %616 : vector<8x128xf32>
    %618 = arith.mulf %560, %514 : vector<8x128xf32>
    %619 = arith.mulf %563, %459 : vector<8x128xf32>
    %620 = arith.addf %618, %619 : vector<8x128xf32>
    %621 = arith.mulf %560, %517 : vector<8x128xf32>
    %622 = arith.mulf %563, %456 : vector<8x128xf32>
    %623 = arith.subf %621, %622 : vector<8x128xf32>
    %624 = arith.mulf %560, %468 : vector<8x128xf32>
    %625 = arith.mulf %563, %529 : vector<8x128xf32>
    %626 = arith.addf %624, %625 : vector<8x128xf32>
    %627 = arith.mulf %560, %471 : vector<8x128xf32>
    %628 = arith.mulf %563, %526 : vector<8x128xf32>
    %629 = arith.subf %627, %628 : vector<8x128xf32>
    %630 = arith.mulf %560, %526 : vector<8x128xf32>
    %631 = arith.mulf %563, %471 : vector<8x128xf32>
    %632 = arith.addf %630, %631 : vector<8x128xf32>
    %633 = arith.mulf %560, %529 : vector<8x128xf32>
    %634 = arith.mulf %563, %468 : vector<8x128xf32>
    %635 = arith.subf %633, %634 : vector<8x128xf32>
    %636 = arith.mulf %560, %462 : vector<8x128xf32>
    %637 = arith.mulf %563, %541 : vector<8x128xf32>
    %638 = arith.addf %636, %637 : vector<8x128xf32>
    %639 = arith.mulf %560, %465 : vector<8x128xf32>
    %640 = arith.mulf %563, %538 : vector<8x128xf32>
    %641 = arith.subf %639, %640 : vector<8x128xf32>
    %642 = arith.mulf %560, %538 : vector<8x128xf32>
    %643 = arith.mulf %563, %465 : vector<8x128xf32>
    %644 = arith.addf %642, %643 : vector<8x128xf32>
    %645 = arith.mulf %560, %541 : vector<8x128xf32>
    %646 = arith.mulf %563, %462 : vector<8x128xf32>
    %647 = arith.subf %645, %646 : vector<8x128xf32>
    %648 = arith.mulf %560, %474 : vector<8x128xf32>
    %649 = arith.mulf %563, %553 : vector<8x128xf32>
    %650 = arith.addf %648, %649 : vector<8x128xf32>
    %651 = arith.mulf %560, %477 : vector<8x128xf32>
    %652 = arith.mulf %563, %550 : vector<8x128xf32>
    %653 = arith.subf %651, %652 : vector<8x128xf32>
    %654 = arith.mulf %560, %550 : vector<8x128xf32>
    %655 = arith.mulf %563, %477 : vector<8x128xf32>
    %656 = arith.addf %654, %655 : vector<8x128xf32>
    %657 = arith.mulf %560, %553 : vector<8x128xf32>
    %658 = arith.mulf %563, %474 : vector<8x128xf32>
    %659 = arith.subf %657, %658 : vector<8x128xf32>
    %c16 = arith.constant 16 : index
    %660 = memref.load %arg1[%c16] : memref<120xf32, #tpu.memory_space<smem>>
    %661 = vector.broadcast %660 : f32 to vector<8x128xf32>
    %c17 = arith.constant 17 : index
    %662 = memref.load %arg1[%c17] : memref<120xf32, #tpu.memory_space<smem>>
    %663 = vector.broadcast %662 : f32 to vector<8x128xf32>
    %664 = arith.mulf %1, %661 : vector<8x128xf32>
    %665 = arith.mulf %3, %663 : vector<8x128xf32>
    %666 = arith.subf %664, %665 : vector<8x128xf32>
    %667 = arith.mulf %3, %661 : vector<8x128xf32>
    %668 = arith.mulf %1, %663 : vector<8x128xf32>
    %669 = arith.addf %667, %668 : vector<8x128xf32>
    %670 = arith.mulf %666, %566 : vector<8x128xf32>
    %671 = arith.mulf %669, %617 : vector<8x128xf32>
    %672 = arith.addf %670, %671 : vector<8x128xf32>
    %673 = arith.mulf %666, %569 : vector<8x128xf32>
    %674 = arith.mulf %669, %614 : vector<8x128xf32>
    %675 = arith.subf %673, %674 : vector<8x128xf32>
    %676 = arith.mulf %666, %614 : vector<8x128xf32>
    %677 = arith.mulf %669, %569 : vector<8x128xf32>
    %678 = arith.addf %676, %677 : vector<8x128xf32>
    %679 = arith.mulf %666, %617 : vector<8x128xf32>
    %680 = arith.mulf %669, %566 : vector<8x128xf32>
    %681 = arith.subf %679, %680 : vector<8x128xf32>
    %682 = arith.mulf %666, %578 : vector<8x128xf32>
    %683 = arith.mulf %669, %629 : vector<8x128xf32>
    %684 = arith.addf %682, %683 : vector<8x128xf32>
    %685 = arith.mulf %666, %581 : vector<8x128xf32>
    %686 = arith.mulf %669, %626 : vector<8x128xf32>
    %687 = arith.subf %685, %686 : vector<8x128xf32>
    %688 = arith.mulf %666, %626 : vector<8x128xf32>
    %689 = arith.mulf %669, %581 : vector<8x128xf32>
    %690 = arith.addf %688, %689 : vector<8x128xf32>
    %691 = arith.mulf %666, %629 : vector<8x128xf32>
    %692 = arith.mulf %669, %578 : vector<8x128xf32>
    %693 = arith.subf %691, %692 : vector<8x128xf32>
    %694 = arith.mulf %666, %590 : vector<8x128xf32>
    %695 = arith.mulf %669, %641 : vector<8x128xf32>
    %696 = arith.addf %694, %695 : vector<8x128xf32>
    %697 = arith.mulf %666, %593 : vector<8x128xf32>
    %698 = arith.mulf %669, %638 : vector<8x128xf32>
    %699 = arith.subf %697, %698 : vector<8x128xf32>
    %700 = arith.mulf %666, %638 : vector<8x128xf32>
    %701 = arith.mulf %669, %593 : vector<8x128xf32>
    %702 = arith.addf %700, %701 : vector<8x128xf32>
    %703 = arith.mulf %666, %641 : vector<8x128xf32>
    %704 = arith.mulf %669, %590 : vector<8x128xf32>
    %705 = arith.subf %703, %704 : vector<8x128xf32>
    %706 = arith.mulf %666, %602 : vector<8x128xf32>
    %707 = arith.mulf %669, %653 : vector<8x128xf32>
    %708 = arith.addf %706, %707 : vector<8x128xf32>
    %709 = arith.mulf %666, %605 : vector<8x128xf32>
    %710 = arith.mulf %669, %650 : vector<8x128xf32>
    %711 = arith.subf %709, %710 : vector<8x128xf32>
    %712 = arith.mulf %666, %650 : vector<8x128xf32>
    %713 = arith.mulf %669, %605 : vector<8x128xf32>
    %714 = arith.addf %712, %713 : vector<8x128xf32>
    %715 = arith.mulf %666, %653 : vector<8x128xf32>
    %716 = arith.mulf %669, %602 : vector<8x128xf32>
    %717 = arith.subf %715, %716 : vector<8x128xf32>
    %718 = arith.mulf %666, %572 : vector<8x128xf32>
    %719 = arith.mulf %669, %623 : vector<8x128xf32>
    %720 = arith.addf %718, %719 : vector<8x128xf32>
    %721 = arith.mulf %666, %575 : vector<8x128xf32>
    %722 = arith.mulf %669, %620 : vector<8x128xf32>
    %723 = arith.subf %721, %722 : vector<8x128xf32>
    %724 = arith.mulf %666, %620 : vector<8x128xf32>
    %725 = arith.mulf %669, %575 : vector<8x128xf32>
    %726 = arith.addf %724, %725 : vector<8x128xf32>
    %727 = arith.mulf %666, %623 : vector<8x128xf32>
    %728 = arith.mulf %669, %572 : vector<8x128xf32>
    %729 = arith.subf %727, %728 : vector<8x128xf32>
    %730 = arith.mulf %666, %584 : vector<8x128xf32>
    %731 = arith.mulf %669, %635 : vector<8x128xf32>
    %732 = arith.addf %730, %731 : vector<8x128xf32>
    %733 = arith.mulf %666, %587 : vector<8x128xf32>
    %734 = arith.mulf %669, %632 : vector<8x128xf32>
    %735 = arith.subf %733, %734 : vector<8x128xf32>
    %736 = arith.mulf %666, %632 : vector<8x128xf32>
    %737 = arith.mulf %669, %587 : vector<8x128xf32>
    %738 = arith.addf %736, %737 : vector<8x128xf32>
    %739 = arith.mulf %666, %635 : vector<8x128xf32>
    %740 = arith.mulf %669, %584 : vector<8x128xf32>
    %741 = arith.subf %739, %740 : vector<8x128xf32>
    %742 = arith.mulf %666, %596 : vector<8x128xf32>
    %743 = arith.mulf %669, %647 : vector<8x128xf32>
    %744 = arith.addf %742, %743 : vector<8x128xf32>
    %745 = arith.mulf %666, %599 : vector<8x128xf32>
    %746 = arith.mulf %669, %644 : vector<8x128xf32>
    %747 = arith.subf %745, %746 : vector<8x128xf32>
    %748 = arith.mulf %666, %644 : vector<8x128xf32>
    %749 = arith.mulf %669, %599 : vector<8x128xf32>
    %750 = arith.addf %748, %749 : vector<8x128xf32>
    %751 = arith.mulf %666, %647 : vector<8x128xf32>
    %752 = arith.mulf %669, %596 : vector<8x128xf32>
    %753 = arith.subf %751, %752 : vector<8x128xf32>
    %754 = arith.mulf %666, %608 : vector<8x128xf32>
    %755 = arith.mulf %669, %659 : vector<8x128xf32>
    %756 = arith.addf %754, %755 : vector<8x128xf32>
    %757 = arith.mulf %666, %611 : vector<8x128xf32>
    %758 = arith.mulf %669, %656 : vector<8x128xf32>
    %759 = arith.subf %757, %758 : vector<8x128xf32>
    %760 = arith.mulf %666, %656 : vector<8x128xf32>
    %761 = arith.mulf %669, %611 : vector<8x128xf32>
    %762 = arith.addf %760, %761 : vector<8x128xf32>
    %763 = arith.mulf %666, %659 : vector<8x128xf32>
    %764 = arith.mulf %669, %608 : vector<8x128xf32>
    %765 = arith.subf %763, %764 : vector<8x128xf32>
    %c26 = arith.constant 26 : index
    %766 = memref.load %arg1[%c26] : memref<120xf32, #tpu.memory_space<smem>>
    %767 = vector.broadcast %766 : f32 to vector<8x128xf32>
    %c27 = arith.constant 27 : index
    %768 = memref.load %arg1[%c27] : memref<120xf32, #tpu.memory_space<smem>>
    %769 = vector.broadcast %768 : f32 to vector<8x128xf32>
    %770 = arith.mulf %1, %767 : vector<8x128xf32>
    %771 = arith.mulf %3, %769 : vector<8x128xf32>
    %772 = arith.subf %770, %771 : vector<8x128xf32>
    %773 = arith.mulf %3, %767 : vector<8x128xf32>
    %774 = arith.mulf %1, %769 : vector<8x128xf32>
    %775 = arith.addf %773, %774 : vector<8x128xf32>
    %776 = arith.mulf %772, %672 : vector<8x128xf32>
    %777 = arith.mulf %775, %699 : vector<8x128xf32>
    %778 = arith.addf %776, %777 : vector<8x128xf32>
    %779 = arith.mulf %772, %675 : vector<8x128xf32>
    %780 = arith.mulf %775, %696 : vector<8x128xf32>
    %781 = arith.subf %779, %780 : vector<8x128xf32>
    %782 = arith.mulf %772, %696 : vector<8x128xf32>
    %783 = arith.mulf %775, %675 : vector<8x128xf32>
    %784 = arith.addf %782, %783 : vector<8x128xf32>
    %785 = arith.mulf %772, %699 : vector<8x128xf32>
    %786 = arith.mulf %775, %672 : vector<8x128xf32>
    %787 = arith.subf %785, %786 : vector<8x128xf32>
    %788 = arith.mulf %772, %684 : vector<8x128xf32>
    %789 = arith.mulf %775, %711 : vector<8x128xf32>
    %790 = arith.addf %788, %789 : vector<8x128xf32>
    %791 = arith.mulf %772, %687 : vector<8x128xf32>
    %792 = arith.mulf %775, %708 : vector<8x128xf32>
    %793 = arith.subf %791, %792 : vector<8x128xf32>
    %794 = arith.mulf %772, %708 : vector<8x128xf32>
    %795 = arith.mulf %775, %687 : vector<8x128xf32>
    %796 = arith.addf %794, %795 : vector<8x128xf32>
    %797 = arith.mulf %772, %711 : vector<8x128xf32>
    %798 = arith.mulf %775, %684 : vector<8x128xf32>
    %799 = arith.subf %797, %798 : vector<8x128xf32>
    %800 = arith.mulf %772, %678 : vector<8x128xf32>
    %801 = arith.mulf %775, %705 : vector<8x128xf32>
    %802 = arith.addf %800, %801 : vector<8x128xf32>
    %803 = arith.mulf %772, %681 : vector<8x128xf32>
    %804 = arith.mulf %775, %702 : vector<8x128xf32>
    %805 = arith.subf %803, %804 : vector<8x128xf32>
    %806 = arith.mulf %772, %702 : vector<8x128xf32>
    %807 = arith.mulf %775, %681 : vector<8x128xf32>
    %808 = arith.addf %806, %807 : vector<8x128xf32>
    %809 = arith.mulf %772, %705 : vector<8x128xf32>
    %810 = arith.mulf %775, %678 : vector<8x128xf32>
    %811 = arith.subf %809, %810 : vector<8x128xf32>
    %812 = arith.mulf %772, %690 : vector<8x128xf32>
    %813 = arith.mulf %775, %717 : vector<8x128xf32>
    %814 = arith.addf %812, %813 : vector<8x128xf32>
    %815 = arith.mulf %772, %693 : vector<8x128xf32>
    %816 = arith.mulf %775, %714 : vector<8x128xf32>
    %817 = arith.subf %815, %816 : vector<8x128xf32>
    %818 = arith.mulf %772, %714 : vector<8x128xf32>
    %819 = arith.mulf %775, %693 : vector<8x128xf32>
    %820 = arith.addf %818, %819 : vector<8x128xf32>
    %821 = arith.mulf %772, %717 : vector<8x128xf32>
    %822 = arith.mulf %775, %690 : vector<8x128xf32>
    %823 = arith.subf %821, %822 : vector<8x128xf32>
    %824 = arith.mulf %772, %720 : vector<8x128xf32>
    %825 = arith.mulf %775, %747 : vector<8x128xf32>
    %826 = arith.addf %824, %825 : vector<8x128xf32>
    %827 = arith.mulf %772, %723 : vector<8x128xf32>
    %828 = arith.mulf %775, %744 : vector<8x128xf32>
    %829 = arith.subf %827, %828 : vector<8x128xf32>
    %830 = arith.mulf %772, %744 : vector<8x128xf32>
    %831 = arith.mulf %775, %723 : vector<8x128xf32>
    %832 = arith.addf %830, %831 : vector<8x128xf32>
    %833 = arith.mulf %772, %747 : vector<8x128xf32>
    %834 = arith.mulf %775, %720 : vector<8x128xf32>
    %835 = arith.subf %833, %834 : vector<8x128xf32>
    %836 = arith.mulf %772, %732 : vector<8x128xf32>
    %837 = arith.mulf %775, %759 : vector<8x128xf32>
    %838 = arith.addf %836, %837 : vector<8x128xf32>
    %839 = arith.mulf %772, %735 : vector<8x128xf32>
    %840 = arith.mulf %775, %756 : vector<8x128xf32>
    %841 = arith.subf %839, %840 : vector<8x128xf32>
    %842 = arith.mulf %772, %756 : vector<8x128xf32>
    %843 = arith.mulf %775, %735 : vector<8x128xf32>
    %844 = arith.addf %842, %843 : vector<8x128xf32>
    %845 = arith.mulf %772, %759 : vector<8x128xf32>
    %846 = arith.mulf %775, %732 : vector<8x128xf32>
    %847 = arith.subf %845, %846 : vector<8x128xf32>
    %848 = arith.mulf %772, %726 : vector<8x128xf32>
    %849 = arith.mulf %775, %753 : vector<8x128xf32>
    %850 = arith.addf %848, %849 : vector<8x128xf32>
    %851 = arith.mulf %772, %729 : vector<8x128xf32>
    %852 = arith.mulf %775, %750 : vector<8x128xf32>
    %853 = arith.subf %851, %852 : vector<8x128xf32>
    %854 = arith.mulf %772, %750 : vector<8x128xf32>
    %855 = arith.mulf %775, %729 : vector<8x128xf32>
    %856 = arith.addf %854, %855 : vector<8x128xf32>
    %857 = arith.mulf %772, %753 : vector<8x128xf32>
    %858 = arith.mulf %775, %726 : vector<8x128xf32>
    %859 = arith.subf %857, %858 : vector<8x128xf32>
    %860 = arith.mulf %772, %738 : vector<8x128xf32>
    %861 = arith.mulf %775, %765 : vector<8x128xf32>
    %862 = arith.addf %860, %861 : vector<8x128xf32>
    %863 = arith.mulf %772, %741 : vector<8x128xf32>
    %864 = arith.mulf %775, %762 : vector<8x128xf32>
    %865 = arith.subf %863, %864 : vector<8x128xf32>
    %866 = arith.mulf %772, %762 : vector<8x128xf32>
    %867 = arith.mulf %775, %741 : vector<8x128xf32>
    %868 = arith.addf %866, %867 : vector<8x128xf32>
    %869 = arith.mulf %772, %765 : vector<8x128xf32>
    %870 = arith.mulf %775, %738 : vector<8x128xf32>
    %871 = arith.subf %869, %870 : vector<8x128xf32>
    %c36 = arith.constant 36 : index
    %872 = memref.load %arg1[%c36] : memref<120xf32, #tpu.memory_space<smem>>
    %873 = vector.broadcast %872 : f32 to vector<8x128xf32>
    %c37 = arith.constant 37 : index
    %874 = memref.load %arg1[%c37] : memref<120xf32, #tpu.memory_space<smem>>
    %875 = vector.broadcast %874 : f32 to vector<8x128xf32>
    %876 = arith.mulf %1, %873 : vector<8x128xf32>
    %877 = arith.mulf %3, %875 : vector<8x128xf32>
    %878 = arith.subf %876, %877 : vector<8x128xf32>
    %879 = arith.mulf %3, %873 : vector<8x128xf32>
    %880 = arith.mulf %1, %875 : vector<8x128xf32>
    %881 = arith.addf %879, %880 : vector<8x128xf32>
    %882 = arith.mulf %878, %778 : vector<8x128xf32>
    %883 = arith.mulf %881, %793 : vector<8x128xf32>
    %884 = arith.addf %882, %883 : vector<8x128xf32>
    %885 = arith.mulf %878, %781 : vector<8x128xf32>
    %886 = arith.mulf %881, %790 : vector<8x128xf32>
    %887 = arith.subf %885, %886 : vector<8x128xf32>
    %888 = arith.mulf %878, %790 : vector<8x128xf32>
    %889 = arith.mulf %881, %781 : vector<8x128xf32>
    %890 = arith.addf %888, %889 : vector<8x128xf32>
    %891 = arith.mulf %878, %793 : vector<8x128xf32>
    %892 = arith.mulf %881, %778 : vector<8x128xf32>
    %893 = arith.subf %891, %892 : vector<8x128xf32>
    %894 = arith.mulf %878, %784 : vector<8x128xf32>
    %895 = arith.mulf %881, %799 : vector<8x128xf32>
    %896 = arith.addf %894, %895 : vector<8x128xf32>
    %897 = arith.mulf %878, %787 : vector<8x128xf32>
    %898 = arith.mulf %881, %796 : vector<8x128xf32>
    %899 = arith.subf %897, %898 : vector<8x128xf32>
    %900 = arith.mulf %878, %796 : vector<8x128xf32>
    %901 = arith.mulf %881, %787 : vector<8x128xf32>
    %902 = arith.addf %900, %901 : vector<8x128xf32>
    %903 = arith.mulf %878, %799 : vector<8x128xf32>
    %904 = arith.mulf %881, %784 : vector<8x128xf32>
    %905 = arith.subf %903, %904 : vector<8x128xf32>
    %906 = arith.mulf %878, %802 : vector<8x128xf32>
    %907 = arith.mulf %881, %817 : vector<8x128xf32>
    %908 = arith.addf %906, %907 : vector<8x128xf32>
    %909 = arith.mulf %878, %805 : vector<8x128xf32>
    %910 = arith.mulf %881, %814 : vector<8x128xf32>
    %911 = arith.subf %909, %910 : vector<8x128xf32>
    %912 = arith.mulf %878, %814 : vector<8x128xf32>
    %913 = arith.mulf %881, %805 : vector<8x128xf32>
    %914 = arith.addf %912, %913 : vector<8x128xf32>
    %915 = arith.mulf %878, %817 : vector<8x128xf32>
    %916 = arith.mulf %881, %802 : vector<8x128xf32>
    %917 = arith.subf %915, %916 : vector<8x128xf32>
    %918 = arith.mulf %878, %808 : vector<8x128xf32>
    %919 = arith.mulf %881, %823 : vector<8x128xf32>
    %920 = arith.addf %918, %919 : vector<8x128xf32>
    %921 = arith.mulf %878, %811 : vector<8x128xf32>
    %922 = arith.mulf %881, %820 : vector<8x128xf32>
    %923 = arith.subf %921, %922 : vector<8x128xf32>
    %924 = arith.mulf %878, %820 : vector<8x128xf32>
    %925 = arith.mulf %881, %811 : vector<8x128xf32>
    %926 = arith.addf %924, %925 : vector<8x128xf32>
    %927 = arith.mulf %878, %823 : vector<8x128xf32>
    %928 = arith.mulf %881, %808 : vector<8x128xf32>
    %929 = arith.subf %927, %928 : vector<8x128xf32>
    %930 = arith.mulf %878, %826 : vector<8x128xf32>
    %931 = arith.mulf %881, %841 : vector<8x128xf32>
    %932 = arith.addf %930, %931 : vector<8x128xf32>
    %933 = arith.mulf %878, %829 : vector<8x128xf32>
    %934 = arith.mulf %881, %838 : vector<8x128xf32>
    %935 = arith.subf %933, %934 : vector<8x128xf32>
    %936 = arith.mulf %878, %838 : vector<8x128xf32>
    %937 = arith.mulf %881, %829 : vector<8x128xf32>
    %938 = arith.addf %936, %937 : vector<8x128xf32>
    %939 = arith.mulf %878, %841 : vector<8x128xf32>
    %940 = arith.mulf %881, %826 : vector<8x128xf32>
    %941 = arith.subf %939, %940 : vector<8x128xf32>
    %942 = arith.mulf %878, %832 : vector<8x128xf32>
    %943 = arith.mulf %881, %847 : vector<8x128xf32>
    %944 = arith.addf %942, %943 : vector<8x128xf32>
    %945 = arith.mulf %878, %835 : vector<8x128xf32>
    %946 = arith.mulf %881, %844 : vector<8x128xf32>
    %947 = arith.subf %945, %946 : vector<8x128xf32>
    %948 = arith.mulf %878, %844 : vector<8x128xf32>
    %949 = arith.mulf %881, %835 : vector<8x128xf32>
    %950 = arith.addf %948, %949 : vector<8x128xf32>
    %951 = arith.mulf %878, %847 : vector<8x128xf32>
    %952 = arith.mulf %881, %832 : vector<8x128xf32>
    %953 = arith.subf %951, %952 : vector<8x128xf32>
    %954 = arith.mulf %878, %850 : vector<8x128xf32>
    %955 = arith.mulf %881, %865 : vector<8x128xf32>
    %956 = arith.addf %954, %955 : vector<8x128xf32>
    %957 = arith.mulf %878, %853 : vector<8x128xf32>
    %958 = arith.mulf %881, %862 : vector<8x128xf32>
    %959 = arith.subf %957, %958 : vector<8x128xf32>
    %960 = arith.mulf %878, %862 : vector<8x128xf32>
    %961 = arith.mulf %881, %853 : vector<8x128xf32>
    %962 = arith.addf %960, %961 : vector<8x128xf32>
    %963 = arith.mulf %878, %865 : vector<8x128xf32>
    %964 = arith.mulf %881, %850 : vector<8x128xf32>
    %965 = arith.subf %963, %964 : vector<8x128xf32>
    %966 = arith.mulf %878, %856 : vector<8x128xf32>
    %967 = arith.mulf %881, %871 : vector<8x128xf32>
    %968 = arith.addf %966, %967 : vector<8x128xf32>
    %969 = arith.mulf %878, %859 : vector<8x128xf32>
    %970 = arith.mulf %881, %868 : vector<8x128xf32>
    %971 = arith.subf %969, %970 : vector<8x128xf32>
    %972 = arith.mulf %878, %868 : vector<8x128xf32>
    %973 = arith.mulf %881, %859 : vector<8x128xf32>
    %974 = arith.addf %972, %973 : vector<8x128xf32>
    %975 = arith.mulf %878, %871 : vector<8x128xf32>
    %976 = arith.mulf %881, %856 : vector<8x128xf32>
    %977 = arith.subf %975, %976 : vector<8x128xf32>
    %c8_49 = arith.constant 8 : index
    %978 = memref.load %arg1[%c8_49] : memref<120xf32, #tpu.memory_space<smem>>
    %979 = vector.broadcast %978 : f32 to vector<8x128xf32>
    %c9_50 = arith.constant 9 : index
    %980 = memref.load %arg1[%c9_50] : memref<120xf32, #tpu.memory_space<smem>>
    %981 = vector.broadcast %980 : f32 to vector<8x128xf32>
    %982 = arith.mulf %5, %979 : vector<8x128xf32>
    %983 = arith.mulf %7, %981 : vector<8x128xf32>
    %984 = arith.subf %982, %983 : vector<8x128xf32>
    %985 = arith.mulf %7, %979 : vector<8x128xf32>
    %986 = arith.mulf %5, %981 : vector<8x128xf32>
    %987 = arith.addf %985, %986 : vector<8x128xf32>
    %988 = arith.mulf %984, %884 : vector<8x128xf32>
    %989 = arith.mulf %987, %932 : vector<8x128xf32>
    %990 = arith.subf %988, %989 : vector<8x128xf32>
    %991 = arith.mulf %984, %887 : vector<8x128xf32>
    %992 = arith.mulf %987, %935 : vector<8x128xf32>
    %993 = arith.subf %991, %992 : vector<8x128xf32>
    %994 = arith.mulf %987, %884 : vector<8x128xf32>
    %995 = arith.mulf %984, %932 : vector<8x128xf32>
    %996 = arith.addf %994, %995 : vector<8x128xf32>
    %997 = arith.mulf %987, %887 : vector<8x128xf32>
    %998 = arith.mulf %984, %935 : vector<8x128xf32>
    %999 = arith.addf %997, %998 : vector<8x128xf32>
    %1000 = arith.mulf %984, %890 : vector<8x128xf32>
    %1001 = arith.mulf %987, %938 : vector<8x128xf32>
    %1002 = arith.subf %1000, %1001 : vector<8x128xf32>
    %1003 = arith.mulf %984, %893 : vector<8x128xf32>
    %1004 = arith.mulf %987, %941 : vector<8x128xf32>
    %1005 = arith.subf %1003, %1004 : vector<8x128xf32>
    %1006 = arith.mulf %987, %890 : vector<8x128xf32>
    %1007 = arith.mulf %984, %938 : vector<8x128xf32>
    %1008 = arith.addf %1006, %1007 : vector<8x128xf32>
    %1009 = arith.mulf %987, %893 : vector<8x128xf32>
    %1010 = arith.mulf %984, %941 : vector<8x128xf32>
    %1011 = arith.addf %1009, %1010 : vector<8x128xf32>
    %1012 = arith.mulf %984, %896 : vector<8x128xf32>
    %1013 = arith.mulf %987, %944 : vector<8x128xf32>
    %1014 = arith.subf %1012, %1013 : vector<8x128xf32>
    %1015 = arith.mulf %984, %899 : vector<8x128xf32>
    %1016 = arith.mulf %987, %947 : vector<8x128xf32>
    %1017 = arith.subf %1015, %1016 : vector<8x128xf32>
    %1018 = arith.mulf %987, %896 : vector<8x128xf32>
    %1019 = arith.mulf %984, %944 : vector<8x128xf32>
    %1020 = arith.addf %1018, %1019 : vector<8x128xf32>
    %1021 = arith.mulf %987, %899 : vector<8x128xf32>
    %1022 = arith.mulf %984, %947 : vector<8x128xf32>
    %1023 = arith.addf %1021, %1022 : vector<8x128xf32>
    %1024 = arith.mulf %984, %902 : vector<8x128xf32>
    %1025 = arith.mulf %987, %950 : vector<8x128xf32>
    %1026 = arith.subf %1024, %1025 : vector<8x128xf32>
    %1027 = arith.mulf %984, %905 : vector<8x128xf32>
    %1028 = arith.mulf %987, %953 : vector<8x128xf32>
    %1029 = arith.subf %1027, %1028 : vector<8x128xf32>
    %1030 = arith.mulf %987, %902 : vector<8x128xf32>
    %1031 = arith.mulf %984, %950 : vector<8x128xf32>
    %1032 = arith.addf %1030, %1031 : vector<8x128xf32>
    %1033 = arith.mulf %987, %905 : vector<8x128xf32>
    %1034 = arith.mulf %984, %953 : vector<8x128xf32>
    %1035 = arith.addf %1033, %1034 : vector<8x128xf32>
    %1036 = arith.mulf %984, %908 : vector<8x128xf32>
    %1037 = arith.mulf %987, %956 : vector<8x128xf32>
    %1038 = arith.subf %1036, %1037 : vector<8x128xf32>
    %1039 = arith.mulf %984, %911 : vector<8x128xf32>
    %1040 = arith.mulf %987, %959 : vector<8x128xf32>
    %1041 = arith.subf %1039, %1040 : vector<8x128xf32>
    %1042 = arith.mulf %987, %908 : vector<8x128xf32>
    %1043 = arith.mulf %984, %956 : vector<8x128xf32>
    %1044 = arith.addf %1042, %1043 : vector<8x128xf32>
    %1045 = arith.mulf %987, %911 : vector<8x128xf32>
    %1046 = arith.mulf %984, %959 : vector<8x128xf32>
    %1047 = arith.addf %1045, %1046 : vector<8x128xf32>
    %1048 = arith.mulf %984, %914 : vector<8x128xf32>
    %1049 = arith.mulf %987, %962 : vector<8x128xf32>
    %1050 = arith.subf %1048, %1049 : vector<8x128xf32>
    %1051 = arith.mulf %984, %917 : vector<8x128xf32>
    %1052 = arith.mulf %987, %965 : vector<8x128xf32>
    %1053 = arith.subf %1051, %1052 : vector<8x128xf32>
    %1054 = arith.mulf %987, %914 : vector<8x128xf32>
    %1055 = arith.mulf %984, %962 : vector<8x128xf32>
    %1056 = arith.addf %1054, %1055 : vector<8x128xf32>
    %1057 = arith.mulf %987, %917 : vector<8x128xf32>
    %1058 = arith.mulf %984, %965 : vector<8x128xf32>
    %1059 = arith.addf %1057, %1058 : vector<8x128xf32>
    %1060 = arith.mulf %984, %920 : vector<8x128xf32>
    %1061 = arith.mulf %987, %968 : vector<8x128xf32>
    %1062 = arith.subf %1060, %1061 : vector<8x128xf32>
    %1063 = arith.mulf %984, %923 : vector<8x128xf32>
    %1064 = arith.mulf %987, %971 : vector<8x128xf32>
    %1065 = arith.subf %1063, %1064 : vector<8x128xf32>
    %1066 = arith.mulf %987, %920 : vector<8x128xf32>
    %1067 = arith.mulf %984, %968 : vector<8x128xf32>
    %1068 = arith.addf %1066, %1067 : vector<8x128xf32>
    %1069 = arith.mulf %987, %923 : vector<8x128xf32>
    %1070 = arith.mulf %984, %971 : vector<8x128xf32>
    %1071 = arith.addf %1069, %1070 : vector<8x128xf32>
    %1072 = arith.mulf %984, %926 : vector<8x128xf32>
    %1073 = arith.mulf %987, %974 : vector<8x128xf32>
    %1074 = arith.subf %1072, %1073 : vector<8x128xf32>
    %1075 = arith.mulf %984, %929 : vector<8x128xf32>
    %1076 = arith.mulf %987, %977 : vector<8x128xf32>
    %1077 = arith.subf %1075, %1076 : vector<8x128xf32>
    %1078 = arith.mulf %987, %926 : vector<8x128xf32>
    %1079 = arith.mulf %984, %974 : vector<8x128xf32>
    %1080 = arith.addf %1078, %1079 : vector<8x128xf32>
    %1081 = arith.mulf %987, %929 : vector<8x128xf32>
    %1082 = arith.mulf %984, %977 : vector<8x128xf32>
    %1083 = arith.addf %1081, %1082 : vector<8x128xf32>
    %c18 = arith.constant 18 : index
    %1084 = memref.load %arg1[%c18] : memref<120xf32, #tpu.memory_space<smem>>
    %1085 = vector.broadcast %1084 : f32 to vector<8x128xf32>
    %c19 = arith.constant 19 : index
    %1086 = memref.load %arg1[%c19] : memref<120xf32, #tpu.memory_space<smem>>
    %1087 = vector.broadcast %1086 : f32 to vector<8x128xf32>
    %1088 = arith.mulf %5, %1085 : vector<8x128xf32>
    %1089 = arith.mulf %7, %1087 : vector<8x128xf32>
    %1090 = arith.subf %1088, %1089 : vector<8x128xf32>
    %1091 = arith.mulf %7, %1085 : vector<8x128xf32>
    %1092 = arith.mulf %5, %1087 : vector<8x128xf32>
    %1093 = arith.addf %1091, %1092 : vector<8x128xf32>
    %1094 = arith.mulf %1090, %990 : vector<8x128xf32>
    %1095 = arith.mulf %1093, %1038 : vector<8x128xf32>
    %1096 = arith.subf %1094, %1095 : vector<8x128xf32>
    %1097 = arith.mulf %1090, %993 : vector<8x128xf32>
    %1098 = arith.mulf %1093, %1041 : vector<8x128xf32>
    %1099 = arith.subf %1097, %1098 : vector<8x128xf32>
    %1100 = arith.mulf %1093, %990 : vector<8x128xf32>
    %1101 = arith.mulf %1090, %1038 : vector<8x128xf32>
    %1102 = arith.addf %1100, %1101 : vector<8x128xf32>
    %1103 = arith.mulf %1093, %993 : vector<8x128xf32>
    %1104 = arith.mulf %1090, %1041 : vector<8x128xf32>
    %1105 = arith.addf %1103, %1104 : vector<8x128xf32>
    %1106 = arith.mulf %1090, %1002 : vector<8x128xf32>
    %1107 = arith.mulf %1093, %1050 : vector<8x128xf32>
    %1108 = arith.subf %1106, %1107 : vector<8x128xf32>
    %1109 = arith.mulf %1090, %1005 : vector<8x128xf32>
    %1110 = arith.mulf %1093, %1053 : vector<8x128xf32>
    %1111 = arith.subf %1109, %1110 : vector<8x128xf32>
    %1112 = arith.mulf %1093, %1002 : vector<8x128xf32>
    %1113 = arith.mulf %1090, %1050 : vector<8x128xf32>
    %1114 = arith.addf %1112, %1113 : vector<8x128xf32>
    %1115 = arith.mulf %1093, %1005 : vector<8x128xf32>
    %1116 = arith.mulf %1090, %1053 : vector<8x128xf32>
    %1117 = arith.addf %1115, %1116 : vector<8x128xf32>
    %1118 = arith.mulf %1090, %1014 : vector<8x128xf32>
    %1119 = arith.mulf %1093, %1062 : vector<8x128xf32>
    %1120 = arith.subf %1118, %1119 : vector<8x128xf32>
    %1121 = arith.mulf %1090, %1017 : vector<8x128xf32>
    %1122 = arith.mulf %1093, %1065 : vector<8x128xf32>
    %1123 = arith.subf %1121, %1122 : vector<8x128xf32>
    %1124 = arith.mulf %1093, %1014 : vector<8x128xf32>
    %1125 = arith.mulf %1090, %1062 : vector<8x128xf32>
    %1126 = arith.addf %1124, %1125 : vector<8x128xf32>
    %1127 = arith.mulf %1093, %1017 : vector<8x128xf32>
    %1128 = arith.mulf %1090, %1065 : vector<8x128xf32>
    %1129 = arith.addf %1127, %1128 : vector<8x128xf32>
    %1130 = arith.mulf %1090, %1026 : vector<8x128xf32>
    %1131 = arith.mulf %1093, %1074 : vector<8x128xf32>
    %1132 = arith.subf %1130, %1131 : vector<8x128xf32>
    %1133 = arith.mulf %1090, %1029 : vector<8x128xf32>
    %1134 = arith.mulf %1093, %1077 : vector<8x128xf32>
    %1135 = arith.subf %1133, %1134 : vector<8x128xf32>
    %1136 = arith.mulf %1093, %1026 : vector<8x128xf32>
    %1137 = arith.mulf %1090, %1074 : vector<8x128xf32>
    %1138 = arith.addf %1136, %1137 : vector<8x128xf32>
    %1139 = arith.mulf %1093, %1029 : vector<8x128xf32>
    %1140 = arith.mulf %1090, %1077 : vector<8x128xf32>
    %1141 = arith.addf %1139, %1140 : vector<8x128xf32>
    %1142 = arith.mulf %1090, %996 : vector<8x128xf32>
    %1143 = arith.mulf %1093, %1044 : vector<8x128xf32>
    %1144 = arith.subf %1142, %1143 : vector<8x128xf32>
    %1145 = arith.mulf %1090, %999 : vector<8x128xf32>
    %1146 = arith.mulf %1093, %1047 : vector<8x128xf32>
    %1147 = arith.subf %1145, %1146 : vector<8x128xf32>
    %1148 = arith.mulf %1093, %996 : vector<8x128xf32>
    %1149 = arith.mulf %1090, %1044 : vector<8x128xf32>
    %1150 = arith.addf %1148, %1149 : vector<8x128xf32>
    %1151 = arith.mulf %1093, %999 : vector<8x128xf32>
    %1152 = arith.mulf %1090, %1047 : vector<8x128xf32>
    %1153 = arith.addf %1151, %1152 : vector<8x128xf32>
    %1154 = arith.mulf %1090, %1008 : vector<8x128xf32>
    %1155 = arith.mulf %1093, %1056 : vector<8x128xf32>
    %1156 = arith.subf %1154, %1155 : vector<8x128xf32>
    %1157 = arith.mulf %1090, %1011 : vector<8x128xf32>
    %1158 = arith.mulf %1093, %1059 : vector<8x128xf32>
    %1159 = arith.subf %1157, %1158 : vector<8x128xf32>
    %1160 = arith.mulf %1093, %1008 : vector<8x128xf32>
    %1161 = arith.mulf %1090, %1056 : vector<8x128xf32>
    %1162 = arith.addf %1160, %1161 : vector<8x128xf32>
    %1163 = arith.mulf %1093, %1011 : vector<8x128xf32>
    %1164 = arith.mulf %1090, %1059 : vector<8x128xf32>
    %1165 = arith.addf %1163, %1164 : vector<8x128xf32>
    %1166 = arith.mulf %1090, %1020 : vector<8x128xf32>
    %1167 = arith.mulf %1093, %1068 : vector<8x128xf32>
    %1168 = arith.subf %1166, %1167 : vector<8x128xf32>
    %1169 = arith.mulf %1090, %1023 : vector<8x128xf32>
    %1170 = arith.mulf %1093, %1071 : vector<8x128xf32>
    %1171 = arith.subf %1169, %1170 : vector<8x128xf32>
    %1172 = arith.mulf %1093, %1020 : vector<8x128xf32>
    %1173 = arith.mulf %1090, %1068 : vector<8x128xf32>
    %1174 = arith.addf %1172, %1173 : vector<8x128xf32>
    %1175 = arith.mulf %1093, %1023 : vector<8x128xf32>
    %1176 = arith.mulf %1090, %1071 : vector<8x128xf32>
    %1177 = arith.addf %1175, %1176 : vector<8x128xf32>
    %1178 = arith.mulf %1090, %1032 : vector<8x128xf32>
    %1179 = arith.mulf %1093, %1080 : vector<8x128xf32>
    %1180 = arith.subf %1178, %1179 : vector<8x128xf32>
    %1181 = arith.mulf %1090, %1035 : vector<8x128xf32>
    %1182 = arith.mulf %1093, %1083 : vector<8x128xf32>
    %1183 = arith.subf %1181, %1182 : vector<8x128xf32>
    %1184 = arith.mulf %1093, %1032 : vector<8x128xf32>
    %1185 = arith.mulf %1090, %1080 : vector<8x128xf32>
    %1186 = arith.addf %1184, %1185 : vector<8x128xf32>
    %1187 = arith.mulf %1093, %1035 : vector<8x128xf32>
    %1188 = arith.mulf %1090, %1083 : vector<8x128xf32>
    %1189 = arith.addf %1187, %1188 : vector<8x128xf32>
    %c28 = arith.constant 28 : index
    %1190 = memref.load %arg1[%c28] : memref<120xf32, #tpu.memory_space<smem>>
    %1191 = vector.broadcast %1190 : f32 to vector<8x128xf32>
    %c29 = arith.constant 29 : index
    %1192 = memref.load %arg1[%c29] : memref<120xf32, #tpu.memory_space<smem>>
    %1193 = vector.broadcast %1192 : f32 to vector<8x128xf32>
    %1194 = arith.mulf %5, %1191 : vector<8x128xf32>
    %1195 = arith.mulf %7, %1193 : vector<8x128xf32>
    %1196 = arith.subf %1194, %1195 : vector<8x128xf32>
    %1197 = arith.mulf %7, %1191 : vector<8x128xf32>
    %1198 = arith.mulf %5, %1193 : vector<8x128xf32>
    %1199 = arith.addf %1197, %1198 : vector<8x128xf32>
    %1200 = arith.mulf %1196, %1096 : vector<8x128xf32>
    %1201 = arith.mulf %1199, %1120 : vector<8x128xf32>
    %1202 = arith.subf %1200, %1201 : vector<8x128xf32>
    %1203 = arith.mulf %1196, %1099 : vector<8x128xf32>
    %1204 = arith.mulf %1199, %1123 : vector<8x128xf32>
    %1205 = arith.subf %1203, %1204 : vector<8x128xf32>
    %1206 = arith.mulf %1199, %1096 : vector<8x128xf32>
    %1207 = arith.mulf %1196, %1120 : vector<8x128xf32>
    %1208 = arith.addf %1206, %1207 : vector<8x128xf32>
    %1209 = arith.mulf %1199, %1099 : vector<8x128xf32>
    %1210 = arith.mulf %1196, %1123 : vector<8x128xf32>
    %1211 = arith.addf %1209, %1210 : vector<8x128xf32>
    %1212 = arith.mulf %1196, %1108 : vector<8x128xf32>
    %1213 = arith.mulf %1199, %1132 : vector<8x128xf32>
    %1214 = arith.subf %1212, %1213 : vector<8x128xf32>
    %1215 = arith.mulf %1196, %1111 : vector<8x128xf32>
    %1216 = arith.mulf %1199, %1135 : vector<8x128xf32>
    %1217 = arith.subf %1215, %1216 : vector<8x128xf32>
    %1218 = arith.mulf %1199, %1108 : vector<8x128xf32>
    %1219 = arith.mulf %1196, %1132 : vector<8x128xf32>
    %1220 = arith.addf %1218, %1219 : vector<8x128xf32>
    %1221 = arith.mulf %1199, %1111 : vector<8x128xf32>
    %1222 = arith.mulf %1196, %1135 : vector<8x128xf32>
    %1223 = arith.addf %1221, %1222 : vector<8x128xf32>
    %1224 = arith.mulf %1196, %1102 : vector<8x128xf32>
    %1225 = arith.mulf %1199, %1126 : vector<8x128xf32>
    %1226 = arith.subf %1224, %1225 : vector<8x128xf32>
    %1227 = arith.mulf %1196, %1105 : vector<8x128xf32>
    %1228 = arith.mulf %1199, %1129 : vector<8x128xf32>
    %1229 = arith.subf %1227, %1228 : vector<8x128xf32>
    %1230 = arith.mulf %1199, %1102 : vector<8x128xf32>
    %1231 = arith.mulf %1196, %1126 : vector<8x128xf32>
    %1232 = arith.addf %1230, %1231 : vector<8x128xf32>
    %1233 = arith.mulf %1199, %1105 : vector<8x128xf32>
    %1234 = arith.mulf %1196, %1129 : vector<8x128xf32>
    %1235 = arith.addf %1233, %1234 : vector<8x128xf32>
    %1236 = arith.mulf %1196, %1114 : vector<8x128xf32>
    %1237 = arith.mulf %1199, %1138 : vector<8x128xf32>
    %1238 = arith.subf %1236, %1237 : vector<8x128xf32>
    %1239 = arith.mulf %1196, %1117 : vector<8x128xf32>
    %1240 = arith.mulf %1199, %1141 : vector<8x128xf32>
    %1241 = arith.subf %1239, %1240 : vector<8x128xf32>
    %1242 = arith.mulf %1199, %1114 : vector<8x128xf32>
    %1243 = arith.mulf %1196, %1138 : vector<8x128xf32>
    %1244 = arith.addf %1242, %1243 : vector<8x128xf32>
    %1245 = arith.mulf %1199, %1117 : vector<8x128xf32>
    %1246 = arith.mulf %1196, %1141 : vector<8x128xf32>
    %1247 = arith.addf %1245, %1246 : vector<8x128xf32>
    %1248 = arith.mulf %1196, %1144 : vector<8x128xf32>
    %1249 = arith.mulf %1199, %1168 : vector<8x128xf32>
    %1250 = arith.subf %1248, %1249 : vector<8x128xf32>
    %1251 = arith.mulf %1196, %1147 : vector<8x128xf32>
    %1252 = arith.mulf %1199, %1171 : vector<8x128xf32>
    %1253 = arith.subf %1251, %1252 : vector<8x128xf32>
    %1254 = arith.mulf %1199, %1144 : vector<8x128xf32>
    %1255 = arith.mulf %1196, %1168 : vector<8x128xf32>
    %1256 = arith.addf %1254, %1255 : vector<8x128xf32>
    %1257 = arith.mulf %1199, %1147 : vector<8x128xf32>
    %1258 = arith.mulf %1196, %1171 : vector<8x128xf32>
    %1259 = arith.addf %1257, %1258 : vector<8x128xf32>
    %1260 = arith.mulf %1196, %1156 : vector<8x128xf32>
    %1261 = arith.mulf %1199, %1180 : vector<8x128xf32>
    %1262 = arith.subf %1260, %1261 : vector<8x128xf32>
    %1263 = arith.mulf %1196, %1159 : vector<8x128xf32>
    %1264 = arith.mulf %1199, %1183 : vector<8x128xf32>
    %1265 = arith.subf %1263, %1264 : vector<8x128xf32>
    %1266 = arith.mulf %1199, %1156 : vector<8x128xf32>
    %1267 = arith.mulf %1196, %1180 : vector<8x128xf32>
    %1268 = arith.addf %1266, %1267 : vector<8x128xf32>
    %1269 = arith.mulf %1199, %1159 : vector<8x128xf32>
    %1270 = arith.mulf %1196, %1183 : vector<8x128xf32>
    %1271 = arith.addf %1269, %1270 : vector<8x128xf32>
    %1272 = arith.mulf %1196, %1150 : vector<8x128xf32>
    %1273 = arith.mulf %1199, %1174 : vector<8x128xf32>
    %1274 = arith.subf %1272, %1273 : vector<8x128xf32>
    %1275 = arith.mulf %1196, %1153 : vector<8x128xf32>
    %1276 = arith.mulf %1199, %1177 : vector<8x128xf32>
    %1277 = arith.subf %1275, %1276 : vector<8x128xf32>
    %1278 = arith.mulf %1199, %1150 : vector<8x128xf32>
    %1279 = arith.mulf %1196, %1174 : vector<8x128xf32>
    %1280 = arith.addf %1278, %1279 : vector<8x128xf32>
    %1281 = arith.mulf %1199, %1153 : vector<8x128xf32>
    %1282 = arith.mulf %1196, %1177 : vector<8x128xf32>
    %1283 = arith.addf %1281, %1282 : vector<8x128xf32>
    %1284 = arith.mulf %1196, %1162 : vector<8x128xf32>
    %1285 = arith.mulf %1199, %1186 : vector<8x128xf32>
    %1286 = arith.subf %1284, %1285 : vector<8x128xf32>
    %1287 = arith.mulf %1196, %1165 : vector<8x128xf32>
    %1288 = arith.mulf %1199, %1189 : vector<8x128xf32>
    %1289 = arith.subf %1287, %1288 : vector<8x128xf32>
    %1290 = arith.mulf %1199, %1162 : vector<8x128xf32>
    %1291 = arith.mulf %1196, %1186 : vector<8x128xf32>
    %1292 = arith.addf %1290, %1291 : vector<8x128xf32>
    %1293 = arith.mulf %1199, %1165 : vector<8x128xf32>
    %1294 = arith.mulf %1196, %1189 : vector<8x128xf32>
    %1295 = arith.addf %1293, %1294 : vector<8x128xf32>
    %c38 = arith.constant 38 : index
    %1296 = memref.load %arg1[%c38] : memref<120xf32, #tpu.memory_space<smem>>
    %1297 = vector.broadcast %1296 : f32 to vector<8x128xf32>
    %c39 = arith.constant 39 : index
    %1298 = memref.load %arg1[%c39] : memref<120xf32, #tpu.memory_space<smem>>
    %1299 = vector.broadcast %1298 : f32 to vector<8x128xf32>
    %1300 = arith.mulf %5, %1297 : vector<8x128xf32>
    %1301 = arith.mulf %7, %1299 : vector<8x128xf32>
    %1302 = arith.subf %1300, %1301 : vector<8x128xf32>
    %1303 = arith.mulf %7, %1297 : vector<8x128xf32>
    %1304 = arith.mulf %5, %1299 : vector<8x128xf32>
    %1305 = arith.addf %1303, %1304 : vector<8x128xf32>
    %1306 = arith.mulf %1302, %1202 : vector<8x128xf32>
    %1307 = arith.mulf %1305, %1214 : vector<8x128xf32>
    %1308 = arith.subf %1306, %1307 : vector<8x128xf32>
    %1309 = arith.mulf %1302, %1205 : vector<8x128xf32>
    %1310 = arith.mulf %1305, %1217 : vector<8x128xf32>
    %1311 = arith.subf %1309, %1310 : vector<8x128xf32>
    %1312 = arith.mulf %1305, %1202 : vector<8x128xf32>
    %1313 = arith.mulf %1302, %1214 : vector<8x128xf32>
    %1314 = arith.addf %1312, %1313 : vector<8x128xf32>
    %1315 = arith.mulf %1305, %1205 : vector<8x128xf32>
    %1316 = arith.mulf %1302, %1217 : vector<8x128xf32>
    %1317 = arith.addf %1315, %1316 : vector<8x128xf32>
    %1318 = arith.mulf %1302, %1208 : vector<8x128xf32>
    %1319 = arith.mulf %1305, %1220 : vector<8x128xf32>
    %1320 = arith.subf %1318, %1319 : vector<8x128xf32>
    %1321 = arith.mulf %1302, %1211 : vector<8x128xf32>
    %1322 = arith.mulf %1305, %1223 : vector<8x128xf32>
    %1323 = arith.subf %1321, %1322 : vector<8x128xf32>
    %1324 = arith.mulf %1305, %1208 : vector<8x128xf32>
    %1325 = arith.mulf %1302, %1220 : vector<8x128xf32>
    %1326 = arith.addf %1324, %1325 : vector<8x128xf32>
    %1327 = arith.mulf %1305, %1211 : vector<8x128xf32>
    %1328 = arith.mulf %1302, %1223 : vector<8x128xf32>
    %1329 = arith.addf %1327, %1328 : vector<8x128xf32>
    %1330 = arith.mulf %1302, %1226 : vector<8x128xf32>
    %1331 = arith.mulf %1305, %1238 : vector<8x128xf32>
    %1332 = arith.subf %1330, %1331 : vector<8x128xf32>
    %1333 = arith.mulf %1302, %1229 : vector<8x128xf32>
    %1334 = arith.mulf %1305, %1241 : vector<8x128xf32>
    %1335 = arith.subf %1333, %1334 : vector<8x128xf32>
    %1336 = arith.mulf %1305, %1226 : vector<8x128xf32>
    %1337 = arith.mulf %1302, %1238 : vector<8x128xf32>
    %1338 = arith.addf %1336, %1337 : vector<8x128xf32>
    %1339 = arith.mulf %1305, %1229 : vector<8x128xf32>
    %1340 = arith.mulf %1302, %1241 : vector<8x128xf32>
    %1341 = arith.addf %1339, %1340 : vector<8x128xf32>
    %1342 = arith.mulf %1302, %1232 : vector<8x128xf32>
    %1343 = arith.mulf %1305, %1244 : vector<8x128xf32>
    %1344 = arith.subf %1342, %1343 : vector<8x128xf32>
    %1345 = arith.mulf %1302, %1235 : vector<8x128xf32>
    %1346 = arith.mulf %1305, %1247 : vector<8x128xf32>
    %1347 = arith.subf %1345, %1346 : vector<8x128xf32>
    %1348 = arith.mulf %1305, %1232 : vector<8x128xf32>
    %1349 = arith.mulf %1302, %1244 : vector<8x128xf32>
    %1350 = arith.addf %1348, %1349 : vector<8x128xf32>
    %1351 = arith.mulf %1305, %1235 : vector<8x128xf32>
    %1352 = arith.mulf %1302, %1247 : vector<8x128xf32>
    %1353 = arith.addf %1351, %1352 : vector<8x128xf32>
    %1354 = arith.mulf %1302, %1250 : vector<8x128xf32>
    %1355 = arith.mulf %1305, %1262 : vector<8x128xf32>
    %1356 = arith.subf %1354, %1355 : vector<8x128xf32>
    %1357 = arith.mulf %1302, %1253 : vector<8x128xf32>
    %1358 = arith.mulf %1305, %1265 : vector<8x128xf32>
    %1359 = arith.subf %1357, %1358 : vector<8x128xf32>
    %1360 = arith.mulf %1305, %1250 : vector<8x128xf32>
    %1361 = arith.mulf %1302, %1262 : vector<8x128xf32>
    %1362 = arith.addf %1360, %1361 : vector<8x128xf32>
    %1363 = arith.mulf %1305, %1253 : vector<8x128xf32>
    %1364 = arith.mulf %1302, %1265 : vector<8x128xf32>
    %1365 = arith.addf %1363, %1364 : vector<8x128xf32>
    %1366 = arith.mulf %1302, %1256 : vector<8x128xf32>
    %1367 = arith.mulf %1305, %1268 : vector<8x128xf32>
    %1368 = arith.subf %1366, %1367 : vector<8x128xf32>
    %1369 = arith.mulf %1302, %1259 : vector<8x128xf32>
    %1370 = arith.mulf %1305, %1271 : vector<8x128xf32>
    %1371 = arith.subf %1369, %1370 : vector<8x128xf32>
    %1372 = arith.mulf %1305, %1256 : vector<8x128xf32>
    %1373 = arith.mulf %1302, %1268 : vector<8x128xf32>
    %1374 = arith.addf %1372, %1373 : vector<8x128xf32>
    %1375 = arith.mulf %1305, %1259 : vector<8x128xf32>
    %1376 = arith.mulf %1302, %1271 : vector<8x128xf32>
    %1377 = arith.addf %1375, %1376 : vector<8x128xf32>
    %1378 = arith.mulf %1302, %1274 : vector<8x128xf32>
    %1379 = arith.mulf %1305, %1286 : vector<8x128xf32>
    %1380 = arith.subf %1378, %1379 : vector<8x128xf32>
    %1381 = arith.mulf %1302, %1277 : vector<8x128xf32>
    %1382 = arith.mulf %1305, %1289 : vector<8x128xf32>
    %1383 = arith.subf %1381, %1382 : vector<8x128xf32>
    %1384 = arith.mulf %1305, %1274 : vector<8x128xf32>
    %1385 = arith.mulf %1302, %1286 : vector<8x128xf32>
    %1386 = arith.addf %1384, %1385 : vector<8x128xf32>
    %1387 = arith.mulf %1305, %1277 : vector<8x128xf32>
    %1388 = arith.mulf %1302, %1289 : vector<8x128xf32>
    %1389 = arith.addf %1387, %1388 : vector<8x128xf32>
    %1390 = arith.mulf %1302, %1280 : vector<8x128xf32>
    %1391 = arith.mulf %1305, %1292 : vector<8x128xf32>
    %1392 = arith.subf %1390, %1391 : vector<8x128xf32>
    %1393 = arith.mulf %1302, %1283 : vector<8x128xf32>
    %1394 = arith.mulf %1305, %1295 : vector<8x128xf32>
    %1395 = arith.subf %1393, %1394 : vector<8x128xf32>
    %1396 = arith.mulf %1305, %1280 : vector<8x128xf32>
    %1397 = arith.mulf %1302, %1292 : vector<8x128xf32>
    %1398 = arith.addf %1396, %1397 : vector<8x128xf32>
    %1399 = arith.mulf %1305, %1283 : vector<8x128xf32>
    %1400 = arith.mulf %1302, %1295 : vector<8x128xf32>
    %1401 = arith.addf %1399, %1400 : vector<8x128xf32>
    %c40 = arith.constant 40 : index
    %1402 = memref.load %arg1[%c40] : memref<120xf32, #tpu.memory_space<smem>>
    %1403 = vector.broadcast %1402 : f32 to vector<8x128xf32>
    %c41 = arith.constant 41 : index
    %1404 = memref.load %arg1[%c41] : memref<120xf32, #tpu.memory_space<smem>>
    %1405 = vector.broadcast %1404 : f32 to vector<8x128xf32>
    %1406 = arith.mulf %1403, %1308 : vector<8x128xf32>
    %1407 = arith.mulf %1405, %1359 : vector<8x128xf32>
    %1408 = arith.addf %1406, %1407 : vector<8x128xf32>
    %1409 = arith.mulf %1403, %1311 : vector<8x128xf32>
    %1410 = arith.mulf %1405, %1356 : vector<8x128xf32>
    %1411 = arith.subf %1409, %1410 : vector<8x128xf32>
    %1412 = arith.mulf %1403, %1356 : vector<8x128xf32>
    %1413 = arith.mulf %1405, %1311 : vector<8x128xf32>
    %1414 = arith.addf %1412, %1413 : vector<8x128xf32>
    %1415 = arith.mulf %1403, %1359 : vector<8x128xf32>
    %1416 = arith.mulf %1405, %1308 : vector<8x128xf32>
    %1417 = arith.subf %1415, %1416 : vector<8x128xf32>
    %1418 = arith.mulf %1403, %1314 : vector<8x128xf32>
    %1419 = arith.mulf %1405, %1365 : vector<8x128xf32>
    %1420 = arith.addf %1418, %1419 : vector<8x128xf32>
    %1421 = arith.mulf %1403, %1317 : vector<8x128xf32>
    %1422 = arith.mulf %1405, %1362 : vector<8x128xf32>
    %1423 = arith.subf %1421, %1422 : vector<8x128xf32>
    %1424 = arith.mulf %1403, %1362 : vector<8x128xf32>
    %1425 = arith.mulf %1405, %1317 : vector<8x128xf32>
    %1426 = arith.addf %1424, %1425 : vector<8x128xf32>
    %1427 = arith.mulf %1403, %1365 : vector<8x128xf32>
    %1428 = arith.mulf %1405, %1314 : vector<8x128xf32>
    %1429 = arith.subf %1427, %1428 : vector<8x128xf32>
    %1430 = arith.mulf %1403, %1320 : vector<8x128xf32>
    %1431 = arith.mulf %1405, %1371 : vector<8x128xf32>
    %1432 = arith.addf %1430, %1431 : vector<8x128xf32>
    %1433 = arith.mulf %1403, %1323 : vector<8x128xf32>
    %1434 = arith.mulf %1405, %1368 : vector<8x128xf32>
    %1435 = arith.subf %1433, %1434 : vector<8x128xf32>
    %1436 = arith.mulf %1403, %1368 : vector<8x128xf32>
    %1437 = arith.mulf %1405, %1323 : vector<8x128xf32>
    %1438 = arith.addf %1436, %1437 : vector<8x128xf32>
    %1439 = arith.mulf %1403, %1371 : vector<8x128xf32>
    %1440 = arith.mulf %1405, %1320 : vector<8x128xf32>
    %1441 = arith.subf %1439, %1440 : vector<8x128xf32>
    %1442 = arith.mulf %1403, %1326 : vector<8x128xf32>
    %1443 = arith.mulf %1405, %1377 : vector<8x128xf32>
    %1444 = arith.addf %1442, %1443 : vector<8x128xf32>
    %1445 = arith.mulf %1403, %1329 : vector<8x128xf32>
    %1446 = arith.mulf %1405, %1374 : vector<8x128xf32>
    %1447 = arith.subf %1445, %1446 : vector<8x128xf32>
    %1448 = arith.mulf %1403, %1374 : vector<8x128xf32>
    %1449 = arith.mulf %1405, %1329 : vector<8x128xf32>
    %1450 = arith.addf %1448, %1449 : vector<8x128xf32>
    %1451 = arith.mulf %1403, %1377 : vector<8x128xf32>
    %1452 = arith.mulf %1405, %1326 : vector<8x128xf32>
    %1453 = arith.subf %1451, %1452 : vector<8x128xf32>
    %1454 = arith.mulf %1403, %1332 : vector<8x128xf32>
    %1455 = arith.mulf %1405, %1383 : vector<8x128xf32>
    %1456 = arith.addf %1454, %1455 : vector<8x128xf32>
    %1457 = arith.mulf %1403, %1335 : vector<8x128xf32>
    %1458 = arith.mulf %1405, %1380 : vector<8x128xf32>
    %1459 = arith.subf %1457, %1458 : vector<8x128xf32>
    %1460 = arith.mulf %1403, %1380 : vector<8x128xf32>
    %1461 = arith.mulf %1405, %1335 : vector<8x128xf32>
    %1462 = arith.addf %1460, %1461 : vector<8x128xf32>
    %1463 = arith.mulf %1403, %1383 : vector<8x128xf32>
    %1464 = arith.mulf %1405, %1332 : vector<8x128xf32>
    %1465 = arith.subf %1463, %1464 : vector<8x128xf32>
    %1466 = arith.mulf %1403, %1338 : vector<8x128xf32>
    %1467 = arith.mulf %1405, %1389 : vector<8x128xf32>
    %1468 = arith.addf %1466, %1467 : vector<8x128xf32>
    %1469 = arith.mulf %1403, %1341 : vector<8x128xf32>
    %1470 = arith.mulf %1405, %1386 : vector<8x128xf32>
    %1471 = arith.subf %1469, %1470 : vector<8x128xf32>
    %1472 = arith.mulf %1403, %1386 : vector<8x128xf32>
    %1473 = arith.mulf %1405, %1341 : vector<8x128xf32>
    %1474 = arith.addf %1472, %1473 : vector<8x128xf32>
    %1475 = arith.mulf %1403, %1389 : vector<8x128xf32>
    %1476 = arith.mulf %1405, %1338 : vector<8x128xf32>
    %1477 = arith.subf %1475, %1476 : vector<8x128xf32>
    %1478 = arith.mulf %1403, %1344 : vector<8x128xf32>
    %1479 = arith.mulf %1405, %1395 : vector<8x128xf32>
    %1480 = arith.addf %1478, %1479 : vector<8x128xf32>
    %1481 = arith.mulf %1403, %1347 : vector<8x128xf32>
    %1482 = arith.mulf %1405, %1392 : vector<8x128xf32>
    %1483 = arith.subf %1481, %1482 : vector<8x128xf32>
    %1484 = arith.mulf %1403, %1392 : vector<8x128xf32>
    %1485 = arith.mulf %1405, %1347 : vector<8x128xf32>
    %1486 = arith.addf %1484, %1485 : vector<8x128xf32>
    %1487 = arith.mulf %1403, %1395 : vector<8x128xf32>
    %1488 = arith.mulf %1405, %1344 : vector<8x128xf32>
    %1489 = arith.subf %1487, %1488 : vector<8x128xf32>
    %1490 = arith.mulf %1403, %1350 : vector<8x128xf32>
    %1491 = arith.mulf %1405, %1401 : vector<8x128xf32>
    %1492 = arith.addf %1490, %1491 : vector<8x128xf32>
    %1493 = arith.mulf %1403, %1353 : vector<8x128xf32>
    %1494 = arith.mulf %1405, %1398 : vector<8x128xf32>
    %1495 = arith.subf %1493, %1494 : vector<8x128xf32>
    %1496 = arith.mulf %1403, %1398 : vector<8x128xf32>
    %1497 = arith.mulf %1405, %1353 : vector<8x128xf32>
    %1498 = arith.addf %1496, %1497 : vector<8x128xf32>
    %1499 = arith.mulf %1403, %1401 : vector<8x128xf32>
    %1500 = arith.mulf %1405, %1350 : vector<8x128xf32>
    %1501 = arith.subf %1499, %1500 : vector<8x128xf32>
    %c42 = arith.constant 42 : index
    %1502 = memref.load %arg1[%c42] : memref<120xf32, #tpu.memory_space<smem>>
    %1503 = vector.broadcast %1502 : f32 to vector<8x128xf32>
    %c43 = arith.constant 43 : index
    %1504 = memref.load %arg1[%c43] : memref<120xf32, #tpu.memory_space<smem>>
    %1505 = vector.broadcast %1504 : f32 to vector<8x128xf32>
    %1506 = arith.mulf %1408, %1503 : vector<8x128xf32>
    %1507 = arith.mulf %1505, %1411 : vector<8x128xf32>
    %1508 = arith.addf %1506, %1507 : vector<8x128xf32>
    %1509 = arith.mulf %1411, %1503 : vector<8x128xf32>
    %1510 = arith.mulf %1505, %1408 : vector<8x128xf32>
    %1511 = arith.subf %1509, %1510 : vector<8x128xf32>
    %1512 = arith.mulf %1420, %1503 : vector<8x128xf32>
    %1513 = arith.mulf %1505, %1423 : vector<8x128xf32>
    %1514 = arith.addf %1512, %1513 : vector<8x128xf32>
    %1515 = arith.mulf %1423, %1503 : vector<8x128xf32>
    %1516 = arith.mulf %1505, %1420 : vector<8x128xf32>
    %1517 = arith.subf %1515, %1516 : vector<8x128xf32>
    %1518 = arith.mulf %1432, %1503 : vector<8x128xf32>
    %1519 = arith.mulf %1505, %1435 : vector<8x128xf32>
    %1520 = arith.addf %1518, %1519 : vector<8x128xf32>
    %1521 = arith.mulf %1435, %1503 : vector<8x128xf32>
    %1522 = arith.mulf %1505, %1432 : vector<8x128xf32>
    %1523 = arith.subf %1521, %1522 : vector<8x128xf32>
    %1524 = arith.mulf %1444, %1503 : vector<8x128xf32>
    %1525 = arith.mulf %1505, %1447 : vector<8x128xf32>
    %1526 = arith.addf %1524, %1525 : vector<8x128xf32>
    %1527 = arith.mulf %1447, %1503 : vector<8x128xf32>
    %1528 = arith.mulf %1505, %1444 : vector<8x128xf32>
    %1529 = arith.subf %1527, %1528 : vector<8x128xf32>
    %1530 = arith.mulf %1456, %1503 : vector<8x128xf32>
    %1531 = arith.mulf %1505, %1459 : vector<8x128xf32>
    %1532 = arith.addf %1530, %1531 : vector<8x128xf32>
    %1533 = arith.mulf %1459, %1503 : vector<8x128xf32>
    %1534 = arith.mulf %1505, %1456 : vector<8x128xf32>
    %1535 = arith.subf %1533, %1534 : vector<8x128xf32>
    %1536 = arith.mulf %1468, %1503 : vector<8x128xf32>
    %1537 = arith.mulf %1505, %1471 : vector<8x128xf32>
    %1538 = arith.addf %1536, %1537 : vector<8x128xf32>
    %1539 = arith.mulf %1471, %1503 : vector<8x128xf32>
    %1540 = arith.mulf %1505, %1468 : vector<8x128xf32>
    %1541 = arith.subf %1539, %1540 : vector<8x128xf32>
    %1542 = arith.mulf %1480, %1503 : vector<8x128xf32>
    %1543 = arith.mulf %1505, %1483 : vector<8x128xf32>
    %1544 = arith.addf %1542, %1543 : vector<8x128xf32>
    %1545 = arith.mulf %1483, %1503 : vector<8x128xf32>
    %1546 = arith.mulf %1505, %1480 : vector<8x128xf32>
    %1547 = arith.subf %1545, %1546 : vector<8x128xf32>
    %1548 = arith.mulf %1492, %1503 : vector<8x128xf32>
    %1549 = arith.mulf %1505, %1495 : vector<8x128xf32>
    %1550 = arith.addf %1548, %1549 : vector<8x128xf32>
    %1551 = arith.mulf %1495, %1503 : vector<8x128xf32>
    %1552 = arith.mulf %1505, %1492 : vector<8x128xf32>
    %1553 = arith.subf %1551, %1552 : vector<8x128xf32>
    %1554 = arith.mulf %1414, %1503 : vector<8x128xf32>
    %1555 = arith.mulf %1505, %1417 : vector<8x128xf32>
    %1556 = arith.subf %1554, %1555 : vector<8x128xf32>
    %1557 = arith.mulf %1417, %1503 : vector<8x128xf32>
    %1558 = arith.mulf %1505, %1414 : vector<8x128xf32>
    %1559 = arith.addf %1557, %1558 : vector<8x128xf32>
    %1560 = arith.mulf %1426, %1503 : vector<8x128xf32>
    %1561 = arith.mulf %1505, %1429 : vector<8x128xf32>
    %1562 = arith.subf %1560, %1561 : vector<8x128xf32>
    %1563 = arith.mulf %1429, %1503 : vector<8x128xf32>
    %1564 = arith.mulf %1505, %1426 : vector<8x128xf32>
    %1565 = arith.addf %1563, %1564 : vector<8x128xf32>
    %1566 = arith.mulf %1438, %1503 : vector<8x128xf32>
    %1567 = arith.mulf %1505, %1441 : vector<8x128xf32>
    %1568 = arith.subf %1566, %1567 : vector<8x128xf32>
    %1569 = arith.mulf %1441, %1503 : vector<8x128xf32>
    %1570 = arith.mulf %1505, %1438 : vector<8x128xf32>
    %1571 = arith.addf %1569, %1570 : vector<8x128xf32>
    %1572 = arith.mulf %1450, %1503 : vector<8x128xf32>
    %1573 = arith.mulf %1505, %1453 : vector<8x128xf32>
    %1574 = arith.subf %1572, %1573 : vector<8x128xf32>
    %1575 = arith.mulf %1453, %1503 : vector<8x128xf32>
    %1576 = arith.mulf %1505, %1450 : vector<8x128xf32>
    %1577 = arith.addf %1575, %1576 : vector<8x128xf32>
    %1578 = arith.mulf %1462, %1503 : vector<8x128xf32>
    %1579 = arith.mulf %1505, %1465 : vector<8x128xf32>
    %1580 = arith.subf %1578, %1579 : vector<8x128xf32>
    %1581 = arith.mulf %1465, %1503 : vector<8x128xf32>
    %1582 = arith.mulf %1505, %1462 : vector<8x128xf32>
    %1583 = arith.addf %1581, %1582 : vector<8x128xf32>
    %1584 = arith.mulf %1474, %1503 : vector<8x128xf32>
    %1585 = arith.mulf %1505, %1477 : vector<8x128xf32>
    %1586 = arith.subf %1584, %1585 : vector<8x128xf32>
    %1587 = arith.mulf %1477, %1503 : vector<8x128xf32>
    %1588 = arith.mulf %1505, %1474 : vector<8x128xf32>
    %1589 = arith.addf %1587, %1588 : vector<8x128xf32>
    %1590 = arith.mulf %1486, %1503 : vector<8x128xf32>
    %1591 = arith.mulf %1505, %1489 : vector<8x128xf32>
    %1592 = arith.subf %1590, %1591 : vector<8x128xf32>
    %1593 = arith.mulf %1489, %1503 : vector<8x128xf32>
    %1594 = arith.mulf %1505, %1486 : vector<8x128xf32>
    %1595 = arith.addf %1593, %1594 : vector<8x128xf32>
    %1596 = arith.mulf %1498, %1503 : vector<8x128xf32>
    %1597 = arith.mulf %1505, %1501 : vector<8x128xf32>
    %1598 = arith.subf %1596, %1597 : vector<8x128xf32>
    %1599 = arith.mulf %1501, %1503 : vector<8x128xf32>
    %1600 = arith.mulf %1505, %1498 : vector<8x128xf32>
    %1601 = arith.addf %1599, %1600 : vector<8x128xf32>
    %c50 = arith.constant 50 : index
    %1602 = memref.load %arg1[%c50] : memref<120xf32, #tpu.memory_space<smem>>
    %1603 = vector.broadcast %1602 : f32 to vector<8x128xf32>
    %c51 = arith.constant 51 : index
    %1604 = memref.load %arg1[%c51] : memref<120xf32, #tpu.memory_space<smem>>
    %1605 = vector.broadcast %1604 : f32 to vector<8x128xf32>
    %1606 = arith.mulf %1603, %1508 : vector<8x128xf32>
    %1607 = arith.mulf %1605, %1535 : vector<8x128xf32>
    %1608 = arith.addf %1606, %1607 : vector<8x128xf32>
    %1609 = arith.mulf %1603, %1511 : vector<8x128xf32>
    %1610 = arith.mulf %1605, %1532 : vector<8x128xf32>
    %1611 = arith.subf %1609, %1610 : vector<8x128xf32>
    %1612 = arith.mulf %1603, %1532 : vector<8x128xf32>
    %1613 = arith.mulf %1605, %1511 : vector<8x128xf32>
    %1614 = arith.addf %1612, %1613 : vector<8x128xf32>
    %1615 = arith.mulf %1603, %1535 : vector<8x128xf32>
    %1616 = arith.mulf %1605, %1508 : vector<8x128xf32>
    %1617 = arith.subf %1615, %1616 : vector<8x128xf32>
    %1618 = arith.mulf %1603, %1514 : vector<8x128xf32>
    %1619 = arith.mulf %1605, %1541 : vector<8x128xf32>
    %1620 = arith.addf %1618, %1619 : vector<8x128xf32>
    %1621 = arith.mulf %1603, %1517 : vector<8x128xf32>
    %1622 = arith.mulf %1605, %1538 : vector<8x128xf32>
    %1623 = arith.subf %1621, %1622 : vector<8x128xf32>
    %1624 = arith.mulf %1603, %1538 : vector<8x128xf32>
    %1625 = arith.mulf %1605, %1517 : vector<8x128xf32>
    %1626 = arith.addf %1624, %1625 : vector<8x128xf32>
    %1627 = arith.mulf %1603, %1541 : vector<8x128xf32>
    %1628 = arith.mulf %1605, %1514 : vector<8x128xf32>
    %1629 = arith.subf %1627, %1628 : vector<8x128xf32>
    %1630 = arith.mulf %1603, %1520 : vector<8x128xf32>
    %1631 = arith.mulf %1605, %1547 : vector<8x128xf32>
    %1632 = arith.addf %1630, %1631 : vector<8x128xf32>
    %1633 = arith.mulf %1603, %1523 : vector<8x128xf32>
    %1634 = arith.mulf %1605, %1544 : vector<8x128xf32>
    %1635 = arith.subf %1633, %1634 : vector<8x128xf32>
    %1636 = arith.mulf %1603, %1544 : vector<8x128xf32>
    %1637 = arith.mulf %1605, %1523 : vector<8x128xf32>
    %1638 = arith.addf %1636, %1637 : vector<8x128xf32>
    %1639 = arith.mulf %1603, %1547 : vector<8x128xf32>
    %1640 = arith.mulf %1605, %1520 : vector<8x128xf32>
    %1641 = arith.subf %1639, %1640 : vector<8x128xf32>
    %1642 = arith.mulf %1603, %1526 : vector<8x128xf32>
    %1643 = arith.mulf %1605, %1553 : vector<8x128xf32>
    %1644 = arith.addf %1642, %1643 : vector<8x128xf32>
    %1645 = arith.mulf %1603, %1529 : vector<8x128xf32>
    %1646 = arith.mulf %1605, %1550 : vector<8x128xf32>
    %1647 = arith.subf %1645, %1646 : vector<8x128xf32>
    %1648 = arith.mulf %1603, %1550 : vector<8x128xf32>
    %1649 = arith.mulf %1605, %1529 : vector<8x128xf32>
    %1650 = arith.addf %1648, %1649 : vector<8x128xf32>
    %1651 = arith.mulf %1603, %1553 : vector<8x128xf32>
    %1652 = arith.mulf %1605, %1526 : vector<8x128xf32>
    %1653 = arith.subf %1651, %1652 : vector<8x128xf32>
    %1654 = arith.mulf %1603, %1556 : vector<8x128xf32>
    %1655 = arith.mulf %1605, %1583 : vector<8x128xf32>
    %1656 = arith.addf %1654, %1655 : vector<8x128xf32>
    %1657 = arith.mulf %1603, %1559 : vector<8x128xf32>
    %1658 = arith.mulf %1605, %1580 : vector<8x128xf32>
    %1659 = arith.subf %1657, %1658 : vector<8x128xf32>
    %1660 = arith.mulf %1603, %1580 : vector<8x128xf32>
    %1661 = arith.mulf %1605, %1559 : vector<8x128xf32>
    %1662 = arith.addf %1660, %1661 : vector<8x128xf32>
    %1663 = arith.mulf %1603, %1583 : vector<8x128xf32>
    %1664 = arith.mulf %1605, %1556 : vector<8x128xf32>
    %1665 = arith.subf %1663, %1664 : vector<8x128xf32>
    %1666 = arith.mulf %1603, %1562 : vector<8x128xf32>
    %1667 = arith.mulf %1605, %1589 : vector<8x128xf32>
    %1668 = arith.addf %1666, %1667 : vector<8x128xf32>
    %1669 = arith.mulf %1603, %1565 : vector<8x128xf32>
    %1670 = arith.mulf %1605, %1586 : vector<8x128xf32>
    %1671 = arith.subf %1669, %1670 : vector<8x128xf32>
    %1672 = arith.mulf %1603, %1586 : vector<8x128xf32>
    %1673 = arith.mulf %1605, %1565 : vector<8x128xf32>
    %1674 = arith.addf %1672, %1673 : vector<8x128xf32>
    %1675 = arith.mulf %1603, %1589 : vector<8x128xf32>
    %1676 = arith.mulf %1605, %1562 : vector<8x128xf32>
    %1677 = arith.subf %1675, %1676 : vector<8x128xf32>
    %1678 = arith.mulf %1603, %1568 : vector<8x128xf32>
    %1679 = arith.mulf %1605, %1595 : vector<8x128xf32>
    %1680 = arith.addf %1678, %1679 : vector<8x128xf32>
    %1681 = arith.mulf %1603, %1571 : vector<8x128xf32>
    %1682 = arith.mulf %1605, %1592 : vector<8x128xf32>
    %1683 = arith.subf %1681, %1682 : vector<8x128xf32>
    %1684 = arith.mulf %1603, %1592 : vector<8x128xf32>
    %1685 = arith.mulf %1605, %1571 : vector<8x128xf32>
    %1686 = arith.addf %1684, %1685 : vector<8x128xf32>
    %1687 = arith.mulf %1603, %1595 : vector<8x128xf32>
    %1688 = arith.mulf %1605, %1568 : vector<8x128xf32>
    %1689 = arith.subf %1687, %1688 : vector<8x128xf32>
    %1690 = arith.mulf %1603, %1574 : vector<8x128xf32>
    %1691 = arith.mulf %1605, %1601 : vector<8x128xf32>
    %1692 = arith.addf %1690, %1691 : vector<8x128xf32>
    %1693 = arith.mulf %1603, %1577 : vector<8x128xf32>
    %1694 = arith.mulf %1605, %1598 : vector<8x128xf32>
    %1695 = arith.subf %1693, %1694 : vector<8x128xf32>
    %1696 = arith.mulf %1603, %1598 : vector<8x128xf32>
    %1697 = arith.mulf %1605, %1577 : vector<8x128xf32>
    %1698 = arith.addf %1696, %1697 : vector<8x128xf32>
    %1699 = arith.mulf %1603, %1601 : vector<8x128xf32>
    %1700 = arith.mulf %1605, %1574 : vector<8x128xf32>
    %1701 = arith.subf %1699, %1700 : vector<8x128xf32>
    %c52 = arith.constant 52 : index
    %1702 = memref.load %arg1[%c52] : memref<120xf32, #tpu.memory_space<smem>>
    %1703 = vector.broadcast %1702 : f32 to vector<8x128xf32>
    %c53 = arith.constant 53 : index
    %1704 = memref.load %arg1[%c53] : memref<120xf32, #tpu.memory_space<smem>>
    %1705 = vector.broadcast %1704 : f32 to vector<8x128xf32>
    %1706 = arith.mulf %1608, %1703 : vector<8x128xf32>
    %1707 = arith.mulf %1705, %1611 : vector<8x128xf32>
    %1708 = arith.addf %1706, %1707 : vector<8x128xf32>
    %1709 = arith.mulf %1611, %1703 : vector<8x128xf32>
    %1710 = arith.mulf %1705, %1608 : vector<8x128xf32>
    %1711 = arith.subf %1709, %1710 : vector<8x128xf32>
    %1712 = arith.mulf %1620, %1703 : vector<8x128xf32>
    %1713 = arith.mulf %1705, %1623 : vector<8x128xf32>
    %1714 = arith.addf %1712, %1713 : vector<8x128xf32>
    %1715 = arith.mulf %1623, %1703 : vector<8x128xf32>
    %1716 = arith.mulf %1705, %1620 : vector<8x128xf32>
    %1717 = arith.subf %1715, %1716 : vector<8x128xf32>
    %1718 = arith.mulf %1632, %1703 : vector<8x128xf32>
    %1719 = arith.mulf %1705, %1635 : vector<8x128xf32>
    %1720 = arith.addf %1718, %1719 : vector<8x128xf32>
    %1721 = arith.mulf %1635, %1703 : vector<8x128xf32>
    %1722 = arith.mulf %1705, %1632 : vector<8x128xf32>
    %1723 = arith.subf %1721, %1722 : vector<8x128xf32>
    %1724 = arith.mulf %1644, %1703 : vector<8x128xf32>
    %1725 = arith.mulf %1705, %1647 : vector<8x128xf32>
    %1726 = arith.addf %1724, %1725 : vector<8x128xf32>
    %1727 = arith.mulf %1647, %1703 : vector<8x128xf32>
    %1728 = arith.mulf %1705, %1644 : vector<8x128xf32>
    %1729 = arith.subf %1727, %1728 : vector<8x128xf32>
    %1730 = arith.mulf %1614, %1703 : vector<8x128xf32>
    %1731 = arith.mulf %1705, %1617 : vector<8x128xf32>
    %1732 = arith.subf %1730, %1731 : vector<8x128xf32>
    %1733 = arith.mulf %1617, %1703 : vector<8x128xf32>
    %1734 = arith.mulf %1705, %1614 : vector<8x128xf32>
    %1735 = arith.addf %1733, %1734 : vector<8x128xf32>
    %1736 = arith.mulf %1626, %1703 : vector<8x128xf32>
    %1737 = arith.mulf %1705, %1629 : vector<8x128xf32>
    %1738 = arith.subf %1736, %1737 : vector<8x128xf32>
    %1739 = arith.mulf %1629, %1703 : vector<8x128xf32>
    %1740 = arith.mulf %1705, %1626 : vector<8x128xf32>
    %1741 = arith.addf %1739, %1740 : vector<8x128xf32>
    %1742 = arith.mulf %1638, %1703 : vector<8x128xf32>
    %1743 = arith.mulf %1705, %1641 : vector<8x128xf32>
    %1744 = arith.subf %1742, %1743 : vector<8x128xf32>
    %1745 = arith.mulf %1641, %1703 : vector<8x128xf32>
    %1746 = arith.mulf %1705, %1638 : vector<8x128xf32>
    %1747 = arith.addf %1745, %1746 : vector<8x128xf32>
    %1748 = arith.mulf %1650, %1703 : vector<8x128xf32>
    %1749 = arith.mulf %1705, %1653 : vector<8x128xf32>
    %1750 = arith.subf %1748, %1749 : vector<8x128xf32>
    %1751 = arith.mulf %1653, %1703 : vector<8x128xf32>
    %1752 = arith.mulf %1705, %1650 : vector<8x128xf32>
    %1753 = arith.addf %1751, %1752 : vector<8x128xf32>
    %1754 = arith.mulf %1656, %1703 : vector<8x128xf32>
    %1755 = arith.mulf %1705, %1659 : vector<8x128xf32>
    %1756 = arith.addf %1754, %1755 : vector<8x128xf32>
    %1757 = arith.mulf %1659, %1703 : vector<8x128xf32>
    %1758 = arith.mulf %1705, %1656 : vector<8x128xf32>
    %1759 = arith.subf %1757, %1758 : vector<8x128xf32>
    %1760 = arith.mulf %1668, %1703 : vector<8x128xf32>
    %1761 = arith.mulf %1705, %1671 : vector<8x128xf32>
    %1762 = arith.addf %1760, %1761 : vector<8x128xf32>
    %1763 = arith.mulf %1671, %1703 : vector<8x128xf32>
    %1764 = arith.mulf %1705, %1668 : vector<8x128xf32>
    %1765 = arith.subf %1763, %1764 : vector<8x128xf32>
    %1766 = arith.mulf %1680, %1703 : vector<8x128xf32>
    %1767 = arith.mulf %1705, %1683 : vector<8x128xf32>
    %1768 = arith.addf %1766, %1767 : vector<8x128xf32>
    %1769 = arith.mulf %1683, %1703 : vector<8x128xf32>
    %1770 = arith.mulf %1705, %1680 : vector<8x128xf32>
    %1771 = arith.subf %1769, %1770 : vector<8x128xf32>
    %1772 = arith.mulf %1692, %1703 : vector<8x128xf32>
    %1773 = arith.mulf %1705, %1695 : vector<8x128xf32>
    %1774 = arith.addf %1772, %1773 : vector<8x128xf32>
    %1775 = arith.mulf %1695, %1703 : vector<8x128xf32>
    %1776 = arith.mulf %1705, %1692 : vector<8x128xf32>
    %1777 = arith.subf %1775, %1776 : vector<8x128xf32>
    %1778 = arith.mulf %1662, %1703 : vector<8x128xf32>
    %1779 = arith.mulf %1705, %1665 : vector<8x128xf32>
    %1780 = arith.subf %1778, %1779 : vector<8x128xf32>
    %1781 = arith.mulf %1665, %1703 : vector<8x128xf32>
    %1782 = arith.mulf %1705, %1662 : vector<8x128xf32>
    %1783 = arith.addf %1781, %1782 : vector<8x128xf32>
    %1784 = arith.mulf %1674, %1703 : vector<8x128xf32>
    %1785 = arith.mulf %1705, %1677 : vector<8x128xf32>
    %1786 = arith.subf %1784, %1785 : vector<8x128xf32>
    %1787 = arith.mulf %1677, %1703 : vector<8x128xf32>
    %1788 = arith.mulf %1705, %1674 : vector<8x128xf32>
    %1789 = arith.addf %1787, %1788 : vector<8x128xf32>
    %1790 = arith.mulf %1686, %1703 : vector<8x128xf32>
    %1791 = arith.mulf %1705, %1689 : vector<8x128xf32>
    %1792 = arith.subf %1790, %1791 : vector<8x128xf32>
    %1793 = arith.mulf %1689, %1703 : vector<8x128xf32>
    %1794 = arith.mulf %1705, %1686 : vector<8x128xf32>
    %1795 = arith.addf %1793, %1794 : vector<8x128xf32>
    %1796 = arith.mulf %1698, %1703 : vector<8x128xf32>
    %1797 = arith.mulf %1705, %1701 : vector<8x128xf32>
    %1798 = arith.subf %1796, %1797 : vector<8x128xf32>
    %1799 = arith.mulf %1701, %1703 : vector<8x128xf32>
    %1800 = arith.mulf %1705, %1698 : vector<8x128xf32>
    %1801 = arith.addf %1799, %1800 : vector<8x128xf32>
    %c60 = arith.constant 60 : index
    %1802 = memref.load %arg1[%c60] : memref<120xf32, #tpu.memory_space<smem>>
    %1803 = vector.broadcast %1802 : f32 to vector<8x128xf32>
    %c61 = arith.constant 61 : index
    %1804 = memref.load %arg1[%c61] : memref<120xf32, #tpu.memory_space<smem>>
    %1805 = vector.broadcast %1804 : f32 to vector<8x128xf32>
    %1806 = arith.mulf %1803, %1708 : vector<8x128xf32>
    %1807 = arith.mulf %1805, %1723 : vector<8x128xf32>
    %1808 = arith.addf %1806, %1807 : vector<8x128xf32>
    %1809 = arith.mulf %1803, %1711 : vector<8x128xf32>
    %1810 = arith.mulf %1805, %1720 : vector<8x128xf32>
    %1811 = arith.subf %1809, %1810 : vector<8x128xf32>
    %1812 = arith.mulf %1803, %1720 : vector<8x128xf32>
    %1813 = arith.mulf %1805, %1711 : vector<8x128xf32>
    %1814 = arith.addf %1812, %1813 : vector<8x128xf32>
    %1815 = arith.mulf %1803, %1723 : vector<8x128xf32>
    %1816 = arith.mulf %1805, %1708 : vector<8x128xf32>
    %1817 = arith.subf %1815, %1816 : vector<8x128xf32>
    %1818 = arith.mulf %1803, %1714 : vector<8x128xf32>
    %1819 = arith.mulf %1805, %1729 : vector<8x128xf32>
    %1820 = arith.addf %1818, %1819 : vector<8x128xf32>
    %1821 = arith.mulf %1803, %1717 : vector<8x128xf32>
    %1822 = arith.mulf %1805, %1726 : vector<8x128xf32>
    %1823 = arith.subf %1821, %1822 : vector<8x128xf32>
    %1824 = arith.mulf %1803, %1726 : vector<8x128xf32>
    %1825 = arith.mulf %1805, %1717 : vector<8x128xf32>
    %1826 = arith.addf %1824, %1825 : vector<8x128xf32>
    %1827 = arith.mulf %1803, %1729 : vector<8x128xf32>
    %1828 = arith.mulf %1805, %1714 : vector<8x128xf32>
    %1829 = arith.subf %1827, %1828 : vector<8x128xf32>
    %1830 = arith.mulf %1803, %1732 : vector<8x128xf32>
    %1831 = arith.mulf %1805, %1747 : vector<8x128xf32>
    %1832 = arith.addf %1830, %1831 : vector<8x128xf32>
    %1833 = arith.mulf %1803, %1735 : vector<8x128xf32>
    %1834 = arith.mulf %1805, %1744 : vector<8x128xf32>
    %1835 = arith.subf %1833, %1834 : vector<8x128xf32>
    %1836 = arith.mulf %1803, %1744 : vector<8x128xf32>
    %1837 = arith.mulf %1805, %1735 : vector<8x128xf32>
    %1838 = arith.addf %1836, %1837 : vector<8x128xf32>
    %1839 = arith.mulf %1803, %1747 : vector<8x128xf32>
    %1840 = arith.mulf %1805, %1732 : vector<8x128xf32>
    %1841 = arith.subf %1839, %1840 : vector<8x128xf32>
    %1842 = arith.mulf %1803, %1738 : vector<8x128xf32>
    %1843 = arith.mulf %1805, %1753 : vector<8x128xf32>
    %1844 = arith.addf %1842, %1843 : vector<8x128xf32>
    %1845 = arith.mulf %1803, %1741 : vector<8x128xf32>
    %1846 = arith.mulf %1805, %1750 : vector<8x128xf32>
    %1847 = arith.subf %1845, %1846 : vector<8x128xf32>
    %1848 = arith.mulf %1803, %1750 : vector<8x128xf32>
    %1849 = arith.mulf %1805, %1741 : vector<8x128xf32>
    %1850 = arith.addf %1848, %1849 : vector<8x128xf32>
    %1851 = arith.mulf %1803, %1753 : vector<8x128xf32>
    %1852 = arith.mulf %1805, %1738 : vector<8x128xf32>
    %1853 = arith.subf %1851, %1852 : vector<8x128xf32>
    %1854 = arith.mulf %1803, %1756 : vector<8x128xf32>
    %1855 = arith.mulf %1805, %1771 : vector<8x128xf32>
    %1856 = arith.addf %1854, %1855 : vector<8x128xf32>
    %1857 = arith.mulf %1803, %1759 : vector<8x128xf32>
    %1858 = arith.mulf %1805, %1768 : vector<8x128xf32>
    %1859 = arith.subf %1857, %1858 : vector<8x128xf32>
    %1860 = arith.mulf %1803, %1768 : vector<8x128xf32>
    %1861 = arith.mulf %1805, %1759 : vector<8x128xf32>
    %1862 = arith.addf %1860, %1861 : vector<8x128xf32>
    %1863 = arith.mulf %1803, %1771 : vector<8x128xf32>
    %1864 = arith.mulf %1805, %1756 : vector<8x128xf32>
    %1865 = arith.subf %1863, %1864 : vector<8x128xf32>
    %1866 = arith.mulf %1803, %1762 : vector<8x128xf32>
    %1867 = arith.mulf %1805, %1777 : vector<8x128xf32>
    %1868 = arith.addf %1866, %1867 : vector<8x128xf32>
    %1869 = arith.mulf %1803, %1765 : vector<8x128xf32>
    %1870 = arith.mulf %1805, %1774 : vector<8x128xf32>
    %1871 = arith.subf %1869, %1870 : vector<8x128xf32>
    %1872 = arith.mulf %1803, %1774 : vector<8x128xf32>
    %1873 = arith.mulf %1805, %1765 : vector<8x128xf32>
    %1874 = arith.addf %1872, %1873 : vector<8x128xf32>
    %1875 = arith.mulf %1803, %1777 : vector<8x128xf32>
    %1876 = arith.mulf %1805, %1762 : vector<8x128xf32>
    %1877 = arith.subf %1875, %1876 : vector<8x128xf32>
    %1878 = arith.mulf %1803, %1780 : vector<8x128xf32>
    %1879 = arith.mulf %1805, %1795 : vector<8x128xf32>
    %1880 = arith.addf %1878, %1879 : vector<8x128xf32>
    %1881 = arith.mulf %1803, %1783 : vector<8x128xf32>
    %1882 = arith.mulf %1805, %1792 : vector<8x128xf32>
    %1883 = arith.subf %1881, %1882 : vector<8x128xf32>
    %1884 = arith.mulf %1803, %1792 : vector<8x128xf32>
    %1885 = arith.mulf %1805, %1783 : vector<8x128xf32>
    %1886 = arith.addf %1884, %1885 : vector<8x128xf32>
    %1887 = arith.mulf %1803, %1795 : vector<8x128xf32>
    %1888 = arith.mulf %1805, %1780 : vector<8x128xf32>
    %1889 = arith.subf %1887, %1888 : vector<8x128xf32>
    %1890 = arith.mulf %1803, %1786 : vector<8x128xf32>
    %1891 = arith.mulf %1805, %1801 : vector<8x128xf32>
    %1892 = arith.addf %1890, %1891 : vector<8x128xf32>
    %1893 = arith.mulf %1803, %1789 : vector<8x128xf32>
    %1894 = arith.mulf %1805, %1798 : vector<8x128xf32>
    %1895 = arith.subf %1893, %1894 : vector<8x128xf32>
    %1896 = arith.mulf %1803, %1798 : vector<8x128xf32>
    %1897 = arith.mulf %1805, %1789 : vector<8x128xf32>
    %1898 = arith.addf %1896, %1897 : vector<8x128xf32>
    %1899 = arith.mulf %1803, %1801 : vector<8x128xf32>
    %1900 = arith.mulf %1805, %1786 : vector<8x128xf32>
    %1901 = arith.subf %1899, %1900 : vector<8x128xf32>
    %c62 = arith.constant 62 : index
    %1902 = memref.load %arg1[%c62] : memref<120xf32, #tpu.memory_space<smem>>
    %1903 = vector.broadcast %1902 : f32 to vector<8x128xf32>
    %c63 = arith.constant 63 : index
    %1904 = memref.load %arg1[%c63] : memref<120xf32, #tpu.memory_space<smem>>
    %1905 = vector.broadcast %1904 : f32 to vector<8x128xf32>
    %1906 = arith.mulf %1808, %1903 : vector<8x128xf32>
    %1907 = arith.mulf %1905, %1811 : vector<8x128xf32>
    %1908 = arith.addf %1906, %1907 : vector<8x128xf32>
    %1909 = arith.mulf %1811, %1903 : vector<8x128xf32>
    %1910 = arith.mulf %1905, %1808 : vector<8x128xf32>
    %1911 = arith.subf %1909, %1910 : vector<8x128xf32>
    %1912 = arith.mulf %1820, %1903 : vector<8x128xf32>
    %1913 = arith.mulf %1905, %1823 : vector<8x128xf32>
    %1914 = arith.addf %1912, %1913 : vector<8x128xf32>
    %1915 = arith.mulf %1823, %1903 : vector<8x128xf32>
    %1916 = arith.mulf %1905, %1820 : vector<8x128xf32>
    %1917 = arith.subf %1915, %1916 : vector<8x128xf32>
    %1918 = arith.mulf %1814, %1903 : vector<8x128xf32>
    %1919 = arith.mulf %1905, %1817 : vector<8x128xf32>
    %1920 = arith.subf %1918, %1919 : vector<8x128xf32>
    %1921 = arith.mulf %1817, %1903 : vector<8x128xf32>
    %1922 = arith.mulf %1905, %1814 : vector<8x128xf32>
    %1923 = arith.addf %1921, %1922 : vector<8x128xf32>
    %1924 = arith.mulf %1826, %1903 : vector<8x128xf32>
    %1925 = arith.mulf %1905, %1829 : vector<8x128xf32>
    %1926 = arith.subf %1924, %1925 : vector<8x128xf32>
    %1927 = arith.mulf %1829, %1903 : vector<8x128xf32>
    %1928 = arith.mulf %1905, %1826 : vector<8x128xf32>
    %1929 = arith.addf %1927, %1928 : vector<8x128xf32>
    %1930 = arith.mulf %1832, %1903 : vector<8x128xf32>
    %1931 = arith.mulf %1905, %1835 : vector<8x128xf32>
    %1932 = arith.addf %1930, %1931 : vector<8x128xf32>
    %1933 = arith.mulf %1835, %1903 : vector<8x128xf32>
    %1934 = arith.mulf %1905, %1832 : vector<8x128xf32>
    %1935 = arith.subf %1933, %1934 : vector<8x128xf32>
    %1936 = arith.mulf %1844, %1903 : vector<8x128xf32>
    %1937 = arith.mulf %1905, %1847 : vector<8x128xf32>
    %1938 = arith.addf %1936, %1937 : vector<8x128xf32>
    %1939 = arith.mulf %1847, %1903 : vector<8x128xf32>
    %1940 = arith.mulf %1905, %1844 : vector<8x128xf32>
    %1941 = arith.subf %1939, %1940 : vector<8x128xf32>
    %1942 = arith.mulf %1838, %1903 : vector<8x128xf32>
    %1943 = arith.mulf %1905, %1841 : vector<8x128xf32>
    %1944 = arith.subf %1942, %1943 : vector<8x128xf32>
    %1945 = arith.mulf %1841, %1903 : vector<8x128xf32>
    %1946 = arith.mulf %1905, %1838 : vector<8x128xf32>
    %1947 = arith.addf %1945, %1946 : vector<8x128xf32>
    %1948 = arith.mulf %1850, %1903 : vector<8x128xf32>
    %1949 = arith.mulf %1905, %1853 : vector<8x128xf32>
    %1950 = arith.subf %1948, %1949 : vector<8x128xf32>
    %1951 = arith.mulf %1853, %1903 : vector<8x128xf32>
    %1952 = arith.mulf %1905, %1850 : vector<8x128xf32>
    %1953 = arith.addf %1951, %1952 : vector<8x128xf32>
    %1954 = arith.mulf %1856, %1903 : vector<8x128xf32>
    %1955 = arith.mulf %1905, %1859 : vector<8x128xf32>
    %1956 = arith.addf %1954, %1955 : vector<8x128xf32>
    %1957 = arith.mulf %1859, %1903 : vector<8x128xf32>
    %1958 = arith.mulf %1905, %1856 : vector<8x128xf32>
    %1959 = arith.subf %1957, %1958 : vector<8x128xf32>
    %1960 = arith.mulf %1868, %1903 : vector<8x128xf32>
    %1961 = arith.mulf %1905, %1871 : vector<8x128xf32>
    %1962 = arith.addf %1960, %1961 : vector<8x128xf32>
    %1963 = arith.mulf %1871, %1903 : vector<8x128xf32>
    %1964 = arith.mulf %1905, %1868 : vector<8x128xf32>
    %1965 = arith.subf %1963, %1964 : vector<8x128xf32>
    %1966 = arith.mulf %1862, %1903 : vector<8x128xf32>
    %1967 = arith.mulf %1905, %1865 : vector<8x128xf32>
    %1968 = arith.subf %1966, %1967 : vector<8x128xf32>
    %1969 = arith.mulf %1865, %1903 : vector<8x128xf32>
    %1970 = arith.mulf %1905, %1862 : vector<8x128xf32>
    %1971 = arith.addf %1969, %1970 : vector<8x128xf32>
    %1972 = arith.mulf %1874, %1903 : vector<8x128xf32>
    %1973 = arith.mulf %1905, %1877 : vector<8x128xf32>
    %1974 = arith.subf %1972, %1973 : vector<8x128xf32>
    %1975 = arith.mulf %1877, %1903 : vector<8x128xf32>
    %1976 = arith.mulf %1905, %1874 : vector<8x128xf32>
    %1977 = arith.addf %1975, %1976 : vector<8x128xf32>
    %1978 = arith.mulf %1880, %1903 : vector<8x128xf32>
    %1979 = arith.mulf %1905, %1883 : vector<8x128xf32>
    %1980 = arith.addf %1978, %1979 : vector<8x128xf32>
    %1981 = arith.mulf %1883, %1903 : vector<8x128xf32>
    %1982 = arith.mulf %1905, %1880 : vector<8x128xf32>
    %1983 = arith.subf %1981, %1982 : vector<8x128xf32>
    %1984 = arith.mulf %1892, %1903 : vector<8x128xf32>
    %1985 = arith.mulf %1905, %1895 : vector<8x128xf32>
    %1986 = arith.addf %1984, %1985 : vector<8x128xf32>
    %1987 = arith.mulf %1895, %1903 : vector<8x128xf32>
    %1988 = arith.mulf %1905, %1892 : vector<8x128xf32>
    %1989 = arith.subf %1987, %1988 : vector<8x128xf32>
    %1990 = arith.mulf %1886, %1903 : vector<8x128xf32>
    %1991 = arith.mulf %1905, %1889 : vector<8x128xf32>
    %1992 = arith.subf %1990, %1991 : vector<8x128xf32>
    %1993 = arith.mulf %1889, %1903 : vector<8x128xf32>
    %1994 = arith.mulf %1905, %1886 : vector<8x128xf32>
    %1995 = arith.addf %1993, %1994 : vector<8x128xf32>
    %1996 = arith.mulf %1898, %1903 : vector<8x128xf32>
    %1997 = arith.mulf %1905, %1901 : vector<8x128xf32>
    %1998 = arith.subf %1996, %1997 : vector<8x128xf32>
    %1999 = arith.mulf %1901, %1903 : vector<8x128xf32>
    %2000 = arith.mulf %1905, %1898 : vector<8x128xf32>
    %2001 = arith.addf %1999, %2000 : vector<8x128xf32>
    %c70 = arith.constant 70 : index
    %2002 = memref.load %arg1[%c70] : memref<120xf32, #tpu.memory_space<smem>>
    %2003 = vector.broadcast %2002 : f32 to vector<8x128xf32>
    %c71 = arith.constant 71 : index
    %2004 = memref.load %arg1[%c71] : memref<120xf32, #tpu.memory_space<smem>>
    %2005 = vector.broadcast %2004 : f32 to vector<8x128xf32>
    %2006 = arith.mulf %2003, %1908 : vector<8x128xf32>
    %2007 = arith.mulf %2005, %1917 : vector<8x128xf32>
    %2008 = arith.addf %2006, %2007 : vector<8x128xf32>
    %2009 = arith.mulf %2003, %1911 : vector<8x128xf32>
    %2010 = arith.mulf %2005, %1914 : vector<8x128xf32>
    %2011 = arith.subf %2009, %2010 : vector<8x128xf32>
    %2012 = arith.mulf %2003, %1914 : vector<8x128xf32>
    %2013 = arith.mulf %2005, %1911 : vector<8x128xf32>
    %2014 = arith.addf %2012, %2013 : vector<8x128xf32>
    %2015 = arith.mulf %2003, %1917 : vector<8x128xf32>
    %2016 = arith.mulf %2005, %1908 : vector<8x128xf32>
    %2017 = arith.subf %2015, %2016 : vector<8x128xf32>
    %2018 = arith.mulf %2003, %1920 : vector<8x128xf32>
    %2019 = arith.mulf %2005, %1929 : vector<8x128xf32>
    %2020 = arith.addf %2018, %2019 : vector<8x128xf32>
    %2021 = arith.mulf %2003, %1923 : vector<8x128xf32>
    %2022 = arith.mulf %2005, %1926 : vector<8x128xf32>
    %2023 = arith.subf %2021, %2022 : vector<8x128xf32>
    %2024 = arith.mulf %2003, %1926 : vector<8x128xf32>
    %2025 = arith.mulf %2005, %1923 : vector<8x128xf32>
    %2026 = arith.addf %2024, %2025 : vector<8x128xf32>
    %2027 = arith.mulf %2003, %1929 : vector<8x128xf32>
    %2028 = arith.mulf %2005, %1920 : vector<8x128xf32>
    %2029 = arith.subf %2027, %2028 : vector<8x128xf32>
    %2030 = arith.mulf %2003, %1932 : vector<8x128xf32>
    %2031 = arith.mulf %2005, %1941 : vector<8x128xf32>
    %2032 = arith.addf %2030, %2031 : vector<8x128xf32>
    %2033 = arith.mulf %2003, %1935 : vector<8x128xf32>
    %2034 = arith.mulf %2005, %1938 : vector<8x128xf32>
    %2035 = arith.subf %2033, %2034 : vector<8x128xf32>
    %2036 = arith.mulf %2003, %1938 : vector<8x128xf32>
    %2037 = arith.mulf %2005, %1935 : vector<8x128xf32>
    %2038 = arith.addf %2036, %2037 : vector<8x128xf32>
    %2039 = arith.mulf %2003, %1941 : vector<8x128xf32>
    %2040 = arith.mulf %2005, %1932 : vector<8x128xf32>
    %2041 = arith.subf %2039, %2040 : vector<8x128xf32>
    %2042 = arith.mulf %2003, %1944 : vector<8x128xf32>
    %2043 = arith.mulf %2005, %1953 : vector<8x128xf32>
    %2044 = arith.addf %2042, %2043 : vector<8x128xf32>
    %2045 = arith.mulf %2003, %1947 : vector<8x128xf32>
    %2046 = arith.mulf %2005, %1950 : vector<8x128xf32>
    %2047 = arith.subf %2045, %2046 : vector<8x128xf32>
    %2048 = arith.mulf %2003, %1950 : vector<8x128xf32>
    %2049 = arith.mulf %2005, %1947 : vector<8x128xf32>
    %2050 = arith.addf %2048, %2049 : vector<8x128xf32>
    %2051 = arith.mulf %2003, %1953 : vector<8x128xf32>
    %2052 = arith.mulf %2005, %1944 : vector<8x128xf32>
    %2053 = arith.subf %2051, %2052 : vector<8x128xf32>
    %2054 = arith.mulf %2003, %1956 : vector<8x128xf32>
    %2055 = arith.mulf %2005, %1965 : vector<8x128xf32>
    %2056 = arith.addf %2054, %2055 : vector<8x128xf32>
    %2057 = arith.mulf %2003, %1959 : vector<8x128xf32>
    %2058 = arith.mulf %2005, %1962 : vector<8x128xf32>
    %2059 = arith.subf %2057, %2058 : vector<8x128xf32>
    %2060 = arith.mulf %2003, %1962 : vector<8x128xf32>
    %2061 = arith.mulf %2005, %1959 : vector<8x128xf32>
    %2062 = arith.addf %2060, %2061 : vector<8x128xf32>
    %2063 = arith.mulf %2003, %1965 : vector<8x128xf32>
    %2064 = arith.mulf %2005, %1956 : vector<8x128xf32>
    %2065 = arith.subf %2063, %2064 : vector<8x128xf32>
    %2066 = arith.mulf %2003, %1968 : vector<8x128xf32>
    %2067 = arith.mulf %2005, %1977 : vector<8x128xf32>
    %2068 = arith.addf %2066, %2067 : vector<8x128xf32>
    %2069 = arith.mulf %2003, %1971 : vector<8x128xf32>
    %2070 = arith.mulf %2005, %1974 : vector<8x128xf32>
    %2071 = arith.subf %2069, %2070 : vector<8x128xf32>
    %2072 = arith.mulf %2003, %1974 : vector<8x128xf32>
    %2073 = arith.mulf %2005, %1971 : vector<8x128xf32>
    %2074 = arith.addf %2072, %2073 : vector<8x128xf32>
    %2075 = arith.mulf %2003, %1977 : vector<8x128xf32>
    %2076 = arith.mulf %2005, %1968 : vector<8x128xf32>
    %2077 = arith.subf %2075, %2076 : vector<8x128xf32>
    %2078 = arith.mulf %2003, %1980 : vector<8x128xf32>
    %2079 = arith.mulf %2005, %1989 : vector<8x128xf32>
    %2080 = arith.addf %2078, %2079 : vector<8x128xf32>
    %2081 = arith.mulf %2003, %1983 : vector<8x128xf32>
    %2082 = arith.mulf %2005, %1986 : vector<8x128xf32>
    %2083 = arith.subf %2081, %2082 : vector<8x128xf32>
    %2084 = arith.mulf %2003, %1986 : vector<8x128xf32>
    %2085 = arith.mulf %2005, %1983 : vector<8x128xf32>
    %2086 = arith.addf %2084, %2085 : vector<8x128xf32>
    %2087 = arith.mulf %2003, %1989 : vector<8x128xf32>
    %2088 = arith.mulf %2005, %1980 : vector<8x128xf32>
    %2089 = arith.subf %2087, %2088 : vector<8x128xf32>
    %2090 = arith.mulf %2003, %1992 : vector<8x128xf32>
    %2091 = arith.mulf %2005, %2001 : vector<8x128xf32>
    %2092 = arith.addf %2090, %2091 : vector<8x128xf32>
    %2093 = arith.mulf %2003, %1995 : vector<8x128xf32>
    %2094 = arith.mulf %2005, %1998 : vector<8x128xf32>
    %2095 = arith.subf %2093, %2094 : vector<8x128xf32>
    %2096 = arith.mulf %2003, %1998 : vector<8x128xf32>
    %2097 = arith.mulf %2005, %1995 : vector<8x128xf32>
    %2098 = arith.addf %2096, %2097 : vector<8x128xf32>
    %2099 = arith.mulf %2003, %2001 : vector<8x128xf32>
    %2100 = arith.mulf %2005, %1992 : vector<8x128xf32>
    %2101 = arith.subf %2099, %2100 : vector<8x128xf32>
    %c72 = arith.constant 72 : index
    %2102 = memref.load %arg1[%c72] : memref<120xf32, #tpu.memory_space<smem>>
    %2103 = vector.broadcast %2102 : f32 to vector<8x128xf32>
    %c73 = arith.constant 73 : index
    %2104 = memref.load %arg1[%c73] : memref<120xf32, #tpu.memory_space<smem>>
    %2105 = vector.broadcast %2104 : f32 to vector<8x128xf32>
    %2106 = arith.mulf %2008, %2103 : vector<8x128xf32>
    %2107 = arith.mulf %2105, %2011 : vector<8x128xf32>
    %2108 = arith.addf %2106, %2107 : vector<8x128xf32>
    %2109 = arith.mulf %2011, %2103 : vector<8x128xf32>
    %2110 = arith.mulf %2105, %2008 : vector<8x128xf32>
    %2111 = arith.subf %2109, %2110 : vector<8x128xf32>
    %2112 = arith.mulf %2014, %2103 : vector<8x128xf32>
    %2113 = arith.mulf %2105, %2017 : vector<8x128xf32>
    %2114 = arith.subf %2112, %2113 : vector<8x128xf32>
    %2115 = arith.mulf %2017, %2103 : vector<8x128xf32>
    %2116 = arith.mulf %2105, %2014 : vector<8x128xf32>
    %2117 = arith.addf %2115, %2116 : vector<8x128xf32>
    %2118 = arith.mulf %2020, %2103 : vector<8x128xf32>
    %2119 = arith.mulf %2105, %2023 : vector<8x128xf32>
    %2120 = arith.addf %2118, %2119 : vector<8x128xf32>
    %2121 = arith.mulf %2023, %2103 : vector<8x128xf32>
    %2122 = arith.mulf %2105, %2020 : vector<8x128xf32>
    %2123 = arith.subf %2121, %2122 : vector<8x128xf32>
    %2124 = arith.mulf %2026, %2103 : vector<8x128xf32>
    %2125 = arith.mulf %2105, %2029 : vector<8x128xf32>
    %2126 = arith.subf %2124, %2125 : vector<8x128xf32>
    %2127 = arith.mulf %2029, %2103 : vector<8x128xf32>
    %2128 = arith.mulf %2105, %2026 : vector<8x128xf32>
    %2129 = arith.addf %2127, %2128 : vector<8x128xf32>
    %2130 = arith.mulf %2032, %2103 : vector<8x128xf32>
    %2131 = arith.mulf %2105, %2035 : vector<8x128xf32>
    %2132 = arith.addf %2130, %2131 : vector<8x128xf32>
    %2133 = arith.mulf %2035, %2103 : vector<8x128xf32>
    %2134 = arith.mulf %2105, %2032 : vector<8x128xf32>
    %2135 = arith.subf %2133, %2134 : vector<8x128xf32>
    %2136 = arith.mulf %2038, %2103 : vector<8x128xf32>
    %2137 = arith.mulf %2105, %2041 : vector<8x128xf32>
    %2138 = arith.subf %2136, %2137 : vector<8x128xf32>
    %2139 = arith.mulf %2041, %2103 : vector<8x128xf32>
    %2140 = arith.mulf %2105, %2038 : vector<8x128xf32>
    %2141 = arith.addf %2139, %2140 : vector<8x128xf32>
    %2142 = arith.mulf %2044, %2103 : vector<8x128xf32>
    %2143 = arith.mulf %2105, %2047 : vector<8x128xf32>
    %2144 = arith.addf %2142, %2143 : vector<8x128xf32>
    %2145 = arith.mulf %2047, %2103 : vector<8x128xf32>
    %2146 = arith.mulf %2105, %2044 : vector<8x128xf32>
    %2147 = arith.subf %2145, %2146 : vector<8x128xf32>
    %2148 = arith.mulf %2050, %2103 : vector<8x128xf32>
    %2149 = arith.mulf %2105, %2053 : vector<8x128xf32>
    %2150 = arith.subf %2148, %2149 : vector<8x128xf32>
    %2151 = arith.mulf %2053, %2103 : vector<8x128xf32>
    %2152 = arith.mulf %2105, %2050 : vector<8x128xf32>
    %2153 = arith.addf %2151, %2152 : vector<8x128xf32>
    %2154 = arith.mulf %2056, %2103 : vector<8x128xf32>
    %2155 = arith.mulf %2105, %2059 : vector<8x128xf32>
    %2156 = arith.addf %2154, %2155 : vector<8x128xf32>
    %2157 = arith.mulf %2059, %2103 : vector<8x128xf32>
    %2158 = arith.mulf %2105, %2056 : vector<8x128xf32>
    %2159 = arith.subf %2157, %2158 : vector<8x128xf32>
    %2160 = arith.mulf %2062, %2103 : vector<8x128xf32>
    %2161 = arith.mulf %2105, %2065 : vector<8x128xf32>
    %2162 = arith.subf %2160, %2161 : vector<8x128xf32>
    %2163 = arith.mulf %2065, %2103 : vector<8x128xf32>
    %2164 = arith.mulf %2105, %2062 : vector<8x128xf32>
    %2165 = arith.addf %2163, %2164 : vector<8x128xf32>
    %2166 = arith.mulf %2068, %2103 : vector<8x128xf32>
    %2167 = arith.mulf %2105, %2071 : vector<8x128xf32>
    %2168 = arith.addf %2166, %2167 : vector<8x128xf32>
    %2169 = arith.mulf %2071, %2103 : vector<8x128xf32>
    %2170 = arith.mulf %2105, %2068 : vector<8x128xf32>
    %2171 = arith.subf %2169, %2170 : vector<8x128xf32>
    %2172 = arith.mulf %2074, %2103 : vector<8x128xf32>
    %2173 = arith.mulf %2105, %2077 : vector<8x128xf32>
    %2174 = arith.subf %2172, %2173 : vector<8x128xf32>
    %2175 = arith.mulf %2077, %2103 : vector<8x128xf32>
    %2176 = arith.mulf %2105, %2074 : vector<8x128xf32>
    %2177 = arith.addf %2175, %2176 : vector<8x128xf32>
    %2178 = arith.mulf %2080, %2103 : vector<8x128xf32>
    %2179 = arith.mulf %2105, %2083 : vector<8x128xf32>
    %2180 = arith.addf %2178, %2179 : vector<8x128xf32>
    %2181 = arith.mulf %2083, %2103 : vector<8x128xf32>
    %2182 = arith.mulf %2105, %2080 : vector<8x128xf32>
    %2183 = arith.subf %2181, %2182 : vector<8x128xf32>
    %2184 = arith.mulf %2086, %2103 : vector<8x128xf32>
    %2185 = arith.mulf %2105, %2089 : vector<8x128xf32>
    %2186 = arith.subf %2184, %2185 : vector<8x128xf32>
    %2187 = arith.mulf %2089, %2103 : vector<8x128xf32>
    %2188 = arith.mulf %2105, %2086 : vector<8x128xf32>
    %2189 = arith.addf %2187, %2188 : vector<8x128xf32>
    %2190 = arith.mulf %2092, %2103 : vector<8x128xf32>
    %2191 = arith.mulf %2105, %2095 : vector<8x128xf32>
    %2192 = arith.addf %2190, %2191 : vector<8x128xf32>
    %2193 = arith.mulf %2095, %2103 : vector<8x128xf32>
    %2194 = arith.mulf %2105, %2092 : vector<8x128xf32>
    %2195 = arith.subf %2193, %2194 : vector<8x128xf32>
    %2196 = arith.mulf %2098, %2103 : vector<8x128xf32>
    %2197 = arith.mulf %2105, %2101 : vector<8x128xf32>
    %2198 = arith.subf %2196, %2197 : vector<8x128xf32>
    %2199 = arith.mulf %2101, %2103 : vector<8x128xf32>
    %2200 = arith.mulf %2105, %2098 : vector<8x128xf32>
    %2201 = arith.addf %2199, %2200 : vector<8x128xf32>
    %c44 = arith.constant 44 : index
    %2202 = memref.load %arg1[%c44] : memref<120xf32, #tpu.memory_space<smem>>
    %2203 = vector.broadcast %2202 : f32 to vector<8x128xf32>
    %c45 = arith.constant 45 : index
    %2204 = memref.load %arg1[%c45] : memref<120xf32, #tpu.memory_space<smem>>
    %2205 = vector.broadcast %2204 : f32 to vector<8x128xf32>
    %2206 = arith.mulf %2203, %2114 : vector<8x128xf32>
    %2207 = arith.mulf %2205, %2165 : vector<8x128xf32>
    %2208 = arith.addf %2206, %2207 : vector<8x128xf32>
    %2209 = arith.mulf %2203, %2117 : vector<8x128xf32>
    %2210 = arith.mulf %2205, %2162 : vector<8x128xf32>
    %2211 = arith.subf %2209, %2210 : vector<8x128xf32>
    %2212 = arith.mulf %2203, %2162 : vector<8x128xf32>
    %2213 = arith.mulf %2205, %2117 : vector<8x128xf32>
    %2214 = arith.addf %2212, %2213 : vector<8x128xf32>
    %2215 = arith.mulf %2203, %2165 : vector<8x128xf32>
    %2216 = arith.mulf %2205, %2114 : vector<8x128xf32>
    %2217 = arith.subf %2215, %2216 : vector<8x128xf32>
    %2218 = arith.mulf %2203, %2126 : vector<8x128xf32>
    %2219 = arith.mulf %2205, %2177 : vector<8x128xf32>
    %2220 = arith.addf %2218, %2219 : vector<8x128xf32>
    %2221 = arith.mulf %2203, %2129 : vector<8x128xf32>
    %2222 = arith.mulf %2205, %2174 : vector<8x128xf32>
    %2223 = arith.subf %2221, %2222 : vector<8x128xf32>
    %2224 = arith.mulf %2203, %2174 : vector<8x128xf32>
    %2225 = arith.mulf %2205, %2129 : vector<8x128xf32>
    %2226 = arith.addf %2224, %2225 : vector<8x128xf32>
    %2227 = arith.mulf %2203, %2177 : vector<8x128xf32>
    %2228 = arith.mulf %2205, %2126 : vector<8x128xf32>
    %2229 = arith.subf %2227, %2228 : vector<8x128xf32>
    %2230 = arith.mulf %2203, %2138 : vector<8x128xf32>
    %2231 = arith.mulf %2205, %2189 : vector<8x128xf32>
    %2232 = arith.addf %2230, %2231 : vector<8x128xf32>
    %2233 = arith.mulf %2203, %2141 : vector<8x128xf32>
    %2234 = arith.mulf %2205, %2186 : vector<8x128xf32>
    %2235 = arith.subf %2233, %2234 : vector<8x128xf32>
    %2236 = arith.mulf %2203, %2186 : vector<8x128xf32>
    %2237 = arith.mulf %2205, %2141 : vector<8x128xf32>
    %2238 = arith.addf %2236, %2237 : vector<8x128xf32>
    %2239 = arith.mulf %2203, %2189 : vector<8x128xf32>
    %2240 = arith.mulf %2205, %2138 : vector<8x128xf32>
    %2241 = arith.subf %2239, %2240 : vector<8x128xf32>
    %2242 = arith.mulf %2203, %2150 : vector<8x128xf32>
    %2243 = arith.mulf %2205, %2201 : vector<8x128xf32>
    %2244 = arith.addf %2242, %2243 : vector<8x128xf32>
    %2245 = arith.mulf %2203, %2153 : vector<8x128xf32>
    %2246 = arith.mulf %2205, %2198 : vector<8x128xf32>
    %2247 = arith.subf %2245, %2246 : vector<8x128xf32>
    %2248 = arith.mulf %2203, %2198 : vector<8x128xf32>
    %2249 = arith.mulf %2205, %2153 : vector<8x128xf32>
    %2250 = arith.addf %2248, %2249 : vector<8x128xf32>
    %2251 = arith.mulf %2203, %2201 : vector<8x128xf32>
    %2252 = arith.mulf %2205, %2150 : vector<8x128xf32>
    %2253 = arith.subf %2251, %2252 : vector<8x128xf32>
    %c54 = arith.constant 54 : index
    %2254 = memref.load %arg1[%c54] : memref<120xf32, #tpu.memory_space<smem>>
    %2255 = vector.broadcast %2254 : f32 to vector<8x128xf32>
    %c55 = arith.constant 55 : index
    %2256 = memref.load %arg1[%c55] : memref<120xf32, #tpu.memory_space<smem>>
    %2257 = vector.broadcast %2256 : f32 to vector<8x128xf32>
    %2258 = arith.mulf %2255, %2120 : vector<8x128xf32>
    %2259 = arith.mulf %2257, %2223 : vector<8x128xf32>
    %2260 = arith.addf %2258, %2259 : vector<8x128xf32>
    %2261 = arith.mulf %2255, %2123 : vector<8x128xf32>
    %2262 = arith.mulf %2257, %2220 : vector<8x128xf32>
    %2263 = arith.subf %2261, %2262 : vector<8x128xf32>
    %2264 = arith.mulf %2255, %2220 : vector<8x128xf32>
    %2265 = arith.mulf %2257, %2123 : vector<8x128xf32>
    %2266 = arith.addf %2264, %2265 : vector<8x128xf32>
    %2267 = arith.mulf %2255, %2223 : vector<8x128xf32>
    %2268 = arith.mulf %2257, %2120 : vector<8x128xf32>
    %2269 = arith.subf %2267, %2268 : vector<8x128xf32>
    %2270 = arith.mulf %2255, %2144 : vector<8x128xf32>
    %2271 = arith.mulf %2257, %2247 : vector<8x128xf32>
    %2272 = arith.addf %2270, %2271 : vector<8x128xf32>
    %2273 = arith.mulf %2255, %2147 : vector<8x128xf32>
    %2274 = arith.mulf %2257, %2244 : vector<8x128xf32>
    %2275 = arith.subf %2273, %2274 : vector<8x128xf32>
    %2276 = arith.mulf %2255, %2244 : vector<8x128xf32>
    %2277 = arith.mulf %2257, %2147 : vector<8x128xf32>
    %2278 = arith.addf %2276, %2277 : vector<8x128xf32>
    %2279 = arith.mulf %2255, %2247 : vector<8x128xf32>
    %2280 = arith.mulf %2257, %2144 : vector<8x128xf32>
    %2281 = arith.subf %2279, %2280 : vector<8x128xf32>
    %2282 = arith.mulf %2255, %2168 : vector<8x128xf32>
    %2283 = arith.mulf %2257, %2229 : vector<8x128xf32>
    %2284 = arith.addf %2282, %2283 : vector<8x128xf32>
    %2285 = arith.mulf %2255, %2171 : vector<8x128xf32>
    %2286 = arith.mulf %2257, %2226 : vector<8x128xf32>
    %2287 = arith.subf %2285, %2286 : vector<8x128xf32>
    %2288 = arith.mulf %2255, %2226 : vector<8x128xf32>
    %2289 = arith.mulf %2257, %2171 : vector<8x128xf32>
    %2290 = arith.addf %2288, %2289 : vector<8x128xf32>
    %2291 = arith.mulf %2255, %2229 : vector<8x128xf32>
    %2292 = arith.mulf %2257, %2168 : vector<8x128xf32>
    %2293 = arith.subf %2291, %2292 : vector<8x128xf32>
    %2294 = arith.mulf %2255, %2192 : vector<8x128xf32>
    %2295 = arith.mulf %2257, %2253 : vector<8x128xf32>
    %2296 = arith.addf %2294, %2295 : vector<8x128xf32>
    %2297 = arith.mulf %2255, %2195 : vector<8x128xf32>
    %2298 = arith.mulf %2257, %2250 : vector<8x128xf32>
    %2299 = arith.subf %2297, %2298 : vector<8x128xf32>
    %2300 = arith.mulf %2255, %2250 : vector<8x128xf32>
    %2301 = arith.mulf %2257, %2195 : vector<8x128xf32>
    %2302 = arith.addf %2300, %2301 : vector<8x128xf32>
    %2303 = arith.mulf %2255, %2253 : vector<8x128xf32>
    %2304 = arith.mulf %2257, %2192 : vector<8x128xf32>
    %2305 = arith.subf %2303, %2304 : vector<8x128xf32>
    %c64 = arith.constant 64 : index
    %2306 = memref.load %arg1[%c64] : memref<120xf32, #tpu.memory_space<smem>>
    %2307 = vector.broadcast %2306 : f32 to vector<8x128xf32>
    %c65 = arith.constant 65 : index
    %2308 = memref.load %arg1[%c65] : memref<120xf32, #tpu.memory_space<smem>>
    %2309 = vector.broadcast %2308 : f32 to vector<8x128xf32>
    %2310 = arith.mulf %2307, %2132 : vector<8x128xf32>
    %2311 = arith.mulf %2309, %2275 : vector<8x128xf32>
    %2312 = arith.addf %2310, %2311 : vector<8x128xf32>
    %2313 = arith.mulf %2307, %2135 : vector<8x128xf32>
    %2314 = arith.mulf %2309, %2272 : vector<8x128xf32>
    %2315 = arith.subf %2313, %2314 : vector<8x128xf32>
    %2316 = arith.mulf %2307, %2272 : vector<8x128xf32>
    %2317 = arith.mulf %2309, %2135 : vector<8x128xf32>
    %2318 = arith.addf %2316, %2317 : vector<8x128xf32>
    %2319 = arith.mulf %2307, %2275 : vector<8x128xf32>
    %2320 = arith.mulf %2309, %2132 : vector<8x128xf32>
    %2321 = arith.subf %2319, %2320 : vector<8x128xf32>
    %2322 = arith.mulf %2307, %2232 : vector<8x128xf32>
    %2323 = arith.mulf %2309, %2281 : vector<8x128xf32>
    %2324 = arith.addf %2322, %2323 : vector<8x128xf32>
    %2325 = arith.mulf %2307, %2235 : vector<8x128xf32>
    %2326 = arith.mulf %2309, %2278 : vector<8x128xf32>
    %2327 = arith.subf %2325, %2326 : vector<8x128xf32>
    %2328 = arith.mulf %2307, %2278 : vector<8x128xf32>
    %2329 = arith.mulf %2309, %2235 : vector<8x128xf32>
    %2330 = arith.addf %2328, %2329 : vector<8x128xf32>
    %2331 = arith.mulf %2307, %2281 : vector<8x128xf32>
    %2332 = arith.mulf %2309, %2232 : vector<8x128xf32>
    %2333 = arith.subf %2331, %2332 : vector<8x128xf32>
    %2334 = arith.mulf %2307, %2180 : vector<8x128xf32>
    %2335 = arith.mulf %2309, %2299 : vector<8x128xf32>
    %2336 = arith.addf %2334, %2335 : vector<8x128xf32>
    %2337 = arith.mulf %2307, %2183 : vector<8x128xf32>
    %2338 = arith.mulf %2309, %2296 : vector<8x128xf32>
    %2339 = arith.subf %2337, %2338 : vector<8x128xf32>
    %2340 = arith.mulf %2307, %2296 : vector<8x128xf32>
    %2341 = arith.mulf %2309, %2183 : vector<8x128xf32>
    %2342 = arith.addf %2340, %2341 : vector<8x128xf32>
    %2343 = arith.mulf %2307, %2299 : vector<8x128xf32>
    %2344 = arith.mulf %2309, %2180 : vector<8x128xf32>
    %2345 = arith.subf %2343, %2344 : vector<8x128xf32>
    %2346 = arith.mulf %2307, %2238 : vector<8x128xf32>
    %2347 = arith.mulf %2309, %2305 : vector<8x128xf32>
    %2348 = arith.addf %2346, %2347 : vector<8x128xf32>
    %2349 = arith.mulf %2307, %2241 : vector<8x128xf32>
    %2350 = arith.mulf %2309, %2302 : vector<8x128xf32>
    %2351 = arith.subf %2349, %2350 : vector<8x128xf32>
    %2352 = arith.mulf %2307, %2302 : vector<8x128xf32>
    %2353 = arith.mulf %2309, %2241 : vector<8x128xf32>
    %2354 = arith.addf %2352, %2353 : vector<8x128xf32>
    %2355 = arith.mulf %2307, %2305 : vector<8x128xf32>
    %2356 = arith.mulf %2309, %2238 : vector<8x128xf32>
    %2357 = arith.subf %2355, %2356 : vector<8x128xf32>
    %c74 = arith.constant 74 : index
    %2358 = memref.load %arg1[%c74] : memref<120xf32, #tpu.memory_space<smem>>
    %2359 = vector.broadcast %2358 : f32 to vector<8x128xf32>
    %c75 = arith.constant 75 : index
    %2360 = memref.load %arg1[%c75] : memref<120xf32, #tpu.memory_space<smem>>
    %2361 = vector.broadcast %2360 : f32 to vector<8x128xf32>
    %2362 = arith.mulf %2359, %2156 : vector<8x128xf32>
    %2363 = arith.mulf %2361, %2339 : vector<8x128xf32>
    %2364 = arith.addf %2362, %2363 : vector<8x128xf32>
    %2365 = arith.mulf %2359, %2159 : vector<8x128xf32>
    %2366 = arith.mulf %2361, %2336 : vector<8x128xf32>
    %2367 = arith.subf %2365, %2366 : vector<8x128xf32>
    %2368 = arith.mulf %2359, %2336 : vector<8x128xf32>
    %2369 = arith.mulf %2361, %2159 : vector<8x128xf32>
    %2370 = arith.addf %2368, %2369 : vector<8x128xf32>
    %2371 = arith.mulf %2359, %2339 : vector<8x128xf32>
    %2372 = arith.mulf %2361, %2156 : vector<8x128xf32>
    %2373 = arith.subf %2371, %2372 : vector<8x128xf32>
    %2374 = arith.mulf %2359, %2214 : vector<8x128xf32>
    %2375 = arith.mulf %2361, %2351 : vector<8x128xf32>
    %2376 = arith.addf %2374, %2375 : vector<8x128xf32>
    %2377 = arith.mulf %2359, %2217 : vector<8x128xf32>
    %2378 = arith.mulf %2361, %2348 : vector<8x128xf32>
    %2379 = arith.subf %2377, %2378 : vector<8x128xf32>
    %2380 = arith.mulf %2359, %2348 : vector<8x128xf32>
    %2381 = arith.mulf %2361, %2217 : vector<8x128xf32>
    %2382 = arith.addf %2380, %2381 : vector<8x128xf32>
    %2383 = arith.mulf %2359, %2351 : vector<8x128xf32>
    %2384 = arith.mulf %2361, %2214 : vector<8x128xf32>
    %2385 = arith.subf %2383, %2384 : vector<8x128xf32>
    %2386 = arith.mulf %2359, %2284 : vector<8x128xf32>
    %2387 = arith.mulf %2361, %2345 : vector<8x128xf32>
    %2388 = arith.addf %2386, %2387 : vector<8x128xf32>
    %2389 = arith.mulf %2359, %2287 : vector<8x128xf32>
    %2390 = arith.mulf %2361, %2342 : vector<8x128xf32>
    %2391 = arith.subf %2389, %2390 : vector<8x128xf32>
    %2392 = arith.mulf %2359, %2342 : vector<8x128xf32>
    %2393 = arith.mulf %2361, %2287 : vector<8x128xf32>
    %2394 = arith.addf %2392, %2393 : vector<8x128xf32>
    %2395 = arith.mulf %2359, %2345 : vector<8x128xf32>
    %2396 = arith.mulf %2361, %2284 : vector<8x128xf32>
    %2397 = arith.subf %2395, %2396 : vector<8x128xf32>
    %2398 = arith.mulf %2359, %2290 : vector<8x128xf32>
    %2399 = arith.mulf %2361, %2357 : vector<8x128xf32>
    %2400 = arith.addf %2398, %2399 : vector<8x128xf32>
    %2401 = arith.mulf %2359, %2293 : vector<8x128xf32>
    %2402 = arith.mulf %2361, %2354 : vector<8x128xf32>
    %2403 = arith.subf %2401, %2402 : vector<8x128xf32>
    %2404 = arith.mulf %2359, %2354 : vector<8x128xf32>
    %2405 = arith.mulf %2361, %2293 : vector<8x128xf32>
    %2406 = arith.addf %2404, %2405 : vector<8x128xf32>
    %2407 = arith.mulf %2359, %2357 : vector<8x128xf32>
    %2408 = arith.mulf %2361, %2290 : vector<8x128xf32>
    %2409 = arith.subf %2407, %2408 : vector<8x128xf32>
    %c46 = arith.constant 46 : index
    %2410 = memref.load %arg1[%c46] : memref<120xf32, #tpu.memory_space<smem>>
    %2411 = vector.broadcast %2410 : f32 to vector<8x128xf32>
    %c47 = arith.constant 47 : index
    %2412 = memref.load %arg1[%c47] : memref<120xf32, #tpu.memory_space<smem>>
    %2413 = vector.broadcast %2412 : f32 to vector<8x128xf32>
    %2414 = arith.mulf %1, %2411 : vector<8x128xf32>
    %2415 = arith.mulf %3, %2413 : vector<8x128xf32>
    %2416 = arith.subf %2414, %2415 : vector<8x128xf32>
    %2417 = arith.mulf %3, %2411 : vector<8x128xf32>
    %2418 = arith.mulf %1, %2413 : vector<8x128xf32>
    %2419 = arith.addf %2417, %2418 : vector<8x128xf32>
    %2420 = arith.mulf %2416, %2108 : vector<8x128xf32>
    %2421 = arith.mulf %2419, %2367 : vector<8x128xf32>
    %2422 = arith.addf %2420, %2421 : vector<8x128xf32>
    %2423 = arith.mulf %2416, %2111 : vector<8x128xf32>
    %2424 = arith.mulf %2419, %2364 : vector<8x128xf32>
    %2425 = arith.subf %2423, %2424 : vector<8x128xf32>
    %2426 = arith.mulf %2416, %2364 : vector<8x128xf32>
    %2427 = arith.mulf %2419, %2111 : vector<8x128xf32>
    %2428 = arith.addf %2426, %2427 : vector<8x128xf32>
    %2429 = arith.mulf %2416, %2367 : vector<8x128xf32>
    %2430 = arith.mulf %2419, %2108 : vector<8x128xf32>
    %2431 = arith.subf %2429, %2430 : vector<8x128xf32>
    %2432 = arith.mulf %2416, %2208 : vector<8x128xf32>
    %2433 = arith.mulf %2419, %2379 : vector<8x128xf32>
    %2434 = arith.addf %2432, %2433 : vector<8x128xf32>
    %2435 = arith.mulf %2416, %2211 : vector<8x128xf32>
    %2436 = arith.mulf %2419, %2376 : vector<8x128xf32>
    %2437 = arith.subf %2435, %2436 : vector<8x128xf32>
    %2438 = arith.mulf %2416, %2376 : vector<8x128xf32>
    %2439 = arith.mulf %2419, %2211 : vector<8x128xf32>
    %2440 = arith.addf %2438, %2439 : vector<8x128xf32>
    %2441 = arith.mulf %2416, %2379 : vector<8x128xf32>
    %2442 = arith.mulf %2419, %2208 : vector<8x128xf32>
    %2443 = arith.subf %2441, %2442 : vector<8x128xf32>
    %2444 = arith.mulf %2416, %2260 : vector<8x128xf32>
    %2445 = arith.mulf %2419, %2391 : vector<8x128xf32>
    %2446 = arith.addf %2444, %2445 : vector<8x128xf32>
    %2447 = arith.mulf %2416, %2263 : vector<8x128xf32>
    %2448 = arith.mulf %2419, %2388 : vector<8x128xf32>
    %2449 = arith.subf %2447, %2448 : vector<8x128xf32>
    %2450 = arith.mulf %2416, %2388 : vector<8x128xf32>
    %2451 = arith.mulf %2419, %2263 : vector<8x128xf32>
    %2452 = arith.addf %2450, %2451 : vector<8x128xf32>
    %2453 = arith.mulf %2416, %2391 : vector<8x128xf32>
    %2454 = arith.mulf %2419, %2260 : vector<8x128xf32>
    %2455 = arith.subf %2453, %2454 : vector<8x128xf32>
    %2456 = arith.mulf %2416, %2266 : vector<8x128xf32>
    %2457 = arith.mulf %2419, %2403 : vector<8x128xf32>
    %2458 = arith.addf %2456, %2457 : vector<8x128xf32>
    %2459 = arith.mulf %2416, %2269 : vector<8x128xf32>
    %2460 = arith.mulf %2419, %2400 : vector<8x128xf32>
    %2461 = arith.subf %2459, %2460 : vector<8x128xf32>
    %2462 = arith.mulf %2416, %2400 : vector<8x128xf32>
    %2463 = arith.mulf %2419, %2269 : vector<8x128xf32>
    %2464 = arith.addf %2462, %2463 : vector<8x128xf32>
    %2465 = arith.mulf %2416, %2403 : vector<8x128xf32>
    %2466 = arith.mulf %2419, %2266 : vector<8x128xf32>
    %2467 = arith.subf %2465, %2466 : vector<8x128xf32>
    %2468 = arith.mulf %2416, %2312 : vector<8x128xf32>
    %2469 = arith.mulf %2419, %2373 : vector<8x128xf32>
    %2470 = arith.addf %2468, %2469 : vector<8x128xf32>
    %2471 = arith.mulf %2416, %2315 : vector<8x128xf32>
    %2472 = arith.mulf %2419, %2370 : vector<8x128xf32>
    %2473 = arith.subf %2471, %2472 : vector<8x128xf32>
    %2474 = arith.mulf %2416, %2370 : vector<8x128xf32>
    %2475 = arith.mulf %2419, %2315 : vector<8x128xf32>
    %2476 = arith.addf %2474, %2475 : vector<8x128xf32>
    %2477 = arith.mulf %2416, %2373 : vector<8x128xf32>
    %2478 = arith.mulf %2419, %2312 : vector<8x128xf32>
    %2479 = arith.subf %2477, %2478 : vector<8x128xf32>
    %2480 = arith.mulf %2416, %2324 : vector<8x128xf32>
    %2481 = arith.mulf %2419, %2385 : vector<8x128xf32>
    %2482 = arith.addf %2480, %2481 : vector<8x128xf32>
    %2483 = arith.mulf %2416, %2327 : vector<8x128xf32>
    %2484 = arith.mulf %2419, %2382 : vector<8x128xf32>
    %2485 = arith.subf %2483, %2484 : vector<8x128xf32>
    %2486 = arith.mulf %2416, %2382 : vector<8x128xf32>
    %2487 = arith.mulf %2419, %2327 : vector<8x128xf32>
    %2488 = arith.addf %2486, %2487 : vector<8x128xf32>
    %2489 = arith.mulf %2416, %2385 : vector<8x128xf32>
    %2490 = arith.mulf %2419, %2324 : vector<8x128xf32>
    %2491 = arith.subf %2489, %2490 : vector<8x128xf32>
    %2492 = arith.mulf %2416, %2318 : vector<8x128xf32>
    %2493 = arith.mulf %2419, %2397 : vector<8x128xf32>
    %2494 = arith.addf %2492, %2493 : vector<8x128xf32>
    %2495 = arith.mulf %2416, %2321 : vector<8x128xf32>
    %2496 = arith.mulf %2419, %2394 : vector<8x128xf32>
    %2497 = arith.subf %2495, %2496 : vector<8x128xf32>
    %2498 = arith.mulf %2416, %2394 : vector<8x128xf32>
    %2499 = arith.mulf %2419, %2321 : vector<8x128xf32>
    %2500 = arith.addf %2498, %2499 : vector<8x128xf32>
    %2501 = arith.mulf %2416, %2397 : vector<8x128xf32>
    %2502 = arith.mulf %2419, %2318 : vector<8x128xf32>
    %2503 = arith.subf %2501, %2502 : vector<8x128xf32>
    %2504 = arith.mulf %2416, %2330 : vector<8x128xf32>
    %2505 = arith.mulf %2419, %2409 : vector<8x128xf32>
    %2506 = arith.addf %2504, %2505 : vector<8x128xf32>
    %2507 = arith.mulf %2416, %2333 : vector<8x128xf32>
    %2508 = arith.mulf %2419, %2406 : vector<8x128xf32>
    %2509 = arith.subf %2507, %2508 : vector<8x128xf32>
    %2510 = arith.mulf %2416, %2406 : vector<8x128xf32>
    %2511 = arith.mulf %2419, %2333 : vector<8x128xf32>
    %2512 = arith.addf %2510, %2511 : vector<8x128xf32>
    %2513 = arith.mulf %2416, %2409 : vector<8x128xf32>
    %2514 = arith.mulf %2419, %2330 : vector<8x128xf32>
    %2515 = arith.subf %2513, %2514 : vector<8x128xf32>
    %c56 = arith.constant 56 : index
    %2516 = memref.load %arg1[%c56] : memref<120xf32, #tpu.memory_space<smem>>
    %2517 = vector.broadcast %2516 : f32 to vector<8x128xf32>
    %c57 = arith.constant 57 : index
    %2518 = memref.load %arg1[%c57] : memref<120xf32, #tpu.memory_space<smem>>
    %2519 = vector.broadcast %2518 : f32 to vector<8x128xf32>
    %2520 = arith.mulf %1, %2517 : vector<8x128xf32>
    %2521 = arith.mulf %3, %2519 : vector<8x128xf32>
    %2522 = arith.subf %2520, %2521 : vector<8x128xf32>
    %2523 = arith.mulf %3, %2517 : vector<8x128xf32>
    %2524 = arith.mulf %1, %2519 : vector<8x128xf32>
    %2525 = arith.addf %2523, %2524 : vector<8x128xf32>
    %2526 = arith.mulf %2522, %2422 : vector<8x128xf32>
    %2527 = arith.mulf %2525, %2473 : vector<8x128xf32>
    %2528 = arith.addf %2526, %2527 : vector<8x128xf32>
    %2529 = arith.mulf %2522, %2425 : vector<8x128xf32>
    %2530 = arith.mulf %2525, %2470 : vector<8x128xf32>
    %2531 = arith.subf %2529, %2530 : vector<8x128xf32>
    %2532 = arith.mulf %2522, %2470 : vector<8x128xf32>
    %2533 = arith.mulf %2525, %2425 : vector<8x128xf32>
    %2534 = arith.addf %2532, %2533 : vector<8x128xf32>
    %2535 = arith.mulf %2522, %2473 : vector<8x128xf32>
    %2536 = arith.mulf %2525, %2422 : vector<8x128xf32>
    %2537 = arith.subf %2535, %2536 : vector<8x128xf32>
    %2538 = arith.mulf %2522, %2434 : vector<8x128xf32>
    %2539 = arith.mulf %2525, %2485 : vector<8x128xf32>
    %2540 = arith.addf %2538, %2539 : vector<8x128xf32>
    %2541 = arith.mulf %2522, %2437 : vector<8x128xf32>
    %2542 = arith.mulf %2525, %2482 : vector<8x128xf32>
    %2543 = arith.subf %2541, %2542 : vector<8x128xf32>
    %2544 = arith.mulf %2522, %2482 : vector<8x128xf32>
    %2545 = arith.mulf %2525, %2437 : vector<8x128xf32>
    %2546 = arith.addf %2544, %2545 : vector<8x128xf32>
    %2547 = arith.mulf %2522, %2485 : vector<8x128xf32>
    %2548 = arith.mulf %2525, %2434 : vector<8x128xf32>
    %2549 = arith.subf %2547, %2548 : vector<8x128xf32>
    %2550 = arith.mulf %2522, %2446 : vector<8x128xf32>
    %2551 = arith.mulf %2525, %2497 : vector<8x128xf32>
    %2552 = arith.addf %2550, %2551 : vector<8x128xf32>
    %2553 = arith.mulf %2522, %2449 : vector<8x128xf32>
    %2554 = arith.mulf %2525, %2494 : vector<8x128xf32>
    %2555 = arith.subf %2553, %2554 : vector<8x128xf32>
    %2556 = arith.mulf %2522, %2494 : vector<8x128xf32>
    %2557 = arith.mulf %2525, %2449 : vector<8x128xf32>
    %2558 = arith.addf %2556, %2557 : vector<8x128xf32>
    %2559 = arith.mulf %2522, %2497 : vector<8x128xf32>
    %2560 = arith.mulf %2525, %2446 : vector<8x128xf32>
    %2561 = arith.subf %2559, %2560 : vector<8x128xf32>
    %2562 = arith.mulf %2522, %2458 : vector<8x128xf32>
    %2563 = arith.mulf %2525, %2509 : vector<8x128xf32>
    %2564 = arith.addf %2562, %2563 : vector<8x128xf32>
    %2565 = arith.mulf %2522, %2461 : vector<8x128xf32>
    %2566 = arith.mulf %2525, %2506 : vector<8x128xf32>
    %2567 = arith.subf %2565, %2566 : vector<8x128xf32>
    %2568 = arith.mulf %2522, %2506 : vector<8x128xf32>
    %2569 = arith.mulf %2525, %2461 : vector<8x128xf32>
    %2570 = arith.addf %2568, %2569 : vector<8x128xf32>
    %2571 = arith.mulf %2522, %2509 : vector<8x128xf32>
    %2572 = arith.mulf %2525, %2458 : vector<8x128xf32>
    %2573 = arith.subf %2571, %2572 : vector<8x128xf32>
    %2574 = arith.mulf %2522, %2428 : vector<8x128xf32>
    %2575 = arith.mulf %2525, %2479 : vector<8x128xf32>
    %2576 = arith.addf %2574, %2575 : vector<8x128xf32>
    %2577 = arith.mulf %2522, %2431 : vector<8x128xf32>
    %2578 = arith.mulf %2525, %2476 : vector<8x128xf32>
    %2579 = arith.subf %2577, %2578 : vector<8x128xf32>
    %2580 = arith.mulf %2522, %2476 : vector<8x128xf32>
    %2581 = arith.mulf %2525, %2431 : vector<8x128xf32>
    %2582 = arith.addf %2580, %2581 : vector<8x128xf32>
    %2583 = arith.mulf %2522, %2479 : vector<8x128xf32>
    %2584 = arith.mulf %2525, %2428 : vector<8x128xf32>
    %2585 = arith.subf %2583, %2584 : vector<8x128xf32>
    %2586 = arith.mulf %2522, %2440 : vector<8x128xf32>
    %2587 = arith.mulf %2525, %2491 : vector<8x128xf32>
    %2588 = arith.addf %2586, %2587 : vector<8x128xf32>
    %2589 = arith.mulf %2522, %2443 : vector<8x128xf32>
    %2590 = arith.mulf %2525, %2488 : vector<8x128xf32>
    %2591 = arith.subf %2589, %2590 : vector<8x128xf32>
    %2592 = arith.mulf %2522, %2488 : vector<8x128xf32>
    %2593 = arith.mulf %2525, %2443 : vector<8x128xf32>
    %2594 = arith.addf %2592, %2593 : vector<8x128xf32>
    %2595 = arith.mulf %2522, %2491 : vector<8x128xf32>
    %2596 = arith.mulf %2525, %2440 : vector<8x128xf32>
    %2597 = arith.subf %2595, %2596 : vector<8x128xf32>
    %2598 = arith.mulf %2522, %2452 : vector<8x128xf32>
    %2599 = arith.mulf %2525, %2503 : vector<8x128xf32>
    %2600 = arith.addf %2598, %2599 : vector<8x128xf32>
    %2601 = arith.mulf %2522, %2455 : vector<8x128xf32>
    %2602 = arith.mulf %2525, %2500 : vector<8x128xf32>
    %2603 = arith.subf %2601, %2602 : vector<8x128xf32>
    %2604 = arith.mulf %2522, %2500 : vector<8x128xf32>
    %2605 = arith.mulf %2525, %2455 : vector<8x128xf32>
    %2606 = arith.addf %2604, %2605 : vector<8x128xf32>
    %2607 = arith.mulf %2522, %2503 : vector<8x128xf32>
    %2608 = arith.mulf %2525, %2452 : vector<8x128xf32>
    %2609 = arith.subf %2607, %2608 : vector<8x128xf32>
    %2610 = arith.mulf %2522, %2464 : vector<8x128xf32>
    %2611 = arith.mulf %2525, %2515 : vector<8x128xf32>
    %2612 = arith.addf %2610, %2611 : vector<8x128xf32>
    %2613 = arith.mulf %2522, %2467 : vector<8x128xf32>
    %2614 = arith.mulf %2525, %2512 : vector<8x128xf32>
    %2615 = arith.subf %2613, %2614 : vector<8x128xf32>
    %2616 = arith.mulf %2522, %2512 : vector<8x128xf32>
    %2617 = arith.mulf %2525, %2467 : vector<8x128xf32>
    %2618 = arith.addf %2616, %2617 : vector<8x128xf32>
    %2619 = arith.mulf %2522, %2515 : vector<8x128xf32>
    %2620 = arith.mulf %2525, %2464 : vector<8x128xf32>
    %2621 = arith.subf %2619, %2620 : vector<8x128xf32>
    %c66 = arith.constant 66 : index
    %2622 = memref.load %arg1[%c66] : memref<120xf32, #tpu.memory_space<smem>>
    %2623 = vector.broadcast %2622 : f32 to vector<8x128xf32>
    %c67 = arith.constant 67 : index
    %2624 = memref.load %arg1[%c67] : memref<120xf32, #tpu.memory_space<smem>>
    %2625 = vector.broadcast %2624 : f32 to vector<8x128xf32>
    %2626 = arith.mulf %1, %2623 : vector<8x128xf32>
    %2627 = arith.mulf %3, %2625 : vector<8x128xf32>
    %2628 = arith.subf %2626, %2627 : vector<8x128xf32>
    %2629 = arith.mulf %3, %2623 : vector<8x128xf32>
    %2630 = arith.mulf %1, %2625 : vector<8x128xf32>
    %2631 = arith.addf %2629, %2630 : vector<8x128xf32>
    %2632 = arith.mulf %2628, %2528 : vector<8x128xf32>
    %2633 = arith.mulf %2631, %2555 : vector<8x128xf32>
    %2634 = arith.addf %2632, %2633 : vector<8x128xf32>
    %2635 = arith.mulf %2628, %2531 : vector<8x128xf32>
    %2636 = arith.mulf %2631, %2552 : vector<8x128xf32>
    %2637 = arith.subf %2635, %2636 : vector<8x128xf32>
    %2638 = arith.mulf %2628, %2552 : vector<8x128xf32>
    %2639 = arith.mulf %2631, %2531 : vector<8x128xf32>
    %2640 = arith.addf %2638, %2639 : vector<8x128xf32>
    %2641 = arith.mulf %2628, %2555 : vector<8x128xf32>
    %2642 = arith.mulf %2631, %2528 : vector<8x128xf32>
    %2643 = arith.subf %2641, %2642 : vector<8x128xf32>
    %2644 = arith.mulf %2628, %2540 : vector<8x128xf32>
    %2645 = arith.mulf %2631, %2567 : vector<8x128xf32>
    %2646 = arith.addf %2644, %2645 : vector<8x128xf32>
    %2647 = arith.mulf %2628, %2543 : vector<8x128xf32>
    %2648 = arith.mulf %2631, %2564 : vector<8x128xf32>
    %2649 = arith.subf %2647, %2648 : vector<8x128xf32>
    %2650 = arith.mulf %2628, %2564 : vector<8x128xf32>
    %2651 = arith.mulf %2631, %2543 : vector<8x128xf32>
    %2652 = arith.addf %2650, %2651 : vector<8x128xf32>
    %2653 = arith.mulf %2628, %2567 : vector<8x128xf32>
    %2654 = arith.mulf %2631, %2540 : vector<8x128xf32>
    %2655 = arith.subf %2653, %2654 : vector<8x128xf32>
    %2656 = arith.mulf %2628, %2534 : vector<8x128xf32>
    %2657 = arith.mulf %2631, %2561 : vector<8x128xf32>
    %2658 = arith.addf %2656, %2657 : vector<8x128xf32>
    %2659 = arith.mulf %2628, %2537 : vector<8x128xf32>
    %2660 = arith.mulf %2631, %2558 : vector<8x128xf32>
    %2661 = arith.subf %2659, %2660 : vector<8x128xf32>
    %2662 = arith.mulf %2628, %2558 : vector<8x128xf32>
    %2663 = arith.mulf %2631, %2537 : vector<8x128xf32>
    %2664 = arith.addf %2662, %2663 : vector<8x128xf32>
    %2665 = arith.mulf %2628, %2561 : vector<8x128xf32>
    %2666 = arith.mulf %2631, %2534 : vector<8x128xf32>
    %2667 = arith.subf %2665, %2666 : vector<8x128xf32>
    %2668 = arith.mulf %2628, %2546 : vector<8x128xf32>
    %2669 = arith.mulf %2631, %2573 : vector<8x128xf32>
    %2670 = arith.addf %2668, %2669 : vector<8x128xf32>
    %2671 = arith.mulf %2628, %2549 : vector<8x128xf32>
    %2672 = arith.mulf %2631, %2570 : vector<8x128xf32>
    %2673 = arith.subf %2671, %2672 : vector<8x128xf32>
    %2674 = arith.mulf %2628, %2570 : vector<8x128xf32>
    %2675 = arith.mulf %2631, %2549 : vector<8x128xf32>
    %2676 = arith.addf %2674, %2675 : vector<8x128xf32>
    %2677 = arith.mulf %2628, %2573 : vector<8x128xf32>
    %2678 = arith.mulf %2631, %2546 : vector<8x128xf32>
    %2679 = arith.subf %2677, %2678 : vector<8x128xf32>
    %2680 = arith.mulf %2628, %2576 : vector<8x128xf32>
    %2681 = arith.mulf %2631, %2603 : vector<8x128xf32>
    %2682 = arith.addf %2680, %2681 : vector<8x128xf32>
    %2683 = arith.mulf %2628, %2579 : vector<8x128xf32>
    %2684 = arith.mulf %2631, %2600 : vector<8x128xf32>
    %2685 = arith.subf %2683, %2684 : vector<8x128xf32>
    %2686 = arith.mulf %2628, %2600 : vector<8x128xf32>
    %2687 = arith.mulf %2631, %2579 : vector<8x128xf32>
    %2688 = arith.addf %2686, %2687 : vector<8x128xf32>
    %2689 = arith.mulf %2628, %2603 : vector<8x128xf32>
    %2690 = arith.mulf %2631, %2576 : vector<8x128xf32>
    %2691 = arith.subf %2689, %2690 : vector<8x128xf32>
    %2692 = arith.mulf %2628, %2588 : vector<8x128xf32>
    %2693 = arith.mulf %2631, %2615 : vector<8x128xf32>
    %2694 = arith.addf %2692, %2693 : vector<8x128xf32>
    %2695 = arith.mulf %2628, %2591 : vector<8x128xf32>
    %2696 = arith.mulf %2631, %2612 : vector<8x128xf32>
    %2697 = arith.subf %2695, %2696 : vector<8x128xf32>
    %2698 = arith.mulf %2628, %2612 : vector<8x128xf32>
    %2699 = arith.mulf %2631, %2591 : vector<8x128xf32>
    %2700 = arith.addf %2698, %2699 : vector<8x128xf32>
    %2701 = arith.mulf %2628, %2615 : vector<8x128xf32>
    %2702 = arith.mulf %2631, %2588 : vector<8x128xf32>
    %2703 = arith.subf %2701, %2702 : vector<8x128xf32>
    %2704 = arith.mulf %2628, %2582 : vector<8x128xf32>
    %2705 = arith.mulf %2631, %2609 : vector<8x128xf32>
    %2706 = arith.addf %2704, %2705 : vector<8x128xf32>
    %2707 = arith.mulf %2628, %2585 : vector<8x128xf32>
    %2708 = arith.mulf %2631, %2606 : vector<8x128xf32>
    %2709 = arith.subf %2707, %2708 : vector<8x128xf32>
    %2710 = arith.mulf %2628, %2606 : vector<8x128xf32>
    %2711 = arith.mulf %2631, %2585 : vector<8x128xf32>
    %2712 = arith.addf %2710, %2711 : vector<8x128xf32>
    %2713 = arith.mulf %2628, %2609 : vector<8x128xf32>
    %2714 = arith.mulf %2631, %2582 : vector<8x128xf32>
    %2715 = arith.subf %2713, %2714 : vector<8x128xf32>
    %2716 = arith.mulf %2628, %2594 : vector<8x128xf32>
    %2717 = arith.mulf %2631, %2621 : vector<8x128xf32>
    %2718 = arith.addf %2716, %2717 : vector<8x128xf32>
    %2719 = arith.mulf %2628, %2597 : vector<8x128xf32>
    %2720 = arith.mulf %2631, %2618 : vector<8x128xf32>
    %2721 = arith.subf %2719, %2720 : vector<8x128xf32>
    %2722 = arith.mulf %2628, %2618 : vector<8x128xf32>
    %2723 = arith.mulf %2631, %2597 : vector<8x128xf32>
    %2724 = arith.addf %2722, %2723 : vector<8x128xf32>
    %2725 = arith.mulf %2628, %2621 : vector<8x128xf32>
    %2726 = arith.mulf %2631, %2594 : vector<8x128xf32>
    %2727 = arith.subf %2725, %2726 : vector<8x128xf32>
    %c76 = arith.constant 76 : index
    %2728 = memref.load %arg1[%c76] : memref<120xf32, #tpu.memory_space<smem>>
    %2729 = vector.broadcast %2728 : f32 to vector<8x128xf32>
    %c77 = arith.constant 77 : index
    %2730 = memref.load %arg1[%c77] : memref<120xf32, #tpu.memory_space<smem>>
    %2731 = vector.broadcast %2730 : f32 to vector<8x128xf32>
    %2732 = arith.mulf %1, %2729 : vector<8x128xf32>
    %2733 = arith.mulf %3, %2731 : vector<8x128xf32>
    %2734 = arith.subf %2732, %2733 : vector<8x128xf32>
    %2735 = arith.mulf %3, %2729 : vector<8x128xf32>
    %2736 = arith.mulf %1, %2731 : vector<8x128xf32>
    %2737 = arith.addf %2735, %2736 : vector<8x128xf32>
    %2738 = arith.mulf %2734, %2634 : vector<8x128xf32>
    %2739 = arith.mulf %2737, %2649 : vector<8x128xf32>
    %2740 = arith.addf %2738, %2739 : vector<8x128xf32>
    %2741 = arith.mulf %2734, %2637 : vector<8x128xf32>
    %2742 = arith.mulf %2737, %2646 : vector<8x128xf32>
    %2743 = arith.subf %2741, %2742 : vector<8x128xf32>
    %2744 = arith.mulf %2734, %2646 : vector<8x128xf32>
    %2745 = arith.mulf %2737, %2637 : vector<8x128xf32>
    %2746 = arith.addf %2744, %2745 : vector<8x128xf32>
    %2747 = arith.mulf %2734, %2649 : vector<8x128xf32>
    %2748 = arith.mulf %2737, %2634 : vector<8x128xf32>
    %2749 = arith.subf %2747, %2748 : vector<8x128xf32>
    %2750 = arith.mulf %2734, %2640 : vector<8x128xf32>
    %2751 = arith.mulf %2737, %2655 : vector<8x128xf32>
    %2752 = arith.addf %2750, %2751 : vector<8x128xf32>
    %2753 = arith.mulf %2734, %2643 : vector<8x128xf32>
    %2754 = arith.mulf %2737, %2652 : vector<8x128xf32>
    %2755 = arith.subf %2753, %2754 : vector<8x128xf32>
    %2756 = arith.mulf %2734, %2652 : vector<8x128xf32>
    %2757 = arith.mulf %2737, %2643 : vector<8x128xf32>
    %2758 = arith.addf %2756, %2757 : vector<8x128xf32>
    %2759 = arith.mulf %2734, %2655 : vector<8x128xf32>
    %2760 = arith.mulf %2737, %2640 : vector<8x128xf32>
    %2761 = arith.subf %2759, %2760 : vector<8x128xf32>
    %2762 = arith.mulf %2734, %2658 : vector<8x128xf32>
    %2763 = arith.mulf %2737, %2673 : vector<8x128xf32>
    %2764 = arith.addf %2762, %2763 : vector<8x128xf32>
    %2765 = arith.mulf %2734, %2661 : vector<8x128xf32>
    %2766 = arith.mulf %2737, %2670 : vector<8x128xf32>
    %2767 = arith.subf %2765, %2766 : vector<8x128xf32>
    %2768 = arith.mulf %2734, %2670 : vector<8x128xf32>
    %2769 = arith.mulf %2737, %2661 : vector<8x128xf32>
    %2770 = arith.addf %2768, %2769 : vector<8x128xf32>
    %2771 = arith.mulf %2734, %2673 : vector<8x128xf32>
    %2772 = arith.mulf %2737, %2658 : vector<8x128xf32>
    %2773 = arith.subf %2771, %2772 : vector<8x128xf32>
    %2774 = arith.mulf %2734, %2664 : vector<8x128xf32>
    %2775 = arith.mulf %2737, %2679 : vector<8x128xf32>
    %2776 = arith.addf %2774, %2775 : vector<8x128xf32>
    %2777 = arith.mulf %2734, %2667 : vector<8x128xf32>
    %2778 = arith.mulf %2737, %2676 : vector<8x128xf32>
    %2779 = arith.subf %2777, %2778 : vector<8x128xf32>
    %2780 = arith.mulf %2734, %2676 : vector<8x128xf32>
    %2781 = arith.mulf %2737, %2667 : vector<8x128xf32>
    %2782 = arith.addf %2780, %2781 : vector<8x128xf32>
    %2783 = arith.mulf %2734, %2679 : vector<8x128xf32>
    %2784 = arith.mulf %2737, %2664 : vector<8x128xf32>
    %2785 = arith.subf %2783, %2784 : vector<8x128xf32>
    %2786 = arith.mulf %2734, %2682 : vector<8x128xf32>
    %2787 = arith.mulf %2737, %2697 : vector<8x128xf32>
    %2788 = arith.addf %2786, %2787 : vector<8x128xf32>
    %2789 = arith.mulf %2734, %2685 : vector<8x128xf32>
    %2790 = arith.mulf %2737, %2694 : vector<8x128xf32>
    %2791 = arith.subf %2789, %2790 : vector<8x128xf32>
    %2792 = arith.mulf %2734, %2694 : vector<8x128xf32>
    %2793 = arith.mulf %2737, %2685 : vector<8x128xf32>
    %2794 = arith.addf %2792, %2793 : vector<8x128xf32>
    %2795 = arith.mulf %2734, %2697 : vector<8x128xf32>
    %2796 = arith.mulf %2737, %2682 : vector<8x128xf32>
    %2797 = arith.subf %2795, %2796 : vector<8x128xf32>
    %2798 = arith.mulf %2734, %2688 : vector<8x128xf32>
    %2799 = arith.mulf %2737, %2703 : vector<8x128xf32>
    %2800 = arith.addf %2798, %2799 : vector<8x128xf32>
    %2801 = arith.mulf %2734, %2691 : vector<8x128xf32>
    %2802 = arith.mulf %2737, %2700 : vector<8x128xf32>
    %2803 = arith.subf %2801, %2802 : vector<8x128xf32>
    %2804 = arith.mulf %2734, %2700 : vector<8x128xf32>
    %2805 = arith.mulf %2737, %2691 : vector<8x128xf32>
    %2806 = arith.addf %2804, %2805 : vector<8x128xf32>
    %2807 = arith.mulf %2734, %2703 : vector<8x128xf32>
    %2808 = arith.mulf %2737, %2688 : vector<8x128xf32>
    %2809 = arith.subf %2807, %2808 : vector<8x128xf32>
    %2810 = arith.mulf %2734, %2706 : vector<8x128xf32>
    %2811 = arith.mulf %2737, %2721 : vector<8x128xf32>
    %2812 = arith.addf %2810, %2811 : vector<8x128xf32>
    %2813 = arith.mulf %2734, %2709 : vector<8x128xf32>
    %2814 = arith.mulf %2737, %2718 : vector<8x128xf32>
    %2815 = arith.subf %2813, %2814 : vector<8x128xf32>
    %2816 = arith.mulf %2734, %2718 : vector<8x128xf32>
    %2817 = arith.mulf %2737, %2709 : vector<8x128xf32>
    %2818 = arith.addf %2816, %2817 : vector<8x128xf32>
    %2819 = arith.mulf %2734, %2721 : vector<8x128xf32>
    %2820 = arith.mulf %2737, %2706 : vector<8x128xf32>
    %2821 = arith.subf %2819, %2820 : vector<8x128xf32>
    %2822 = arith.mulf %2734, %2712 : vector<8x128xf32>
    %2823 = arith.mulf %2737, %2727 : vector<8x128xf32>
    %2824 = arith.addf %2822, %2823 : vector<8x128xf32>
    %2825 = arith.mulf %2734, %2715 : vector<8x128xf32>
    %2826 = arith.mulf %2737, %2724 : vector<8x128xf32>
    %2827 = arith.subf %2825, %2826 : vector<8x128xf32>
    %2828 = arith.mulf %2734, %2724 : vector<8x128xf32>
    %2829 = arith.mulf %2737, %2715 : vector<8x128xf32>
    %2830 = arith.addf %2828, %2829 : vector<8x128xf32>
    %2831 = arith.mulf %2734, %2727 : vector<8x128xf32>
    %2832 = arith.mulf %2737, %2712 : vector<8x128xf32>
    %2833 = arith.subf %2831, %2832 : vector<8x128xf32>
    %c48 = arith.constant 48 : index
    %2834 = memref.load %arg1[%c48] : memref<120xf32, #tpu.memory_space<smem>>
    %2835 = vector.broadcast %2834 : f32 to vector<8x128xf32>
    %c49 = arith.constant 49 : index
    %2836 = memref.load %arg1[%c49] : memref<120xf32, #tpu.memory_space<smem>>
    %2837 = vector.broadcast %2836 : f32 to vector<8x128xf32>
    %2838 = arith.mulf %5, %2835 : vector<8x128xf32>
    %2839 = arith.mulf %7, %2837 : vector<8x128xf32>
    %2840 = arith.subf %2838, %2839 : vector<8x128xf32>
    %2841 = arith.mulf %7, %2835 : vector<8x128xf32>
    %2842 = arith.mulf %5, %2837 : vector<8x128xf32>
    %2843 = arith.addf %2841, %2842 : vector<8x128xf32>
    %2844 = arith.mulf %2840, %2740 : vector<8x128xf32>
    %2845 = arith.mulf %2843, %2788 : vector<8x128xf32>
    %2846 = arith.subf %2844, %2845 : vector<8x128xf32>
    %2847 = arith.mulf %2840, %2743 : vector<8x128xf32>
    %2848 = arith.mulf %2843, %2791 : vector<8x128xf32>
    %2849 = arith.subf %2847, %2848 : vector<8x128xf32>
    %2850 = arith.mulf %2843, %2740 : vector<8x128xf32>
    %2851 = arith.mulf %2840, %2788 : vector<8x128xf32>
    %2852 = arith.addf %2850, %2851 : vector<8x128xf32>
    %2853 = arith.mulf %2843, %2743 : vector<8x128xf32>
    %2854 = arith.mulf %2840, %2791 : vector<8x128xf32>
    %2855 = arith.addf %2853, %2854 : vector<8x128xf32>
    %2856 = arith.mulf %2840, %2746 : vector<8x128xf32>
    %2857 = arith.mulf %2843, %2794 : vector<8x128xf32>
    %2858 = arith.subf %2856, %2857 : vector<8x128xf32>
    %2859 = arith.mulf %2840, %2749 : vector<8x128xf32>
    %2860 = arith.mulf %2843, %2797 : vector<8x128xf32>
    %2861 = arith.subf %2859, %2860 : vector<8x128xf32>
    %2862 = arith.mulf %2843, %2746 : vector<8x128xf32>
    %2863 = arith.mulf %2840, %2794 : vector<8x128xf32>
    %2864 = arith.addf %2862, %2863 : vector<8x128xf32>
    %2865 = arith.mulf %2843, %2749 : vector<8x128xf32>
    %2866 = arith.mulf %2840, %2797 : vector<8x128xf32>
    %2867 = arith.addf %2865, %2866 : vector<8x128xf32>
    %2868 = arith.mulf %2840, %2752 : vector<8x128xf32>
    %2869 = arith.mulf %2843, %2800 : vector<8x128xf32>
    %2870 = arith.subf %2868, %2869 : vector<8x128xf32>
    %2871 = arith.mulf %2840, %2755 : vector<8x128xf32>
    %2872 = arith.mulf %2843, %2803 : vector<8x128xf32>
    %2873 = arith.subf %2871, %2872 : vector<8x128xf32>
    %2874 = arith.mulf %2843, %2752 : vector<8x128xf32>
    %2875 = arith.mulf %2840, %2800 : vector<8x128xf32>
    %2876 = arith.addf %2874, %2875 : vector<8x128xf32>
    %2877 = arith.mulf %2843, %2755 : vector<8x128xf32>
    %2878 = arith.mulf %2840, %2803 : vector<8x128xf32>
    %2879 = arith.addf %2877, %2878 : vector<8x128xf32>
    %2880 = arith.mulf %2840, %2758 : vector<8x128xf32>
    %2881 = arith.mulf %2843, %2806 : vector<8x128xf32>
    %2882 = arith.subf %2880, %2881 : vector<8x128xf32>
    %2883 = arith.mulf %2840, %2761 : vector<8x128xf32>
    %2884 = arith.mulf %2843, %2809 : vector<8x128xf32>
    %2885 = arith.subf %2883, %2884 : vector<8x128xf32>
    %2886 = arith.mulf %2843, %2758 : vector<8x128xf32>
    %2887 = arith.mulf %2840, %2806 : vector<8x128xf32>
    %2888 = arith.addf %2886, %2887 : vector<8x128xf32>
    %2889 = arith.mulf %2843, %2761 : vector<8x128xf32>
    %2890 = arith.mulf %2840, %2809 : vector<8x128xf32>
    %2891 = arith.addf %2889, %2890 : vector<8x128xf32>
    %2892 = arith.mulf %2840, %2764 : vector<8x128xf32>
    %2893 = arith.mulf %2843, %2812 : vector<8x128xf32>
    %2894 = arith.subf %2892, %2893 : vector<8x128xf32>
    %2895 = arith.mulf %2840, %2767 : vector<8x128xf32>
    %2896 = arith.mulf %2843, %2815 : vector<8x128xf32>
    %2897 = arith.subf %2895, %2896 : vector<8x128xf32>
    %2898 = arith.mulf %2843, %2764 : vector<8x128xf32>
    %2899 = arith.mulf %2840, %2812 : vector<8x128xf32>
    %2900 = arith.addf %2898, %2899 : vector<8x128xf32>
    %2901 = arith.mulf %2843, %2767 : vector<8x128xf32>
    %2902 = arith.mulf %2840, %2815 : vector<8x128xf32>
    %2903 = arith.addf %2901, %2902 : vector<8x128xf32>
    %2904 = arith.mulf %2840, %2770 : vector<8x128xf32>
    %2905 = arith.mulf %2843, %2818 : vector<8x128xf32>
    %2906 = arith.subf %2904, %2905 : vector<8x128xf32>
    %2907 = arith.mulf %2840, %2773 : vector<8x128xf32>
    %2908 = arith.mulf %2843, %2821 : vector<8x128xf32>
    %2909 = arith.subf %2907, %2908 : vector<8x128xf32>
    %2910 = arith.mulf %2843, %2770 : vector<8x128xf32>
    %2911 = arith.mulf %2840, %2818 : vector<8x128xf32>
    %2912 = arith.addf %2910, %2911 : vector<8x128xf32>
    %2913 = arith.mulf %2843, %2773 : vector<8x128xf32>
    %2914 = arith.mulf %2840, %2821 : vector<8x128xf32>
    %2915 = arith.addf %2913, %2914 : vector<8x128xf32>
    %2916 = arith.mulf %2840, %2776 : vector<8x128xf32>
    %2917 = arith.mulf %2843, %2824 : vector<8x128xf32>
    %2918 = arith.subf %2916, %2917 : vector<8x128xf32>
    %2919 = arith.mulf %2840, %2779 : vector<8x128xf32>
    %2920 = arith.mulf %2843, %2827 : vector<8x128xf32>
    %2921 = arith.subf %2919, %2920 : vector<8x128xf32>
    %2922 = arith.mulf %2843, %2776 : vector<8x128xf32>
    %2923 = arith.mulf %2840, %2824 : vector<8x128xf32>
    %2924 = arith.addf %2922, %2923 : vector<8x128xf32>
    %2925 = arith.mulf %2843, %2779 : vector<8x128xf32>
    %2926 = arith.mulf %2840, %2827 : vector<8x128xf32>
    %2927 = arith.addf %2925, %2926 : vector<8x128xf32>
    %2928 = arith.mulf %2840, %2782 : vector<8x128xf32>
    %2929 = arith.mulf %2843, %2830 : vector<8x128xf32>
    %2930 = arith.subf %2928, %2929 : vector<8x128xf32>
    %2931 = arith.mulf %2840, %2785 : vector<8x128xf32>
    %2932 = arith.mulf %2843, %2833 : vector<8x128xf32>
    %2933 = arith.subf %2931, %2932 : vector<8x128xf32>
    %2934 = arith.mulf %2843, %2782 : vector<8x128xf32>
    %2935 = arith.mulf %2840, %2830 : vector<8x128xf32>
    %2936 = arith.addf %2934, %2935 : vector<8x128xf32>
    %2937 = arith.mulf %2843, %2785 : vector<8x128xf32>
    %2938 = arith.mulf %2840, %2833 : vector<8x128xf32>
    %2939 = arith.addf %2937, %2938 : vector<8x128xf32>
    %c58 = arith.constant 58 : index
    %2940 = memref.load %arg1[%c58] : memref<120xf32, #tpu.memory_space<smem>>
    %2941 = vector.broadcast %2940 : f32 to vector<8x128xf32>
    %c59 = arith.constant 59 : index
    %2942 = memref.load %arg1[%c59] : memref<120xf32, #tpu.memory_space<smem>>
    %2943 = vector.broadcast %2942 : f32 to vector<8x128xf32>
    %2944 = arith.mulf %5, %2941 : vector<8x128xf32>
    %2945 = arith.mulf %7, %2943 : vector<8x128xf32>
    %2946 = arith.subf %2944, %2945 : vector<8x128xf32>
    %2947 = arith.mulf %7, %2941 : vector<8x128xf32>
    %2948 = arith.mulf %5, %2943 : vector<8x128xf32>
    %2949 = arith.addf %2947, %2948 : vector<8x128xf32>
    %2950 = arith.mulf %2946, %2846 : vector<8x128xf32>
    %2951 = arith.mulf %2949, %2894 : vector<8x128xf32>
    %2952 = arith.subf %2950, %2951 : vector<8x128xf32>
    %2953 = arith.mulf %2946, %2849 : vector<8x128xf32>
    %2954 = arith.mulf %2949, %2897 : vector<8x128xf32>
    %2955 = arith.subf %2953, %2954 : vector<8x128xf32>
    %2956 = arith.mulf %2949, %2846 : vector<8x128xf32>
    %2957 = arith.mulf %2946, %2894 : vector<8x128xf32>
    %2958 = arith.addf %2956, %2957 : vector<8x128xf32>
    %2959 = arith.mulf %2949, %2849 : vector<8x128xf32>
    %2960 = arith.mulf %2946, %2897 : vector<8x128xf32>
    %2961 = arith.addf %2959, %2960 : vector<8x128xf32>
    %2962 = arith.mulf %2946, %2858 : vector<8x128xf32>
    %2963 = arith.mulf %2949, %2906 : vector<8x128xf32>
    %2964 = arith.subf %2962, %2963 : vector<8x128xf32>
    %2965 = arith.mulf %2946, %2861 : vector<8x128xf32>
    %2966 = arith.mulf %2949, %2909 : vector<8x128xf32>
    %2967 = arith.subf %2965, %2966 : vector<8x128xf32>
    %2968 = arith.mulf %2949, %2858 : vector<8x128xf32>
    %2969 = arith.mulf %2946, %2906 : vector<8x128xf32>
    %2970 = arith.addf %2968, %2969 : vector<8x128xf32>
    %2971 = arith.mulf %2949, %2861 : vector<8x128xf32>
    %2972 = arith.mulf %2946, %2909 : vector<8x128xf32>
    %2973 = arith.addf %2971, %2972 : vector<8x128xf32>
    %2974 = arith.mulf %2946, %2870 : vector<8x128xf32>
    %2975 = arith.mulf %2949, %2918 : vector<8x128xf32>
    %2976 = arith.subf %2974, %2975 : vector<8x128xf32>
    %2977 = arith.mulf %2946, %2873 : vector<8x128xf32>
    %2978 = arith.mulf %2949, %2921 : vector<8x128xf32>
    %2979 = arith.subf %2977, %2978 : vector<8x128xf32>
    %2980 = arith.mulf %2949, %2870 : vector<8x128xf32>
    %2981 = arith.mulf %2946, %2918 : vector<8x128xf32>
    %2982 = arith.addf %2980, %2981 : vector<8x128xf32>
    %2983 = arith.mulf %2949, %2873 : vector<8x128xf32>
    %2984 = arith.mulf %2946, %2921 : vector<8x128xf32>
    %2985 = arith.addf %2983, %2984 : vector<8x128xf32>
    %2986 = arith.mulf %2946, %2882 : vector<8x128xf32>
    %2987 = arith.mulf %2949, %2930 : vector<8x128xf32>
    %2988 = arith.subf %2986, %2987 : vector<8x128xf32>
    %2989 = arith.mulf %2946, %2885 : vector<8x128xf32>
    %2990 = arith.mulf %2949, %2933 : vector<8x128xf32>
    %2991 = arith.subf %2989, %2990 : vector<8x128xf32>
    %2992 = arith.mulf %2949, %2882 : vector<8x128xf32>
    %2993 = arith.mulf %2946, %2930 : vector<8x128xf32>
    %2994 = arith.addf %2992, %2993 : vector<8x128xf32>
    %2995 = arith.mulf %2949, %2885 : vector<8x128xf32>
    %2996 = arith.mulf %2946, %2933 : vector<8x128xf32>
    %2997 = arith.addf %2995, %2996 : vector<8x128xf32>
    %2998 = arith.mulf %2946, %2852 : vector<8x128xf32>
    %2999 = arith.mulf %2949, %2900 : vector<8x128xf32>
    %3000 = arith.subf %2998, %2999 : vector<8x128xf32>
    %3001 = arith.mulf %2946, %2855 : vector<8x128xf32>
    %3002 = arith.mulf %2949, %2903 : vector<8x128xf32>
    %3003 = arith.subf %3001, %3002 : vector<8x128xf32>
    %3004 = arith.mulf %2949, %2852 : vector<8x128xf32>
    %3005 = arith.mulf %2946, %2900 : vector<8x128xf32>
    %3006 = arith.addf %3004, %3005 : vector<8x128xf32>
    %3007 = arith.mulf %2949, %2855 : vector<8x128xf32>
    %3008 = arith.mulf %2946, %2903 : vector<8x128xf32>
    %3009 = arith.addf %3007, %3008 : vector<8x128xf32>
    %3010 = arith.mulf %2946, %2864 : vector<8x128xf32>
    %3011 = arith.mulf %2949, %2912 : vector<8x128xf32>
    %3012 = arith.subf %3010, %3011 : vector<8x128xf32>
    %3013 = arith.mulf %2946, %2867 : vector<8x128xf32>
    %3014 = arith.mulf %2949, %2915 : vector<8x128xf32>
    %3015 = arith.subf %3013, %3014 : vector<8x128xf32>
    %3016 = arith.mulf %2949, %2864 : vector<8x128xf32>
    %3017 = arith.mulf %2946, %2912 : vector<8x128xf32>
    %3018 = arith.addf %3016, %3017 : vector<8x128xf32>
    %3019 = arith.mulf %2949, %2867 : vector<8x128xf32>
    %3020 = arith.mulf %2946, %2915 : vector<8x128xf32>
    %3021 = arith.addf %3019, %3020 : vector<8x128xf32>
    %3022 = arith.mulf %2946, %2876 : vector<8x128xf32>
    %3023 = arith.mulf %2949, %2924 : vector<8x128xf32>
    %3024 = arith.subf %3022, %3023 : vector<8x128xf32>
    %3025 = arith.mulf %2946, %2879 : vector<8x128xf32>
    %3026 = arith.mulf %2949, %2927 : vector<8x128xf32>
    %3027 = arith.subf %3025, %3026 : vector<8x128xf32>
    %3028 = arith.mulf %2949, %2876 : vector<8x128xf32>
    %3029 = arith.mulf %2946, %2924 : vector<8x128xf32>
    %3030 = arith.addf %3028, %3029 : vector<8x128xf32>
    %3031 = arith.mulf %2949, %2879 : vector<8x128xf32>
    %3032 = arith.mulf %2946, %2927 : vector<8x128xf32>
    %3033 = arith.addf %3031, %3032 : vector<8x128xf32>
    %3034 = arith.mulf %2946, %2888 : vector<8x128xf32>
    %3035 = arith.mulf %2949, %2936 : vector<8x128xf32>
    %3036 = arith.subf %3034, %3035 : vector<8x128xf32>
    %3037 = arith.mulf %2946, %2891 : vector<8x128xf32>
    %3038 = arith.mulf %2949, %2939 : vector<8x128xf32>
    %3039 = arith.subf %3037, %3038 : vector<8x128xf32>
    %3040 = arith.mulf %2949, %2888 : vector<8x128xf32>
    %3041 = arith.mulf %2946, %2936 : vector<8x128xf32>
    %3042 = arith.addf %3040, %3041 : vector<8x128xf32>
    %3043 = arith.mulf %2949, %2891 : vector<8x128xf32>
    %3044 = arith.mulf %2946, %2939 : vector<8x128xf32>
    %3045 = arith.addf %3043, %3044 : vector<8x128xf32>
    %c68 = arith.constant 68 : index
    %3046 = memref.load %arg1[%c68] : memref<120xf32, #tpu.memory_space<smem>>
    %3047 = vector.broadcast %3046 : f32 to vector<8x128xf32>
    %c69 = arith.constant 69 : index
    %3048 = memref.load %arg1[%c69] : memref<120xf32, #tpu.memory_space<smem>>
    %3049 = vector.broadcast %3048 : f32 to vector<8x128xf32>
    %3050 = arith.mulf %5, %3047 : vector<8x128xf32>
    %3051 = arith.mulf %7, %3049 : vector<8x128xf32>
    %3052 = arith.subf %3050, %3051 : vector<8x128xf32>
    %3053 = arith.mulf %7, %3047 : vector<8x128xf32>
    %3054 = arith.mulf %5, %3049 : vector<8x128xf32>
    %3055 = arith.addf %3053, %3054 : vector<8x128xf32>
    %3056 = arith.mulf %3052, %2952 : vector<8x128xf32>
    %3057 = arith.mulf %3055, %2976 : vector<8x128xf32>
    %3058 = arith.subf %3056, %3057 : vector<8x128xf32>
    %3059 = arith.mulf %3052, %2955 : vector<8x128xf32>
    %3060 = arith.mulf %3055, %2979 : vector<8x128xf32>
    %3061 = arith.subf %3059, %3060 : vector<8x128xf32>
    %3062 = arith.mulf %3055, %2952 : vector<8x128xf32>
    %3063 = arith.mulf %3052, %2976 : vector<8x128xf32>
    %3064 = arith.addf %3062, %3063 : vector<8x128xf32>
    %3065 = arith.mulf %3055, %2955 : vector<8x128xf32>
    %3066 = arith.mulf %3052, %2979 : vector<8x128xf32>
    %3067 = arith.addf %3065, %3066 : vector<8x128xf32>
    %3068 = arith.mulf %3052, %2964 : vector<8x128xf32>
    %3069 = arith.mulf %3055, %2988 : vector<8x128xf32>
    %3070 = arith.subf %3068, %3069 : vector<8x128xf32>
    %3071 = arith.mulf %3052, %2967 : vector<8x128xf32>
    %3072 = arith.mulf %3055, %2991 : vector<8x128xf32>
    %3073 = arith.subf %3071, %3072 : vector<8x128xf32>
    %3074 = arith.mulf %3055, %2964 : vector<8x128xf32>
    %3075 = arith.mulf %3052, %2988 : vector<8x128xf32>
    %3076 = arith.addf %3074, %3075 : vector<8x128xf32>
    %3077 = arith.mulf %3055, %2967 : vector<8x128xf32>
    %3078 = arith.mulf %3052, %2991 : vector<8x128xf32>
    %3079 = arith.addf %3077, %3078 : vector<8x128xf32>
    %3080 = arith.mulf %3052, %2958 : vector<8x128xf32>
    %3081 = arith.mulf %3055, %2982 : vector<8x128xf32>
    %3082 = arith.subf %3080, %3081 : vector<8x128xf32>
    %3083 = arith.mulf %3052, %2961 : vector<8x128xf32>
    %3084 = arith.mulf %3055, %2985 : vector<8x128xf32>
    %3085 = arith.subf %3083, %3084 : vector<8x128xf32>
    %3086 = arith.mulf %3055, %2958 : vector<8x128xf32>
    %3087 = arith.mulf %3052, %2982 : vector<8x128xf32>
    %3088 = arith.addf %3086, %3087 : vector<8x128xf32>
    %3089 = arith.mulf %3055, %2961 : vector<8x128xf32>
    %3090 = arith.mulf %3052, %2985 : vector<8x128xf32>
    %3091 = arith.addf %3089, %3090 : vector<8x128xf32>
    %3092 = arith.mulf %3052, %2970 : vector<8x128xf32>
    %3093 = arith.mulf %3055, %2994 : vector<8x128xf32>
    %3094 = arith.subf %3092, %3093 : vector<8x128xf32>
    %3095 = arith.mulf %3052, %2973 : vector<8x128xf32>
    %3096 = arith.mulf %3055, %2997 : vector<8x128xf32>
    %3097 = arith.subf %3095, %3096 : vector<8x128xf32>
    %3098 = arith.mulf %3055, %2970 : vector<8x128xf32>
    %3099 = arith.mulf %3052, %2994 : vector<8x128xf32>
    %3100 = arith.addf %3098, %3099 : vector<8x128xf32>
    %3101 = arith.mulf %3055, %2973 : vector<8x128xf32>
    %3102 = arith.mulf %3052, %2997 : vector<8x128xf32>
    %3103 = arith.addf %3101, %3102 : vector<8x128xf32>
    %3104 = arith.mulf %3052, %3000 : vector<8x128xf32>
    %3105 = arith.mulf %3055, %3024 : vector<8x128xf32>
    %3106 = arith.subf %3104, %3105 : vector<8x128xf32>
    %3107 = arith.mulf %3052, %3003 : vector<8x128xf32>
    %3108 = arith.mulf %3055, %3027 : vector<8x128xf32>
    %3109 = arith.subf %3107, %3108 : vector<8x128xf32>
    %3110 = arith.mulf %3055, %3000 : vector<8x128xf32>
    %3111 = arith.mulf %3052, %3024 : vector<8x128xf32>
    %3112 = arith.addf %3110, %3111 : vector<8x128xf32>
    %3113 = arith.mulf %3055, %3003 : vector<8x128xf32>
    %3114 = arith.mulf %3052, %3027 : vector<8x128xf32>
    %3115 = arith.addf %3113, %3114 : vector<8x128xf32>
    %3116 = arith.mulf %3052, %3012 : vector<8x128xf32>
    %3117 = arith.mulf %3055, %3036 : vector<8x128xf32>
    %3118 = arith.subf %3116, %3117 : vector<8x128xf32>
    %3119 = arith.mulf %3052, %3015 : vector<8x128xf32>
    %3120 = arith.mulf %3055, %3039 : vector<8x128xf32>
    %3121 = arith.subf %3119, %3120 : vector<8x128xf32>
    %3122 = arith.mulf %3055, %3012 : vector<8x128xf32>
    %3123 = arith.mulf %3052, %3036 : vector<8x128xf32>
    %3124 = arith.addf %3122, %3123 : vector<8x128xf32>
    %3125 = arith.mulf %3055, %3015 : vector<8x128xf32>
    %3126 = arith.mulf %3052, %3039 : vector<8x128xf32>
    %3127 = arith.addf %3125, %3126 : vector<8x128xf32>
    %3128 = arith.mulf %3052, %3006 : vector<8x128xf32>
    %3129 = arith.mulf %3055, %3030 : vector<8x128xf32>
    %3130 = arith.subf %3128, %3129 : vector<8x128xf32>
    %3131 = arith.mulf %3052, %3009 : vector<8x128xf32>
    %3132 = arith.mulf %3055, %3033 : vector<8x128xf32>
    %3133 = arith.subf %3131, %3132 : vector<8x128xf32>
    %3134 = arith.mulf %3055, %3006 : vector<8x128xf32>
    %3135 = arith.mulf %3052, %3030 : vector<8x128xf32>
    %3136 = arith.addf %3134, %3135 : vector<8x128xf32>
    %3137 = arith.mulf %3055, %3009 : vector<8x128xf32>
    %3138 = arith.mulf %3052, %3033 : vector<8x128xf32>
    %3139 = arith.addf %3137, %3138 : vector<8x128xf32>
    %3140 = arith.mulf %3052, %3018 : vector<8x128xf32>
    %3141 = arith.mulf %3055, %3042 : vector<8x128xf32>
    %3142 = arith.subf %3140, %3141 : vector<8x128xf32>
    %3143 = arith.mulf %3052, %3021 : vector<8x128xf32>
    %3144 = arith.mulf %3055, %3045 : vector<8x128xf32>
    %3145 = arith.subf %3143, %3144 : vector<8x128xf32>
    %3146 = arith.mulf %3055, %3018 : vector<8x128xf32>
    %3147 = arith.mulf %3052, %3042 : vector<8x128xf32>
    %3148 = arith.addf %3146, %3147 : vector<8x128xf32>
    %3149 = arith.mulf %3055, %3021 : vector<8x128xf32>
    %3150 = arith.mulf %3052, %3045 : vector<8x128xf32>
    %3151 = arith.addf %3149, %3150 : vector<8x128xf32>
    %c78 = arith.constant 78 : index
    %3152 = memref.load %arg1[%c78] : memref<120xf32, #tpu.memory_space<smem>>
    %3153 = vector.broadcast %3152 : f32 to vector<8x128xf32>
    %c79 = arith.constant 79 : index
    %3154 = memref.load %arg1[%c79] : memref<120xf32, #tpu.memory_space<smem>>
    %3155 = vector.broadcast %3154 : f32 to vector<8x128xf32>
    %3156 = arith.mulf %5, %3153 : vector<8x128xf32>
    %3157 = arith.mulf %7, %3155 : vector<8x128xf32>
    %3158 = arith.subf %3156, %3157 : vector<8x128xf32>
    %3159 = arith.mulf %7, %3153 : vector<8x128xf32>
    %3160 = arith.mulf %5, %3155 : vector<8x128xf32>
    %3161 = arith.addf %3159, %3160 : vector<8x128xf32>
    %3162 = arith.mulf %3158, %3058 : vector<8x128xf32>
    %3163 = arith.mulf %3161, %3070 : vector<8x128xf32>
    %3164 = arith.subf %3162, %3163 : vector<8x128xf32>
    %3165 = arith.mulf %3158, %3061 : vector<8x128xf32>
    %3166 = arith.mulf %3161, %3073 : vector<8x128xf32>
    %3167 = arith.subf %3165, %3166 : vector<8x128xf32>
    %3168 = arith.mulf %3161, %3058 : vector<8x128xf32>
    %3169 = arith.mulf %3158, %3070 : vector<8x128xf32>
    %3170 = arith.addf %3168, %3169 : vector<8x128xf32>
    %3171 = arith.mulf %3161, %3061 : vector<8x128xf32>
    %3172 = arith.mulf %3158, %3073 : vector<8x128xf32>
    %3173 = arith.addf %3171, %3172 : vector<8x128xf32>
    %3174 = arith.mulf %3158, %3064 : vector<8x128xf32>
    %3175 = arith.mulf %3161, %3076 : vector<8x128xf32>
    %3176 = arith.subf %3174, %3175 : vector<8x128xf32>
    %3177 = arith.mulf %3158, %3067 : vector<8x128xf32>
    %3178 = arith.mulf %3161, %3079 : vector<8x128xf32>
    %3179 = arith.subf %3177, %3178 : vector<8x128xf32>
    %3180 = arith.mulf %3161, %3064 : vector<8x128xf32>
    %3181 = arith.mulf %3158, %3076 : vector<8x128xf32>
    %3182 = arith.addf %3180, %3181 : vector<8x128xf32>
    %3183 = arith.mulf %3161, %3067 : vector<8x128xf32>
    %3184 = arith.mulf %3158, %3079 : vector<8x128xf32>
    %3185 = arith.addf %3183, %3184 : vector<8x128xf32>
    %3186 = arith.mulf %3158, %3082 : vector<8x128xf32>
    %3187 = arith.mulf %3161, %3094 : vector<8x128xf32>
    %3188 = arith.subf %3186, %3187 : vector<8x128xf32>
    %3189 = arith.mulf %3158, %3085 : vector<8x128xf32>
    %3190 = arith.mulf %3161, %3097 : vector<8x128xf32>
    %3191 = arith.subf %3189, %3190 : vector<8x128xf32>
    %3192 = arith.mulf %3161, %3082 : vector<8x128xf32>
    %3193 = arith.mulf %3158, %3094 : vector<8x128xf32>
    %3194 = arith.addf %3192, %3193 : vector<8x128xf32>
    %3195 = arith.mulf %3161, %3085 : vector<8x128xf32>
    %3196 = arith.mulf %3158, %3097 : vector<8x128xf32>
    %3197 = arith.addf %3195, %3196 : vector<8x128xf32>
    %3198 = arith.mulf %3158, %3088 : vector<8x128xf32>
    %3199 = arith.mulf %3161, %3100 : vector<8x128xf32>
    %3200 = arith.subf %3198, %3199 : vector<8x128xf32>
    %3201 = arith.mulf %3158, %3091 : vector<8x128xf32>
    %3202 = arith.mulf %3161, %3103 : vector<8x128xf32>
    %3203 = arith.subf %3201, %3202 : vector<8x128xf32>
    %3204 = arith.mulf %3161, %3088 : vector<8x128xf32>
    %3205 = arith.mulf %3158, %3100 : vector<8x128xf32>
    %3206 = arith.addf %3204, %3205 : vector<8x128xf32>
    %3207 = arith.mulf %3161, %3091 : vector<8x128xf32>
    %3208 = arith.mulf %3158, %3103 : vector<8x128xf32>
    %3209 = arith.addf %3207, %3208 : vector<8x128xf32>
    %3210 = arith.mulf %3158, %3106 : vector<8x128xf32>
    %3211 = arith.mulf %3161, %3118 : vector<8x128xf32>
    %3212 = arith.subf %3210, %3211 : vector<8x128xf32>
    %3213 = arith.mulf %3158, %3109 : vector<8x128xf32>
    %3214 = arith.mulf %3161, %3121 : vector<8x128xf32>
    %3215 = arith.subf %3213, %3214 : vector<8x128xf32>
    %3216 = arith.mulf %3161, %3106 : vector<8x128xf32>
    %3217 = arith.mulf %3158, %3118 : vector<8x128xf32>
    %3218 = arith.addf %3216, %3217 : vector<8x128xf32>
    %3219 = arith.mulf %3161, %3109 : vector<8x128xf32>
    %3220 = arith.mulf %3158, %3121 : vector<8x128xf32>
    %3221 = arith.addf %3219, %3220 : vector<8x128xf32>
    %3222 = arith.mulf %3158, %3112 : vector<8x128xf32>
    %3223 = arith.mulf %3161, %3124 : vector<8x128xf32>
    %3224 = arith.subf %3222, %3223 : vector<8x128xf32>
    %3225 = arith.mulf %3158, %3115 : vector<8x128xf32>
    %3226 = arith.mulf %3161, %3127 : vector<8x128xf32>
    %3227 = arith.subf %3225, %3226 : vector<8x128xf32>
    %3228 = arith.mulf %3161, %3112 : vector<8x128xf32>
    %3229 = arith.mulf %3158, %3124 : vector<8x128xf32>
    %3230 = arith.addf %3228, %3229 : vector<8x128xf32>
    %3231 = arith.mulf %3161, %3115 : vector<8x128xf32>
    %3232 = arith.mulf %3158, %3127 : vector<8x128xf32>
    %3233 = arith.addf %3231, %3232 : vector<8x128xf32>
    %3234 = arith.mulf %3158, %3130 : vector<8x128xf32>
    %3235 = arith.mulf %3161, %3142 : vector<8x128xf32>
    %3236 = arith.subf %3234, %3235 : vector<8x128xf32>
    %3237 = arith.mulf %3158, %3133 : vector<8x128xf32>
    %3238 = arith.mulf %3161, %3145 : vector<8x128xf32>
    %3239 = arith.subf %3237, %3238 : vector<8x128xf32>
    %3240 = arith.mulf %3161, %3130 : vector<8x128xf32>
    %3241 = arith.mulf %3158, %3142 : vector<8x128xf32>
    %3242 = arith.addf %3240, %3241 : vector<8x128xf32>
    %3243 = arith.mulf %3161, %3133 : vector<8x128xf32>
    %3244 = arith.mulf %3158, %3145 : vector<8x128xf32>
    %3245 = arith.addf %3243, %3244 : vector<8x128xf32>
    %3246 = arith.mulf %3158, %3136 : vector<8x128xf32>
    %3247 = arith.mulf %3161, %3148 : vector<8x128xf32>
    %3248 = arith.subf %3246, %3247 : vector<8x128xf32>
    %3249 = arith.mulf %3158, %3139 : vector<8x128xf32>
    %3250 = arith.mulf %3161, %3151 : vector<8x128xf32>
    %3251 = arith.subf %3249, %3250 : vector<8x128xf32>
    %3252 = arith.mulf %3161, %3136 : vector<8x128xf32>
    %3253 = arith.mulf %3158, %3148 : vector<8x128xf32>
    %3254 = arith.addf %3252, %3253 : vector<8x128xf32>
    %3255 = arith.mulf %3161, %3139 : vector<8x128xf32>
    %3256 = arith.mulf %3158, %3151 : vector<8x128xf32>
    %3257 = arith.addf %3255, %3256 : vector<8x128xf32>
    %c80 = arith.constant 80 : index
    %3258 = memref.load %arg1[%c80] : memref<120xf32, #tpu.memory_space<smem>>
    %3259 = vector.broadcast %3258 : f32 to vector<8x128xf32>
    %c81 = arith.constant 81 : index
    %3260 = memref.load %arg1[%c81] : memref<120xf32, #tpu.memory_space<smem>>
    %3261 = vector.broadcast %3260 : f32 to vector<8x128xf32>
    %3262 = arith.mulf %3259, %3164 : vector<8x128xf32>
    %3263 = arith.mulf %3261, %3215 : vector<8x128xf32>
    %3264 = arith.addf %3262, %3263 : vector<8x128xf32>
    %3265 = arith.mulf %3259, %3167 : vector<8x128xf32>
    %3266 = arith.mulf %3261, %3212 : vector<8x128xf32>
    %3267 = arith.subf %3265, %3266 : vector<8x128xf32>
    %3268 = arith.mulf %3259, %3212 : vector<8x128xf32>
    %3269 = arith.mulf %3261, %3167 : vector<8x128xf32>
    %3270 = arith.addf %3268, %3269 : vector<8x128xf32>
    %3271 = arith.mulf %3259, %3215 : vector<8x128xf32>
    %3272 = arith.mulf %3261, %3164 : vector<8x128xf32>
    %3273 = arith.subf %3271, %3272 : vector<8x128xf32>
    %3274 = arith.mulf %3259, %3170 : vector<8x128xf32>
    %3275 = arith.mulf %3261, %3221 : vector<8x128xf32>
    %3276 = arith.addf %3274, %3275 : vector<8x128xf32>
    %3277 = arith.mulf %3259, %3173 : vector<8x128xf32>
    %3278 = arith.mulf %3261, %3218 : vector<8x128xf32>
    %3279 = arith.subf %3277, %3278 : vector<8x128xf32>
    %3280 = arith.mulf %3259, %3218 : vector<8x128xf32>
    %3281 = arith.mulf %3261, %3173 : vector<8x128xf32>
    %3282 = arith.addf %3280, %3281 : vector<8x128xf32>
    %3283 = arith.mulf %3259, %3221 : vector<8x128xf32>
    %3284 = arith.mulf %3261, %3170 : vector<8x128xf32>
    %3285 = arith.subf %3283, %3284 : vector<8x128xf32>
    %3286 = arith.mulf %3259, %3176 : vector<8x128xf32>
    %3287 = arith.mulf %3261, %3227 : vector<8x128xf32>
    %3288 = arith.addf %3286, %3287 : vector<8x128xf32>
    %3289 = arith.mulf %3259, %3179 : vector<8x128xf32>
    %3290 = arith.mulf %3261, %3224 : vector<8x128xf32>
    %3291 = arith.subf %3289, %3290 : vector<8x128xf32>
    %3292 = arith.mulf %3259, %3224 : vector<8x128xf32>
    %3293 = arith.mulf %3261, %3179 : vector<8x128xf32>
    %3294 = arith.addf %3292, %3293 : vector<8x128xf32>
    %3295 = arith.mulf %3259, %3227 : vector<8x128xf32>
    %3296 = arith.mulf %3261, %3176 : vector<8x128xf32>
    %3297 = arith.subf %3295, %3296 : vector<8x128xf32>
    %3298 = arith.mulf %3259, %3182 : vector<8x128xf32>
    %3299 = arith.mulf %3261, %3233 : vector<8x128xf32>
    %3300 = arith.addf %3298, %3299 : vector<8x128xf32>
    %3301 = arith.mulf %3259, %3185 : vector<8x128xf32>
    %3302 = arith.mulf %3261, %3230 : vector<8x128xf32>
    %3303 = arith.subf %3301, %3302 : vector<8x128xf32>
    %3304 = arith.mulf %3259, %3230 : vector<8x128xf32>
    %3305 = arith.mulf %3261, %3185 : vector<8x128xf32>
    %3306 = arith.addf %3304, %3305 : vector<8x128xf32>
    %3307 = arith.mulf %3259, %3233 : vector<8x128xf32>
    %3308 = arith.mulf %3261, %3182 : vector<8x128xf32>
    %3309 = arith.subf %3307, %3308 : vector<8x128xf32>
    %3310 = arith.mulf %3259, %3188 : vector<8x128xf32>
    %3311 = arith.mulf %3261, %3239 : vector<8x128xf32>
    %3312 = arith.addf %3310, %3311 : vector<8x128xf32>
    %3313 = arith.mulf %3259, %3191 : vector<8x128xf32>
    %3314 = arith.mulf %3261, %3236 : vector<8x128xf32>
    %3315 = arith.subf %3313, %3314 : vector<8x128xf32>
    %3316 = arith.mulf %3259, %3236 : vector<8x128xf32>
    %3317 = arith.mulf %3261, %3191 : vector<8x128xf32>
    %3318 = arith.addf %3316, %3317 : vector<8x128xf32>
    %3319 = arith.mulf %3259, %3239 : vector<8x128xf32>
    %3320 = arith.mulf %3261, %3188 : vector<8x128xf32>
    %3321 = arith.subf %3319, %3320 : vector<8x128xf32>
    %3322 = arith.mulf %3259, %3194 : vector<8x128xf32>
    %3323 = arith.mulf %3261, %3245 : vector<8x128xf32>
    %3324 = arith.addf %3322, %3323 : vector<8x128xf32>
    %3325 = arith.mulf %3259, %3197 : vector<8x128xf32>
    %3326 = arith.mulf %3261, %3242 : vector<8x128xf32>
    %3327 = arith.subf %3325, %3326 : vector<8x128xf32>
    %3328 = arith.mulf %3259, %3242 : vector<8x128xf32>
    %3329 = arith.mulf %3261, %3197 : vector<8x128xf32>
    %3330 = arith.addf %3328, %3329 : vector<8x128xf32>
    %3331 = arith.mulf %3259, %3245 : vector<8x128xf32>
    %3332 = arith.mulf %3261, %3194 : vector<8x128xf32>
    %3333 = arith.subf %3331, %3332 : vector<8x128xf32>
    %3334 = arith.mulf %3259, %3200 : vector<8x128xf32>
    %3335 = arith.mulf %3261, %3251 : vector<8x128xf32>
    %3336 = arith.addf %3334, %3335 : vector<8x128xf32>
    %3337 = arith.mulf %3259, %3203 : vector<8x128xf32>
    %3338 = arith.mulf %3261, %3248 : vector<8x128xf32>
    %3339 = arith.subf %3337, %3338 : vector<8x128xf32>
    %3340 = arith.mulf %3259, %3248 : vector<8x128xf32>
    %3341 = arith.mulf %3261, %3203 : vector<8x128xf32>
    %3342 = arith.addf %3340, %3341 : vector<8x128xf32>
    %3343 = arith.mulf %3259, %3251 : vector<8x128xf32>
    %3344 = arith.mulf %3261, %3200 : vector<8x128xf32>
    %3345 = arith.subf %3343, %3344 : vector<8x128xf32>
    %3346 = arith.mulf %3259, %3206 : vector<8x128xf32>
    %3347 = arith.mulf %3261, %3257 : vector<8x128xf32>
    %3348 = arith.addf %3346, %3347 : vector<8x128xf32>
    %3349 = arith.mulf %3259, %3209 : vector<8x128xf32>
    %3350 = arith.mulf %3261, %3254 : vector<8x128xf32>
    %3351 = arith.subf %3349, %3350 : vector<8x128xf32>
    %3352 = arith.mulf %3259, %3254 : vector<8x128xf32>
    %3353 = arith.mulf %3261, %3209 : vector<8x128xf32>
    %3354 = arith.addf %3352, %3353 : vector<8x128xf32>
    %3355 = arith.mulf %3259, %3257 : vector<8x128xf32>
    %3356 = arith.mulf %3261, %3206 : vector<8x128xf32>
    %3357 = arith.subf %3355, %3356 : vector<8x128xf32>
    %c82 = arith.constant 82 : index
    %3358 = memref.load %arg1[%c82] : memref<120xf32, #tpu.memory_space<smem>>
    %3359 = vector.broadcast %3358 : f32 to vector<8x128xf32>
    %c83 = arith.constant 83 : index
    %3360 = memref.load %arg1[%c83] : memref<120xf32, #tpu.memory_space<smem>>
    %3361 = vector.broadcast %3360 : f32 to vector<8x128xf32>
    %3362 = arith.mulf %3264, %3359 : vector<8x128xf32>
    %3363 = arith.mulf %3361, %3267 : vector<8x128xf32>
    %3364 = arith.addf %3362, %3363 : vector<8x128xf32>
    %3365 = arith.mulf %3267, %3359 : vector<8x128xf32>
    %3366 = arith.mulf %3361, %3264 : vector<8x128xf32>
    %3367 = arith.subf %3365, %3366 : vector<8x128xf32>
    %3368 = arith.mulf %3276, %3359 : vector<8x128xf32>
    %3369 = arith.mulf %3361, %3279 : vector<8x128xf32>
    %3370 = arith.addf %3368, %3369 : vector<8x128xf32>
    %3371 = arith.mulf %3279, %3359 : vector<8x128xf32>
    %3372 = arith.mulf %3361, %3276 : vector<8x128xf32>
    %3373 = arith.subf %3371, %3372 : vector<8x128xf32>
    %3374 = arith.mulf %3288, %3359 : vector<8x128xf32>
    %3375 = arith.mulf %3361, %3291 : vector<8x128xf32>
    %3376 = arith.addf %3374, %3375 : vector<8x128xf32>
    %3377 = arith.mulf %3291, %3359 : vector<8x128xf32>
    %3378 = arith.mulf %3361, %3288 : vector<8x128xf32>
    %3379 = arith.subf %3377, %3378 : vector<8x128xf32>
    %3380 = arith.mulf %3300, %3359 : vector<8x128xf32>
    %3381 = arith.mulf %3361, %3303 : vector<8x128xf32>
    %3382 = arith.addf %3380, %3381 : vector<8x128xf32>
    %3383 = arith.mulf %3303, %3359 : vector<8x128xf32>
    %3384 = arith.mulf %3361, %3300 : vector<8x128xf32>
    %3385 = arith.subf %3383, %3384 : vector<8x128xf32>
    %3386 = arith.mulf %3312, %3359 : vector<8x128xf32>
    %3387 = arith.mulf %3361, %3315 : vector<8x128xf32>
    %3388 = arith.addf %3386, %3387 : vector<8x128xf32>
    %3389 = arith.mulf %3315, %3359 : vector<8x128xf32>
    %3390 = arith.mulf %3361, %3312 : vector<8x128xf32>
    %3391 = arith.subf %3389, %3390 : vector<8x128xf32>
    %3392 = arith.mulf %3324, %3359 : vector<8x128xf32>
    %3393 = arith.mulf %3361, %3327 : vector<8x128xf32>
    %3394 = arith.addf %3392, %3393 : vector<8x128xf32>
    %3395 = arith.mulf %3327, %3359 : vector<8x128xf32>
    %3396 = arith.mulf %3361, %3324 : vector<8x128xf32>
    %3397 = arith.subf %3395, %3396 : vector<8x128xf32>
    %3398 = arith.mulf %3336, %3359 : vector<8x128xf32>
    %3399 = arith.mulf %3361, %3339 : vector<8x128xf32>
    %3400 = arith.addf %3398, %3399 : vector<8x128xf32>
    %3401 = arith.mulf %3339, %3359 : vector<8x128xf32>
    %3402 = arith.mulf %3361, %3336 : vector<8x128xf32>
    %3403 = arith.subf %3401, %3402 : vector<8x128xf32>
    %3404 = arith.mulf %3348, %3359 : vector<8x128xf32>
    %3405 = arith.mulf %3361, %3351 : vector<8x128xf32>
    %3406 = arith.addf %3404, %3405 : vector<8x128xf32>
    %3407 = arith.mulf %3351, %3359 : vector<8x128xf32>
    %3408 = arith.mulf %3361, %3348 : vector<8x128xf32>
    %3409 = arith.subf %3407, %3408 : vector<8x128xf32>
    %3410 = arith.mulf %3270, %3359 : vector<8x128xf32>
    %3411 = arith.mulf %3361, %3273 : vector<8x128xf32>
    %3412 = arith.subf %3410, %3411 : vector<8x128xf32>
    %3413 = arith.mulf %3273, %3359 : vector<8x128xf32>
    %3414 = arith.mulf %3361, %3270 : vector<8x128xf32>
    %3415 = arith.addf %3413, %3414 : vector<8x128xf32>
    %3416 = arith.mulf %3282, %3359 : vector<8x128xf32>
    %3417 = arith.mulf %3361, %3285 : vector<8x128xf32>
    %3418 = arith.subf %3416, %3417 : vector<8x128xf32>
    %3419 = arith.mulf %3285, %3359 : vector<8x128xf32>
    %3420 = arith.mulf %3361, %3282 : vector<8x128xf32>
    %3421 = arith.addf %3419, %3420 : vector<8x128xf32>
    %3422 = arith.mulf %3294, %3359 : vector<8x128xf32>
    %3423 = arith.mulf %3361, %3297 : vector<8x128xf32>
    %3424 = arith.subf %3422, %3423 : vector<8x128xf32>
    %3425 = arith.mulf %3297, %3359 : vector<8x128xf32>
    %3426 = arith.mulf %3361, %3294 : vector<8x128xf32>
    %3427 = arith.addf %3425, %3426 : vector<8x128xf32>
    %3428 = arith.mulf %3306, %3359 : vector<8x128xf32>
    %3429 = arith.mulf %3361, %3309 : vector<8x128xf32>
    %3430 = arith.subf %3428, %3429 : vector<8x128xf32>
    %3431 = arith.mulf %3309, %3359 : vector<8x128xf32>
    %3432 = arith.mulf %3361, %3306 : vector<8x128xf32>
    %3433 = arith.addf %3431, %3432 : vector<8x128xf32>
    %3434 = arith.mulf %3318, %3359 : vector<8x128xf32>
    %3435 = arith.mulf %3361, %3321 : vector<8x128xf32>
    %3436 = arith.subf %3434, %3435 : vector<8x128xf32>
    %3437 = arith.mulf %3321, %3359 : vector<8x128xf32>
    %3438 = arith.mulf %3361, %3318 : vector<8x128xf32>
    %3439 = arith.addf %3437, %3438 : vector<8x128xf32>
    %3440 = arith.mulf %3330, %3359 : vector<8x128xf32>
    %3441 = arith.mulf %3361, %3333 : vector<8x128xf32>
    %3442 = arith.subf %3440, %3441 : vector<8x128xf32>
    %3443 = arith.mulf %3333, %3359 : vector<8x128xf32>
    %3444 = arith.mulf %3361, %3330 : vector<8x128xf32>
    %3445 = arith.addf %3443, %3444 : vector<8x128xf32>
    %3446 = arith.mulf %3342, %3359 : vector<8x128xf32>
    %3447 = arith.mulf %3361, %3345 : vector<8x128xf32>
    %3448 = arith.subf %3446, %3447 : vector<8x128xf32>
    %3449 = arith.mulf %3345, %3359 : vector<8x128xf32>
    %3450 = arith.mulf %3361, %3342 : vector<8x128xf32>
    %3451 = arith.addf %3449, %3450 : vector<8x128xf32>
    %3452 = arith.mulf %3354, %3359 : vector<8x128xf32>
    %3453 = arith.mulf %3361, %3357 : vector<8x128xf32>
    %3454 = arith.subf %3452, %3453 : vector<8x128xf32>
    %3455 = arith.mulf %3357, %3359 : vector<8x128xf32>
    %3456 = arith.mulf %3361, %3354 : vector<8x128xf32>
    %3457 = arith.addf %3455, %3456 : vector<8x128xf32>
    %c110 = arith.constant 110 : index
    %3458 = memref.load %arg1[%c110] : memref<120xf32, #tpu.memory_space<smem>>
    %3459 = vector.broadcast %3458 : f32 to vector<8x128xf32>
    %c111 = arith.constant 111 : index
    %3460 = memref.load %arg1[%c111] : memref<120xf32, #tpu.memory_space<smem>>
    %3461 = vector.broadcast %3460 : f32 to vector<8x128xf32>
    %3462 = arith.mulf %3459, %3364 : vector<8x128xf32>
    %3463 = arith.mulf %3461, %3373 : vector<8x128xf32>
    %3464 = arith.addf %3462, %3463 : vector<8x128xf32>
    %3465 = arith.mulf %3459, %3367 : vector<8x128xf32>
    %3466 = arith.mulf %3461, %3370 : vector<8x128xf32>
    %3467 = arith.subf %3465, %3466 : vector<8x128xf32>
    %3468 = arith.mulf %3459, %3370 : vector<8x128xf32>
    %3469 = arith.mulf %3461, %3367 : vector<8x128xf32>
    %3470 = arith.addf %3468, %3469 : vector<8x128xf32>
    %3471 = arith.mulf %3459, %3373 : vector<8x128xf32>
    %3472 = arith.mulf %3461, %3364 : vector<8x128xf32>
    %3473 = arith.subf %3471, %3472 : vector<8x128xf32>
    %3474 = arith.mulf %3459, %3376 : vector<8x128xf32>
    %3475 = arith.mulf %3461, %3385 : vector<8x128xf32>
    %3476 = arith.addf %3474, %3475 : vector<8x128xf32>
    %3477 = arith.mulf %3459, %3379 : vector<8x128xf32>
    %3478 = arith.mulf %3461, %3382 : vector<8x128xf32>
    %3479 = arith.subf %3477, %3478 : vector<8x128xf32>
    %3480 = arith.mulf %3459, %3382 : vector<8x128xf32>
    %3481 = arith.mulf %3461, %3379 : vector<8x128xf32>
    %3482 = arith.addf %3480, %3481 : vector<8x128xf32>
    %3483 = arith.mulf %3459, %3385 : vector<8x128xf32>
    %3484 = arith.mulf %3461, %3376 : vector<8x128xf32>
    %3485 = arith.subf %3483, %3484 : vector<8x128xf32>
    %3486 = arith.mulf %3459, %3388 : vector<8x128xf32>
    %3487 = arith.mulf %3461, %3397 : vector<8x128xf32>
    %3488 = arith.addf %3486, %3487 : vector<8x128xf32>
    %3489 = arith.mulf %3459, %3391 : vector<8x128xf32>
    %3490 = arith.mulf %3461, %3394 : vector<8x128xf32>
    %3491 = arith.subf %3489, %3490 : vector<8x128xf32>
    %3492 = arith.mulf %3459, %3394 : vector<8x128xf32>
    %3493 = arith.mulf %3461, %3391 : vector<8x128xf32>
    %3494 = arith.addf %3492, %3493 : vector<8x128xf32>
    %3495 = arith.mulf %3459, %3397 : vector<8x128xf32>
    %3496 = arith.mulf %3461, %3388 : vector<8x128xf32>
    %3497 = arith.subf %3495, %3496 : vector<8x128xf32>
    %3498 = arith.mulf %3459, %3400 : vector<8x128xf32>
    %3499 = arith.mulf %3461, %3409 : vector<8x128xf32>
    %3500 = arith.addf %3498, %3499 : vector<8x128xf32>
    %3501 = arith.mulf %3459, %3403 : vector<8x128xf32>
    %3502 = arith.mulf %3461, %3406 : vector<8x128xf32>
    %3503 = arith.subf %3501, %3502 : vector<8x128xf32>
    %3504 = arith.mulf %3459, %3406 : vector<8x128xf32>
    %3505 = arith.mulf %3461, %3403 : vector<8x128xf32>
    %3506 = arith.addf %3504, %3505 : vector<8x128xf32>
    %3507 = arith.mulf %3459, %3409 : vector<8x128xf32>
    %3508 = arith.mulf %3461, %3400 : vector<8x128xf32>
    %3509 = arith.subf %3507, %3508 : vector<8x128xf32>
    %3510 = arith.mulf %3459, %3412 : vector<8x128xf32>
    %3511 = arith.mulf %3461, %3421 : vector<8x128xf32>
    %3512 = arith.addf %3510, %3511 : vector<8x128xf32>
    %3513 = arith.mulf %3459, %3415 : vector<8x128xf32>
    %3514 = arith.mulf %3461, %3418 : vector<8x128xf32>
    %3515 = arith.subf %3513, %3514 : vector<8x128xf32>
    %3516 = arith.mulf %3459, %3418 : vector<8x128xf32>
    %3517 = arith.mulf %3461, %3415 : vector<8x128xf32>
    %3518 = arith.addf %3516, %3517 : vector<8x128xf32>
    %3519 = arith.mulf %3459, %3421 : vector<8x128xf32>
    %3520 = arith.mulf %3461, %3412 : vector<8x128xf32>
    %3521 = arith.subf %3519, %3520 : vector<8x128xf32>
    %3522 = arith.mulf %3459, %3424 : vector<8x128xf32>
    %3523 = arith.mulf %3461, %3433 : vector<8x128xf32>
    %3524 = arith.addf %3522, %3523 : vector<8x128xf32>
    %3525 = arith.mulf %3459, %3427 : vector<8x128xf32>
    %3526 = arith.mulf %3461, %3430 : vector<8x128xf32>
    %3527 = arith.subf %3525, %3526 : vector<8x128xf32>
    %3528 = arith.mulf %3459, %3430 : vector<8x128xf32>
    %3529 = arith.mulf %3461, %3427 : vector<8x128xf32>
    %3530 = arith.addf %3528, %3529 : vector<8x128xf32>
    %3531 = arith.mulf %3459, %3433 : vector<8x128xf32>
    %3532 = arith.mulf %3461, %3424 : vector<8x128xf32>
    %3533 = arith.subf %3531, %3532 : vector<8x128xf32>
    %3534 = arith.mulf %3459, %3436 : vector<8x128xf32>
    %3535 = arith.mulf %3461, %3445 : vector<8x128xf32>
    %3536 = arith.addf %3534, %3535 : vector<8x128xf32>
    %3537 = arith.mulf %3459, %3439 : vector<8x128xf32>
    %3538 = arith.mulf %3461, %3442 : vector<8x128xf32>
    %3539 = arith.subf %3537, %3538 : vector<8x128xf32>
    %3540 = arith.mulf %3459, %3442 : vector<8x128xf32>
    %3541 = arith.mulf %3461, %3439 : vector<8x128xf32>
    %3542 = arith.addf %3540, %3541 : vector<8x128xf32>
    %3543 = arith.mulf %3459, %3445 : vector<8x128xf32>
    %3544 = arith.mulf %3461, %3436 : vector<8x128xf32>
    %3545 = arith.subf %3543, %3544 : vector<8x128xf32>
    %3546 = arith.mulf %3459, %3448 : vector<8x128xf32>
    %3547 = arith.mulf %3461, %3457 : vector<8x128xf32>
    %3548 = arith.addf %3546, %3547 : vector<8x128xf32>
    %3549 = arith.mulf %3459, %3451 : vector<8x128xf32>
    %3550 = arith.mulf %3461, %3454 : vector<8x128xf32>
    %3551 = arith.subf %3549, %3550 : vector<8x128xf32>
    %3552 = arith.mulf %3459, %3454 : vector<8x128xf32>
    %3553 = arith.mulf %3461, %3451 : vector<8x128xf32>
    %3554 = arith.addf %3552, %3553 : vector<8x128xf32>
    %3555 = arith.mulf %3459, %3457 : vector<8x128xf32>
    %3556 = arith.mulf %3461, %3448 : vector<8x128xf32>
    %3557 = arith.subf %3555, %3556 : vector<8x128xf32>
    %c84 = arith.constant 84 : index
    %3558 = memref.load %arg1[%c84] : memref<120xf32, #tpu.memory_space<smem>>
    %3559 = vector.broadcast %3558 : f32 to vector<8x128xf32>
    %c85 = arith.constant 85 : index
    %3560 = memref.load %arg1[%c85] : memref<120xf32, #tpu.memory_space<smem>>
    %3561 = vector.broadcast %3560 : f32 to vector<8x128xf32>
    %3562 = arith.mulf %3559, %3470 : vector<8x128xf32>
    %3563 = arith.mulf %3561, %3521 : vector<8x128xf32>
    %3564 = arith.addf %3562, %3563 : vector<8x128xf32>
    %3565 = arith.mulf %3559, %3473 : vector<8x128xf32>
    %3566 = arith.mulf %3561, %3518 : vector<8x128xf32>
    %3567 = arith.subf %3565, %3566 : vector<8x128xf32>
    %3568 = arith.mulf %3559, %3518 : vector<8x128xf32>
    %3569 = arith.mulf %3561, %3473 : vector<8x128xf32>
    %3570 = arith.addf %3568, %3569 : vector<8x128xf32>
    %3571 = arith.mulf %3559, %3521 : vector<8x128xf32>
    %3572 = arith.mulf %3561, %3470 : vector<8x128xf32>
    %3573 = arith.subf %3571, %3572 : vector<8x128xf32>
    %3574 = arith.mulf %3559, %3482 : vector<8x128xf32>
    %3575 = arith.mulf %3561, %3533 : vector<8x128xf32>
    %3576 = arith.addf %3574, %3575 : vector<8x128xf32>
    %3577 = arith.mulf %3559, %3485 : vector<8x128xf32>
    %3578 = arith.mulf %3561, %3530 : vector<8x128xf32>
    %3579 = arith.subf %3577, %3578 : vector<8x128xf32>
    %3580 = arith.mulf %3559, %3530 : vector<8x128xf32>
    %3581 = arith.mulf %3561, %3485 : vector<8x128xf32>
    %3582 = arith.addf %3580, %3581 : vector<8x128xf32>
    %3583 = arith.mulf %3559, %3533 : vector<8x128xf32>
    %3584 = arith.mulf %3561, %3482 : vector<8x128xf32>
    %3585 = arith.subf %3583, %3584 : vector<8x128xf32>
    %3586 = arith.mulf %3559, %3494 : vector<8x128xf32>
    %3587 = arith.mulf %3561, %3545 : vector<8x128xf32>
    %3588 = arith.addf %3586, %3587 : vector<8x128xf32>
    %3589 = arith.mulf %3559, %3497 : vector<8x128xf32>
    %3590 = arith.mulf %3561, %3542 : vector<8x128xf32>
    %3591 = arith.subf %3589, %3590 : vector<8x128xf32>
    %3592 = arith.mulf %3559, %3542 : vector<8x128xf32>
    %3593 = arith.mulf %3561, %3497 : vector<8x128xf32>
    %3594 = arith.addf %3592, %3593 : vector<8x128xf32>
    %3595 = arith.mulf %3559, %3545 : vector<8x128xf32>
    %3596 = arith.mulf %3561, %3494 : vector<8x128xf32>
    %3597 = arith.subf %3595, %3596 : vector<8x128xf32>
    %3598 = arith.mulf %3559, %3506 : vector<8x128xf32>
    %3599 = arith.mulf %3561, %3557 : vector<8x128xf32>
    %3600 = arith.addf %3598, %3599 : vector<8x128xf32>
    %3601 = arith.mulf %3559, %3509 : vector<8x128xf32>
    %3602 = arith.mulf %3561, %3554 : vector<8x128xf32>
    %3603 = arith.subf %3601, %3602 : vector<8x128xf32>
    %3604 = arith.mulf %3559, %3554 : vector<8x128xf32>
    %3605 = arith.mulf %3561, %3509 : vector<8x128xf32>
    %3606 = arith.addf %3604, %3605 : vector<8x128xf32>
    %3607 = arith.mulf %3559, %3557 : vector<8x128xf32>
    %3608 = arith.mulf %3561, %3506 : vector<8x128xf32>
    %3609 = arith.subf %3607, %3608 : vector<8x128xf32>
    %3610 = arith.mulf %3464, %3464 : vector<8x128xf32>
    %3611 = arith.mulf %3467, %3467 : vector<8x128xf32>
    %3612 = arith.addf %3610, %3611 : vector<8x128xf32>
    %3613 = arith.mulf %3564, %3564 : vector<8x128xf32>
    %3614 = arith.mulf %3567, %3567 : vector<8x128xf32>
    %3615 = arith.addf %3613, %3614 : vector<8x128xf32>
    %3616 = arith.addf %3612, %3615 : vector<8x128xf32>
    %3617 = arith.mulf %3476, %3476 : vector<8x128xf32>
    %3618 = arith.mulf %3479, %3479 : vector<8x128xf32>
    %3619 = arith.addf %3617, %3618 : vector<8x128xf32>
    %3620 = arith.addf %3616, %3619 : vector<8x128xf32>
    %3621 = arith.mulf %3576, %3576 : vector<8x128xf32>
    %3622 = arith.mulf %3579, %3579 : vector<8x128xf32>
    %3623 = arith.addf %3621, %3622 : vector<8x128xf32>
    %3624 = arith.addf %3620, %3623 : vector<8x128xf32>
    %3625 = arith.mulf %3488, %3488 : vector<8x128xf32>
    %3626 = arith.mulf %3491, %3491 : vector<8x128xf32>
    %3627 = arith.addf %3625, %3626 : vector<8x128xf32>
    %3628 = arith.addf %3624, %3627 : vector<8x128xf32>
    %3629 = arith.mulf %3588, %3588 : vector<8x128xf32>
    %3630 = arith.mulf %3591, %3591 : vector<8x128xf32>
    %3631 = arith.addf %3629, %3630 : vector<8x128xf32>
    %3632 = arith.addf %3628, %3631 : vector<8x128xf32>
    %3633 = arith.mulf %3500, %3500 : vector<8x128xf32>
    %3634 = arith.mulf %3503, %3503 : vector<8x128xf32>
    %3635 = arith.addf %3633, %3634 : vector<8x128xf32>
    %3636 = arith.addf %3632, %3635 : vector<8x128xf32>
    %3637 = arith.mulf %3600, %3600 : vector<8x128xf32>
    %3638 = arith.mulf %3603, %3603 : vector<8x128xf32>
    %3639 = arith.addf %3637, %3638 : vector<8x128xf32>
    %3640 = arith.addf %3636, %3639 : vector<8x128xf32>
    %3641 = arith.mulf %3512, %3512 : vector<8x128xf32>
    %3642 = arith.mulf %3515, %3515 : vector<8x128xf32>
    %3643 = arith.addf %3641, %3642 : vector<8x128xf32>
    %3644 = arith.subf %3640, %3643 : vector<8x128xf32>
    %3645 = arith.mulf %3570, %3570 : vector<8x128xf32>
    %3646 = arith.mulf %3573, %3573 : vector<8x128xf32>
    %3647 = arith.addf %3645, %3646 : vector<8x128xf32>
    %3648 = arith.subf %3644, %3647 : vector<8x128xf32>
    %3649 = arith.mulf %3524, %3524 : vector<8x128xf32>
    %3650 = arith.mulf %3527, %3527 : vector<8x128xf32>
    %3651 = arith.addf %3649, %3650 : vector<8x128xf32>
    %3652 = arith.subf %3648, %3651 : vector<8x128xf32>
    %3653 = arith.mulf %3582, %3582 : vector<8x128xf32>
    %3654 = arith.mulf %3585, %3585 : vector<8x128xf32>
    %3655 = arith.addf %3653, %3654 : vector<8x128xf32>
    %3656 = arith.subf %3652, %3655 : vector<8x128xf32>
    %3657 = arith.mulf %3536, %3536 : vector<8x128xf32>
    %3658 = arith.mulf %3539, %3539 : vector<8x128xf32>
    %3659 = arith.addf %3657, %3658 : vector<8x128xf32>
    %3660 = arith.subf %3656, %3659 : vector<8x128xf32>
    %3661 = arith.mulf %3594, %3594 : vector<8x128xf32>
    %3662 = arith.mulf %3597, %3597 : vector<8x128xf32>
    %3663 = arith.addf %3661, %3662 : vector<8x128xf32>
    %3664 = arith.subf %3660, %3663 : vector<8x128xf32>
    %3665 = arith.mulf %3548, %3548 : vector<8x128xf32>
    %3666 = arith.mulf %3551, %3551 : vector<8x128xf32>
    %3667 = arith.addf %3665, %3666 : vector<8x128xf32>
    %3668 = arith.subf %3664, %3667 : vector<8x128xf32>
    %3669 = arith.mulf %3606, %3606 : vector<8x128xf32>
    %3670 = arith.mulf %3609, %3609 : vector<8x128xf32>
    %3671 = arith.addf %3669, %3670 : vector<8x128xf32>
    %3672 = arith.subf %3668, %3671 : vector<8x128xf32>
    %cst_51 = arith.constant 1.000000e+00 : f32
    %3673 = vector.broadcast %cst_51 : f32 to vector<8x128xf32>
    %3674 = arith.addf %3672, %3673 : vector<8x128xf32>
    %cst_52 = arith.constant 5.000000e-01 : f32
    %3675 = vector.broadcast %cst_52 : f32 to vector<8x128xf32>
    %3676 = arith.mulf %3674, %3675 : vector<8x128xf32>
    %c0_53 = arith.constant 0 : index
    %c0_54 = arith.constant 0 : index
    %3677 = vector.load %arg3[%c0_53, %c0_54] : memref<8x128xf32, #tpu.memory_space<vmem>>, vector<8x128xf32>
    tpu.vector_store %arg3[%c0_53, %c0_54], %3676 {strides = array<i32>} : memref<8x128xf32, #tpu.memory_space<vmem>>, vector<8x128xf32>,
    return
  }
  func.func @transform_0(%arg0: i32) -> i32 {
    %c0_i32 = arith.constant 0 : i32
    %c0_i32_0 = arith.constant 0 : i32
    return %c0_i32 : i32
  }
  func.func @transform_1(%arg0: i32) -> (i32, i32, i32) {
    %c0_i32 = arith.constant 0 : i32
    %c0_i32_0 = arith.constant 0 : i32
    %c0_i32_1 = arith.constant 0 : i32
    return %arg0, %c0_i32, %c0_i32_0 : i32, i32, i32
  }
  func.func @transform_2(%arg0: i32) -> (i32, i32) {
    %c0_i32 = arith.constant 0 : i32
    %c0_i32_0 = arith.constant 0 : i32
    return %arg0, %c0_i32 : i32, i32
  }
}

</mosaic_0001>

<llo_original>
// kernel: tpu_custom_call.1
$region0: #{tpu_custom_call.1}
  #allocation0 [shape = 'u32[]', space=smem, size = 0x4, offset = 0x4, fixed_abs, tag = 'smem constant byte address 0x4 - core index']
  #allocation1 [shape = 'u32[144,128]{1,0:T(1,128)}', space=vmem, size = 0x12000, scoped, tag = 'internal scratch']
  %s0 = inlined_call_operand.hbm [shape: f32[120], index: 0, kind: input, shape index: {}]
  %s1 = inlined_call_operand.hbm [shape: f32[12,8,128], index: 1, kind: input, shape index: {}]
  %s2 = inlined_call_operand.hbm [shape: f32[8,128], index: 2, kind: output, shape index: {}]
  %s3 = sld [smem:[#allocation0]]
  $region26: #{tpu_custom_call.1} parent=0
    _
  %s5 = ssub.s32 1, %s3
  %s6 = scalar_select 0, %s5, %s3
  $region1: #{tpu_custom_call.1} parent=0
    #allocation2 [shape = 'u8[512]{0}', space=smem, size = 0x200, scoped, tag = 'input window, operand 0, single buffered']
    #allocation3 [shape = 's32[1]{0}', space=sflag, size = 0x4, scoped, tag = 'scoped memory for tpu_custom_call.1']
    #allocation4 [shape = 's32[1]{0}', space=sflag, size = 0x4, scoped, tag = 'scoped memory for tpu_custom_call.1']
    #allocation5 [shape = 's32[1]{0}', space=sflag, size = 0x4, scoped, tag = 'scoped memory for tpu_custom_call.1']
    #allocation6 [shape = 'u8[49152]{0}', space=vmem, size = 0xc000, scoped, tag = 'input window, operand 1, single buffered']
    #allocation7 [shape = 'u8[4096]{0}', space=vmem, size = 0x1000, scoped, tag = 'output window, operand 0, single buffered']
    %7 = vsyncpa [#allocation5], 0
    %8 = vsyncpa [#allocation3], 0
    %9 = vsyncpa [#allocation4], 0
    // Predicated region
    $region2: #{tpu_custom_call.1} parent=1 // pred_check
      _
    $region3: #{tpu_custom_call.1} parent=1 // pred_check_branch
      %11 = sbr.rel (0) target = $region5
    $region4: #{tpu_custom_call.1} parent=1 // pred_region
      %s13 = ssub.s32 16, 16
      %14 = vsyncadd [#allocation5], %s13
      %17 = dma.hbm_to_smem %s0, 16, [#allocation2], [#allocation5]
    $region5: #{tpu_custom_call.1} parent=1 // pred_fallthru
      _
    // Predicated region
    $region6: #{tpu_custom_call.1} parent=1 // pred_check
      _
    $region7: #{tpu_custom_call.1} parent=1 // pred_check_branch
      %19 = sbr.rel (0) target = $region9
    $region8: #{tpu_custom_call.1} parent=1 // pred_region
      %s21 = ssub.s32 1536, 1536
      %22 = vsyncadd [#allocation3], %s21
      %s23 = sshll.u32 [#allocation6], 4
      %s24 = int_to_ptr.vmem [resolvable:$true] %s23
      %29 = dma.hbm_to_vmem [thread:$0]  %s1, 1536, %s24, [#allocation3], 128, 128, 8
    $region9: #{tpu_custom_call.1} parent=1 // pred_fallthru
      _
    // Predicated region
    $region10: #{tpu_custom_call.1} parent=1 // pred_check
      _
    $region11: #{tpu_custom_call.1} parent=1 // pred_check_branch
      %31 = sbr.rel (0) target = $region13
    $region12: #{tpu_custom_call.1} parent=1 // pred_region
      %32 = dma.done [#allocation5], 16
    $region13: #{tpu_custom_call.1} parent=1 // pred_fallthru
      _
    // Predicated region
    $region14: #{tpu_custom_call.1} parent=1 // pred_check
      _
    $region15: #{tpu_custom_call.1} parent=1 // pred_check_branch
      %34 = sbr.rel (0) target = $region17
    $region16: #{tpu_custom_call.1} parent=1 // pred_region
      %35 = dma.done [#allocation3], 1536
    $region17: #{tpu_custom_call.1} parent=1 // pred_fallthru
      _
    %36 = sfence
    %v37 = vld [vmem:[#allocation6] sm:$0xff]
    %s38 = scalar_lea.vmem [#allocation6], 8
    %v39 = vld [vmem:[%s38] sm:$0xff]
    %s40 = scalar_lea.vmem [#allocation6], 16
    %v41 = vld [vmem:[%s40] sm:$0xff]
    %s42 = scalar_lea.vmem [#allocation6], 24
    %v43 = vld [vmem:[%s42] sm:$0xff]
    %s44 = scalar_lea.vmem [#allocation6], 32
    %v45 = vld [vmem:[%s44] sm:$0xff]
    %s46 = scalar_lea.vmem [#allocation6], 40
    %v47 = vld [vmem:[%s46] sm:$0xff]
    %s48 = scalar_lea.vmem [#allocation6], 48
    %v49 = vld [vmem:[%s48] sm:$0xff]
    %s50 = scalar_lea.vmem [#allocation6], 56
    %v51 = vld [vmem:[%s50] sm:$0xff]
    %s52 = scalar_lea.vmem [#allocation6], 64
    %v53 = vld [vmem:[%s52] sm:$0xff]
    %s54 = scalar_lea.vmem [#allocation6], 72
    %v55 = vld [vmem:[%s54] sm:$0xff]
    %s56 = scalar_lea.vmem [#allocation6], 80
    %v57 = vld [vmem:[%s56] sm:$0xff]
    %s58 = scalar_lea.vmem [#allocation6], 88
    %v59 = vld [vmem:[%s58] sm:$0xff]
    %v60 = vsub.f32 0.0, %v47
    %v61 = vmul.f32 %v45, %v49
    %v62 = vmul.f32 %v51, %v60
    %v63 = vadd.f32 %v61, %v62
    %v64 = vmul.f32 %v60, %v49
    %v65 = vmul.f32 %v51, %v45
    %v66 = vsub.f32 %v64, %v65
    %v67 = vmul.f32 %v63, %v53
    %v68 = vmul.f32 %v55, %v66
    %v69 = vadd.f32 %v67, %v68
    %v70 = vmul.f32 %v66, %v53
    %v71 = vmul.f32 %v55, %v63
    %v72 = vsub.f32 %v70, %v71
    %v73 = vmul.f32 %v69, %v57
    %v74 = vmul.f32 %v59, %v72
    %v75 = vadd.f32 %v73, %v74
    %v76 = vmul.f32 %v72, %v57
    %v77 = vmul.f32 %v59, %v69
    %v78 = vsub.f32 %v76, %v77
    %s79 = sld [smem:[#allocation2]]
    %v80 = vstv %s79
    %s81 = sld [smem:[#allocation2 + $0x1]]
    %v82 = vstv %s81
    %v83 = vmul.f32 %v80, %v75
    %v84 = vmul.f32 %v80, %v78
    %v85 = vmul.f32 %v82, %v78
    %v86 = vmul.f32 %v82, %v75
    %v87 = vsub.f32 0.0, %v86
    %s88 = sld [smem:[#allocation2 + $0x2]]
    %v89 = vstv %s88
    %s90 = sld [smem:[#allocation2 + $0x3]]
    %v91 = vstv %s90
    %v92 = vmul.f32 %v83, %v89
    %v93 = vmul.f32 %v91, %v84
    %v94 = vadd.f32 %v92, %v93
    %v95 = vmul.f32 %v84, %v89
    %v96 = vmul.f32 %v91, %v83
    %v97 = vsub.f32 %v95, %v96
    %v98 = vmul.f32 %v85, %v89
    %v99 = vmul.f32 %v91, %v87
    %v100 = vsub.f32 %v98, %v99
    %v101 = vmul.f32 %v87, %v89
    %v102 = vmul.f32 %v91, %v85
    %v103 = vadd.f32 %v101, %v102
    %s104 = sld [smem:[#allocation2 + $0xa]]
    %v105 = vstv %s104
    %s106 = sld [smem:[#allocation2 + $0xb]]
    %v107 = vstv %s106
    %v108 = vmul.f32 %v105, %v94
    %v109 = vmul.f32 %v105, %v97
    %v110 = vmul.f32 %v107, %v97
    %v111 = vmul.f32 %v107, %v94
    %v112 = vsub.f32 0.0, %v111
    %v113 = vmul.f32 %v105, %v100
    %v114 = vmul.f32 %v105, %v103
    %v115 = vmul.f32 %v107, %v103
    %v116 = vmul.f32 %v107, %v100
    %v117 = vsub.f32 0.0, %v116
    %s118 = sld [smem:[#allocation2 + $0xc]]
    %v119 = vstv %s118
    %s120 = sld [smem:[#allocation2 + $0xd]]
    %v121 = vstv %s120
    %v122 = vmul.f32 %v108, %v119
    %v123 = vmul.f32 %v121, %v109
    %v124 = vadd.f32 %v122, %v123
    %v125 = vmul.f32 %v109, %v119
    %v126 = vmul.f32 %v121, %v108
    %v127 = vsub.f32 %v125, %v126
    %v128 = vmul.f32 %v110, %v119
    %v129 = vmul.f32 %v121, %v112
    %v130 = vsub.f32 %v128, %v129
    %v131 = vmul.f32 %v112, %v119
    %v132 = vmul.f32 %v121, %v110
    %v133 = vadd.f32 %v131, %v132
    %v134 = vmul.f32 %v113, %v119
    %v135 = vmul.f32 %v121, %v114
    %v136 = vadd.f32 %v134, %v135
    %v137 = vmul.f32 %v114, %v119
    %v138 = vmul.f32 %v121, %v113
    %v139 = vsub.f32 %v137, %v138
    %v140 = vmul.f32 %v115, %v119
    %v141 = vmul.f32 %v121, %v117
    %v142 = vsub.f32 %v140, %v141
    %v143 = vmul.f32 %v117, %v119
    %v144 = vmul.f32 %v121, %v115
    %v145 = vadd.f32 %v143, %v144
    %s146 = sld [smem:[#allocation2 + $0x14]]
    %v147 = vstv %s146
    %s148 = sld [smem:[#allocation2 + $0x15]]
    %v149 = vstv %s148
    %v150 = vmul.f32 %v147, %v124
    %v151 = vmul.f32 %v147, %v127
    %v152 = vmul.f32 %v149, %v127
    %v153 = vmul.f32 %v149, %v124
    %v154 = vsub.f32 0.0, %v153
    %v155 = vmul.f32 %v147, %v130
    %v156 = vmul.f32 %v147, %v133
    %v157 = vmul.f32 %v149, %v133
    %v158 = vmul.f32 %v149, %v130
    %v159 = vsub.f32 0.0, %v158
    %v160 = vmul.f32 %v147, %v136
    %v161 = vmul.f32 %v147, %v139
    %v162 = vmul.f32 %v149, %v139
    %v163 = vmul.f32 %v149, %v136
    %v164 = vsub.f32 0.0, %v163
    %v165 = vmul.f32 %v147, %v142
    %v166 = vmul.f32 %v147, %v145
    %v167 = vmul.f32 %v149, %v145
    %v168 = vmul.f32 %v149, %v142
    %v169 = vsub.f32 0.0, %v168
    %s170 = sld [smem:[#allocation2 + $0x16]]
    %v171 = vstv %s170
    %s172 = sld [smem:[#allocation2 + $0x17]]
    %v173 = vstv %s172
    %v174 = vmul.f32 %v150, %v171
    %v175 = vmul.f32 %v173, %v151
    %v176 = vadd.f32 %v174, %v175
    %v177 = vmul.f32 %v151, %v171
    %v178 = vmul.f32 %v173, %v150
    %v179 = vsub.f32 %v177, %v178
    %v180 = vmul.f32 %v152, %v171
    %v181 = vmul.f32 %v173, %v154
    %v182 = vsub.f32 %v180, %v181
    %v183 = vmul.f32 %v154, %v171
    %v184 = vmul.f32 %v173, %v152
    %v185 = vadd.f32 %v183, %v184
    %v186 = vmul.f32 %v155, %v171
    %v187 = vmul.f32 %v173, %v156
    %v188 = vadd.f32 %v186, %v187
    %v189 = vmul.f32 %v156, %v171
    %v190 = vmul.f32 %v173, %v155
    %v191 = vsub.f32 %v189, %v190
    %v192 = vmul.f32 %v157, %v171
    %v193 = vmul.f32 %v173, %v159
    %v194 = vsub.f32 %v192, %v193
    %v195 = vmul.f32 %v159, %v171
    %v196 = vmul.f32 %v173, %v157
    %v197 = vadd.f32 %v195, %v196
    %v198 = vmul.f32 %v160, %v171
    %v199 = vmul.f32 %v173, %v161
    %v200 = vadd.f32 %v198, %v199
    %v201 = vmul.f32 %v161, %v171
    %v202 = vmul.f32 %v173, %v160
    %v203 = vsub.f32 %v201, %v202
    %v204 = vmul.f32 %v162, %v171
    %v205 = vmul.f32 %v173, %v164
    %v206 = vsub.f32 %v204, %v205
    %v207 = vmul.f32 %v164, %v171
    %v208 = vmul.f32 %v173, %v162
    %v209 = vadd.f32 %v207, %v208
    %v210 = vmul.f32 %v165, %v171
    %v211 = vmul.f32 %v173, %v166
    %v212 = vadd.f32 %v210, %v211
    %v213 = vmul.f32 %v166, %v171
    %v214 = vmul.f32 %v173, %v165
    %v215 = vsub.f32 %v213, %v214
    %v216 = vmul.f32 %v167, %v171
    %v217 = vmul.f32 %v173, %v169
    %v218 = vsub.f32 %v216, %v217
    %v219 = vmul.f32 %v169, %v171
    %v220 = vmul.f32 %v173, %v167
    %v221 = vadd.f32 %v219, %v220
    %s222 = sld [smem:[#allocation2 + $0x1e]]
    %v223 = vstv %s222
    %s224 = sld [smem:[#allocation2 + $0x1f]]
    %v225 = vstv %s224
    %v226 = vmul.f32 %v223, %v176
    %v227 = vmul.f32 %v223, %v179
    %v228 = vmul.f32 %v225, %v179
    %v229 = vmul.f32 %v225, %v176
    %v230 = vsub.f32 0.0, %v229
    %v231 = vmul.f32 %v223, %v182
    %v232 = vmul.f32 %v223, %v185
    %v233 = vmul.f32 %v225, %v185
    %v234 = vmul.f32 %v225, %v182
    %v235 = vsub.f32 0.0, %v234
    %v236 = vmul.f32 %v223, %v188
    %v237 = vmul.f32 %v223, %v191
    %v238 = vmul.f32 %v225, %v191
    %v239 = vmul.f32 %v225, %v188
    %v240 = vsub.f32 0.0, %v239
    %v241 = vmul.f32 %v223, %v194
    %v242 = vmul.f32 %v223, %v197
    %v243 = vmul.f32 %v225, %v197
    %v244 = vmul.f32 %v225, %v194
    %v245 = vsub.f32 0.0, %v244
    %v246 = vmul.f32 %v223, %v200
    %v247 = vmul.f32 %v223, %v203
    %v248 = vmul.f32 %v225, %v203
    %v249 = vmul.f32 %v225, %v200
    %v250 = vsub.f32 0.0, %v249
    %v251 = vmul.f32 %v223, %v206
    %v252 = vmul.f32 %v223, %v209
    %v253 = vmul.f32 %v225, %v209
    %v254 = vmul.f32 %v225, %v206
    %v255 = vsub.f32 0.0, %v254
    %v256 = vmul.f32 %v223, %v212
    %v257 = vmul.f32 %v223, %v215
    %v258 = vmul.f32 %v225, %v215
    %v259 = vmul.f32 %v225, %v212
    %v260 = vsub.f32 0.0, %v259
    %v261 = vmul.f32 %v223, %v218
    %v262 = vmul.f32 %v223, %v221
    %v263 = vmul.f32 %v225, %v221
    %v264 = vmul.f32 %v225, %v218
    %v265 = vsub.f32 0.0, %v264
    %s266 = sld [smem:[#allocation2 + $0x20]]
    %v267 = vstv %s266
    %s268 = sld [smem:[#allocation2 + $0x21]]
    %v269 = vstv %s268
    %v270 = vmul.f32 %v226, %v267
    %v271 = vmul.f32 %v269, %v227
    %v272 = vadd.f32 %v270, %v271
    %v273 = vmul.f32 %v227, %v267
    %v274 = vmul.f32 %v269, %v226
    %v275 = vsub.f32 %v273, %v274
    %v276 = vmul.f32 %v228, %v267
    %v277 = vmul.f32 %v269, %v230
    %v278 = vsub.f32 %v276, %v277
    %v279 = vmul.f32 %v230, %v267
    %v280 = vmul.f32 %v269, %v228
    %v281 = vadd.f32 %v279, %v280
    %v282 = vmul.f32 %v231, %v267
    %v283 = vmul.f32 %v269, %v232
    %v284 = vadd.f32 %v282, %v283
    %v285 = vmul.f32 %v232, %v267
    %v286 = vmul.f32 %v269, %v231
    %v287 = vsub.f32 %v285, %v286
    %v288 = vmul.f32 %v233, %v267
    %v289 = vmul.f32 %v269, %v235
    %v290 = vsub.f32 %v288, %v289
    %v291 = vmul.f32 %v235, %v267
    %v292 = vmul.f32 %v269, %v233
    %v293 = vadd.f32 %v291, %v292
    %v294 = vmul.f32 %v236, %v267
    %v295 = vmul.f32 %v269, %v237
    %v296 = vadd.f32 %v294, %v295
    %v297 = vmul.f32 %v237, %v267
    %v298 = vmul.f32 %v269, %v236
    %v299 = vsub.f32 %v297, %v298
    %v300 = vmul.f32 %v238, %v267
    %v301 = vmul.f32 %v269, %v240
    %v302 = vsub.f32 %v300, %v301
    %v303 = vmul.f32 %v240, %v267
    %v304 = vmul.f32 %v269, %v238
    %v305 = vadd.f32 %v303, %v304
    %v306 = vmul.f32 %v241, %v267
    %v307 = vmul.f32 %v269, %v242
    %v308 = vadd.f32 %v306, %v307
    %v309 = vmul.f32 %v242, %v267
    %v310 = vmul.f32 %v269, %v241
    %v311 = vsub.f32 %v309, %v310
    %v312 = vmul.f32 %v243, %v267
    %v313 = vmul.f32 %v269, %v245
    %v314 = vsub.f32 %v312, %v313
    %v315 = vmul.f32 %v245, %v267
    %v316 = vmul.f32 %v269, %v243
    %v317 = vadd.f32 %v315, %v316
    %v318 = vmul.f32 %v246, %v267
    %v319 = vmul.f32 %v269, %v247
    %v320 = vadd.f32 %v318, %v319
    %v321 = vmul.f32 %v247, %v267
    %v322 = vmul.f32 %v269, %v246
    %v323 = vsub.f32 %v321, %v322
    %v324 = vmul.f32 %v248, %v267
    %v325 = vmul.f32 %v269, %v250
    %v326 = vsub.f32 %v324, %v325
    %v327 = vmul.f32 %v250, %v267
    %v328 = vmul.f32 %v269, %v248
    %v329 = vadd.f32 %v327, %v328
    %v330 = vmul.f32 %v251, %v267
    %v331 = vmul.f32 %v269, %v252
    %v332 = vadd.f32 %v330, %v331
    %v333 = vmul.f32 %v252, %v267
    %v334 = vmul.f32 %v269, %v251
    %v335 = vsub.f32 %v333, %v334
    %v336 = vmul.f32 %v253, %v267
    %v337 = vmul.f32 %v269, %v255
    %v338 = vsub.f32 %v336, %v337
    %v339 = vmul.f32 %v255, %v267
    %v340 = vmul.f32 %v269, %v253
    %v341 = vadd.f32 %v339, %v340
    %v342 = vmul.f32 %v256, %v267
    %v343 = vmul.f32 %v269, %v257
    %v344 = vadd.f32 %v342, %v343
    %v345 = vmul.f32 %v257, %v267
    %v346 = vmul.f32 %v269, %v256
    %v347 = vsub.f32 %v345, %v346
    %v348 = vmul.f32 %v258, %v267
    %v349 = vmul.f32 %v269, %v260
    %v350 = vsub.f32 %v348, %v349
    %v351 = vmul.f32 %v260, %v267
    %v352 = vmul.f32 %v269, %v258
    %v353 = vadd.f32 %v351, %v352
    %v354 = vmul.f32 %v261, %v267
    %v355 = vmul.f32 %v269, %v262
    %v356 = vadd.f32 %v354, %v355
    %v357 = vmul.f32 %v262, %v267
    %v358 = vmul.f32 %v269, %v261
    %v359 = vsub.f32 %v357, %v358
    %v360 = vmul.f32 %v263, %v267
    %v361 = vmul.f32 %v269, %v265
    %v362 = vsub.f32 %v360, %v361
    %v363 = vmul.f32 %v265, %v267
    %v364 = vmul.f32 %v269, %v263
    %v365 = vadd.f32 %v363, %v364
    %s366 = sld [smem:[#allocation2 + $0x4]]
    %v367 = vstv %s366
    %s368 = sld [smem:[#allocation2 + $0x5]]
    %v369 = vstv %s368
    %v370 = vmul.f32 %v367, %v278
    %v371 = vmul.f32 %v369, %v329
    %v372 = vadd.f32 %v370, %v371
    %v373 = vmul.f32 %v367, %v281
    %v374 = vmul.f32 %v369, %v326
    %v375 = vsub.f32 %v373, %v374
    %v376 = vmul.f32 %v367, %v326
    %v377 = vmul.f32 %v369, %v281
    %v378 = vadd.f32 %v376, %v377
    %v379 = vmul.f32 %v367, %v329
    %v380 = vmul.f32 %v369, %v278
    %v381 = vsub.f32 %v379, %v380
    %v382 = vmul.f32 %v367, %v290
    %v383 = vmul.f32 %v369, %v341
    %v384 = vadd.f32 %v382, %v383
    %v385 = vmul.f32 %v367, %v293
    %v386 = vmul.f32 %v369, %v338
    %v387 = vsub.f32 %v385, %v386
    %v388 = vmul.f32 %v367, %v338
    %v389 = vmul.f32 %v369, %v293
    %v390 = vadd.f32 %v388, %v389
    %v391 = vmul.f32 %v367, %v341
    %v392 = vmul.f32 %v369, %v290
    %v393 = vsub.f32 %v391, %v392
    %v394 = vmul.f32 %v367, %v302
    %v395 = vmul.f32 %v369, %v353
    %v396 = vadd.f32 %v394, %v395
    %v397 = vmul.f32 %v367, %v305
    %v398 = vmul.f32 %v369, %v350
    %v399 = vsub.f32 %v397, %v398
    %v400 = vmul.f32 %v367, %v350
    %v401 = vmul.f32 %v369, %v305
    %v402 = vadd.f32 %v400, %v401
    %v403 = vmul.f32 %v367, %v353
    %v404 = vmul.f32 %v369, %v302
    %v405 = vsub.f32 %v403, %v404
    %v406 = vmul.f32 %v367, %v314
    %v407 = vmul.f32 %v369, %v365
    %v408 = vadd.f32 %v406, %v407
    %v409 = vmul.f32 %v367, %v317
    %v410 = vmul.f32 %v369, %v362
    %v411 = vsub.f32 %v409, %v410
    %v412 = vmul.f32 %v367, %v362
    %v413 = vmul.f32 %v369, %v317
    %v414 = vadd.f32 %v412, %v413
    %v415 = vmul.f32 %v367, %v365
    %v416 = vmul.f32 %v369, %v314
    %v417 = vsub.f32 %v415, %v416
    %s418 = sld [smem:[#allocation2 + $0xe]]
    %v419 = vstv %s418
    %s420 = sld [smem:[#allocation2 + $0xf]]
    %v421 = vstv %s420
    %v422 = vmul.f32 %v419, %v284
    %v423 = vmul.f32 %v421, %v387
    %v424 = vadd.f32 %v422, %v423
    %v425 = vmul.f32 %v419, %v287
    %v426 = vmul.f32 %v421, %v384
    %v427 = vsub.f32 %v425, %v426
    %v428 = vmul.f32 %v419, %v384
    %v429 = vmul.f32 %v421, %v287
    %v430 = vadd.f32 %v428, %v429
    %v431 = vmul.f32 %v419, %v387
    %v432 = vmul.f32 %v421, %v284
    %v433 = vsub.f32 %v431, %v432
    %v434 = vmul.f32 %v419, %v308
    %v435 = vmul.f32 %v421, %v411
    %v436 = vadd.f32 %v434, %v435
    %v437 = vmul.f32 %v419, %v311
    %v438 = vmul.f32 %v421, %v408
    %v439 = vsub.f32 %v437, %v438
    %v440 = vmul.f32 %v419, %v408
    %v441 = vmul.f32 %v421, %v311
    %v442 = vadd.f32 %v440, %v441
    %v443 = vmul.f32 %v419, %v411
    %v444 = vmul.f32 %v421, %v308
    %v445 = vsub.f32 %v443, %v444
    %v446 = vmul.f32 %v419, %v332
    %v447 = vmul.f32 %v421, %v393
    %v448 = vadd.f32 %v446, %v447
    %v449 = vmul.f32 %v419, %v335
    %v450 = vmul.f32 %v421, %v390
    %v451 = vsub.f32 %v449, %v450
    %v452 = vmul.f32 %v419, %v390
    %v453 = vmul.f32 %v421, %v335
    %v454 = vadd.f32 %v452, %v453
    %v455 = vmul.f32 %v419, %v393
    %v456 = vmul.f32 %v421, %v332
    %v457 = vsub.f32 %v455, %v456
    %v458 = vmul.f32 %v419, %v356
    %v459 = vmul.f32 %v421, %v417
    %v460 = vadd.f32 %v458, %v459
    %v461 = vmul.f32 %v419, %v359
    %v462 = vmul.f32 %v421, %v414
    %v463 = vsub.f32 %v461, %v462
    %v464 = vmul.f32 %v419, %v414
    %v465 = vmul.f32 %v421, %v359
    %v466 = vadd.f32 %v464, %v465
    %v467 = vmul.f32 %v419, %v417
    %v468 = vmul.f32 %v421, %v356
    %v469 = vsub.f32 %v467, %v468
    %s470 = sld [smem:[#allocation2 + $0x18]]
    %v471 = vstv %s470
    %s472 = sld [smem:[#allocation2 + $0x19]]
    %v473 = vstv %s472
    %v474 = vmul.f32 %v471, %v296
    %v475 = vmul.f32 %v473, %v439
    %v476 = vadd.f32 %v474, %v475
    %v477 = vmul.f32 %v471, %v299
    %v478 = vmul.f32 %v473, %v436
    %v479 = vsub.f32 %v477, %v478
    %v480 = vmul.f32 %v471, %v436
    %v481 = vmul.f32 %v473, %v299
    %v482 = vadd.f32 %v480, %v481
    %v483 = vmul.f32 %v471, %v439
    %v484 = vmul.f32 %v473, %v296
    %v485 = vsub.f32 %v483, %v484
    %v486 = vmul.f32 %v471, %v396
    %v487 = vmul.f32 %v473, %v445
    %v488 = vadd.f32 %v486, %v487
    %v489 = vmul.f32 %v471, %v399
    %v490 = vmul.f32 %v473, %v442
    %v491 = vsub.f32 %v489, %v490
    %v492 = vmul.f32 %v471, %v442
    %v493 = vmul.f32 %v473, %v399
    %v494 = vadd.f32 %v492, %v493
    %v495 = vmul.f32 %v471, %v445
    %v496 = vmul.f32 %v473, %v396
    %v497 = vsub.f32 %v495, %v496
    %v498 = vmul.f32 %v471, %v344
    %v499 = vmul.f32 %v473, %v463
    %v500 = vadd.f32 %v498, %v499
    %v501 = vmul.f32 %v471, %v347
    %v502 = vmul.f32 %v473, %v460
    %v503 = vsub.f32 %v501, %v502
    %v504 = vmul.f32 %v471, %v460
    %v505 = vmul.f32 %v473, %v347
    %v506 = vadd.f32 %v504, %v505
    %v507 = vmul.f32 %v471, %v463
    %v508 = vmul.f32 %v473, %v344
    %v509 = vsub.f32 %v507, %v508
    %v510 = vmul.f32 %v471, %v402
    %v511 = vmul.f32 %v473, %v469
    %v512 = vadd.f32 %v510, %v511
    %v513 = vmul.f32 %v471, %v405
    %v514 = vmul.f32 %v473, %v466
    %v515 = vsub.f32 %v513, %v514
    %v516 = vmul.f32 %v471, %v466
    %v517 = vmul.f32 %v473, %v405
    %v518 = vadd.f32 %v516, %v517
    %v519 = vmul.f32 %v471, %v469
    %v520 = vmul.f32 %v473, %v402
    %v521 = vsub.f32 %v519, %v520
    %s522 = sld [smem:[#allocation2 + $0x22]]
    %v523 = vstv %s522
    %s524 = sld [smem:[#allocation2 + $0x23]]
    %v525 = vstv %s524
    %v526 = vmul.f32 %v523, %v320
    %v527 = vmul.f32 %v525, %v503
    %v528 = vadd.f32 %v526, %v527
    %v529 = vmul.f32 %v523, %v323
    %v530 = vmul.f32 %v525, %v500
    %v531 = vsub.f32 %v529, %v530
    %v532 = vmul.f32 %v523, %v500
    %v533 = vmul.f32 %v525, %v323
    %v534 = vadd.f32 %v532, %v533
    %v535 = vmul.f32 %v523, %v503
    %v536 = vmul.f32 %v525, %v320
    %v537 = vsub.f32 %v535, %v536
    %v538 = vmul.f32 %v523, %v378
    %v539 = vmul.f32 %v525, %v515
    %v540 = vadd.f32 %v538, %v539
    %v541 = vmul.f32 %v523, %v381
    %v542 = vmul.f32 %v525, %v512
    %v543 = vsub.f32 %v541, %v542
    %v544 = vmul.f32 %v523, %v512
    %v545 = vmul.f32 %v525, %v381
    %v546 = vadd.f32 %v544, %v545
    %v547 = vmul.f32 %v523, %v515
    %v548 = vmul.f32 %v525, %v378
    %v549 = vsub.f32 %v547, %v548
    %v550 = vmul.f32 %v523, %v448
    %v551 = vmul.f32 %v525, %v509
    %v552 = vadd.f32 %v550, %v551
    %v553 = vmul.f32 %v523, %v451
    %v554 = vmul.f32 %v525, %v506
    %v555 = vsub.f32 %v553, %v554
    %v556 = vmul.f32 %v523, %v506
    %v557 = vmul.f32 %v525, %v451
    %v558 = vadd.f32 %v556, %v557
    %v559 = vmul.f32 %v523, %v509
    %v560 = vmul.f32 %v525, %v448
    %v561 = vsub.f32 %v559, %v560
    %v562 = vmul.f32 %v523, %v454
    %v563 = vmul.f32 %v525, %v521
    %v564 = vadd.f32 %v562, %v563
    %v565 = vmul.f32 %v523, %v457
    %v566 = vmul.f32 %v525, %v518
    %v567 = vsub.f32 %v565, %v566
    %v568 = vmul.f32 %v523, %v518
    %v569 = vmul.f32 %v525, %v457
    %v570 = vadd.f32 %v568, %v569
    %v571 = vmul.f32 %v523, %v521
    %v572 = vmul.f32 %v525, %v454
    %v573 = vsub.f32 %v571, %v572
    %s574 = sld [smem:[#allocation2 + $0x6]]
    %v575 = vstv %s574
    %s576 = sld [smem:[#allocation2 + $0x7]]
    %v577 = vstv %s576
    %v578 = vmul.f32 %v37, %v575
    %v579 = vmul.f32 %v39, %v577
    %v580 = vsub.f32 %v578, %v579
    %v581 = vmul.f32 %v39, %v575
    %v582 = vmul.f32 %v37, %v577
    %v583 = vadd.f32 %v581, %v582
    %v584 = vmul.f32 %v580, %v272
    %v585 = vmul.f32 %v583, %v531
    %v586 = vadd.f32 %v584, %v585
    %v587 = vmul.f32 %v580, %v275
    %v588 = vmul.f32 %v583, %v528
    %v589 = vsub.f32 %v587, %v588
    %v590 = vmul.f32 %v580, %v528
    %v591 = vmul.f32 %v583, %v275
    %v592 = vadd.f32 %v590, %v591
    %v593 = vmul.f32 %v580, %v531
    %v594 = vmul.f32 %v583, %v272
    %v595 = vsub.f32 %v593, %v594
    %v596 = vmul.f32 %v580, %v372
    %v597 = vmul.f32 %v583, %v543
    %v598 = vadd.f32 %v596, %v597
    %v599 = vmul.f32 %v580, %v375
    %v600 = vmul.f32 %v583, %v540
    %v601 = vsub.f32 %v599, %v600
    %v602 = vmul.f32 %v580, %v540
    %v603 = vmul.f32 %v583, %v375
    %v604 = vadd.f32 %v602, %v603
    %v605 = vmul.f32 %v580, %v543
    %v606 = vmul.f32 %v583, %v372
    %v607 = vsub.f32 %v605, %v606
    %v608 = vmul.f32 %v580, %v424
    %v609 = vmul.f32 %v583, %v555
    %v610 = vadd.f32 %v608, %v609
    %v611 = vmul.f32 %v580, %v427
    %v612 = vmul.f32 %v583, %v552
    %v613 = vsub.f32 %v611, %v612
    %v614 = vmul.f32 %v580, %v552
    %v615 = vmul.f32 %v583, %v427
    %v616 = vadd.f32 %v614, %v615
    %v617 = vmul.f32 %v580, %v555
    %v618 = vmul.f32 %v583, %v424
    %v619 = vsub.f32 %v617, %v618
    %v620 = vmul.f32 %v580, %v430
    %v621 = vmul.f32 %v583, %v567
    %v622 = vadd.f32 %v620, %v621
    %v623 = vmul.f32 %v580, %v433
    %v624 = vmul.f32 %v583, %v564
    %v625 = vsub.f32 %v623, %v624
    %v626 = vmul.f32 %v580, %v564
    %v627 = vmul.f32 %v583, %v433
    %v628 = vadd.f32 %v626, %v627
    %v629 = vmul.f32 %v580, %v567
    %v630 = vmul.f32 %v583, %v430
    %v631 = vsub.f32 %v629, %v630
    %v632 = vmul.f32 %v580, %v476
    %v633 = vmul.f32 %v583, %v537
    %v634 = vadd.f32 %v632, %v633
    %v635 = vmul.f32 %v580, %v479
    %v636 = vmul.f32 %v583, %v534
    %v637 = vsub.f32 %v635, %v636
    %v638 = vmul.f32 %v580, %v534
    %v639 = vmul.f32 %v583, %v479
    %v640 = vadd.f32 %v638, %v639
    %v641 = vmul.f32 %v580, %v537
    %v642 = vmul.f32 %v583, %v476
    %v643 = vsub.f32 %v641, %v642
    %v644 = vmul.f32 %v580, %v488
    %v645 = vmul.f32 %v583, %v549
    %v646 = vadd.f32 %v644, %v645
    %v647 = vmul.f32 %v580, %v491
    %v648 = vmul.f32 %v583, %v546
    %v649 = vsub.f32 %v647, %v648
    %v650 = vmul.f32 %v580, %v546
    %v651 = vmul.f32 %v583, %v491
    %v652 = vadd.f32 %v650, %v651
    %v653 = vmul.f32 %v580, %v549
    %v654 = vmul.f32 %v583, %v488
    %v655 = vsub.f32 %v653, %v654
    %v656 = vmul.f32 %v580, %v482
    %v657 = vmul.f32 %v583, %v561
    %v658 = vadd.f32 %v656, %v657
    %v659 = vmul.f32 %v580, %v485
    %v660 = vmul.f32 %v583, %v558
    %v661 = vsub.f32 %v659, %v660
    %v662 = vmul.f32 %v580, %v558
    %v663 = vmul.f32 %v583, %v485
    %v664 = vadd.f32 %v662, %v663
    %v665 = vmul.f32 %v580, %v561
    %v666 = vmul.f32 %v583, %v482
    %v667 = vsub.f32 %v665, %v666
    %v668 = vmul.f32 %v580, %v494
    %v669 = vmul.f32 %v583, %v573
    %v670 = vadd.f32 %v668, %v669
    %v671 = vmul.f32 %v580, %v497
    %v672 = vmul.f32 %v583, %v570
    %v673 = vsub.f32 %v671, %v672
    %v674 = vmul.f32 %v580, %v570
    %v675 = vmul.f32 %v583, %v497
    %v676 = vadd.f32 %v674, %v675
    %v677 = vmul.f32 %v580, %v573
    %v678 = vmul.f32 %v583, %v494
    %v679 = vsub.f32 %v677, %v678
    %s680 = sld [smem:[#allocation2 + $0x10]]
    %v681 = vstv %s680
    %s682 = sld [smem:[#allocation2 + $0x11]]
    %v683 = vstv %s682
    %v684 = vmul.f32 %v37, %v681
    %v685 = vmul.f32 %v39, %v683
    %v686 = vsub.f32 %v684, %v685
    %v687 = vmul.f32 %v39, %v681
    %v688 = vmul.f32 %v37, %v683
    %v689 = vadd.f32 %v687, %v688
    %v690 = vmul.f32 %v686, %v586
    %v691 = vmul.f32 %v689, %v637
    %v692 = vadd.f32 %v690, %v691
    %v693 = vmul.f32 %v686, %v589
    %v694 = vmul.f32 %v689, %v634
    %v695 = vsub.f32 %v693, %v694
    %v696 = vmul.f32 %v686, %v634
    %v697 = vmul.f32 %v689, %v589
    %v698 = vadd.f32 %v696, %v697
    %v699 = vmul.f32 %v686, %v637
    %v700 = vmul.f32 %v689, %v586
    %v701 = vsub.f32 %v699, %v700
    %v702 = vmul.f32 %v686, %v598
    %v703 = vmul.f32 %v689, %v649
    %v704 = vadd.f32 %v702, %v703
    %v705 = vmul.f32 %v686, %v601
    %v706 = vmul.f32 %v689, %v646
    %v707 = vsub.f32 %v705, %v706
    %v708 = vmul.f32 %v686, %v646
    %v709 = vmul.f32 %v689, %v601
    %v710 = vadd.f32 %v708, %v709
    %v711 = vmul.f32 %v686, %v649
    %v712 = vmul.f32 %v689, %v598
    %v713 = vsub.f32 %v711, %v712
    %v714 = vmul.f32 %v686, %v610
    %v715 = vmul.f32 %v689, %v661
    %v716 = vadd.f32 %v714, %v715
    %v717 = vmul.f32 %v686, %v613
    %v718 = vmul.f32 %v689, %v658
    %v719 = vsub.f32 %v717, %v718
    %v720 = vmul.f32 %v686, %v658
    %v721 = vmul.f32 %v689, %v613
    %v722 = vadd.f32 %v720, %v721
    %v723 = vmul.f32 %v686, %v661
    %v724 = vmul.f32 %v689, %v610
    %v725 = vsub.f32 %v723, %v724
    %v726 = vmul.f32 %v686, %v622
    %v727 = vmul.f32 %v689, %v673
    %v728 = vadd.f32 %v726, %v727
    %v729 = vmul.f32 %v686, %v625
    %v730 = vmul.f32 %v689, %v670
    %v731 = vsub.f32 %v729, %v730
    %v732 = vmul.f32 %v686, %v670
    %v733 = vmul.f32 %v689, %v625
    %v734 = vadd.f32 %v732, %v733
    %v735 = vmul.f32 %v686, %v673
    %v736 = vmul.f32 %v689, %v622
    %v737 = vsub.f32 %v735, %v736
    %v738 = vmul.f32 %v686, %v592
    %v739 = vmul.f32 %v689, %v643
    %v740 = vadd.f32 %v738, %v739
    %v741 = vmul.f32 %v686, %v595
    %v742 = vmul.f32 %v689, %v640
    %v743 = vsub.f32 %v741, %v742
    %v744 = vmul.f32 %v686, %v640
    %v745 = vmul.f32 %v689, %v595
    %v746 = vadd.f32 %v744, %v745
    %v747 = vmul.f32 %v686, %v643
    %v748 = vmul.f32 %v689, %v592
    %v749 = vsub.f32 %v747, %v748
    %v750 = vmul.f32 %v686, %v604
    %v751 = vmul.f32 %v689, %v655
    %v752 = vadd.f32 %v750, %v751
    %v753 = vmul.f32 %v686, %v607
    %v754 = vmul.f32 %v689, %v652
    %v755 = vsub.f32 %v753, %v754
    %v756 = vmul.f32 %v686, %v652
    %v757 = vmul.f32 %v689, %v607
    %v758 = vadd.f32 %v756, %v757
    %v759 = vmul.f32 %v686, %v655
    %v760 = vmul.f32 %v689, %v604
    %v761 = vsub.f32 %v759, %v760
    %v762 = vmul.f32 %v686, %v616
    %v763 = vmul.f32 %v689, %v667
    %v764 = vadd.f32 %v762, %v763
    %v765 = vmul.f32 %v686, %v619
    %v766 = vmul.f32 %v689, %v664
    %v767 = vsub.f32 %v765, %v766
    %v768 = vmul.f32 %v686, %v664
    %v769 = vmul.f32 %v689, %v619
    %v770 = vadd.f32 %v768, %v769
    %v771 = vmul.f32 %v686, %v667
    %v772 = vmul.f32 %v689, %v616
    %v773 = vsub.f32 %v771, %v772
    %v774 = vmul.f32 %v686, %v628
    %v775 = vmul.f32 %v689, %v679
    %v776 = vadd.f32 %v774, %v775
    %v777 = vmul.f32 %v686, %v631
    %v778 = vmul.f32 %v689, %v676
    %v779 = vsub.f32 %v777, %v778
    %v780 = vmul.f32 %v686, %v676
    %v781 = vmul.f32 %v689, %v631
    %v782 = vadd.f32 %v780, %v781
    %v783 = vmul.f32 %v686, %v679
    %v784 = vmul.f32 %v689, %v628
    %v785 = vsub.f32 %v783, %v784
    %s786 = sld [smem:[#allocation2 + $0x1a]]
    %v787 = vstv %s786
    %s788 = sld [smem:[#allocation2 + $0x1b]]
    %v789 = vstv %s788
    %v790 = vmul.f32 %v37, %v787
    %v791 = vmul.f32 %v39, %v789
    %v792 = vsub.f32 %v790, %v791
    %v793 = vmul.f32 %v39, %v787
    %v794 = vmul.f32 %v37, %v789
    %v795 = vadd.f32 %v793, %v794
    %v796 = vmul.f32 %v792, %v692
    %v797 = vmul.f32 %v795, %v719
    %v798 = vadd.f32 %v796, %v797
    %v799 = vmul.f32 %v792, %v695
    %v800 = vmul.f32 %v795, %v716
    %v801 = vsub.f32 %v799, %v800
    %v802 = vmul.f32 %v792, %v716
    %v803 = vmul.f32 %v795, %v695
    %v804 = vadd.f32 %v802, %v803
    %v805 = vmul.f32 %v792, %v719
    %v806 = vmul.f32 %v795, %v692
    %v807 = vsub.f32 %v805, %v806
    %v808 = vmul.f32 %v792, %v704
    %v809 = vmul.f32 %v795, %v731
    %v810 = vadd.f32 %v808, %v809
    %v811 = vmul.f32 %v792, %v707
    %v812 = vmul.f32 %v795, %v728
    %v813 = vsub.f32 %v811, %v812
    %v814 = vmul.f32 %v792, %v728
    %v815 = vmul.f32 %v795, %v707
    %v816 = vadd.f32 %v814, %v815
    %v817 = vmul.f32 %v792, %v731
    %v818 = vmul.f32 %v795, %v704
    %v819 = vsub.f32 %v817, %v818
    %v820 = vmul.f32 %v792, %v698
    %v821 = vmul.f32 %v795, %v725
    %v822 = vadd.f32 %v820, %v821
    %v823 = vmul.f32 %v792, %v701
    %v824 = vmul.f32 %v795, %v722
    %v825 = vsub.f32 %v823, %v824
    %v826 = vmul.f32 %v792, %v722
    %v827 = vmul.f32 %v795, %v701
    %v828 = vadd.f32 %v826, %v827
    %v829 = vmul.f32 %v792, %v725
    %v830 = vmul.f32 %v795, %v698
    %v831 = vsub.f32 %v829, %v830
    %v832 = vmul.f32 %v792, %v710
    %v833 = vmul.f32 %v795, %v737
    %v834 = vadd.f32 %v832, %v833
    %v835 = vmul.f32 %v792, %v713
    %v836 = vmul.f32 %v795, %v734
    %v837 = vsub.f32 %v835, %v836
    %v838 = vmul.f32 %v792, %v734
    %v839 = vmul.f32 %v795, %v713
    %v840 = vadd.f32 %v838, %v839
    %v841 = vmul.f32 %v792, %v737
    %v842 = vmul.f32 %v795, %v710
    %v843 = vsub.f32 %v841, %v842
    %v844 = vmul.f32 %v792, %v740
    %v845 = vmul.f32 %v795, %v767
    %v846 = vadd.f32 %v844, %v845
    %v847 = vmul.f32 %v792, %v743
    %v848 = vmul.f32 %v795, %v764
    %v849 = vsub.f32 %v847, %v848
    %v850 = vmul.f32 %v792, %v764
    %v851 = vmul.f32 %v795, %v743
    %v852 = vadd.f32 %v850, %v851
    %v853 = vmul.f32 %v792, %v767
    %v854 = vmul.f32 %v795, %v740
    %v855 = vsub.f32 %v853, %v854
    %v856 = vmul.f32 %v792, %v752
    %v857 = vmul.f32 %v795, %v779
    %v858 = vadd.f32 %v856, %v857
    %v859 = vmul.f32 %v792, %v755
    %v860 = vmul.f32 %v795, %v776
    %v861 = vsub.f32 %v859, %v860
    %v862 = vmul.f32 %v792, %v776
    %v863 = vmul.f32 %v795, %v755
    %v864 = vadd.f32 %v862, %v863
    %v865 = vmul.f32 %v792, %v779
    %v866 = vmul.f32 %v795, %v752
    %v867 = vsub.f32 %v865, %v866
    %v868 = vmul.f32 %v792, %v746
    %v869 = vmul.f32 %v795, %v773
    %v870 = vadd.f32 %v868, %v869
    %v871 = vmul.f32 %v792, %v749
    %v872 = vmul.f32 %v795, %v770
    %v873 = vsub.f32 %v871, %v872
    %v874 = vmul.f32 %v792, %v770
    %v875 = vmul.f32 %v795, %v749
    %v876 = vadd.f32 %v874, %v875
    %v877 = vmul.f32 %v792, %v773
    %v878 = vmul.f32 %v795, %v746
    %v879 = vsub.f32 %v877, %v878
    %v880 = vmul.f32 %v792, %v758
    %v881 = vmul.f32 %v795, %v785
    %v882 = vadd.f32 %v880, %v881
    %v883 = vmul.f32 %v792, %v761
    %v884 = vmul.f32 %v795, %v782
    %v885 = vsub.f32 %v883, %v884
    %v886 = vmul.f32 %v792, %v782
    %v887 = vmul.f32 %v795, %v761
    %v888 = vadd.f32 %v886, %v887
    %v889 = vmul.f32 %v792, %v785
    %v890 = vmul.f32 %v795, %v758
    %v891 = vsub.f32 %v889, %v890
    %s892 = sld [smem:[#allocation2 + $0x24]]
    %v893 = vstv %s892
    %s894 = sld [smem:[#allocation2 + $0x25]]
    %v895 = vstv %s894
    %v896 = vmul.f32 %v37, %v893
    %v897 = vmul.f32 %v39, %v895
    %v898 = vsub.f32 %v896, %v897
    %v899 = vmul.f32 %v39, %v893
    %v900 = vmul.f32 %v37, %v895
    %v901 = vadd.f32 %v899, %v900
    %v902 = vmul.f32 %v898, %v798
    %v903 = vmul.f32 %v901, %v813
    %v904 = vadd.f32 %v902, %v903
    %v905 = vmul.f32 %v898, %v801
    %v906 = vmul.f32 %v901, %v810
    %v907 = vsub.f32 %v905, %v906
    %v908 = vmul.f32 %v898, %v810
    %v909 = vmul.f32 %v901, %v801
    %v910 = vadd.f32 %v908, %v909
    %v911 = vmul.f32 %v898, %v813
    %v912 = vmul.f32 %v901, %v798
    %v913 = vsub.f32 %v911, %v912
    %v914 = vmul.f32 %v898, %v804
    %v915 = vmul.f32 %v901, %v819
    %v916 = vadd.f32 %v914, %v915
    %v917 = vmul.f32 %v898, %v807
    %v918 = vmul.f32 %v901, %v816
    %v919 = vsub.f32 %v917, %v918
    %v920 = vmul.f32 %v898, %v816
    %v921 = vmul.f32 %v901, %v807
    %v922 = vadd.f32 %v920, %v921
    %v923 = vmul.f32 %v898, %v819
    %v924 = vmul.f32 %v901, %v804
    %v925 = vsub.f32 %v923, %v924
    %v926 = vmul.f32 %v898, %v822
    %v927 = vmul.f32 %v901, %v837
    %v928 = vadd.f32 %v926, %v927
    %v929 = vmul.f32 %v898, %v825
    %v930 = vmul.f32 %v901, %v834
    %v931 = vsub.f32 %v929, %v930
    %v932 = vmul.f32 %v898, %v834
    %v933 = vmul.f32 %v901, %v825
    %v934 = vadd.f32 %v932, %v933
    %v935 = vmul.f32 %v898, %v837
    %v936 = vmul.f32 %v901, %v822
    %v937 = vsub.f32 %v935, %v936
    %v938 = vmul.f32 %v898, %v828
    %v939 = vmul.f32 %v901, %v843
    %v940 = vadd.f32 %v938, %v939
    %v941 = vmul.f32 %v898, %v831
    %v942 = vmul.f32 %v901, %v840
    %v943 = vsub.f32 %v941, %v942
    %v944 = vmul.f32 %v898, %v840
    %v945 = vmul.f32 %v901, %v831
    %v946 = vadd.f32 %v944, %v945
    %v947 = vmul.f32 %v898, %v843
    %v948 = vmul.f32 %v901, %v828
    %v949 = vsub.f32 %v947, %v948
    %v950 = vmul.f32 %v898, %v846
    %v951 = vmul.f32 %v901, %v861
    %v952 = vadd.f32 %v950, %v951
    %v953 = vmul.f32 %v898, %v849
    %v954 = vmul.f32 %v901, %v858
    %v955 = vsub.f32 %v953, %v954
    %v956 = vmul.f32 %v898, %v858
    %v957 = vmul.f32 %v901, %v849
    %v958 = vadd.f32 %v956, %v957
    %v959 = vmul.f32 %v898, %v861
    %v960 = vmul.f32 %v901, %v846
    %v961 = vsub.f32 %v959, %v960
    %v962 = vmul.f32 %v898, %v852
    %v963 = vmul.f32 %v901, %v867
    %v964 = vadd.f32 %v962, %v963
    %v965 = vmul.f32 %v898, %v855
    %v966 = vmul.f32 %v901, %v864
    %v967 = vsub.f32 %v965, %v966
    %v968 = vmul.f32 %v898, %v864
    %v969 = vmul.f32 %v901, %v855
    %v970 = vadd.f32 %v968, %v969
    %v971 = vmul.f32 %v898, %v867
    %v972 = vmul.f32 %v901, %v852
    %v973 = vsub.f32 %v971, %v972
    %v974 = vmul.f32 %v898, %v870
    %v975 = vmul.f32 %v901, %v885
    %v976 = vadd.f32 %v974, %v975
    %v977 = vmul.f32 %v898, %v873
    %v978 = vmul.f32 %v901, %v882
    %v979 = vsub.f32 %v977, %v978
    %v980 = vmul.f32 %v898, %v882
    %v981 = vmul.f32 %v901, %v873
    %v982 = vadd.f32 %v980, %v981
    %v983 = vmul.f32 %v898, %v885
    %v984 = vmul.f32 %v901, %v870
    %v985 = vsub.f32 %v983, %v984
    %v986 = vmul.f32 %v898, %v876
    %v987 = vmul.f32 %v901, %v891
    %v988 = vadd.f32 %v986, %v987
    %v989 = vmul.f32 %v898, %v879
    %v990 = vmul.f32 %v901, %v888
    %v991 = vsub.f32 %v989, %v990
    %v992 = vmul.f32 %v898, %v888
    %v993 = vmul.f32 %v901, %v879
    %v994 = vadd.f32 %v992, %v993
    %v995 = vmul.f32 %v898, %v891
    %v996 = vmul.f32 %v901, %v876
    %v997 = vsub.f32 %v995, %v996
    %s998 = sld [smem:[#allocation2 + $0x8]]
    %v999 = vstv %s998
    %s1000 = sld [smem:[#allocation2 + $0x9]]
    %v1001 = vstv %s1000
    %v1002 = vmul.f32 %v41, %v999
    %v1003 = vmul.f32 %v43, %v1001
    %v1004 = vsub.f32 %v1002, %v1003
    %v1005 = vmul.f32 %v43, %v999
    %v1006 = vmul.f32 %v41, %v1001
    %v1007 = vadd.f32 %v1005, %v1006
    %v1008 = vmul.f32 %v1004, %v904
    %v1009 = vmul.f32 %v1007, %v952
    %v1010 = vsub.f32 %v1008, %v1009
    %v1011 = vmul.f32 %v1004, %v907
    %v1012 = vmul.f32 %v1007, %v955
    %v1013 = vsub.f32 %v1011, %v1012
    %v1014 = vmul.f32 %v1007, %v904
    %v1015 = vmul.f32 %v1004, %v952
    %v1016 = vadd.f32 %v1014, %v1015
    %v1017 = vmul.f32 %v1007, %v907
    %v1018 = vmul.f32 %v1004, %v955
    %v1019 = vadd.f32 %v1017, %v1018
    %v1020 = vmul.f32 %v1004, %v910
    %v1021 = vmul.f32 %v1007, %v958
    %v1022 = vsub.f32 %v1020, %v1021
    %v1023 = vmul.f32 %v1004, %v913
    %v1024 = vmul.f32 %v1007, %v961
    %v1025 = vsub.f32 %v1023, %v1024
    %v1026 = vmul.f32 %v1007, %v910
    %v1027 = vmul.f32 %v1004, %v958
    %v1028 = vadd.f32 %v1026, %v1027
    %v1029 = vmul.f32 %v1007, %v913
    %v1030 = vmul.f32 %v1004, %v961
    %v1031 = vadd.f32 %v1029, %v1030
    %v1032 = vmul.f32 %v1004, %v916
    %v1033 = vmul.f32 %v1007, %v964
    %v1034 = vsub.f32 %v1032, %v1033
    %v1035 = vmul.f32 %v1004, %v919
    %v1036 = vmul.f32 %v1007, %v967
    %v1037 = vsub.f32 %v1035, %v1036
    %v1038 = vmul.f32 %v1007, %v916
    %v1039 = vmul.f32 %v1004, %v964
    %v1040 = vadd.f32 %v1038, %v1039
    %v1041 = vmul.f32 %v1007, %v919
    %v1042 = vmul.f32 %v1004, %v967
    %v1043 = vadd.f32 %v1041, %v1042
    %v1044 = vmul.f32 %v1004, %v922
    %v1045 = vmul.f32 %v1007, %v970
    %v1046 = vsub.f32 %v1044, %v1045
    %v1047 = vmul.f32 %v1004, %v925
    %v1048 = vmul.f32 %v1007, %v973
    %v1049 = vsub.f32 %v1047, %v1048
    %v1050 = vmul.f32 %v1007, %v922
    %v1051 = vmul.f32 %v1004, %v970
    %v1052 = vadd.f32 %v1050, %v1051
    %v1053 = vmul.f32 %v1007, %v925
    %v1054 = vmul.f32 %v1004, %v973
    %v1055 = vadd.f32 %v1053, %v1054
    %v1056 = vmul.f32 %v1004, %v928
    %v1057 = vmul.f32 %v1007, %v976
    %v1058 = vsub.f32 %v1056, %v1057
    %v1059 = vmul.f32 %v1004, %v931
    %v1060 = vmul.f32 %v1007, %v979
    %v1061 = vsub.f32 %v1059, %v1060
    %v1062 = vmul.f32 %v1007, %v928
    %v1063 = vmul.f32 %v1004, %v976
    %v1064 = vadd.f32 %v1062, %v1063
    %v1065 = vmul.f32 %v1007, %v931
    %v1066 = vmul.f32 %v1004, %v979
    %v1067 = vadd.f32 %v1065, %v1066
    %v1068 = vmul.f32 %v1004, %v934
    %v1069 = vmul.f32 %v1007, %v982
    %v1070 = vsub.f32 %v1068, %v1069
    %v1071 = vmul.f32 %v1004, %v937
    %v1072 = vmul.f32 %v1007, %v985
    %v1073 = vsub.f32 %v1071, %v1072
    %v1074 = vmul.f32 %v1007, %v934
    %v1075 = vmul.f32 %v1004, %v982
    %v1076 = vadd.f32 %v1074, %v1075
    %v1077 = vmul.f32 %v1007, %v937
    %v1078 = vmul.f32 %v1004, %v985
    %v1079 = vadd.f32 %v1077, %v1078
    %v1080 = vmul.f32 %v1004, %v940
    %v1081 = vmul.f32 %v1007, %v988
    %v1082 = vsub.f32 %v1080, %v1081
    %v1083 = vmul.f32 %v1004, %v943
    %v1084 = vmul.f32 %v1007, %v991
    %v1085 = vsub.f32 %v1083, %v1084
    %v1086 = vmul.f32 %v1007, %v940
    %v1087 = vmul.f32 %v1004, %v988
    %v1088 = vadd.f32 %v1086, %v1087
    %v1089 = vmul.f32 %v1007, %v943
    %v1090 = vmul.f32 %v1004, %v991
    %v1091 = vadd.f32 %v1089, %v1090
    %v1092 = vmul.f32 %v1004, %v946
    %v1093 = vmul.f32 %v1007, %v994
    %v1094 = vsub.f32 %v1092, %v1093
    %v1095 = vmul.f32 %v1004, %v949
    %v1096 = vmul.f32 %v1007, %v997
    %v1097 = vsub.f32 %v1095, %v1096
    %v1098 = vmul.f32 %v1007, %v946
    %v1099 = vmul.f32 %v1004, %v994
    %v1100 = vadd.f32 %v1098, %v1099
    %v1101 = vmul.f32 %v1007, %v949
    %v1102 = vmul.f32 %v1004, %v997
    %v1103 = vadd.f32 %v1101, %v1102
    %s1104 = sld [smem:[#allocation2 + $0x12]]
    %v1105 = vstv %s1104
    %s1106 = sld [smem:[#allocation2 + $0x13]]
    %v1107 = vstv %s1106
    %v1108 = vmul.f32 %v41, %v1105
    %v1109 = vmul.f32 %v43, %v1107
    %v1110 = vsub.f32 %v1108, %v1109
    %v1111 = vmul.f32 %v43, %v1105
    %v1112 = vmul.f32 %v41, %v1107
    %v1113 = vadd.f32 %v1111, %v1112
    %v1114 = vmul.f32 %v1110, %v1010
    %v1115 = vmul.f32 %v1113, %v1058
    %v1116 = vsub.f32 %v1114, %v1115
    %v1117 = vmul.f32 %v1110, %v1013
    %v1118 = vmul.f32 %v1113, %v1061
    %v1119 = vsub.f32 %v1117, %v1118
    %v1120 = vmul.f32 %v1113, %v1010
    %v1121 = vmul.f32 %v1110, %v1058
    %v1122 = vadd.f32 %v1120, %v1121
    %v1123 = vmul.f32 %v1113, %v1013
    %v1124 = vmul.f32 %v1110, %v1061
    %v1125 = vadd.f32 %v1123, %v1124
    %v1126 = vmul.f32 %v1110, %v1022
    %v1127 = vmul.f32 %v1113, %v1070
    %v1128 = vsub.f32 %v1126, %v1127
    %v1129 = vmul.f32 %v1110, %v1025
    %v1130 = vmul.f32 %v1113, %v1073
    %v1131 = vsub.f32 %v1129, %v1130
    %v1132 = vmul.f32 %v1113, %v1022
    %v1133 = vmul.f32 %v1110, %v1070
    %v1134 = vadd.f32 %v1132, %v1133
    %v1135 = vmul.f32 %v1113, %v1025
    %v1136 = vmul.f32 %v1110, %v1073
    %v1137 = vadd.f32 %v1135, %v1136
    %v1138 = vmul.f32 %v1110, %v1034
    %v1139 = vmul.f32 %v1113, %v1082
    %v1140 = vsub.f32 %v1138, %v1139
    %v1141 = vmul.f32 %v1110, %v1037
    %v1142 = vmul.f32 %v1113, %v1085
    %v1143 = vsub.f32 %v1141, %v1142
    %v1144 = vmul.f32 %v1113, %v1034
    %v1145 = vmul.f32 %v1110, %v1082
    %v1146 = vadd.f32 %v1144, %v1145
    %v1147 = vmul.f32 %v1113, %v1037
    %v1148 = vmul.f32 %v1110, %v1085
    %v1149 = vadd.f32 %v1147, %v1148
    %v1150 = vmul.f32 %v1110, %v1046
    %v1151 = vmul.f32 %v1113, %v1094
    %v1152 = vsub.f32 %v1150, %v1151
    %v1153 = vmul.f32 %v1110, %v1049
    %v1154 = vmul.f32 %v1113, %v1097
    %v1155 = vsub.f32 %v1153, %v1154
    %v1156 = vmul.f32 %v1113, %v1046
    %v1157 = vmul.f32 %v1110, %v1094
    %v1158 = vadd.f32 %v1156, %v1157
    %v1159 = vmul.f32 %v1113, %v1049
    %v1160 = vmul.f32 %v1110, %v1097
    %v1161 = vadd.f32 %v1159, %v1160
    %v1162 = vmul.f32 %v1110, %v1016
    %v1163 = vmul.f32 %v1113, %v1064
    %v1164 = vsub.f32 %v1162, %v1163
    %v1165 = vmul.f32 %v1110, %v1019
    %v1166 = vmul.f32 %v1113, %v1067
    %v1167 = vsub.f32 %v1165, %v1166
    %v1168 = vmul.f32 %v1113, %v1016
    %v1169 = vmul.f32 %v1110, %v1064
    %v1170 = vadd.f32 %v1168, %v1169
    %v1171 = vmul.f32 %v1113, %v1019
    %v1172 = vmul.f32 %v1110, %v1067
    %v1173 = vadd.f32 %v1171, %v1172
    %v1174 = vmul.f32 %v1110, %v1028
    %v1175 = vmul.f32 %v1113, %v1076
    %v1176 = vsub.f32 %v1174, %v1175
    %v1177 = vmul.f32 %v1110, %v1031
    %v1178 = vmul.f32 %v1113, %v1079
    %v1179 = vsub.f32 %v1177, %v1178
    %v1180 = vmul.f32 %v1113, %v1028
    %v1181 = vmul.f32 %v1110, %v1076
    %v1182 = vadd.f32 %v1180, %v1181
    %v1183 = vmul.f32 %v1113, %v1031
    %v1184 = vmul.f32 %v1110, %v1079
    %v1185 = vadd.f32 %v1183, %v1184
    %v1186 = vmul.f32 %v1110, %v1040
    %v1187 = vmul.f32 %v1113, %v1088
    %v1188 = vsub.f32 %v1186, %v1187
    %v1189 = vmul.f32 %v1110, %v1043
    %v1190 = vmul.f32 %v1113, %v1091
    %v1191 = vsub.f32 %v1189, %v1190
    %v1192 = vmul.f32 %v1113, %v1040
    %v1193 = vmul.f32 %v1110, %v1088
    %v1194 = vadd.f32 %v1192, %v1193
    %v1195 = vmul.f32 %v1113, %v1043
    %v1196 = vmul.f32 %v1110, %v1091
    %v1197 = vadd.f32 %v1195, %v1196
    %v1198 = vmul.f32 %v1110, %v1052
    %v1199 = vmul.f32 %v1113, %v1100
    %v1200 = vsub.f32 %v1198, %v1199
    %v1201 = vmul.f32 %v1110, %v1055
    %v1202 = vmul.f32 %v1113, %v1103
    %v1203 = vsub.f32 %v1201, %v1202
    %v1204 = vmul.f32 %v1113, %v1052
    %v1205 = vmul.f32 %v1110, %v1100
    %v1206 = vadd.f32 %v1204, %v1205
    %v1207 = vmul.f32 %v1113, %v1055
    %v1208 = vmul.f32 %v1110, %v1103
    %v1209 = vadd.f32 %v1207, %v1208
    %s1210 = sld [smem:[#allocation2 + $0x1c]]
    %v1211 = vstv %s1210
    %s1212 = sld [smem:[#allocation2 + $0x1d]]
    %v1213 = vstv %s1212
    %v1214 = vmul.f32 %v41, %v1211
    %v1215 = vmul.f32 %v43, %v1213
    %v1216 = vsub.f32 %v1214, %v1215
    %v1217 = vmul.f32 %v43, %v1211
    %v1218 = vmul.f32 %v41, %v1213
    %v1219 = vadd.f32 %v1217, %v1218
    %v1220 = vmul.f32 %v1216, %v1116
    %v1221 = vmul.f32 %v1219, %v1140
    %v1222 = vsub.f32 %v1220, %v1221
    %v1223 = vmul.f32 %v1216, %v1119
    %v1224 = vmul.f32 %v1219, %v1143
    %v1225 = vsub.f32 %v1223, %v1224
    %v1226 = vmul.f32 %v1219, %v1116
    %v1227 = vmul.f32 %v1216, %v1140
    %v1228 = vadd.f32 %v1226, %v1227
    %v1229 = vmul.f32 %v1219, %v1119
    %v1230 = vmul.f32 %v1216, %v1143
    %v1231 = vadd.f32 %v1229, %v1230
    %v1232 = vmul.f32 %v1216, %v1128
    %v1233 = vmul.f32 %v1219, %v1152
    %v1234 = vsub.f32 %v1232, %v1233
    %v1235 = vmul.f32 %v1216, %v1131
    %v1236 = vmul.f32 %v1219, %v1155
    %v1237 = vsub.f32 %v1235, %v1236
    %v1238 = vmul.f32 %v1219, %v1128
    %v1239 = vmul.f32 %v1216, %v1152
    %v1240 = vadd.f32 %v1238, %v1239
    %v1241 = vmul.f32 %v1219, %v1131
    %v1242 = vmul.f32 %v1216, %v1155
    %v1243 = vadd.f32 %v1241, %v1242
    %v1244 = vmul.f32 %v1216, %v1122
    %v1245 = vmul.f32 %v1219, %v1146
    %v1246 = vsub.f32 %v1244, %v1245
    %v1247 = vmul.f32 %v1216, %v1125
    %v1248 = vmul.f32 %v1219, %v1149
    %v1249 = vsub.f32 %v1247, %v1248
    %v1250 = vmul.f32 %v1219, %v1122
    %v1251 = vmul.f32 %v1216, %v1146
    %v1252 = vadd.f32 %v1250, %v1251
    %v1253 = vmul.f32 %v1219, %v1125
    %v1254 = vmul.f32 %v1216, %v1149
    %v1255 = vadd.f32 %v1253, %v1254
    %v1256 = vmul.f32 %v1216, %v1134
    %v1257 = vmul.f32 %v1219, %v1158
    %v1258 = vsub.f32 %v1256, %v1257
    %v1259 = vmul.f32 %v1216, %v1137
    %v1260 = vmul.f32 %v1219, %v1161
    %v1261 = vsub.f32 %v1259, %v1260
    %v1262 = vmul.f32 %v1219, %v1134
    %v1263 = vmul.f32 %v1216, %v1158
    %v1264 = vadd.f32 %v1262, %v1263
    %v1265 = vmul.f32 %v1219, %v1137
    %v1266 = vmul.f32 %v1216, %v1161
    %v1267 = vadd.f32 %v1265, %v1266
    %v1268 = vmul.f32 %v1216, %v1164
    %v1269 = vmul.f32 %v1219, %v1188
    %v1270 = vsub.f32 %v1268, %v1269
    %v1271 = vmul.f32 %v1216, %v1167
    %v1272 = vmul.f32 %v1219, %v1191
    %v1273 = vsub.f32 %v1271, %v1272
    %v1274 = vmul.f32 %v1219, %v1164
    %v1275 = vmul.f32 %v1216, %v1188
    %v1276 = vadd.f32 %v1274, %v1275
    %v1277 = vmul.f32 %v1219, %v1167
    %v1278 = vmul.f32 %v1216, %v1191
    %v1279 = vadd.f32 %v1277, %v1278
    %v1280 = vmul.f32 %v1216, %v1176
    %v1281 = vmul.f32 %v1219, %v1200
    %v1282 = vsub.f32 %v1280, %v1281
    %v1283 = vmul.f32 %v1216, %v1179
    %v1284 = vmul.f32 %v1219, %v1203
    %v1285 = vsub.f32 %v1283, %v1284
    %v1286 = vmul.f32 %v1219, %v1176
    %v1287 = vmul.f32 %v1216, %v1200
    %v1288 = vadd.f32 %v1286, %v1287
    %v1289 = vmul.f32 %v1219, %v1179
    %v1290 = vmul.f32 %v1216, %v1203
    %v1291 = vadd.f32 %v1289, %v1290
    %v1292 = vmul.f32 %v1216, %v1170
    %v1293 = vmul.f32 %v1219, %v1194
    %v1294 = vsub.f32 %v1292, %v1293
    %v1295 = vmul.f32 %v1216, %v1173
    %v1296 = vmul.f32 %v1219, %v1197
    %v1297 = vsub.f32 %v1295, %v1296
    %v1298 = vmul.f32 %v1219, %v1170
    %v1299 = vmul.f32 %v1216, %v1194
    %v1300 = vadd.f32 %v1298, %v1299
    %v1301 = vmul.f32 %v1219, %v1173
    %v1302 = vmul.f32 %v1216, %v1197
    %v1303 = vadd.f32 %v1301, %v1302
    %v1304 = vmul.f32 %v1216, %v1182
    %v1305 = vmul.f32 %v1219, %v1206
    %v1306 = vsub.f32 %v1304, %v1305
    %v1307 = vmul.f32 %v1216, %v1185
    %v1308 = vmul.f32 %v1219, %v1209
    %v1309 = vsub.f32 %v1307, %v1308
    %v1310 = vmul.f32 %v1219, %v1182
    %v1311 = vmul.f32 %v1216, %v1206
    %v1312 = vadd.f32 %v1310, %v1311
    %v1313 = vmul.f32 %v1219, %v1185
    %v1314 = vmul.f32 %v1216, %v1209
    %v1315 = vadd.f32 %v1313, %v1314
    %s1316 = sld [smem:[#allocation2 + $0x26]]
    %v1317 = vstv %s1316
    %s1318 = sld [smem:[#allocation2 + $0x27]]
    %v1319 = vstv %s1318
    %v1320 = vmul.f32 %v41, %v1317
    %v1321 = vmul.f32 %v43, %v1319
    %v1322 = vsub.f32 %v1320, %v1321
    %v1323 = vmul.f32 %v43, %v1317
    %v1324 = vmul.f32 %v41, %v1319
    %v1325 = vadd.f32 %v1323, %v1324
    %v1326 = vmul.f32 %v1322, %v1222
    %v1327 = vmul.f32 %v1325, %v1234
    %v1328 = vsub.f32 %v1326, %v1327
    %v1329 = vmul.f32 %v1322, %v1225
    %v1330 = vmul.f32 %v1325, %v1237
    %v1331 = vsub.f32 %v1329, %v1330
    %v1332 = vmul.f32 %v1325, %v1222
    %v1333 = vmul.f32 %v1322, %v1234
    %v1334 = vadd.f32 %v1332, %v1333
    %v1335 = vmul.f32 %v1325, %v1225
    %v1336 = vmul.f32 %v1322, %v1237
    %v1337 = vadd.f32 %v1335, %v1336
    %v1338 = vmul.f32 %v1322, %v1228
    %v1339 = vmul.f32 %v1325, %v1240
    %v1340 = vsub.f32 %v1338, %v1339
    %v1341 = vmul.f32 %v1322, %v1231
    %v1342 = vmul.f32 %v1325, %v1243
    %v1343 = vsub.f32 %v1341, %v1342
    %v1344 = vmul.f32 %v1325, %v1228
    %v1345 = vmul.f32 %v1322, %v1240
    %v1346 = vadd.f32 %v1344, %v1345
    %v1347 = vmul.f32 %v1325, %v1231
    %v1348 = vmul.f32 %v1322, %v1243
    %v1349 = vadd.f32 %v1347, %v1348
    %v1350 = vmul.f32 %v1322, %v1246
    %v1351 = vmul.f32 %v1325, %v1258
    %v1352 = vsub.f32 %v1350, %v1351
    %v1353 = vmul.f32 %v1322, %v1249
    %v1354 = vmul.f32 %v1325, %v1261
    %v1355 = vsub.f32 %v1353, %v1354
    %v1356 = vmul.f32 %v1325, %v1246
    %v1357 = vmul.f32 %v1322, %v1258
    %v1358 = vadd.f32 %v1356, %v1357
    %v1359 = vmul.f32 %v1325, %v1249
    %v1360 = vmul.f32 %v1322, %v1261
    %v1361 = vadd.f32 %v1359, %v1360
    %v1362 = vmul.f32 %v1322, %v1252
    %v1363 = vmul.f32 %v1325, %v1264
    %v1364 = vsub.f32 %v1362, %v1363
    %v1365 = vmul.f32 %v1322, %v1255
    %v1366 = vmul.f32 %v1325, %v1267
    %v1367 = vsub.f32 %v1365, %v1366
    %v1368 = vmul.f32 %v1325, %v1252
    %v1369 = vmul.f32 %v1322, %v1264
    %v1370 = vadd.f32 %v1368, %v1369
    %v1371 = vmul.f32 %v1325, %v1255
    %v1372 = vmul.f32 %v1322, %v1267
    %v1373 = vadd.f32 %v1371, %v1372
    %v1374 = vmul.f32 %v1322, %v1270
    %v1375 = vmul.f32 %v1325, %v1282
    %v1376 = vsub.f32 %v1374, %v1375
    %v1377 = vmul.f32 %v1322, %v1273
    %v1378 = vmul.f32 %v1325, %v1285
    %v1379 = vsub.f32 %v1377, %v1378
    %v1380 = vmul.f32 %v1325, %v1270
    %v1381 = vmul.f32 %v1322, %v1282
    %v1382 = vadd.f32 %v1380, %v1381
    %v1383 = vmul.f32 %v1325, %v1273
    %v1384 = vmul.f32 %v1322, %v1285
    %v1385 = vadd.f32 %v1383, %v1384
    %v1386 = vmul.f32 %v1322, %v1276
    %v1387 = vmul.f32 %v1325, %v1288
    %v1388 = vsub.f32 %v1386, %v1387
    %v1389 = vmul.f32 %v1322, %v1279
    %v1390 = vmul.f32 %v1325, %v1291
    %v1391 = vsub.f32 %v1389, %v1390
    %v1392 = vmul.f32 %v1325, %v1276
    %v1393 = vmul.f32 %v1322, %v1288
    %v1394 = vadd.f32 %v1392, %v1393
    %v1395 = vmul.f32 %v1325, %v1279
    %v1396 = vmul.f32 %v1322, %v1291
    %v1397 = vadd.f32 %v1395, %v1396
    %v1398 = vmul.f32 %v1322, %v1294
    %v1399 = vmul.f32 %v1325, %v1306
    %v1400 = vsub.f32 %v1398, %v1399
    %v1401 = vmul.f32 %v1322, %v1297
    %v1402 = vmul.f32 %v1325, %v1309
    %v1403 = vsub.f32 %v1401, %v1402
    %v1404 = vmul.f32 %v1325, %v1294
    %v1405 = vmul.f32 %v1322, %v1306
    %v1406 = vadd.f32 %v1404, %v1405
    %v1407 = vmul.f32 %v1325, %v1297
    %v1408 = vmul.f32 %v1322, %v1309
    %v1409 = vadd.f32 %v1407, %v1408
    %v1410 = vmul.f32 %v1322, %v1300
    %v1411 = vmul.f32 %v1325, %v1312
    %v1412 = vsub.f32 %v1410, %v1411
    %v1413 = vmul.f32 %v1322, %v1303
    %v1414 = vmul.f32 %v1325, %v1315
    %v1415 = vsub.f32 %v1413, %v1414
    %v1416 = vmul.f32 %v1325, %v1300
    %v1417 = vmul.f32 %v1322, %v1312
    %v1418 = vadd.f32 %v1416, %v1417
    %v1419 = vmul.f32 %v1325, %v1303
    %v1420 = vmul.f32 %v1322, %v1315
    %v1421 = vadd.f32 %v1419, %v1420
    %s1422 = sld [smem:[#allocation2 + $0x28]]
    %v1423 = vstv %s1422
    %s1424 = sld [smem:[#allocation2 + $0x29]]
    %v1425 = vstv %s1424
    %v1426 = vmul.f32 %v1423, %v1328
    %v1427 = vmul.f32 %v1425, %v1379
    %v1428 = vadd.f32 %v1426, %v1427
    %v1429 = vmul.f32 %v1423, %v1331
    %v1430 = vmul.f32 %v1425, %v1376
    %v1431 = vsub.f32 %v1429, %v1430
    %v1432 = vmul.f32 %v1423, %v1376
    %v1433 = vmul.f32 %v1425, %v1331
    %v1434 = vadd.f32 %v1432, %v1433
    %v1435 = vmul.f32 %v1423, %v1379
    %v1436 = vmul.f32 %v1425, %v1328
    %v1437 = vsub.f32 %v1435, %v1436
    %v1438 = vmul.f32 %v1423, %v1334
    %v1439 = vmul.f32 %v1425, %v1385
    %v1440 = vadd.f32 %v1438, %v1439
    %v1441 = vmul.f32 %v1423, %v1337
    %v1442 = vmul.f32 %v1425, %v1382
    %v1443 = vsub.f32 %v1441, %v1442
    %v1444 = vmul.f32 %v1423, %v1382
    %v1445 = vmul.f32 %v1425, %v1337
    %v1446 = vadd.f32 %v1444, %v1445
    %v1447 = vmul.f32 %v1423, %v1385
    %v1448 = vmul.f32 %v1425, %v1334
    %v1449 = vsub.f32 %v1447, %v1448
    %v1450 = vmul.f32 %v1423, %v1340
    %v1451 = vmul.f32 %v1425, %v1391
    %v1452 = vadd.f32 %v1450, %v1451
    %v1453 = vmul.f32 %v1423, %v1343
    %v1454 = vmul.f32 %v1425, %v1388
    %v1455 = vsub.f32 %v1453, %v1454
    %v1456 = vmul.f32 %v1423, %v1388
    %v1457 = vmul.f32 %v1425, %v1343
    %v1458 = vadd.f32 %v1456, %v1457
    %v1459 = vmul.f32 %v1423, %v1391
    %v1460 = vmul.f32 %v1425, %v1340
    %v1461 = vsub.f32 %v1459, %v1460
    %v1462 = vmul.f32 %v1423, %v1346
    %v1463 = vmul.f32 %v1425, %v1397
    %v1464 = vadd.f32 %v1462, %v1463
    %v1465 = vmul.f32 %v1423, %v1349
    %v1466 = vmul.f32 %v1425, %v1394
    %v1467 = vsub.f32 %v1465, %v1466
    %v1468 = vmul.f32 %v1423, %v1394
    %v1469 = vmul.f32 %v1425, %v1349
    %v1470 = vadd.f32 %v1468, %v1469
    %v1471 = vmul.f32 %v1423, %v1397
    %v1472 = vmul.f32 %v1425, %v1346
    %v1473 = vsub.f32 %v1471, %v1472
    %v1474 = vmul.f32 %v1423, %v1352
    %v1475 = vmul.f32 %v1425, %v1403
    %v1476 = vadd.f32 %v1474, %v1475
    %v1477 = vmul.f32 %v1423, %v1355
    %v1478 = vmul.f32 %v1425, %v1400
    %v1479 = vsub.f32 %v1477, %v1478
    %v1480 = vmul.f32 %v1423, %v1400
    %v1481 = vmul.f32 %v1425, %v1355
    %v1482 = vadd.f32 %v1480, %v1481
    %v1483 = vmul.f32 %v1423, %v1403
    %v1484 = vmul.f32 %v1425, %v1352
    %v1485 = vsub.f32 %v1483, %v1484
    %v1486 = vmul.f32 %v1423, %v1358
    %v1487 = vmul.f32 %v1425, %v1409
    %v1488 = vadd.f32 %v1486, %v1487
    %v1489 = vmul.f32 %v1423, %v1361
    %v1490 = vmul.f32 %v1425, %v1406
    %v1491 = vsub.f32 %v1489, %v1490
    %v1492 = vmul.f32 %v1423, %v1406
    %v1493 = vmul.f32 %v1425, %v1361
    %v1494 = vadd.f32 %v1492, %v1493
    %v1495 = vmul.f32 %v1423, %v1409
    %v1496 = vmul.f32 %v1425, %v1358
    %v1497 = vsub.f32 %v1495, %v1496
    %v1498 = vmul.f32 %v1423, %v1364
    %v1499 = vmul.f32 %v1425, %v1415
    %v1500 = vadd.f32 %v1498, %v1499
    %v1501 = vmul.f32 %v1423, %v1367
    %v1502 = vmul.f32 %v1425, %v1412
    %v1503 = vsub.f32 %v1501, %v1502
    %v1504 = vmul.f32 %v1423, %v1412
    %v1505 = vmul.f32 %v1425, %v1367
    %v1506 = vadd.f32 %v1504, %v1505
    %v1507 = vmul.f32 %v1423, %v1415
    %v1508 = vmul.f32 %v1425, %v1364
    %v1509 = vsub.f32 %v1507, %v1508
    %v1510 = vmul.f32 %v1423, %v1370
    %v1511 = vmul.f32 %v1425, %v1421
    %v1512 = vadd.f32 %v1510, %v1511
    %v1513 = vmul.f32 %v1423, %v1373
    %v1514 = vmul.f32 %v1425, %v1418
    %v1515 = vsub.f32 %v1513, %v1514
    %v1516 = vmul.f32 %v1423, %v1418
    %v1517 = vmul.f32 %v1425, %v1373
    %v1518 = vadd.f32 %v1516, %v1517
    %v1519 = vmul.f32 %v1423, %v1421
    %v1520 = vmul.f32 %v1425, %v1370
    %v1521 = vsub.f32 %v1519, %v1520
    %s1522 = sld [smem:[#allocation2 + $0x2a]]
    %v1523 = vstv %s1522
    %s1524 = sld [smem:[#allocation2 + $0x2b]]
    %v1525 = vstv %s1524
    %v1526 = vmul.f32 %v1428, %v1523
    %v1527 = vmul.f32 %v1525, %v1431
    %v1528 = vadd.f32 %v1526, %v1527
    %v1529 = vmul.f32 %v1431, %v1523
    %v1530 = vmul.f32 %v1525, %v1428
    %v1531 = vsub.f32 %v1529, %v1530
    %v1532 = vmul.f32 %v1440, %v1523
    %v1533 = vmul.f32 %v1525, %v1443
    %v1534 = vadd.f32 %v1532, %v1533
    %v1535 = vmul.f32 %v1443, %v1523
    %v1536 = vmul.f32 %v1525, %v1440
    %v1537 = vsub.f32 %v1535, %v1536
    %v1538 = vmul.f32 %v1452, %v1523
    %v1539 = vmul.f32 %v1525, %v1455
    %v1540 = vadd.f32 %v1538, %v1539
    %v1541 = vmul.f32 %v1455, %v1523
    %v1542 = vmul.f32 %v1525, %v1452
    %v1543 = vsub.f32 %v1541, %v1542
    %v1544 = vmul.f32 %v1464, %v1523
    %v1545 = vmul.f32 %v1525, %v1467
    %v1546 = vadd.f32 %v1544, %v1545
    %v1547 = vmul.f32 %v1467, %v1523
    %v1548 = vmul.f32 %v1525, %v1464
    %v1549 = vsub.f32 %v1547, %v1548
    %v1550 = vmul.f32 %v1476, %v1523
    %v1551 = vmul.f32 %v1525, %v1479
    %v1552 = vadd.f32 %v1550, %v1551
    %v1553 = vmul.f32 %v1479, %v1523
    %v1554 = vmul.f32 %v1525, %v1476
    %v1555 = vsub.f32 %v1553, %v1554
    %v1556 = vmul.f32 %v1488, %v1523
    %v1557 = vmul.f32 %v1525, %v1491
    %v1558 = vadd.f32 %v1556, %v1557
    %v1559 = vmul.f32 %v1491, %v1523
    %v1560 = vmul.f32 %v1525, %v1488
    %v1561 = vsub.f32 %v1559, %v1560
    %v1562 = vmul.f32 %v1500, %v1523
    %v1563 = vmul.f32 %v1525, %v1503
    %v1564 = vadd.f32 %v1562, %v1563
    %v1565 = vmul.f32 %v1503, %v1523
    %v1566 = vmul.f32 %v1525, %v1500
    %v1567 = vsub.f32 %v1565, %v1566
    %v1568 = vmul.f32 %v1512, %v1523
    %v1569 = vmul.f32 %v1525, %v1515
    %v1570 = vadd.f32 %v1568, %v1569
    %v1571 = vmul.f32 %v1515, %v1523
    %v1572 = vmul.f32 %v1525, %v1512
    %v1573 = vsub.f32 %v1571, %v1572
    %v1574 = vmul.f32 %v1434, %v1523
    %v1575 = vmul.f32 %v1525, %v1437
    %v1576 = vsub.f32 %v1574, %v1575
    %v1577 = vmul.f32 %v1437, %v1523
    %v1578 = vmul.f32 %v1525, %v1434
    %v1579 = vadd.f32 %v1577, %v1578
    %v1580 = vmul.f32 %v1446, %v1523
    %v1581 = vmul.f32 %v1525, %v1449
    %v1582 = vsub.f32 %v1580, %v1581
    %v1583 = vmul.f32 %v1449, %v1523
    %v1584 = vmul.f32 %v1525, %v1446
    %v1585 = vadd.f32 %v1583, %v1584
    %v1586 = vmul.f32 %v1458, %v1523
    %v1587 = vmul.f32 %v1525, %v1461
    %v1588 = vsub.f32 %v1586, %v1587
    %v1589 = vmul.f32 %v1461, %v1523
    %v1590 = vmul.f32 %v1525, %v1458
    %v1591 = vadd.f32 %v1589, %v1590
    %v1592 = vmul.f32 %v1470, %v1523
    %v1593 = vmul.f32 %v1525, %v1473
    %v1594 = vsub.f32 %v1592, %v1593
    %v1595 = vmul.f32 %v1473, %v1523
    %v1596 = vmul.f32 %v1525, %v1470
    %v1597 = vadd.f32 %v1595, %v1596
    %v1598 = vmul.f32 %v1482, %v1523
    %v1599 = vmul.f32 %v1525, %v1485
    %v1600 = vsub.f32 %v1598, %v1599
    %v1601 = vmul.f32 %v1485, %v1523
    %v1602 = vmul.f32 %v1525, %v1482
    %v1603 = vadd.f32 %v1601, %v1602
    %v1604 = vmul.f32 %v1494, %v1523
    %v1605 = vmul.f32 %v1525, %v1497
    %v1606 = vsub.f32 %v1604, %v1605
    %v1607 = vmul.f32 %v1497, %v1523
    %v1608 = vmul.f32 %v1525, %v1494
    %v1609 = vadd.f32 %v1607, %v1608
    %v1610 = vmul.f32 %v1506, %v1523
    %v1611 = vmul.f32 %v1525, %v1509
    %v1612 = vsub.f32 %v1610, %v1611
    %v1613 = vmul.f32 %v1509, %v1523
    %v1614 = vmul.f32 %v1525, %v1506
    %v1615 = vadd.f32 %v1613, %v1614
    %v1616 = vmul.f32 %v1518, %v1523
    %v1617 = vmul.f32 %v1525, %v1521
    %v1618 = vsub.f32 %v1616, %v1617
    %v1619 = vmul.f32 %v1521, %v1523
    %v1620 = vmul.f32 %v1525, %v1518
    %v1621 = vadd.f32 %v1619, %v1620
    %s1622 = sld [smem:[#allocation2 + $0x32]]
    %v1623 = vstv %s1622
    %s1624 = sld [smem:[#allocation2 + $0x33]]
    %v1625 = vstv %s1624
    %v1626 = vmul.f32 %v1623, %v1528
    %v1627 = vmul.f32 %v1625, %v1555
    %v1628 = vadd.f32 %v1626, %v1627
    %v1629 = vmul.f32 %v1623, %v1531
    %v1630 = vmul.f32 %v1625, %v1552
    %v1631 = vsub.f32 %v1629, %v1630
    %v1632 = vmul.f32 %v1623, %v1552
    %v1633 = vmul.f32 %v1625, %v1531
    %v1634 = vadd.f32 %v1632, %v1633
    %v1635 = vmul.f32 %v1623, %v1555
    %v1636 = vmul.f32 %v1625, %v1528
    %v1637 = vsub.f32 %v1635, %v1636
    %v1638 = vmul.f32 %v1623, %v1534
    %v1639 = vmul.f32 %v1625, %v1561
    %v1640 = vadd.f32 %v1638, %v1639
    %v1641 = vmul.f32 %v1623, %v1537
    %v1642 = vmul.f32 %v1625, %v1558
    %v1643 = vsub.f32 %v1641, %v1642
    %v1644 = vmul.f32 %v1623, %v1558
    %v1645 = vmul.f32 %v1625, %v1537
    %v1646 = vadd.f32 %v1644, %v1645
    %v1647 = vmul.f32 %v1623, %v1561
    %v1648 = vmul.f32 %v1625, %v1534
    %v1649 = vsub.f32 %v1647, %v1648
    %v1650 = vmul.f32 %v1623, %v1540
    %v1651 = vmul.f32 %v1625, %v1567
    %v1652 = vadd.f32 %v1650, %v1651
    %v1653 = vmul.f32 %v1623, %v1543
    %v1654 = vmul.f32 %v1625, %v1564
    %v1655 = vsub.f32 %v1653, %v1654
    %v1656 = vmul.f32 %v1623, %v1564
    %v1657 = vmul.f32 %v1625, %v1543
    %v1658 = vadd.f32 %v1656, %v1657
    %v1659 = vmul.f32 %v1623, %v1567
    %v1660 = vmul.f32 %v1625, %v1540
    %v1661 = vsub.f32 %v1659, %v1660
    %v1662 = vmul.f32 %v1623, %v1546
    %v1663 = vmul.f32 %v1625, %v1573
    %v1664 = vadd.f32 %v1662, %v1663
    %v1665 = vmul.f32 %v1623, %v1549
    %v1666 = vmul.f32 %v1625, %v1570
    %v1667 = vsub.f32 %v1665, %v1666
    %v1668 = vmul.f32 %v1623, %v1570
    %v1669 = vmul.f32 %v1625, %v1549
    %v1670 = vadd.f32 %v1668, %v1669
    %v1671 = vmul.f32 %v1623, %v1573
    %v1672 = vmul.f32 %v1625, %v1546
    %v1673 = vsub.f32 %v1671, %v1672
    %v1674 = vmul.f32 %v1623, %v1576
    %v1675 = vmul.f32 %v1625, %v1603
    %v1676 = vadd.f32 %v1674, %v1675
    %v1677 = vmul.f32 %v1623, %v1579
    %v1678 = vmul.f32 %v1625, %v1600
    %v1679 = vsub.f32 %v1677, %v1678
    %v1680 = vmul.f32 %v1623, %v1600
    %v1681 = vmul.f32 %v1625, %v1579
    %v1682 = vadd.f32 %v1680, %v1681
    %v1683 = vmul.f32 %v1623, %v1603
    %v1684 = vmul.f32 %v1625, %v1576
    %v1685 = vsub.f32 %v1683, %v1684
    %v1686 = vmul.f32 %v1623, %v1582
    %v1687 = vmul.f32 %v1625, %v1609
    %v1688 = vadd.f32 %v1686, %v1687
    %v1689 = vmul.f32 %v1623, %v1585
    %v1690 = vmul.f32 %v1625, %v1606
    %v1691 = vsub.f32 %v1689, %v1690
    %v1692 = vmul.f32 %v1623, %v1606
    %v1693 = vmul.f32 %v1625, %v1585
    %v1694 = vadd.f32 %v1692, %v1693
    %v1695 = vmul.f32 %v1623, %v1609
    %v1696 = vmul.f32 %v1625, %v1582
    %v1697 = vsub.f32 %v1695, %v1696
    %v1698 = vmul.f32 %v1623, %v1588
    %v1699 = vmul.f32 %v1625, %v1615
    %v1700 = vadd.f32 %v1698, %v1699
    %v1701 = vmul.f32 %v1623, %v1591
    %v1702 = vmul.f32 %v1625, %v1612
    %v1703 = vsub.f32 %v1701, %v1702
    %v1704 = vmul.f32 %v1623, %v1612
    %v1705 = vmul.f32 %v1625, %v1591
    %v1706 = vadd.f32 %v1704, %v1705
    %v1707 = vmul.f32 %v1623, %v1615
    %v1708 = vmul.f32 %v1625, %v1588
    %v1709 = vsub.f32 %v1707, %v1708
    %v1710 = vmul.f32 %v1623, %v1594
    %v1711 = vmul.f32 %v1625, %v1621
    %v1712 = vadd.f32 %v1710, %v1711
    %v1713 = vmul.f32 %v1623, %v1597
    %v1714 = vmul.f32 %v1625, %v1618
    %v1715 = vsub.f32 %v1713, %v1714
    %v1716 = vmul.f32 %v1623, %v1618
    %v1717 = vmul.f32 %v1625, %v1597
    %v1718 = vadd.f32 %v1716, %v1717
    %v1719 = vmul.f32 %v1623, %v1621
    %v1720 = vmul.f32 %v1625, %v1594
    %v1721 = vsub.f32 %v1719, %v1720
    %s1722 = sld [smem:[#allocation2 + $0x34]]
    %v1723 = vstv %s1722
    %s1724 = sld [smem:[#allocation2 + $0x35]]
    %v1725 = vstv %s1724
    %v1726 = vmul.f32 %v1628, %v1723
    %v1727 = vmul.f32 %v1725, %v1631
    %v1728 = vadd.f32 %v1726, %v1727
    %v1729 = vmul.f32 %v1631, %v1723
    %v1730 = vmul.f32 %v1725, %v1628
    %v1731 = vsub.f32 %v1729, %v1730
    %v1732 = vmul.f32 %v1640, %v1723
    %v1733 = vmul.f32 %v1725, %v1643
    %v1734 = vadd.f32 %v1732, %v1733
    %v1735 = vmul.f32 %v1643, %v1723
    %v1736 = vmul.f32 %v1725, %v1640
    %v1737 = vsub.f32 %v1735, %v1736
    %v1738 = vmul.f32 %v1652, %v1723
    %v1739 = vmul.f32 %v1725, %v1655
    %v1740 = vadd.f32 %v1738, %v1739
    %v1741 = vmul.f32 %v1655, %v1723
    %v1742 = vmul.f32 %v1725, %v1652
    %v1743 = vsub.f32 %v1741, %v1742
    %v1744 = vmul.f32 %v1664, %v1723
    %v1745 = vmul.f32 %v1725, %v1667
    %v1746 = vadd.f32 %v1744, %v1745
    %v1747 = vmul.f32 %v1667, %v1723
    %v1748 = vmul.f32 %v1725, %v1664
    %v1749 = vsub.f32 %v1747, %v1748
    %v1750 = vmul.f32 %v1634, %v1723
    %v1751 = vmul.f32 %v1725, %v1637
    %v1752 = vsub.f32 %v1750, %v1751
    %v1753 = vmul.f32 %v1637, %v1723
    %v1754 = vmul.f32 %v1725, %v1634
    %v1755 = vadd.f32 %v1753, %v1754
    %v1756 = vmul.f32 %v1646, %v1723
    %v1757 = vmul.f32 %v1725, %v1649
    %v1758 = vsub.f32 %v1756, %v1757
    %v1759 = vmul.f32 %v1649, %v1723
    %v1760 = vmul.f32 %v1725, %v1646
    %v1761 = vadd.f32 %v1759, %v1760
    %v1762 = vmul.f32 %v1658, %v1723
    %v1763 = vmul.f32 %v1725, %v1661
    %v1764 = vsub.f32 %v1762, %v1763
    %v1765 = vmul.f32 %v1661, %v1723
    %v1766 = vmul.f32 %v1725, %v1658
    %v1767 = vadd.f32 %v1765, %v1766
    %v1768 = vmul.f32 %v1670, %v1723
    %v1769 = vmul.f32 %v1725, %v1673
    %v1770 = vsub.f32 %v1768, %v1769
    %v1771 = vmul.f32 %v1673, %v1723
    %v1772 = vmul.f32 %v1725, %v1670
    %v1773 = vadd.f32 %v1771, %v1772
    %v1774 = vmul.f32 %v1676, %v1723
    %v1775 = vmul.f32 %v1725, %v1679
    %v1776 = vadd.f32 %v1774, %v1775
    %v1777 = vmul.f32 %v1679, %v1723
    %v1778 = vmul.f32 %v1725, %v1676
    %v1779 = vsub.f32 %v1777, %v1778
    %v1780 = vmul.f32 %v1688, %v1723
    %v1781 = vmul.f32 %v1725, %v1691
    %v1782 = vadd.f32 %v1780, %v1781
    %v1783 = vmul.f32 %v1691, %v1723
    %v1784 = vmul.f32 %v1725, %v1688
    %v1785 = vsub.f32 %v1783, %v1784
    %v1786 = vmul.f32 %v1700, %v1723
    %v1787 = vmul.f32 %v1725, %v1703
    %v1788 = vadd.f32 %v1786, %v1787
    %v1789 = vmul.f32 %v1703, %v1723
    %v1790 = vmul.f32 %v1725, %v1700
    %v1791 = vsub.f32 %v1789, %v1790
    %v1792 = vmul.f32 %v1712, %v1723
    %v1793 = vmul.f32 %v1725, %v1715
    %v1794 = vadd.f32 %v1792, %v1793
    %v1795 = vmul.f32 %v1715, %v1723
    %v1796 = vmul.f32 %v1725, %v1712
    %v1797 = vsub.f32 %v1795, %v1796
    %v1798 = vmul.f32 %v1682, %v1723
    %v1799 = vmul.f32 %v1725, %v1685
    %v1800 = vsub.f32 %v1798, %v1799
    %v1801 = vmul.f32 %v1685, %v1723
    %v1802 = vmul.f32 %v1725, %v1682
    %v1803 = vadd.f32 %v1801, %v1802
    %v1804 = vmul.f32 %v1694, %v1723
    %v1805 = vmul.f32 %v1725, %v1697
    %v1806 = vsub.f32 %v1804, %v1805
    %v1807 = vmul.f32 %v1697, %v1723
    %v1808 = vmul.f32 %v1725, %v1694
    %v1809 = vadd.f32 %v1807, %v1808
    %v1810 = vmul.f32 %v1706, %v1723
    %v1811 = vmul.f32 %v1725, %v1709
    %v1812 = vsub.f32 %v1810, %v1811
    %v1813 = vmul.f32 %v1709, %v1723
    %v1814 = vmul.f32 %v1725, %v1706
    %v1815 = vadd.f32 %v1813, %v1814
    %v1816 = vmul.f32 %v1718, %v1723
    %v1817 = vmul.f32 %v1725, %v1721
    %v1818 = vsub.f32 %v1816, %v1817
    %v1819 = vmul.f32 %v1721, %v1723
    %v1820 = vmul.f32 %v1725, %v1718
    %v1821 = vadd.f32 %v1819, %v1820
    %s1822 = sld [smem:[#allocation2 + $0x3c]]
    %v1823 = vstv %s1822
    %s1824 = sld [smem:[#allocation2 + $0x3d]]
    %v1825 = vstv %s1824
    %v1826 = vmul.f32 %v1823, %v1728
    %v1827 = vmul.f32 %v1825, %v1743
    %v1828 = vadd.f32 %v1826, %v1827
    %v1829 = vmul.f32 %v1823, %v1731
    %v1830 = vmul.f32 %v1825, %v1740
    %v1831 = vsub.f32 %v1829, %v1830
    %v1832 = vmul.f32 %v1823, %v1740
    %v1833 = vmul.f32 %v1825, %v1731
    %v1834 = vadd.f32 %v1832, %v1833
    %v1835 = vmul.f32 %v1823, %v1743
    %v1836 = vmul.f32 %v1825, %v1728
    %v1837 = vsub.f32 %v1835, %v1836
    %v1838 = vmul.f32 %v1823, %v1734
    %v1839 = vmul.f32 %v1825, %v1749
    %v1840 = vadd.f32 %v1838, %v1839
    %v1841 = vmul.f32 %v1823, %v1737
    %v1842 = vmul.f32 %v1825, %v1746
    %v1843 = vsub.f32 %v1841, %v1842
    %v1844 = vmul.f32 %v1823, %v1746
    %v1845 = vmul.f32 %v1825, %v1737
    %v1846 = vadd.f32 %v1844, %v1845
    %v1847 = vmul.f32 %v1823, %v1749
    %v1848 = vmul.f32 %v1825, %v1734
    %v1849 = vsub.f32 %v1847, %v1848
    %v1850 = vmul.f32 %v1823, %v1752
    %v1851 = vmul.f32 %v1825, %v1767
    %v1852 = vadd.f32 %v1850, %v1851
    %v1853 = vmul.f32 %v1823, %v1755
    %v1854 = vmul.f32 %v1825, %v1764
    %v1855 = vsub.f32 %v1853, %v1854
    %v1856 = vmul.f32 %v1823, %v1764
    %v1857 = vmul.f32 %v1825, %v1755
    %v1858 = vadd.f32 %v1856, %v1857
    %v1859 = vmul.f32 %v1823, %v1767
    %v1860 = vmul.f32 %v1825, %v1752
    %v1861 = vsub.f32 %v1859, %v1860
    %v1862 = vmul.f32 %v1823, %v1758
    %v1863 = vmul.f32 %v1825, %v1773
    %v1864 = vadd.f32 %v1862, %v1863
    %v1865 = vmul.f32 %v1823, %v1761
    %v1866 = vmul.f32 %v1825, %v1770
    %v1867 = vsub.f32 %v1865, %v1866
    %v1868 = vmul.f32 %v1823, %v1770
    %v1869 = vmul.f32 %v1825, %v1761
    %v1870 = vadd.f32 %v1868, %v1869
    %v1871 = vmul.f32 %v1823, %v1773
    %v1872 = vmul.f32 %v1825, %v1758
    %v1873 = vsub.f32 %v1871, %v1872
    %v1874 = vmul.f32 %v1823, %v1776
    %v1875 = vmul.f32 %v1825, %v1791
    %v1876 = vadd.f32 %v1874, %v1875
    %v1877 = vmul.f32 %v1823, %v1779
    %v1878 = vmul.f32 %v1825, %v1788
    %v1879 = vsub.f32 %v1877, %v1878
    %v1880 = vmul.f32 %v1823, %v1788
    %v1881 = vmul.f32 %v1825, %v1779
    %v1882 = vadd.f32 %v1880, %v1881
    %v1883 = vmul.f32 %v1823, %v1791
    %v1884 = vmul.f32 %v1825, %v1776
    %v1885 = vsub.f32 %v1883, %v1884
    %v1886 = vmul.f32 %v1823, %v1782
    %v1887 = vmul.f32 %v1825, %v1797
    %v1888 = vadd.f32 %v1886, %v1887
    %v1889 = vmul.f32 %v1823, %v1785
    %v1890 = vmul.f32 %v1825, %v1794
    %v1891 = vsub.f32 %v1889, %v1890
    %v1892 = vmul.f32 %v1823, %v1794
    %v1893 = vmul.f32 %v1825, %v1785
    %v1894 = vadd.f32 %v1892, %v1893
    %v1895 = vmul.f32 %v1823, %v1797
    %v1896 = vmul.f32 %v1825, %v1782
    %v1897 = vsub.f32 %v1895, %v1896
    %v1898 = vmul.f32 %v1823, %v1800
    %v1899 = vmul.f32 %v1825, %v1815
    %v1900 = vadd.f32 %v1898, %v1899
    %v1901 = vmul.f32 %v1823, %v1803
    %v1902 = vmul.f32 %v1825, %v1812
    %v1903 = vsub.f32 %v1901, %v1902
    %v1904 = vmul.f32 %v1823, %v1812
    %v1905 = vmul.f32 %v1825, %v1803
    %v1906 = vadd.f32 %v1904, %v1905
    %v1907 = vmul.f32 %v1823, %v1815
    %v1908 = vmul.f32 %v1825, %v1800
    %v1909 = vsub.f32 %v1907, %v1908
    %v1910 = vmul.f32 %v1823, %v1806
    %v1911 = vmul.f32 %v1825, %v1821
    %v1912 = vadd.f32 %v1910, %v1911
    %v1913 = vmul.f32 %v1823, %v1809
    %v1914 = vmul.f32 %v1825, %v1818
    %v1915 = vsub.f32 %v1913, %v1914
    %v1916 = vmul.f32 %v1823, %v1818
    %v1917 = vmul.f32 %v1825, %v1809
    %v1918 = vadd.f32 %v1916, %v1917
    %v1919 = vmul.f32 %v1823, %v1821
    %v1920 = vmul.f32 %v1825, %v1806
    %v1921 = vsub.f32 %v1919, %v1920
    %s1922 = sld [smem:[#allocation2 + $0x3e]]
    %v1923 = vstv %s1922
    %s1924 = sld [smem:[#allocation2 + $0x3f]]
    %v1925 = vstv %s1924
    %v1926 = vmul.f32 %v1828, %v1923
    %v1927 = vmul.f32 %v1925, %v1831
    %v1928 = vadd.f32 %v1926, %v1927
    %v1929 = vmul.f32 %v1831, %v1923
    %v1930 = vmul.f32 %v1925, %v1828
    %v1931 = vsub.f32 %v1929, %v1930
    %v1932 = vmul.f32 %v1840, %v1923
    %v1933 = vmul.f32 %v1925, %v1843
    %v1934 = vadd.f32 %v1932, %v1933
    %v1935 = vmul.f32 %v1843, %v1923
    %v1936 = vmul.f32 %v1925, %v1840
    %v1937 = vsub.f32 %v1935, %v1936
    %v1938 = vmul.f32 %v1834, %v1923
    %v1939 = vmul.f32 %v1925, %v1837
    %v1940 = vsub.f32 %v1938, %v1939
    %v1941 = vmul.f32 %v1837, %v1923
    %v1942 = vmul.f32 %v1925, %v1834
    %v1943 = vadd.f32 %v1941, %v1942
    %v1944 = vmul.f32 %v1846, %v1923
    %v1945 = vmul.f32 %v1925, %v1849
    %v1946 = vsub.f32 %v1944, %v1945
    %v1947 = vmul.f32 %v1849, %v1923
    %v1948 = vmul.f32 %v1925, %v1846
    %v1949 = vadd.f32 %v1947, %v1948
    %v1950 = vmul.f32 %v1852, %v1923
    %v1951 = vmul.f32 %v1925, %v1855
    %v1952 = vadd.f32 %v1950, %v1951
    %v1953 = vmul.f32 %v1855, %v1923
    %v1954 = vmul.f32 %v1925, %v1852
    %v1955 = vsub.f32 %v1953, %v1954
    %v1956 = vmul.f32 %v1864, %v1923
    %v1957 = vmul.f32 %v1925, %v1867
    %v1958 = vadd.f32 %v1956, %v1957
    %v1959 = vmul.f32 %v1867, %v1923
    %v1960 = vmul.f32 %v1925, %v1864
    %v1961 = vsub.f32 %v1959, %v1960
    %v1962 = vmul.f32 %v1858, %v1923
    %v1963 = vmul.f32 %v1925, %v1861
    %v1964 = vsub.f32 %v1962, %v1963
    %v1965 = vmul.f32 %v1861, %v1923
    %v1966 = vmul.f32 %v1925, %v1858
    %v1967 = vadd.f32 %v1965, %v1966
    %v1968 = vmul.f32 %v1870, %v1923
    %v1969 = vmul.f32 %v1925, %v1873
    %v1970 = vsub.f32 %v1968, %v1969
    %v1971 = vmul.f32 %v1873, %v1923
    %v1972 = vmul.f32 %v1925, %v1870
    %v1973 = vadd.f32 %v1971, %v1972
    %v1974 = vmul.f32 %v1876, %v1923
    %v1975 = vmul.f32 %v1925, %v1879
    %v1976 = vadd.f32 %v1974, %v1975
    %v1977 = vmul.f32 %v1879, %v1923
    %v1978 = vmul.f32 %v1925, %v1876
    %v1979 = vsub.f32 %v1977, %v1978
    %v1980 = vmul.f32 %v1888, %v1923
    %v1981 = vmul.f32 %v1925, %v1891
    %v1982 = vadd.f32 %v1980, %v1981
    %v1983 = vmul.f32 %v1891, %v1923
    %v1984 = vmul.f32 %v1925, %v1888
    %v1985 = vsub.f32 %v1983, %v1984
    %v1986 = vmul.f32 %v1882, %v1923
    %v1987 = vmul.f32 %v1925, %v1885
    %v1988 = vsub.f32 %v1986, %v1987
    %v1989 = vmul.f32 %v1885, %v1923
    %v1990 = vmul.f32 %v1925, %v1882
    %v1991 = vadd.f32 %v1989, %v1990
    %v1992 = vmul.f32 %v1894, %v1923
    %v1993 = vmul.f32 %v1925, %v1897
    %v1994 = vsub.f32 %v1992, %v1993
    %v1995 = vmul.f32 %v1897, %v1923
    %v1996 = vmul.f32 %v1925, %v1894
    %v1997 = vadd.f32 %v1995, %v1996
    %v1998 = vmul.f32 %v1900, %v1923
    %v1999 = vmul.f32 %v1925, %v1903
    %v2000 = vadd.f32 %v1998, %v1999
    %v2001 = vmul.f32 %v1903, %v1923
    %v2002 = vmul.f32 %v1925, %v1900
    %v2003 = vsub.f32 %v2001, %v2002
    %v2004 = vmul.f32 %v1912, %v1923
    %v2005 = vmul.f32 %v1925, %v1915
    %v2006 = vadd.f32 %v2004, %v2005
    %v2007 = vmul.f32 %v1915, %v1923
    %v2008 = vmul.f32 %v1925, %v1912
    %v2009 = vsub.f32 %v2007, %v2008
    %v2010 = vmul.f32 %v1906, %v1923
    %v2011 = vmul.f32 %v1925, %v1909
    %v2012 = vsub.f32 %v2010, %v2011
    %v2013 = vmul.f32 %v1909, %v1923
    %v2014 = vmul.f32 %v1925, %v1906
    %v2015 = vadd.f32 %v2013, %v2014
    %v2016 = vmul.f32 %v1918, %v1923
    %v2017 = vmul.f32 %v1925, %v1921
    %v2018 = vsub.f32 %v2016, %v2017
    %v2019 = vmul.f32 %v1921, %v1923
    %v2020 = vmul.f32 %v1925, %v1918
    %v2021 = vadd.f32 %v2019, %v2020
    %s2022 = sld [smem:[#allocation2 + $0x46]]
    %v2023 = vstv %s2022
    %s2024 = sld [smem:[#allocation2 + $0x47]]
    %v2025 = vstv %s2024
    %v2026 = vmul.f32 %v2023, %v1928
    %v2027 = vmul.f32 %v2025, %v1937
    %v2028 = vadd.f32 %v2026, %v2027
    %v2029 = vmul.f32 %v2023, %v1931
    %v2030 = vmul.f32 %v2025, %v1934
    %v2031 = vsub.f32 %v2029, %v2030
    %v2032 = vmul.f32 %v2023, %v1934
    %v2033 = vmul.f32 %v2025, %v1931
    %v2034 = vadd.f32 %v2032, %v2033
    %v2035 = vmul.f32 %v2023, %v1937
    %v2036 = vmul.f32 %v2025, %v1928
    %v2037 = vsub.f32 %v2035, %v2036
    %v2038 = vmul.f32 %v2023, %v1940
    %v2039 = vmul.f32 %v2025, %v1949
    %v2040 = vadd.f32 %v2038, %v2039
    %v2041 = vmul.f32 %v2023, %v1943
    %v2042 = vmul.f32 %v2025, %v1946
    %v2043 = vsub.f32 %v2041, %v2042
    %v2044 = vmul.f32 %v2023, %v1946
    %v2045 = vmul.f32 %v2025, %v1943
    %v2046 = vadd.f32 %v2044, %v2045
    %v2047 = vmul.f32 %v2023, %v1949
    %v2048 = vmul.f32 %v2025, %v1940
    %v2049 = vsub.f32 %v2047, %v2048
    %v2050 = vmul.f32 %v2023, %v1952
    %v2051 = vmul.f32 %v2025, %v1961
    %v2052 = vadd.f32 %v2050, %v2051
    %v2053 = vmul.f32 %v2023, %v1955
    %v2054 = vmul.f32 %v2025, %v1958
    %v2055 = vsub.f32 %v2053, %v2054
    %v2056 = vmul.f32 %v2023, %v1958
    %v2057 = vmul.f32 %v2025, %v1955
    %v2058 = vadd.f32 %v2056, %v2057
    %v2059 = vmul.f32 %v2023, %v1961
    %v2060 = vmul.f32 %v2025, %v1952
    %v2061 = vsub.f32 %v2059, %v2060
    %v2062 = vmul.f32 %v2023, %v1964
    %v2063 = vmul.f32 %v2025, %v1973
    %v2064 = vadd.f32 %v2062, %v2063
    %v2065 = vmul.f32 %v2023, %v1967
    %v2066 = vmul.f32 %v2025, %v1970
    %v2067 = vsub.f32 %v2065, %v2066
    %v2068 = vmul.f32 %v2023, %v1970
    %v2069 = vmul.f32 %v2025, %v1967
    %v2070 = vadd.f32 %v2068, %v2069
    %v2071 = vmul.f32 %v2023, %v1973
    %v2072 = vmul.f32 %v2025, %v1964
    %v2073 = vsub.f32 %v2071, %v2072
    %v2074 = vmul.f32 %v2023, %v1976
    %v2075 = vmul.f32 %v2025, %v1985
    %v2076 = vadd.f32 %v2074, %v2075
    %v2077 = vmul.f32 %v2023, %v1979
    %v2078 = vmul.f32 %v2025, %v1982
    %v2079 = vsub.f32 %v2077, %v2078
    %v2080 = vmul.f32 %v2023, %v1982
    %v2081 = vmul.f32 %v2025, %v1979
    %v2082 = vadd.f32 %v2080, %v2081
    %v2083 = vmul.f32 %v2023, %v1985
    %v2084 = vmul.f32 %v2025, %v1976
    %v2085 = vsub.f32 %v2083, %v2084
    %v2086 = vmul.f32 %v2023, %v1988
    %v2087 = vmul.f32 %v2025, %v1997
    %v2088 = vadd.f32 %v2086, %v2087
    %v2089 = vmul.f32 %v2023, %v1991
    %v2090 = vmul.f32 %v2025, %v1994
    %v2091 = vsub.f32 %v2089, %v2090
    %v2092 = vmul.f32 %v2023, %v1994
    %v2093 = vmul.f32 %v2025, %v1991
    %v2094 = vadd.f32 %v2092, %v2093
    %v2095 = vmul.f32 %v2023, %v1997
    %v2096 = vmul.f32 %v2025, %v1988
    %v2097 = vsub.f32 %v2095, %v2096
    %v2098 = vmul.f32 %v2023, %v2000
    %v2099 = vmul.f32 %v2025, %v2009
    %v2100 = vadd.f32 %v2098, %v2099
    %v2101 = vmul.f32 %v2023, %v2003
    %v2102 = vmul.f32 %v2025, %v2006
    %v2103 = vsub.f32 %v2101, %v2102
    %v2104 = vmul.f32 %v2023, %v2006
    %v2105 = vmul.f32 %v2025, %v2003
    %v2106 = vadd.f32 %v2104, %v2105
    %v2107 = vmul.f32 %v2023, %v2009
    %v2108 = vmul.f32 %v2025, %v2000
    %v2109 = vsub.f32 %v2107, %v2108
    %v2110 = vmul.f32 %v2023, %v2012
    %v2111 = vmul.f32 %v2025, %v2021
    %v2112 = vadd.f32 %v2110, %v2111
    %v2113 = vmul.f32 %v2023, %v2015
    %v2114 = vmul.f32 %v2025, %v2018
    %v2115 = vsub.f32 %v2113, %v2114
    %v2116 = vmul.f32 %v2023, %v2018
    %v2117 = vmul.f32 %v2025, %v2015
    %v2118 = vadd.f32 %v2116, %v2117
    %v2119 = vmul.f32 %v2023, %v2021
    %v2120 = vmul.f32 %v2025, %v2012
    %v2121 = vsub.f32 %v2119, %v2120
    %s2122 = sld [smem:[#allocation2 + $0x48]]
    %v2123 = vstv %s2122
    %s2124 = sld [smem:[#allocation2 + $0x49]]
    %v2125 = vstv %s2124
    %v2126 = vmul.f32 %v2028, %v2123
    %v2127 = vmul.f32 %v2125, %v2031
    %v2128 = vadd.f32 %v2126, %v2127
    %v2129 = vmul.f32 %v2031, %v2123
    %v2130 = vmul.f32 %v2125, %v2028
    %v2131 = vsub.f32 %v2129, %v2130
    %v2132 = vmul.f32 %v2034, %v2123
    %v2133 = vmul.f32 %v2125, %v2037
    %v2134 = vsub.f32 %v2132, %v2133
    %v2135 = vmul.f32 %v2037, %v2123
    %v2136 = vmul.f32 %v2125, %v2034
    %v2137 = vadd.f32 %v2135, %v2136
    %v2138 = vmul.f32 %v2040, %v2123
    %v2139 = vmul.f32 %v2125, %v2043
    %v2140 = vadd.f32 %v2138, %v2139
    %v2141 = vmul.f32 %v2043, %v2123
    %v2142 = vmul.f32 %v2125, %v2040
    %v2143 = vsub.f32 %v2141, %v2142
    %v2144 = vmul.f32 %v2046, %v2123
    %v2145 = vmul.f32 %v2125, %v2049
    %v2146 = vsub.f32 %v2144, %v2145
    %v2147 = vmul.f32 %v2049, %v2123
    %v2148 = vmul.f32 %v2125, %v2046
    %v2149 = vadd.f32 %v2147, %v2148
    %v2150 = vmul.f32 %v2052, %v2123
    %v2151 = vmul.f32 %v2125, %v2055
    %v2152 = vadd.f32 %v2150, %v2151
    %v2153 = vmul.f32 %v2055, %v2123
    %v2154 = vmul.f32 %v2125, %v2052
    %v2155 = vsub.f32 %v2153, %v2154
    %v2156 = vmul.f32 %v2058, %v2123
    %v2157 = vmul.f32 %v2125, %v2061
    %v2158 = vsub.f32 %v2156, %v2157
    %v2159 = vmul.f32 %v2061, %v2123
    %v2160 = vmul.f32 %v2125, %v2058
    %v2161 = vadd.f32 %v2159, %v2160
    %v2162 = vmul.f32 %v2064, %v2123
    %v2163 = vmul.f32 %v2125, %v2067
    %v2164 = vadd.f32 %v2162, %v2163
    %v2165 = vmul.f32 %v2067, %v2123
    %v2166 = vmul.f32 %v2125, %v2064
    %v2167 = vsub.f32 %v2165, %v2166
    %v2168 = vmul.f32 %v2070, %v2123
    %v2169 = vmul.f32 %v2125, %v2073
    %v2170 = vsub.f32 %v2168, %v2169
    %v2171 = vmul.f32 %v2073, %v2123
    %v2172 = vmul.f32 %v2125, %v2070
    %v2173 = vadd.f32 %v2171, %v2172
    %v2174 = vmul.f32 %v2076, %v2123
    %v2175 = vmul.f32 %v2125, %v2079
    %v2176 = vadd.f32 %v2174, %v2175
    %v2177 = vmul.f32 %v2079, %v2123
    %v2178 = vmul.f32 %v2125, %v2076
    %v2179 = vsub.f32 %v2177, %v2178
    %v2180 = vmul.f32 %v2082, %v2123
    %v2181 = vmul.f32 %v2125, %v2085
    %v2182 = vsub.f32 %v2180, %v2181
    %v2183 = vmul.f32 %v2085, %v2123
    %v2184 = vmul.f32 %v2125, %v2082
    %v2185 = vadd.f32 %v2183, %v2184
    %v2186 = vmul.f32 %v2088, %v2123
    %v2187 = vmul.f32 %v2125, %v2091
    %v2188 = vadd.f32 %v2186, %v2187
    %v2189 = vmul.f32 %v2091, %v2123
    %v2190 = vmul.f32 %v2125, %v2088
    %v2191 = vsub.f32 %v2189, %v2190
    %v2192 = vmul.f32 %v2094, %v2123
    %v2193 = vmul.f32 %v2125, %v2097
    %v2194 = vsub.f32 %v2192, %v2193
    %v2195 = vmul.f32 %v2097, %v2123
    %v2196 = vmul.f32 %v2125, %v2094
    %v2197 = vadd.f32 %v2195, %v2196
    %v2198 = vmul.f32 %v2100, %v2123
    %v2199 = vmul.f32 %v2125, %v2103
    %v2200 = vadd.f32 %v2198, %v2199
    %v2201 = vmul.f32 %v2103, %v2123
    %v2202 = vmul.f32 %v2125, %v2100
    %v2203 = vsub.f32 %v2201, %v2202
    %v2204 = vmul.f32 %v2106, %v2123
    %v2205 = vmul.f32 %v2125, %v2109
    %v2206 = vsub.f32 %v2204, %v2205
    %v2207 = vmul.f32 %v2109, %v2123
    %v2208 = vmul.f32 %v2125, %v2106
    %v2209 = vadd.f32 %v2207, %v2208
    %v2210 = vmul.f32 %v2112, %v2123
    %v2211 = vmul.f32 %v2125, %v2115
    %v2212 = vadd.f32 %v2210, %v2211
    %v2213 = vmul.f32 %v2115, %v2123
    %v2214 = vmul.f32 %v2125, %v2112
    %v2215 = vsub.f32 %v2213, %v2214
    %v2216 = vmul.f32 %v2118, %v2123
    %v2217 = vmul.f32 %v2125, %v2121
    %v2218 = vsub.f32 %v2216, %v2217
    %v2219 = vmul.f32 %v2121, %v2123
    %v2220 = vmul.f32 %v2125, %v2118
    %v2221 = vadd.f32 %v2219, %v2220
    %s2222 = sld [smem:[#allocation2 + $0x2c]]
    %v2223 = vstv %s2222
    %s2224 = sld [smem:[#allocation2 + $0x2d]]
    %v2225 = vstv %s2224
    %v2226 = vmul.f32 %v2223, %v2134
    %v2227 = vmul.f32 %v2225, %v2185
    %v2228 = vadd.f32 %v2226, %v2227
    %v2229 = vmul.f32 %v2223, %v2137
    %v2230 = vmul.f32 %v2225, %v2182
    %v2231 = vsub.f32 %v2229, %v2230
    %v2232 = vmul.f32 %v2223, %v2182
    %v2233 = vmul.f32 %v2225, %v2137
    %v2234 = vadd.f32 %v2232, %v2233
    %v2235 = vmul.f32 %v2223, %v2185
    %v2236 = vmul.f32 %v2225, %v2134
    %v2237 = vsub.f32 %v2235, %v2236
    %v2238 = vmul.f32 %v2223, %v2146
    %v2239 = vmul.f32 %v2225, %v2197
    %v2240 = vadd.f32 %v2238, %v2239
    %v2241 = vmul.f32 %v2223, %v2149
    %v2242 = vmul.f32 %v2225, %v2194
    %v2243 = vsub.f32 %v2241, %v2242
    %v2244 = vmul.f32 %v2223, %v2194
    %v2245 = vmul.f32 %v2225, %v2149
    %v2246 = vadd.f32 %v2244, %v2245
    %v2247 = vmul.f32 %v2223, %v2197
    %v2248 = vmul.f32 %v2225, %v2146
    %v2249 = vsub.f32 %v2247, %v2248
    %v2250 = vmul.f32 %v2223, %v2158
    %v2251 = vmul.f32 %v2225, %v2209
    %v2252 = vadd.f32 %v2250, %v2251
    %v2253 = vmul.f32 %v2223, %v2161
    %v2254 = vmul.f32 %v2225, %v2206
    %v2255 = vsub.f32 %v2253, %v2254
    %v2256 = vmul.f32 %v2223, %v2206
    %v2257 = vmul.f32 %v2225, %v2161
    %v2258 = vadd.f32 %v2256, %v2257
    %v2259 = vmul.f32 %v2223, %v2209
    %v2260 = vmul.f32 %v2225, %v2158
    %v2261 = vsub.f32 %v2259, %v2260
    %v2262 = vmul.f32 %v2223, %v2170
    %v2263 = vmul.f32 %v2225, %v2221
    %v2264 = vadd.f32 %v2262, %v2263
    %v2265 = vmul.f32 %v2223, %v2173
    %v2266 = vmul.f32 %v2225, %v2218
    %v2267 = vsub.f32 %v2265, %v2266
    %v2268 = vmul.f32 %v2223, %v2218
    %v2269 = vmul.f32 %v2225, %v2173
    %v2270 = vadd.f32 %v2268, %v2269
    %v2271 = vmul.f32 %v2223, %v2221
    %v2272 = vmul.f32 %v2225, %v2170
    %v2273 = vsub.f32 %v2271, %v2272
    %s2274 = sld [smem:[#allocation2 + $0x36]]
    %v2275 = vstv %s2274
    %s2276 = sld [smem:[#allocation2 + $0x37]]
    %v2277 = vstv %s2276
    %v2278 = vmul.f32 %v2275, %v2140
    %v2279 = vmul.f32 %v2277, %v2243
    %v2280 = vadd.f32 %v2278, %v2279
    %v2281 = vmul.f32 %v2275, %v2143
    %v2282 = vmul.f32 %v2277, %v2240
    %v2283 = vsub.f32 %v2281, %v2282
    %v2284 = vmul.f32 %v2275, %v2240
    %v2285 = vmul.f32 %v2277, %v2143
    %v2286 = vadd.f32 %v2284, %v2285
    %v2287 = vmul.f32 %v2275, %v2243
    %v2288 = vmul.f32 %v2277, %v2140
    %v2289 = vsub.f32 %v2287, %v2288
    %v2290 = vmul.f32 %v2275, %v2164
    %v2291 = vmul.f32 %v2277, %v2267
    %v2292 = vadd.f32 %v2290, %v2291
    %v2293 = vmul.f32 %v2275, %v2167
    %v2294 = vmul.f32 %v2277, %v2264
    %v2295 = vsub.f32 %v2293, %v2294
    %v2296 = vmul.f32 %v2275, %v2264
    %v2297 = vmul.f32 %v2277, %v2167
    %v2298 = vadd.f32 %v2296, %v2297
    %v2299 = vmul.f32 %v2275, %v2267
    %v2300 = vmul.f32 %v2277, %v2164
    %v2301 = vsub.f32 %v2299, %v2300
    %v2302 = vmul.f32 %v2275, %v2188
    %v2303 = vmul.f32 %v2277, %v2249
    %v2304 = vadd.f32 %v2302, %v2303
    %v2305 = vmul.f32 %v2275, %v2191
    %v2306 = vmul.f32 %v2277, %v2246
    %v2307 = vsub.f32 %v2305, %v2306
    %v2308 = vmul.f32 %v2275, %v2246
    %v2309 = vmul.f32 %v2277, %v2191
    %v2310 = vadd.f32 %v2308, %v2309
    %v2311 = vmul.f32 %v2275, %v2249
    %v2312 = vmul.f32 %v2277, %v2188
    %v2313 = vsub.f32 %v2311, %v2312
    %v2314 = vmul.f32 %v2275, %v2212
    %v2315 = vmul.f32 %v2277, %v2273
    %v2316 = vadd.f32 %v2314, %v2315
    %v2317 = vmul.f32 %v2275, %v2215
    %v2318 = vmul.f32 %v2277, %v2270
    %v2319 = vsub.f32 %v2317, %v2318
    %v2320 = vmul.f32 %v2275, %v2270
    %v2321 = vmul.f32 %v2277, %v2215
    %v2322 = vadd.f32 %v2320, %v2321
    %v2323 = vmul.f32 %v2275, %v2273
    %v2324 = vmul.f32 %v2277, %v2212
    %v2325 = vsub.f32 %v2323, %v2324
    %s2326 = sld [smem:[#allocation2 + $0x40]]
    %v2327 = vstv %s2326
    %s2328 = sld [smem:[#allocation2 + $0x41]]
    %v2329 = vstv %s2328
    %v2330 = vmul.f32 %v2327, %v2152
    %v2331 = vmul.f32 %v2329, %v2295
    %v2332 = vadd.f32 %v2330, %v2331
    %v2333 = vmul.f32 %v2327, %v2155
    %v2334 = vmul.f32 %v2329, %v2292
    %v2335 = vsub.f32 %v2333, %v2334
    %v2336 = vmul.f32 %v2327, %v2292
    %v2337 = vmul.f32 %v2329, %v2155
    %v2338 = vadd.f32 %v2336, %v2337
    %v2339 = vmul.f32 %v2327, %v2295
    %v2340 = vmul.f32 %v2329, %v2152
    %v2341 = vsub.f32 %v2339, %v2340
    %v2342 = vmul.f32 %v2327, %v2252
    %v2343 = vmul.f32 %v2329, %v2301
    %v2344 = vadd.f32 %v2342, %v2343
    %v2345 = vmul.f32 %v2327, %v2255
    %v2346 = vmul.f32 %v2329, %v2298
    %v2347 = vsub.f32 %v2345, %v2346
    %v2348 = vmul.f32 %v2327, %v2298
    %v2349 = vmul.f32 %v2329, %v2255
    %v2350 = vadd.f32 %v2348, %v2349
    %v2351 = vmul.f32 %v2327, %v2301
    %v2352 = vmul.f32 %v2329, %v2252
    %v2353 = vsub.f32 %v2351, %v2352
    %v2354 = vmul.f32 %v2327, %v2200
    %v2355 = vmul.f32 %v2329, %v2319
    %v2356 = vadd.f32 %v2354, %v2355
    %v2357 = vmul.f32 %v2327, %v2203
    %v2358 = vmul.f32 %v2329, %v2316
    %v2359 = vsub.f32 %v2357, %v2358
    %v2360 = vmul.f32 %v2327, %v2316
    %v2361 = vmul.f32 %v2329, %v2203
    %v2362 = vadd.f32 %v2360, %v2361
    %v2363 = vmul.f32 %v2327, %v2319
    %v2364 = vmul.f32 %v2329, %v2200
    %v2365 = vsub.f32 %v2363, %v2364
    %v2366 = vmul.f32 %v2327, %v2258
    %v2367 = vmul.f32 %v2329, %v2325
    %v2368 = vadd.f32 %v2366, %v2367
    %v2369 = vmul.f32 %v2327, %v2261
    %v2370 = vmul.f32 %v2329, %v2322
    %v2371 = vsub.f32 %v2369, %v2370
    %v2372 = vmul.f32 %v2327, %v2322
    %v2373 = vmul.f32 %v2329, %v2261
    %v2374 = vadd.f32 %v2372, %v2373
    %v2375 = vmul.f32 %v2327, %v2325
    %v2376 = vmul.f32 %v2329, %v2258
    %v2377 = vsub.f32 %v2375, %v2376
    %s2378 = sld [smem:[#allocation2 + $0x4a]]
    %v2379 = vstv %s2378
    %s2380 = sld [smem:[#allocation2 + $0x4b]]
    %v2381 = vstv %s2380
    %v2382 = vmul.f32 %v2379, %v2176
    %v2383 = vmul.f32 %v2381, %v2359
    %v2384 = vadd.f32 %v2382, %v2383
    %v2385 = vmul.f32 %v2379, %v2179
    %v2386 = vmul.f32 %v2381, %v2356
    %v2387 = vsub.f32 %v2385, %v2386
    %v2388 = vmul.f32 %v2379, %v2356
    %v2389 = vmul.f32 %v2381, %v2179
    %v2390 = vadd.f32 %v2388, %v2389
    %v2391 = vmul.f32 %v2379, %v2359
    %v2392 = vmul.f32 %v2381, %v2176
    %v2393 = vsub.f32 %v2391, %v2392
    %v2394 = vmul.f32 %v2379, %v2234
    %v2395 = vmul.f32 %v2381, %v2371
    %v2396 = vadd.f32 %v2394, %v2395
    %v2397 = vmul.f32 %v2379, %v2237
    %v2398 = vmul.f32 %v2381, %v2368
    %v2399 = vsub.f32 %v2397, %v2398
    %v2400 = vmul.f32 %v2379, %v2368
    %v2401 = vmul.f32 %v2381, %v2237
    %v2402 = vadd.f32 %v2400, %v2401
    %v2403 = vmul.f32 %v2379, %v2371
    %v2404 = vmul.f32 %v2381, %v2234
    %v2405 = vsub.f32 %v2403, %v2404
    %v2406 = vmul.f32 %v2379, %v2304
    %v2407 = vmul.f32 %v2381, %v2365
    %v2408 = vadd.f32 %v2406, %v2407
    %v2409 = vmul.f32 %v2379, %v2307
    %v2410 = vmul.f32 %v2381, %v2362
    %v2411 = vsub.f32 %v2409, %v2410
    %v2412 = vmul.f32 %v2379, %v2362
    %v2413 = vmul.f32 %v2381, %v2307
    %v2414 = vadd.f32 %v2412, %v2413
    %v2415 = vmul.f32 %v2379, %v2365
    %v2416 = vmul.f32 %v2381, %v2304
    %v2417 = vsub.f32 %v2415, %v2416
    %v2418 = vmul.f32 %v2379, %v2310
    %v2419 = vmul.f32 %v2381, %v2377
    %v2420 = vadd.f32 %v2418, %v2419
    %v2421 = vmul.f32 %v2379, %v2313
    %v2422 = vmul.f32 %v2381, %v2374
    %v2423 = vsub.f32 %v2421, %v2422
    %v2424 = vmul.f32 %v2379, %v2374
    %v2425 = vmul.f32 %v2381, %v2313
    %v2426 = vadd.f32 %v2424, %v2425
    %v2427 = vmul.f32 %v2379, %v2377
    %v2428 = vmul.f32 %v2381, %v2310
    %v2429 = vsub.f32 %v2427, %v2428
    %s2430 = sld [smem:[#allocation2 + $0x2e]]
    %v2431 = vstv %s2430
    %s2432 = sld [smem:[#allocation2 + $0x2f]]
    %v2433 = vstv %s2432
    %v2434 = vmul.f32 %v37, %v2431
    %v2435 = vmul.f32 %v39, %v2433
    %v2436 = vsub.f32 %v2434, %v2435
    %v2437 = vmul.f32 %v39, %v2431
    %v2438 = vmul.f32 %v37, %v2433
    %v2439 = vadd.f32 %v2437, %v2438
    %v2440 = vmul.f32 %v2436, %v2128
    %v2441 = vmul.f32 %v2439, %v2387
    %v2442 = vadd.f32 %v2440, %v2441
    %v2443 = vmul.f32 %v2436, %v2131
    %v2444 = vmul.f32 %v2439, %v2384
    %v2445 = vsub.f32 %v2443, %v2444
    %v2446 = vmul.f32 %v2436, %v2384
    %v2447 = vmul.f32 %v2439, %v2131
    %v2448 = vadd.f32 %v2446, %v2447
    %v2449 = vmul.f32 %v2436, %v2387
    %v2450 = vmul.f32 %v2439, %v2128
    %v2451 = vsub.f32 %v2449, %v2450
    %v2452 = vmul.f32 %v2436, %v2228
    %v2453 = vmul.f32 %v2439, %v2399
    %v2454 = vadd.f32 %v2452, %v2453
    %v2455 = vmul.f32 %v2436, %v2231
    %v2456 = vmul.f32 %v2439, %v2396
    %v2457 = vsub.f32 %v2455, %v2456
    %v2458 = vmul.f32 %v2436, %v2396
    %v2459 = vmul.f32 %v2439, %v2231
    %v2460 = vadd.f32 %v2458, %v2459
    %v2461 = vmul.f32 %v2436, %v2399
    %v2462 = vmul.f32 %v2439, %v2228
    %v2463 = vsub.f32 %v2461, %v2462
    %v2464 = vmul.f32 %v2436, %v2280
    %v2465 = vmul.f32 %v2439, %v2411
    %v2466 = vadd.f32 %v2464, %v2465
    %v2467 = vmul.f32 %v2436, %v2283
    %v2468 = vmul.f32 %v2439, %v2408
    %v2469 = vsub.f32 %v2467, %v2468
    %v2470 = vmul.f32 %v2436, %v2408
    %v2471 = vmul.f32 %v2439, %v2283
    %v2472 = vadd.f32 %v2470, %v2471
    %v2473 = vmul.f32 %v2436, %v2411
    %v2474 = vmul.f32 %v2439, %v2280
    %v2475 = vsub.f32 %v2473, %v2474
    %v2476 = vmul.f32 %v2436, %v2286
    %v2477 = vmul.f32 %v2439, %v2423
    %v2478 = vadd.f32 %v2476, %v2477
    %v2479 = vmul.f32 %v2436, %v2289
    %v2480 = vmul.f32 %v2439, %v2420
    %v2481 = vsub.f32 %v2479, %v2480
    %v2482 = vmul.f32 %v2436, %v2420
    %v2483 = vmul.f32 %v2439, %v2289
    %v2484 = vadd.f32 %v2482, %v2483
    %v2485 = vmul.f32 %v2436, %v2423
    %v2486 = vmul.f32 %v2439, %v2286
    %v2487 = vsub.f32 %v2485, %v2486
    %v2488 = vmul.f32 %v2436, %v2332
    %v2489 = vmul.f32 %v2439, %v2393
    %v2490 = vadd.f32 %v2488, %v2489
    %v2491 = vmul.f32 %v2436, %v2335
    %v2492 = vmul.f32 %v2439, %v2390
    %v2493 = vsub.f32 %v2491, %v2492
    %v2494 = vmul.f32 %v2436, %v2390
    %v2495 = vmul.f32 %v2439, %v2335
    %v2496 = vadd.f32 %v2494, %v2495
    %v2497 = vmul.f32 %v2436, %v2393
    %v2498 = vmul.f32 %v2439, %v2332
    %v2499 = vsub.f32 %v2497, %v2498
    %v2500 = vmul.f32 %v2436, %v2344
    %v2501 = vmul.f32 %v2439, %v2405
    %v2502 = vadd.f32 %v2500, %v2501
    %v2503 = vmul.f32 %v2436, %v2347
    %v2504 = vmul.f32 %v2439, %v2402
    %v2505 = vsub.f32 %v2503, %v2504
    %v2506 = vmul.f32 %v2436, %v2402
    %v2507 = vmul.f32 %v2439, %v2347
    %v2508 = vadd.f32 %v2506, %v2507
    %v2509 = vmul.f32 %v2436, %v2405
    %v2510 = vmul.f32 %v2439, %v2344
    %v2511 = vsub.f32 %v2509, %v2510
    %v2512 = vmul.f32 %v2436, %v2338
    %v2513 = vmul.f32 %v2439, %v2417
    %v2514 = vadd.f32 %v2512, %v2513
    %v2515 = vmul.f32 %v2436, %v2341
    %v2516 = vmul.f32 %v2439, %v2414
    %v2517 = vsub.f32 %v2515, %v2516
    %v2518 = vmul.f32 %v2436, %v2414
    %v2519 = vmul.f32 %v2439, %v2341
    %v2520 = vadd.f32 %v2518, %v2519
    %v2521 = vmul.f32 %v2436, %v2417
    %v2522 = vmul.f32 %v2439, %v2338
    %v2523 = vsub.f32 %v2521, %v2522
    %v2524 = vmul.f32 %v2436, %v2350
    %v2525 = vmul.f32 %v2439, %v2429
    %v2526 = vadd.f32 %v2524, %v2525
    %v2527 = vmul.f32 %v2436, %v2353
    %v2528 = vmul.f32 %v2439, %v2426
    %v2529 = vsub.f32 %v2527, %v2528
    %v2530 = vmul.f32 %v2436, %v2426
    %v2531 = vmul.f32 %v2439, %v2353
    %v2532 = vadd.f32 %v2530, %v2531
    %v2533 = vmul.f32 %v2436, %v2429
    %v2534 = vmul.f32 %v2439, %v2350
    %v2535 = vsub.f32 %v2533, %v2534
    %s2536 = sld [smem:[#allocation2 + $0x38]]
    %v2537 = vstv %s2536
    %s2538 = sld [smem:[#allocation2 + $0x39]]
    %v2539 = vstv %s2538
    %v2540 = vmul.f32 %v37, %v2537
    %v2541 = vmul.f32 %v39, %v2539
    %v2542 = vsub.f32 %v2540, %v2541
    %v2543 = vmul.f32 %v39, %v2537
    %v2544 = vmul.f32 %v37, %v2539
    %v2545 = vadd.f32 %v2543, %v2544
    %v2546 = vmul.f32 %v2542, %v2442
    %v2547 = vmul.f32 %v2545, %v2493
    %v2548 = vadd.f32 %v2546, %v2547
    %v2549 = vmul.f32 %v2542, %v2445
    %v2550 = vmul.f32 %v2545, %v2490
    %v2551 = vsub.f32 %v2549, %v2550
    %v2552 = vmul.f32 %v2542, %v2490
    %v2553 = vmul.f32 %v2545, %v2445
    %v2554 = vadd.f32 %v2552, %v2553
    %v2555 = vmul.f32 %v2542, %v2493
    %v2556 = vmul.f32 %v2545, %v2442
    %v2557 = vsub.f32 %v2555, %v2556
    %v2558 = vmul.f32 %v2542, %v2454
    %v2559 = vmul.f32 %v2545, %v2505
    %v2560 = vadd.f32 %v2558, %v2559
    %v2561 = vmul.f32 %v2542, %v2457
    %v2562 = vmul.f32 %v2545, %v2502
    %v2563 = vsub.f32 %v2561, %v2562
    %v2564 = vmul.f32 %v2542, %v2502
    %v2565 = vmul.f32 %v2545, %v2457
    %v2566 = vadd.f32 %v2564, %v2565
    %v2567 = vmul.f32 %v2542, %v2505
    %v2568 = vmul.f32 %v2545, %v2454
    %v2569 = vsub.f32 %v2567, %v2568
    %v2570 = vmul.f32 %v2542, %v2466
    %v2571 = vmul.f32 %v2545, %v2517
    %v2572 = vadd.f32 %v2570, %v2571
    %v2573 = vmul.f32 %v2542, %v2469
    %v2574 = vmul.f32 %v2545, %v2514
    %v2575 = vsub.f32 %v2573, %v2574
    %v2576 = vmul.f32 %v2542, %v2514
    %v2577 = vmul.f32 %v2545, %v2469
    %v2578 = vadd.f32 %v2576, %v2577
    %v2579 = vmul.f32 %v2542, %v2517
    %v2580 = vmul.f32 %v2545, %v2466
    %v2581 = vsub.f32 %v2579, %v2580
    %v2582 = vmul.f32 %v2542, %v2478
    %v2583 = vmul.f32 %v2545, %v2529
    %v2584 = vadd.f32 %v2582, %v2583
    %v2585 = vmul.f32 %v2542, %v2481
    %v2586 = vmul.f32 %v2545, %v2526
    %v2587 = vsub.f32 %v2585, %v2586
    %v2588 = vmul.f32 %v2542, %v2526
    %v2589 = vmul.f32 %v2545, %v2481
    %v2590 = vadd.f32 %v2588, %v2589
    %v2591 = vmul.f32 %v2542, %v2529
    %v2592 = vmul.f32 %v2545, %v2478
    %v2593 = vsub.f32 %v2591, %v2592
    %v2594 = vmul.f32 %v2542, %v2448
    %v2595 = vmul.f32 %v2545, %v2499
    %v2596 = vadd.f32 %v2594, %v2595
    %v2597 = vmul.f32 %v2542, %v2451
    %v2598 = vmul.f32 %v2545, %v2496
    %v2599 = vsub.f32 %v2597, %v2598
    %v2600 = vmul.f32 %v2542, %v2496
    %v2601 = vmul.f32 %v2545, %v2451
    %v2602 = vadd.f32 %v2600, %v2601
    %v2603 = vmul.f32 %v2542, %v2499
    %v2604 = vmul.f32 %v2545, %v2448
    %v2605 = vsub.f32 %v2603, %v2604
    %v2606 = vmul.f32 %v2542, %v2460
    %v2607 = vmul.f32 %v2545, %v2511
    %v2608 = vadd.f32 %v2606, %v2607
    %v2609 = vmul.f32 %v2542, %v2463
    %v2610 = vmul.f32 %v2545, %v2508
    %v2611 = vsub.f32 %v2609, %v2610
    %v2612 = vmul.f32 %v2542, %v2508
    %v2613 = vmul.f32 %v2545, %v2463
    %v2614 = vadd.f32 %v2612, %v2613
    %v2615 = vmul.f32 %v2542, %v2511
    %v2616 = vmul.f32 %v2545, %v2460
    %v2617 = vsub.f32 %v2615, %v2616
    %v2618 = vmul.f32 %v2542, %v2472
    %v2619 = vmul.f32 %v2545, %v2523
    %v2620 = vadd.f32 %v2618, %v2619
    %v2621 = vmul.f32 %v2542, %v2475
    %v2622 = vmul.f32 %v2545, %v2520
    %v2623 = vsub.f32 %v2621, %v2622
    %v2624 = vmul.f32 %v2542, %v2520
    %v2625 = vmul.f32 %v2545, %v2475
    %v2626 = vadd.f32 %v2624, %v2625
    %v2627 = vmul.f32 %v2542, %v2523
    %v2628 = vmul.f32 %v2545, %v2472
    %v2629 = vsub.f32 %v2627, %v2628
    %v2630 = vmul.f32 %v2542, %v2484
    %v2631 = vmul.f32 %v2545, %v2535
    %v2632 = vadd.f32 %v2630, %v2631
    %v2633 = vmul.f32 %v2542, %v2487
    %v2634 = vmul.f32 %v2545, %v2532
    %v2635 = vsub.f32 %v2633, %v2634
    %v2636 = vmul.f32 %v2542, %v2532
    %v2637 = vmul.f32 %v2545, %v2487
    %v2638 = vadd.f32 %v2636, %v2637
    %v2639 = vmul.f32 %v2542, %v2535
    %v2640 = vmul.f32 %v2545, %v2484
    %v2641 = vsub.f32 %v2639, %v2640
    %s2642 = sld [smem:[#allocation2 + $0x42]]
    %v2643 = vstv %s2642
    %s2644 = sld [smem:[#allocation2 + $0x43]]
    %v2645 = vstv %s2644
    %v2646 = vmul.f32 %v37, %v2643
    %v2647 = vmul.f32 %v39, %v2645
    %v2648 = vsub.f32 %v2646, %v2647
    %v2649 = vmul.f32 %v39, %v2643
    %v2650 = vmul.f32 %v37, %v2645
    %v2651 = vadd.f32 %v2649, %v2650
    %v2652 = vmul.f32 %v2648, %v2548
    %v2653 = vmul.f32 %v2651, %v2575
    %v2654 = vadd.f32 %v2652, %v2653
    %v2655 = vmul.f32 %v2648, %v2551
    %v2656 = vmul.f32 %v2651, %v2572
    %v2657 = vsub.f32 %v2655, %v2656
    %v2658 = vmul.f32 %v2648, %v2572
    %v2659 = vmul.f32 %v2651, %v2551
    %v2660 = vadd.f32 %v2658, %v2659
    %v2661 = vmul.f32 %v2648, %v2575
    %v2662 = vmul.f32 %v2651, %v2548
    %v2663 = vsub.f32 %v2661, %v2662
    %v2664 = vmul.f32 %v2648, %v2560
    %v2665 = vmul.f32 %v2651, %v2587
    %v2666 = vadd.f32 %v2664, %v2665
    %v2667 = vmul.f32 %v2648, %v2563
    %v2668 = vmul.f32 %v2651, %v2584
    %v2669 = vsub.f32 %v2667, %v2668
    %v2670 = vmul.f32 %v2648, %v2584
    %v2671 = vmul.f32 %v2651, %v2563
    %v2672 = vadd.f32 %v2670, %v2671
    %v2673 = vmul.f32 %v2648, %v2587
    %v2674 = vmul.f32 %v2651, %v2560
    %v2675 = vsub.f32 %v2673, %v2674
    %v2676 = vmul.f32 %v2648, %v2554
    %v2677 = vmul.f32 %v2651, %v2581
    %v2678 = vadd.f32 %v2676, %v2677
    %v2679 = vmul.f32 %v2648, %v2557
    %v2680 = vmul.f32 %v2651, %v2578
    %v2681 = vsub.f32 %v2679, %v2680
    %v2682 = vmul.f32 %v2648, %v2578
    %v2683 = vmul.f32 %v2651, %v2557
    %v2684 = vadd.f32 %v2682, %v2683
    %v2685 = vmul.f32 %v2648, %v2581
    %v2686 = vmul.f32 %v2651, %v2554
    %v2687 = vsub.f32 %v2685, %v2686
    %v2688 = vmul.f32 %v2648, %v2566
    %v2689 = vmul.f32 %v2651, %v2593
    %v2690 = vadd.f32 %v2688, %v2689
    %v2691 = vmul.f32 %v2648, %v2569
    %v2692 = vmul.f32 %v2651, %v2590
    %v2693 = vsub.f32 %v2691, %v2692
    %v2694 = vmul.f32 %v2648, %v2590
    %v2695 = vmul.f32 %v2651, %v2569
    %v2696 = vadd.f32 %v2694, %v2695
    %v2697 = vmul.f32 %v2648, %v2593
    %v2698 = vmul.f32 %v2651, %v2566
    %v2699 = vsub.f32 %v2697, %v2698
    %v2700 = vmul.f32 %v2648, %v2596
    %v2701 = vmul.f32 %v2651, %v2623
    %v2702 = vadd.f32 %v2700, %v2701
    %v2703 = vmul.f32 %v2648, %v2599
    %v2704 = vmul.f32 %v2651, %v2620
    %v2705 = vsub.f32 %v2703, %v2704
    %v2706 = vmul.f32 %v2648, %v2620
    %v2707 = vmul.f32 %v2651, %v2599
    %v2708 = vadd.f32 %v2706, %v2707
    %v2709 = vmul.f32 %v2648, %v2623
    %v2710 = vmul.f32 %v2651, %v2596
    %v2711 = vsub.f32 %v2709, %v2710
    %v2712 = vmul.f32 %v2648, %v2608
    %v2713 = vmul.f32 %v2651, %v2635
    %v2714 = vadd.f32 %v2712, %v2713
    %v2715 = vmul.f32 %v2648, %v2611
    %v2716 = vmul.f32 %v2651, %v2632
    %v2717 = vsub.f32 %v2715, %v2716
    %v2718 = vmul.f32 %v2648, %v2632
    %v2719 = vmul.f32 %v2651, %v2611
    %v2720 = vadd.f32 %v2718, %v2719
    %v2721 = vmul.f32 %v2648, %v2635
    %v2722 = vmul.f32 %v2651, %v2608
    %v2723 = vsub.f32 %v2721, %v2722
    %v2724 = vmul.f32 %v2648, %v2602
    %v2725 = vmul.f32 %v2651, %v2629
    %v2726 = vadd.f32 %v2724, %v2725
    %v2727 = vmul.f32 %v2648, %v2605
    %v2728 = vmul.f32 %v2651, %v2626
    %v2729 = vsub.f32 %v2727, %v2728
    %v2730 = vmul.f32 %v2648, %v2626
    %v2731 = vmul.f32 %v2651, %v2605
    %v2732 = vadd.f32 %v2730, %v2731
    %v2733 = vmul.f32 %v2648, %v2629
    %v2734 = vmul.f32 %v2651, %v2602
    %v2735 = vsub.f32 %v2733, %v2734
    %v2736 = vmul.f32 %v2648, %v2614
    %v2737 = vmul.f32 %v2651, %v2641
    %v2738 = vadd.f32 %v2736, %v2737
    %v2739 = vmul.f32 %v2648, %v2617
    %v2740 = vmul.f32 %v2651, %v2638
    %v2741 = vsub.f32 %v2739, %v2740
    %v2742 = vmul.f32 %v2648, %v2638
    %v2743 = vmul.f32 %v2651, %v2617
    %v2744 = vadd.f32 %v2742, %v2743
    %v2745 = vmul.f32 %v2648, %v2641
    %v2746 = vmul.f32 %v2651, %v2614
    %v2747 = vsub.f32 %v2745, %v2746
    %s2748 = sld [smem:[#allocation2 + $0x4c]]
    %v2749 = vstv %s2748
    %s2750 = sld [smem:[#allocation2 + $0x4d]]
    %v2751 = vstv %s2750
    %v2752 = vmul.f32 %v37, %v2749
    %v2753 = vmul.f32 %v39, %v2751
    %v2754 = vsub.f32 %v2752, %v2753
    %v2755 = vmul.f32 %v39, %v2749
    %v2756 = vmul.f32 %v37, %v2751
    %v2757 = vadd.f32 %v2755, %v2756
    %v2758 = vmul.f32 %v2754, %v2654
    %v2759 = vmul.f32 %v2757, %v2669
    %v2760 = vadd.f32 %v2758, %v2759
    %v2761 = vmul.f32 %v2754, %v2657
    %v2762 = vmul.f32 %v2757, %v2666
    %v2763 = vsub.f32 %v2761, %v2762
    %v2764 = vmul.f32 %v2754, %v2666
    %v2765 = vmul.f32 %v2757, %v2657
    %v2766 = vadd.f32 %v2764, %v2765
    %v2767 = vmul.f32 %v2754, %v2669
    %v2768 = vmul.f32 %v2757, %v2654
    %v2769 = vsub.f32 %v2767, %v2768
    %v2770 = vmul.f32 %v2754, %v2660
    %v2771 = vmul.f32 %v2757, %v2675
    %v2772 = vadd.f32 %v2770, %v2771
    %v2773 = vmul.f32 %v2754, %v2663
    %v2774 = vmul.f32 %v2757, %v2672
    %v2775 = vsub.f32 %v2773, %v2774
    %v2776 = vmul.f32 %v2754, %v2672
    %v2777 = vmul.f32 %v2757, %v2663
    %v2778 = vadd.f32 %v2776, %v2777
    %v2779 = vmul.f32 %v2754, %v2675
    %v2780 = vmul.f32 %v2757, %v2660
    %v2781 = vsub.f32 %v2779, %v2780
    %v2782 = vmul.f32 %v2754, %v2678
    %v2783 = vmul.f32 %v2757, %v2693
    %v2784 = vadd.f32 %v2782, %v2783
    %v2785 = vmul.f32 %v2754, %v2681
    %v2786 = vmul.f32 %v2757, %v2690
    %v2787 = vsub.f32 %v2785, %v2786
    %v2788 = vmul.f32 %v2754, %v2690
    %v2789 = vmul.f32 %v2757, %v2681
    %v2790 = vadd.f32 %v2788, %v2789
    %v2791 = vmul.f32 %v2754, %v2693
    %v2792 = vmul.f32 %v2757, %v2678
    %v2793 = vsub.f32 %v2791, %v2792
    %v2794 = vmul.f32 %v2754, %v2684
    %v2795 = vmul.f32 %v2757, %v2699
    %v2796 = vadd.f32 %v2794, %v2795
    %v2797 = vmul.f32 %v2754, %v2687
    %v2798 = vmul.f32 %v2757, %v2696
    %v2799 = vsub.f32 %v2797, %v2798
    %v2800 = vmul.f32 %v2754, %v2696
    %v2801 = vmul.f32 %v2757, %v2687
    %v2802 = vadd.f32 %v2800, %v2801
    %v2803 = vmul.f32 %v2754, %v2699
    %v2804 = vmul.f32 %v2757, %v2684
    %v2805 = vsub.f32 %v2803, %v2804
    %v2806 = vmul.f32 %v2754, %v2702
    %v2807 = vmul.f32 %v2757, %v2717
    %v2808 = vadd.f32 %v2806, %v2807
    %v2809 = vmul.f32 %v2754, %v2705
    %v2810 = vmul.f32 %v2757, %v2714
    %v2811 = vsub.f32 %v2809, %v2810
    %v2812 = vmul.f32 %v2754, %v2714
    %v2813 = vmul.f32 %v2757, %v2705
    %v2814 = vadd.f32 %v2812, %v2813
    %v2815 = vmul.f32 %v2754, %v2717
    %v2816 = vmul.f32 %v2757, %v2702
    %v2817 = vsub.f32 %v2815, %v2816
    %v2818 = vmul.f32 %v2754, %v2708
    %v2819 = vmul.f32 %v2757, %v2723
    %v2820 = vadd.f32 %v2818, %v2819
    %v2821 = vmul.f32 %v2754, %v2711
    %v2822 = vmul.f32 %v2757, %v2720
    %v2823 = vsub.f32 %v2821, %v2822
    %v2824 = vmul.f32 %v2754, %v2720
    %v2825 = vmul.f32 %v2757, %v2711
    %v2826 = vadd.f32 %v2824, %v2825
    %v2827 = vmul.f32 %v2754, %v2723
    %v2828 = vmul.f32 %v2757, %v2708
    %v2829 = vsub.f32 %v2827, %v2828
    %v2830 = vmul.f32 %v2754, %v2726
    %v2831 = vmul.f32 %v2757, %v2741
    %v2832 = vadd.f32 %v2830, %v2831
    %v2833 = vmul.f32 %v2754, %v2729
    %v2834 = vmul.f32 %v2757, %v2738
    %v2835 = vsub.f32 %v2833, %v2834
    %v2836 = vmul.f32 %v2754, %v2738
    %v2837 = vmul.f32 %v2757, %v2729
    %v2838 = vadd.f32 %v2836, %v2837
    %v2839 = vmul.f32 %v2754, %v2741
    %v2840 = vmul.f32 %v2757, %v2726
    %v2841 = vsub.f32 %v2839, %v2840
    %v2842 = vmul.f32 %v2754, %v2732
    %v2843 = vmul.f32 %v2757, %v2747
    %v2844 = vadd.f32 %v2842, %v2843
    %v2845 = vmul.f32 %v2754, %v2735
    %v2846 = vmul.f32 %v2757, %v2744
    %v2847 = vsub.f32 %v2845, %v2846
    %v2848 = vmul.f32 %v2754, %v2744
    %v2849 = vmul.f32 %v2757, %v2735
    %v2850 = vadd.f32 %v2848, %v2849
    %v2851 = vmul.f32 %v2754, %v2747
    %v2852 = vmul.f32 %v2757, %v2732
    %v2853 = vsub.f32 %v2851, %v2852
    %s2854 = sld [smem:[#allocation2 + $0x30]]
    %v2855 = vstv %s2854
    %s2856 = sld [smem:[#allocation2 + $0x31]]
    %v2857 = vstv %s2856
    %v2858 = vmul.f32 %v41, %v2855
    %v2859 = vmul.f32 %v43, %v2857
    %v2860 = vsub.f32 %v2858, %v2859
    %v2861 = vmul.f32 %v43, %v2855
    %v2862 = vmul.f32 %v41, %v2857
    %v2863 = vadd.f32 %v2861, %v2862
    %v2864 = vmul.f32 %v2860, %v2760
    %v2865 = vmul.f32 %v2863, %v2808
    %v2866 = vsub.f32 %v2864, %v2865
    %v2867 = vmul.f32 %v2860, %v2763
    %v2868 = vmul.f32 %v2863, %v2811
    %v2869 = vsub.f32 %v2867, %v2868
    %v2870 = vmul.f32 %v2863, %v2760
    %v2871 = vmul.f32 %v2860, %v2808
    %v2872 = vadd.f32 %v2870, %v2871
    %v2873 = vmul.f32 %v2863, %v2763
    %v2874 = vmul.f32 %v2860, %v2811
    %v2875 = vadd.f32 %v2873, %v2874
    %v2876 = vmul.f32 %v2860, %v2766
    %v2877 = vmul.f32 %v2863, %v2814
    %v2878 = vsub.f32 %v2876, %v2877
    %v2879 = vmul.f32 %v2860, %v2769
    %v2880 = vmul.f32 %v2863, %v2817
    %v2881 = vsub.f32 %v2879, %v2880
    %v2882 = vmul.f32 %v2863, %v2766
    %v2883 = vmul.f32 %v2860, %v2814
    %v2884 = vadd.f32 %v2882, %v2883
    %v2885 = vmul.f32 %v2863, %v2769
    %v2886 = vmul.f32 %v2860, %v2817
    %v2887 = vadd.f32 %v2885, %v2886
    %v2888 = vmul.f32 %v2860, %v2772
    %v2889 = vmul.f32 %v2863, %v2820
    %v2890 = vsub.f32 %v2888, %v2889
    %v2891 = vmul.f32 %v2860, %v2775
    %v2892 = vmul.f32 %v2863, %v2823
    %v2893 = vsub.f32 %v2891, %v2892
    %v2894 = vmul.f32 %v2863, %v2772
    %v2895 = vmul.f32 %v2860, %v2820
    %v2896 = vadd.f32 %v2894, %v2895
    %v2897 = vmul.f32 %v2863, %v2775
    %v2898 = vmul.f32 %v2860, %v2823
    %v2899 = vadd.f32 %v2897, %v2898
    %v2900 = vmul.f32 %v2860, %v2778
    %v2901 = vmul.f32 %v2863, %v2826
    %v2902 = vsub.f32 %v2900, %v2901
    %v2903 = vmul.f32 %v2860, %v2781
    %v2904 = vmul.f32 %v2863, %v2829
    %v2905 = vsub.f32 %v2903, %v2904
    %v2906 = vmul.f32 %v2863, %v2778
    %v2907 = vmul.f32 %v2860, %v2826
    %v2908 = vadd.f32 %v2906, %v2907
    %v2909 = vmul.f32 %v2863, %v2781
    %v2910 = vmul.f32 %v2860, %v2829
    %v2911 = vadd.f32 %v2909, %v2910
    %v2912 = vmul.f32 %v2860, %v2784
    %v2913 = vmul.f32 %v2863, %v2832
    %v2914 = vsub.f32 %v2912, %v2913
    %v2915 = vmul.f32 %v2860, %v2787
    %v2916 = vmul.f32 %v2863, %v2835
    %v2917 = vsub.f32 %v2915, %v2916
    %v2918 = vmul.f32 %v2863, %v2784
    %v2919 = vmul.f32 %v2860, %v2832
    %v2920 = vadd.f32 %v2918, %v2919
    %v2921 = vmul.f32 %v2863, %v2787
    %v2922 = vmul.f32 %v2860, %v2835
    %v2923 = vadd.f32 %v2921, %v2922
    %v2924 = vmul.f32 %v2860, %v2790
    %v2925 = vmul.f32 %v2863, %v2838
    %v2926 = vsub.f32 %v2924, %v2925
    %v2927 = vmul.f32 %v2860, %v2793
    %v2928 = vmul.f32 %v2863, %v2841
    %v2929 = vsub.f32 %v2927, %v2928
    %v2930 = vmul.f32 %v2863, %v2790
    %v2931 = vmul.f32 %v2860, %v2838
    %v2932 = vadd.f32 %v2930, %v2931
    %v2933 = vmul.f32 %v2863, %v2793
    %v2934 = vmul.f32 %v2860, %v2841
    %v2935 = vadd.f32 %v2933, %v2934
    %v2936 = vmul.f32 %v2860, %v2796
    %v2937 = vmul.f32 %v2863, %v2844
    %v2938 = vsub.f32 %v2936, %v2937
    %v2939 = vmul.f32 %v2860, %v2799
    %v2940 = vmul.f32 %v2863, %v2847
    %v2941 = vsub.f32 %v2939, %v2940
    %v2942 = vmul.f32 %v2863, %v2796
    %v2943 = vmul.f32 %v2860, %v2844
    %v2944 = vadd.f32 %v2942, %v2943
    %v2945 = vmul.f32 %v2863, %v2799
    %v2946 = vmul.f32 %v2860, %v2847
    %v2947 = vadd.f32 %v2945, %v2946
    %v2948 = vmul.f32 %v2860, %v2802
    %v2949 = vmul.f32 %v2863, %v2850
    %v2950 = vsub.f32 %v2948, %v2949
    %v2951 = vmul.f32 %v2860, %v2805
    %v2952 = vmul.f32 %v2863, %v2853
    %v2953 = vsub.f32 %v2951, %v2952
    %v2954 = vmul.f32 %v2863, %v2802
    %v2955 = vmul.f32 %v2860, %v2850
    %v2956 = vadd.f32 %v2954, %v2955
    %v2957 = vmul.f32 %v2863, %v2805
    %v2958 = vmul.f32 %v2860, %v2853
    %v2959 = vadd.f32 %v2957, %v2958
    %s2960 = sld [smem:[#allocation2 + $0x3a]]
    %v2961 = vstv %s2960
    %s2962 = sld [smem:[#allocation2 + $0x3b]]
    %v2963 = vstv %s2962
    %v2964 = vmul.f32 %v41, %v2961
    %v2965 = vmul.f32 %v43, %v2963
    %v2966 = vsub.f32 %v2964, %v2965
    %v2967 = vmul.f32 %v43, %v2961
    %v2968 = vmul.f32 %v41, %v2963
    %v2969 = vadd.f32 %v2967, %v2968
    %v2970 = vmul.f32 %v2966, %v2866
    %v2971 = vmul.f32 %v2969, %v2914
    %v2972 = vsub.f32 %v2970, %v2971
    %v2973 = vmul.f32 %v2966, %v2869
    %v2974 = vmul.f32 %v2969, %v2917
    %v2975 = vsub.f32 %v2973, %v2974
    %v2976 = vmul.f32 %v2969, %v2866
    %v2977 = vmul.f32 %v2966, %v2914
    %v2978 = vadd.f32 %v2976, %v2977
    %v2979 = vmul.f32 %v2969, %v2869
    %v2980 = vmul.f32 %v2966, %v2917
    %v2981 = vadd.f32 %v2979, %v2980
    %v2982 = vmul.f32 %v2966, %v2878
    %v2983 = vmul.f32 %v2969, %v2926
    %v2984 = vsub.f32 %v2982, %v2983
    %v2985 = vmul.f32 %v2966, %v2881
    %v2986 = vmul.f32 %v2969, %v2929
    %v2987 = vsub.f32 %v2985, %v2986
    %v2988 = vmul.f32 %v2969, %v2878
    %v2989 = vmul.f32 %v2966, %v2926
    %v2990 = vadd.f32 %v2988, %v2989
    %v2991 = vmul.f32 %v2969, %v2881
    %v2992 = vmul.f32 %v2966, %v2929
    %v2993 = vadd.f32 %v2991, %v2992
    %v2994 = vmul.f32 %v2966, %v2890
    %v2995 = vmul.f32 %v2969, %v2938
    %v2996 = vsub.f32 %v2994, %v2995
    %v2997 = vmul.f32 %v2966, %v2893
    %v2998 = vmul.f32 %v2969, %v2941
    %v2999 = vsub.f32 %v2997, %v2998
    %v3000 = vmul.f32 %v2969, %v2890
    %v3001 = vmul.f32 %v2966, %v2938
    %v3002 = vadd.f32 %v3000, %v3001
    %v3003 = vmul.f32 %v2969, %v2893
    %v3004 = vmul.f32 %v2966, %v2941
    %v3005 = vadd.f32 %v3003, %v3004
    %v3006 = vmul.f32 %v2966, %v2902
    %v3007 = vmul.f32 %v2969, %v2950
    %v3008 = vsub.f32 %v3006, %v3007
    %v3009 = vmul.f32 %v2966, %v2905
    %v3010 = vmul.f32 %v2969, %v2953
    %v3011 = vsub.f32 %v3009, %v3010
    %v3012 = vmul.f32 %v2969, %v2902
    %v3013 = vmul.f32 %v2966, %v2950
    %v3014 = vadd.f32 %v3012, %v3013
    %v3015 = vmul.f32 %v2969, %v2905
    %v3016 = vmul.f32 %v2966, %v2953
    %v3017 = vadd.f32 %v3015, %v3016
    %v3018 = vmul.f32 %v2966, %v2872
    %v3019 = vmul.f32 %v2969, %v2920
    %v3020 = vsub.f32 %v3018, %v3019
    %v3021 = vmul.f32 %v2966, %v2875
    %v3022 = vmul.f32 %v2969, %v2923
    %v3023 = vsub.f32 %v3021, %v3022
    %v3024 = vmul.f32 %v2969, %v2872
    %v3025 = vmul.f32 %v2966, %v2920
    %v3026 = vadd.f32 %v3024, %v3025
    %v3027 = vmul.f32 %v2969, %v2875
    %v3028 = vmul.f32 %v2966, %v2923
    %v3029 = vadd.f32 %v3027, %v3028
    %v3030 = vmul.f32 %v2966, %v2884
    %v3031 = vmul.f32 %v2969, %v2932
    %v3032 = vsub.f32 %v3030, %v3031
    %v3033 = vmul.f32 %v2966, %v2887
    %v3034 = vmul.f32 %v2969, %v2935
    %v3035 = vsub.f32 %v3033, %v3034
    %v3036 = vmul.f32 %v2969, %v2884
    %v3037 = vmul.f32 %v2966, %v2932
    %v3038 = vadd.f32 %v3036, %v3037
    %v3039 = vmul.f32 %v2969, %v2887
    %v3040 = vmul.f32 %v2966, %v2935
    %v3041 = vadd.f32 %v3039, %v3040
    %v3042 = vmul.f32 %v2966, %v2896
    %v3043 = vmul.f32 %v2969, %v2944
    %v3044 = vsub.f32 %v3042, %v3043
    %v3045 = vmul.f32 %v2966, %v2899
    %v3046 = vmul.f32 %v2969, %v2947
    %v3047 = vsub.f32 %v3045, %v3046
    %v3048 = vmul.f32 %v2969, %v2896
    %v3049 = vmul.f32 %v2966, %v2944
    %v3050 = vadd.f32 %v3048, %v3049
    %v3051 = vmul.f32 %v2969, %v2899
    %v3052 = vmul.f32 %v2966, %v2947
    %v3053 = vadd.f32 %v3051, %v3052
    %v3054 = vmul.f32 %v2966, %v2908
    %v3055 = vmul.f32 %v2969, %v2956
    %v3056 = vsub.f32 %v3054, %v3055
    %v3057 = vmul.f32 %v2966, %v2911
    %v3058 = vmul.f32 %v2969, %v2959
    %v3059 = vsub.f32 %v3057, %v3058
    %v3060 = vmul.f32 %v2969, %v2908
    %v3061 = vmul.f32 %v2966, %v2956
    %v3062 = vadd.f32 %v3060, %v3061
    %v3063 = vmul.f32 %v2969, %v2911
    %v3064 = vmul.f32 %v2966, %v2959
    %v3065 = vadd.f32 %v3063, %v3064
    %s3066 = sld [smem:[#allocation2 + $0x44]]
    %v3067 = vstv %s3066
    %s3068 = sld [smem:[#allocation2 + $0x45]]
    %v3069 = vstv %s3068
    %v3070 = vmul.f32 %v41, %v3067
    %v3071 = vmul.f32 %v43, %v3069
    %v3072 = vsub.f32 %v3070, %v3071
    %v3073 = vmul.f32 %v43, %v3067
    %v3074 = vmul.f32 %v41, %v3069
    %v3075 = vadd.f32 %v3073, %v3074
    %v3076 = vmul.f32 %v3072, %v2972
    %v3077 = vmul.f32 %v3075, %v2996
    %v3078 = vsub.f32 %v3076, %v3077
    %v3079 = vmul.f32 %v3072, %v2975
    %v3080 = vmul.f32 %v3075, %v2999
    %v3081 = vsub.f32 %v3079, %v3080
    %v3082 = vmul.f32 %v3075, %v2972
    %v3083 = vmul.f32 %v3072, %v2996
    %v3084 = vadd.f32 %v3082, %v3083
    %v3085 = vmul.f32 %v3075, %v2975
    %v3086 = vmul.f32 %v3072, %v2999
    %v3087 = vadd.f32 %v3085, %v3086
    %v3088 = vmul.f32 %v3072, %v2984
    %v3089 = vmul.f32 %v3075, %v3008
    %v3090 = vsub.f32 %v3088, %v3089
    %v3091 = vmul.f32 %v3072, %v2987
    %v3092 = vmul.f32 %v3075, %v3011
    %v3093 = vsub.f32 %v3091, %v3092
    %v3094 = vmul.f32 %v3075, %v2984
    %v3095 = vmul.f32 %v3072, %v3008
    %v3096 = vadd.f32 %v3094, %v3095
    %v3097 = vmul.f32 %v3075, %v2987
    %v3098 = vmul.f32 %v3072, %v3011
    %v3099 = vadd.f32 %v3097, %v3098
    %v3100 = vmul.f32 %v3072, %v2978
    %v3101 = vmul.f32 %v3075, %v3002
    %v3102 = vsub.f32 %v3100, %v3101
    %v3103 = vmul.f32 %v3072, %v2981
    %v3104 = vmul.f32 %v3075, %v3005
    %v3105 = vsub.f32 %v3103, %v3104
    %v3106 = vmul.f32 %v3075, %v2978
    %v3107 = vmul.f32 %v3072, %v3002
    %v3108 = vadd.f32 %v3106, %v3107
    %v3109 = vmul.f32 %v3075, %v2981
    %v3110 = vmul.f32 %v3072, %v3005
    %v3111 = vadd.f32 %v3109, %v3110
    %v3112 = vmul.f32 %v3072, %v2990
    %v3113 = vmul.f32 %v3075, %v3014
    %v3114 = vsub.f32 %v3112, %v3113
    %v3115 = vmul.f32 %v3072, %v2993
    %v3116 = vmul.f32 %v3075, %v3017
    %v3117 = vsub.f32 %v3115, %v3116
    %v3118 = vmul.f32 %v3075, %v2990
    %v3119 = vmul.f32 %v3072, %v3014
    %v3120 = vadd.f32 %v3118, %v3119
    %v3121 = vmul.f32 %v3075, %v2993
    %v3122 = vmul.f32 %v3072, %v3017
    %v3123 = vadd.f32 %v3121, %v3122
    %v3124 = vmul.f32 %v3072, %v3020
    %v3125 = vmul.f32 %v3075, %v3044
    %v3126 = vsub.f32 %v3124, %v3125
    %v3127 = vmul.f32 %v3072, %v3023
    %v3128 = vmul.f32 %v3075, %v3047
    %v3129 = vsub.f32 %v3127, %v3128
    %v3130 = vmul.f32 %v3075, %v3020
    %v3131 = vmul.f32 %v3072, %v3044
    %v3132 = vadd.f32 %v3130, %v3131
    %v3133 = vmul.f32 %v3075, %v3023
    %v3134 = vmul.f32 %v3072, %v3047
    %v3135 = vadd.f32 %v3133, %v3134
    %v3136 = vmul.f32 %v3072, %v3032
    %v3137 = vmul.f32 %v3075, %v3056
    %v3138 = vsub.f32 %v3136, %v3137
    %v3139 = vmul.f32 %v3072, %v3035
    %v3140 = vmul.f32 %v3075, %v3059
    %v3141 = vsub.f32 %v3139, %v3140
    %v3142 = vmul.f32 %v3075, %v3032
    %v3143 = vmul.f32 %v3072, %v3056
    %v3144 = vadd.f32 %v3142, %v3143
    %v3145 = vmul.f32 %v3075, %v3035
    %v3146 = vmul.f32 %v3072, %v3059
    %v3147 = vadd.f32 %v3145, %v3146
    %v3148 = vmul.f32 %v3072, %v3026
    %v3149 = vmul.f32 %v3075, %v3050
    %v3150 = vsub.f32 %v3148, %v3149
    %v3151 = vmul.f32 %v3072, %v3029
    %v3152 = vmul.f32 %v3075, %v3053
    %v3153 = vsub.f32 %v3151, %v3152
    %v3154 = vmul.f32 %v3075, %v3026
    %v3155 = vmul.f32 %v3072, %v3050
    %v3156 = vadd.f32 %v3154, %v3155
    %v3157 = vmul.f32 %v3075, %v3029
    %v3158 = vmul.f32 %v3072, %v3053
    %v3159 = vadd.f32 %v3157, %v3158
    %v3160 = vmul.f32 %v3072, %v3038
    %v3161 = vmul.f32 %v3075, %v3062
    %v3162 = vsub.f32 %v3160, %v3161
    %v3163 = vmul.f32 %v3072, %v3041
    %v3164 = vmul.f32 %v3075, %v3065
    %v3165 = vsub.f32 %v3163, %v3164
    %v3166 = vmul.f32 %v3075, %v3038
    %v3167 = vmul.f32 %v3072, %v3062
    %v3168 = vadd.f32 %v3166, %v3167
    %v3169 = vmul.f32 %v3075, %v3041
    %v3170 = vmul.f32 %v3072, %v3065
    %v3171 = vadd.f32 %v3169, %v3170
    %s3172 = sld [smem:[#allocation2 + $0x4e]]
    %v3173 = vstv %s3172
    %s3174 = sld [smem:[#allocation2 + $0x4f]]
    %v3175 = vstv %s3174
    %v3176 = vmul.f32 %v41, %v3173
    %v3177 = vmul.f32 %v43, %v3175
    %v3178 = vsub.f32 %v3176, %v3177
    %v3179 = vmul.f32 %v43, %v3173
    %v3180 = vmul.f32 %v41, %v3175
    %v3181 = vadd.f32 %v3179, %v3180
    %v3182 = vmul.f32 %v3178, %v3078
    %v3183 = vmul.f32 %v3181, %v3090
    %v3184 = vsub.f32 %v3182, %v3183
    %v3185 = vmul.f32 %v3178, %v3081
    %v3186 = vmul.f32 %v3181, %v3093
    %v3187 = vsub.f32 %v3185, %v3186
    %v3188 = vmul.f32 %v3181, %v3078
    %v3189 = vmul.f32 %v3178, %v3090
    %v3190 = vadd.f32 %v3188, %v3189
    %v3191 = vmul.f32 %v3181, %v3081
    %v3192 = vmul.f32 %v3178, %v3093
    %v3193 = vadd.f32 %v3191, %v3192
    %v3194 = vmul.f32 %v3178, %v3084
    %v3195 = vmul.f32 %v3181, %v3096
    %v3196 = vsub.f32 %v3194, %v3195
    %v3197 = vmul.f32 %v3178, %v3087
    %v3198 = vmul.f32 %v3181, %v3099
    %v3199 = vsub.f32 %v3197, %v3198
    %v3200 = vmul.f32 %v3181, %v3084
    %v3201 = vmul.f32 %v3178, %v3096
    %v3202 = vadd.f32 %v3200, %v3201
    %v3203 = vmul.f32 %v3181, %v3087
    %v3204 = vmul.f32 %v3178, %v3099
    %v3205 = vadd.f32 %v3203, %v3204
    %v3206 = vmul.f32 %v3178, %v3102
    %v3207 = vmul.f32 %v3181, %v3114
    %v3208 = vsub.f32 %v3206, %v3207
    %v3209 = vmul.f32 %v3178, %v3105
    %v3210 = vmul.f32 %v3181, %v3117
    %v3211 = vsub.f32 %v3209, %v3210
    %v3212 = vmul.f32 %v3181, %v3102
    %v3213 = vmul.f32 %v3178, %v3114
    %v3214 = vadd.f32 %v3212, %v3213
    %v3215 = vmul.f32 %v3181, %v3105
    %v3216 = vmul.f32 %v3178, %v3117
    %v3217 = vadd.f32 %v3215, %v3216
    %v3218 = vmul.f32 %v3178, %v3108
    %v3219 = vmul.f32 %v3181, %v3120
    %v3220 = vsub.f32 %v3218, %v3219
    %v3221 = vmul.f32 %v3178, %v3111
    %v3222 = vmul.f32 %v3181, %v3123
    %v3223 = vsub.f32 %v3221, %v3222
    %v3224 = vmul.f32 %v3181, %v3108
    %v3225 = vmul.f32 %v3178, %v3120
    %v3226 = vadd.f32 %v3224, %v3225
    %v3227 = vmul.f32 %v3181, %v3111
    %v3228 = vmul.f32 %v3178, %v3123
    %v3229 = vadd.f32 %v3227, %v3228
    %v3230 = vmul.f32 %v3178, %v3126
    %v3231 = vmul.f32 %v3181, %v3138
    %v3232 = vsub.f32 %v3230, %v3231
    %v3233 = vmul.f32 %v3178, %v3129
    %v3234 = vmul.f32 %v3181, %v3141
    %v3235 = vsub.f32 %v3233, %v3234
    %v3236 = vmul.f32 %v3181, %v3126
    %v3237 = vmul.f32 %v3178, %v3138
    %v3238 = vadd.f32 %v3236, %v3237
    %v3239 = vmul.f32 %v3181, %v3129
    %v3240 = vmul.f32 %v3178, %v3141
    %v3241 = vadd.f32 %v3239, %v3240
    %v3242 = vmul.f32 %v3178, %v3132
    %v3243 = vmul.f32 %v3181, %v3144
    %v3244 = vsub.f32 %v3242, %v3243
    %v3245 = vmul.f32 %v3178, %v3135
    %v3246 = vmul.f32 %v3181, %v3147
    %v3247 = vsub.f32 %v3245, %v3246
    %v3248 = vmul.f32 %v3181, %v3132
    %v3249 = vmul.f32 %v3178, %v3144
    %v3250 = vadd.f32 %v3248, %v3249
    %v3251 = vmul.f32 %v3181, %v3135
    %v3252 = vmul.f32 %v3178, %v3147
    %v3253 = vadd.f32 %v3251, %v3252
    %v3254 = vmul.f32 %v3178, %v3150
    %v3255 = vmul.f32 %v3181, %v3162
    %v3256 = vsub.f32 %v3254, %v3255
    %v3257 = vmul.f32 %v3178, %v3153
    %v3258 = vmul.f32 %v3181, %v3165
    %v3259 = vsub.f32 %v3257, %v3258
    %v3260 = vmul.f32 %v3181, %v3150
    %v3261 = vmul.f32 %v3178, %v3162
    %v3262 = vadd.f32 %v3260, %v3261
    %v3263 = vmul.f32 %v3181, %v3153
    %v3264 = vmul.f32 %v3178, %v3165
    %v3265 = vadd.f32 %v3263, %v3264
    %v3266 = vmul.f32 %v3178, %v3156
    %v3267 = vmul.f32 %v3181, %v3168
    %v3268 = vsub.f32 %v3266, %v3267
    %v3269 = vmul.f32 %v3178, %v3159
    %v3270 = vmul.f32 %v3181, %v3171
    %v3271 = vsub.f32 %v3269, %v3270
    %v3272 = vmul.f32 %v3181, %v3156
    %v3273 = vmul.f32 %v3178, %v3168
    %v3274 = vadd.f32 %v3272, %v3273
    %v3275 = vmul.f32 %v3181, %v3159
    %v3276 = vmul.f32 %v3178, %v3171
    %v3277 = vadd.f32 %v3275, %v3276
    %s3278 = sld [smem:[#allocation2 + $0x50]]
    %v3279 = vstv %s3278
    %s3280 = sld [smem:[#allocation2 + $0x51]]
    %v3281 = vstv %s3280
    %v3282 = vmul.f32 %v3279, %v3184
    %v3283 = vmul.f32 %v3281, %v3235
    %v3284 = vadd.f32 %v3282, %v3283
    %v3285 = vmul.f32 %v3279, %v3187
    %v3286 = vmul.f32 %v3281, %v3232
    %v3287 = vsub.f32 %v3285, %v3286
    %v3288 = vmul.f32 %v3279, %v3232
    %v3289 = vmul.f32 %v3281, %v3187
    %v3290 = vadd.f32 %v3288, %v3289
    %v3291 = vmul.f32 %v3279, %v3235
    %v3292 = vmul.f32 %v3281, %v3184
    %v3293 = vsub.f32 %v3291, %v3292
    %v3294 = vmul.f32 %v3279, %v3190
    %v3295 = vmul.f32 %v3281, %v3241
    %v3296 = vadd.f32 %v3294, %v3295
    %v3297 = vmul.f32 %v3279, %v3193
    %v3298 = vmul.f32 %v3281, %v3238
    %v3299 = vsub.f32 %v3297, %v3298
    %v3300 = vmul.f32 %v3279, %v3238
    %v3301 = vmul.f32 %v3281, %v3193
    %v3302 = vadd.f32 %v3300, %v3301
    %v3303 = vmul.f32 %v3279, %v3241
    %v3304 = vmul.f32 %v3281, %v3190
    %v3305 = vsub.f32 %v3303, %v3304
    %v3306 = vmul.f32 %v3279, %v3196
    %v3307 = vmul.f32 %v3281, %v3247
    %v3308 = vadd.f32 %v3306, %v3307
    %v3309 = vmul.f32 %v3279, %v3199
    %v3310 = vmul.f32 %v3281, %v3244
    %v3311 = vsub.f32 %v3309, %v3310
    %v3312 = vmul.f32 %v3279, %v3244
    %v3313 = vmul.f32 %v3281, %v3199
    %v3314 = vadd.f32 %v3312, %v3313
    %v3315 = vmul.f32 %v3279, %v3247
    %v3316 = vmul.f32 %v3281, %v3196
    %v3317 = vsub.f32 %v3315, %v3316
    %v3318 = vmul.f32 %v3279, %v3202
    %v3319 = vmul.f32 %v3281, %v3253
    %v3320 = vadd.f32 %v3318, %v3319
    %v3321 = vmul.f32 %v3279, %v3205
    %v3322 = vmul.f32 %v3281, %v3250
    %v3323 = vsub.f32 %v3321, %v3322
    %v3324 = vmul.f32 %v3279, %v3250
    %v3325 = vmul.f32 %v3281, %v3205
    %v3326 = vadd.f32 %v3324, %v3325
    %v3327 = vmul.f32 %v3279, %v3253
    %v3328 = vmul.f32 %v3281, %v3202
    %v3329 = vsub.f32 %v3327, %v3328
    %v3330 = vmul.f32 %v3279, %v3208
    %v3331 = vmul.f32 %v3281, %v3259
    %v3332 = vadd.f32 %v3330, %v3331
    %v3333 = vmul.f32 %v3279, %v3211
    %v3334 = vmul.f32 %v3281, %v3256
    %v3335 = vsub.f32 %v3333, %v3334
    %v3336 = vmul.f32 %v3279, %v3256
    %v3337 = vmul.f32 %v3281, %v3211
    %v3338 = vadd.f32 %v3336, %v3337
    %v3339 = vmul.f32 %v3279, %v3259
    %v3340 = vmul.f32 %v3281, %v3208
    %v3341 = vsub.f32 %v3339, %v3340
    %v3342 = vmul.f32 %v3279, %v3214
    %v3343 = vmul.f32 %v3281, %v3265
    %v3344 = vadd.f32 %v3342, %v3343
    %v3345 = vmul.f32 %v3279, %v3217
    %v3346 = vmul.f32 %v3281, %v3262
    %v3347 = vsub.f32 %v3345, %v3346
    %v3348 = vmul.f32 %v3279, %v3262
    %v3349 = vmul.f32 %v3281, %v3217
    %v3350 = vadd.f32 %v3348, %v3349
    %v3351 = vmul.f32 %v3279, %v3265
    %v3352 = vmul.f32 %v3281, %v3214
    %v3353 = vsub.f32 %v3351, %v3352
    %v3354 = vmul.f32 %v3279, %v3220
    %v3355 = vmul.f32 %v3281, %v3271
    %v3356 = vadd.f32 %v3354, %v3355
    %v3357 = vmul.f32 %v3279, %v3223
    %v3358 = vmul.f32 %v3281, %v3268
    %v3359 = vsub.f32 %v3357, %v3358
    %v3360 = vmul.f32 %v3279, %v3268
    %v3361 = vmul.f32 %v3281, %v3223
    %v3362 = vadd.f32 %v3360, %v3361
    %v3363 = vmul.f32 %v3279, %v3271
    %v3364 = vmul.f32 %v3281, %v3220
    %v3365 = vsub.f32 %v3363, %v3364
    %v3366 = vmul.f32 %v3279, %v3226
    %v3367 = vmul.f32 %v3281, %v3277
    %v3368 = vadd.f32 %v3366, %v3367
    %v3369 = vmul.f32 %v3279, %v3229
    %v3370 = vmul.f32 %v3281, %v3274
    %v3371 = vsub.f32 %v3369, %v3370
    %v3372 = vmul.f32 %v3279, %v3274
    %v3373 = vmul.f32 %v3281, %v3229
    %v3374 = vadd.f32 %v3372, %v3373
    %v3375 = vmul.f32 %v3279, %v3277
    %v3376 = vmul.f32 %v3281, %v3226
    %v3377 = vsub.f32 %v3375, %v3376
    %s3378 = sld [smem:[#allocation2 + $0x52]]
    %v3379 = vstv %s3378
    %s3380 = sld [smem:[#allocation2 + $0x53]]
    %v3381 = vstv %s3380
    %v3382 = vmul.f32 %v3284, %v3379
    %v3383 = vmul.f32 %v3381, %v3287
    %v3384 = vadd.f32 %v3382, %v3383
    %v3385 = vmul.f32 %v3287, %v3379
    %v3386 = vmul.f32 %v3381, %v3284
    %v3387 = vsub.f32 %v3385, %v3386
    %v3388 = vmul.f32 %v3296, %v3379
    %v3389 = vmul.f32 %v3381, %v3299
    %v3390 = vadd.f32 %v3388, %v3389
    %v3391 = vmul.f32 %v3299, %v3379
    %v3392 = vmul.f32 %v3381, %v3296
    %v3393 = vsub.f32 %v3391, %v3392
    %v3394 = vmul.f32 %v3308, %v3379
    %v3395 = vmul.f32 %v3381, %v3311
    %v3396 = vadd.f32 %v3394, %v3395
    %v3397 = vmul.f32 %v3311, %v3379
    %v3398 = vmul.f32 %v3381, %v3308
    %v3399 = vsub.f32 %v3397, %v3398
    %v3400 = vmul.f32 %v3320, %v3379
    %v3401 = vmul.f32 %v3381, %v3323
    %v3402 = vadd.f32 %v3400, %v3401
    %v3403 = vmul.f32 %v3323, %v3379
    %v3404 = vmul.f32 %v3381, %v3320
    %v3405 = vsub.f32 %v3403, %v3404
    %v3406 = vmul.f32 %v3332, %v3379
    %v3407 = vmul.f32 %v3381, %v3335
    %v3408 = vadd.f32 %v3406, %v3407
    %v3409 = vmul.f32 %v3335, %v3379
    %v3410 = vmul.f32 %v3381, %v3332
    %v3411 = vsub.f32 %v3409, %v3410
    %v3412 = vmul.f32 %v3344, %v3379
    %v3413 = vmul.f32 %v3381, %v3347
    %v3414 = vadd.f32 %v3412, %v3413
    %v3415 = vmul.f32 %v3347, %v3379
    %v3416 = vmul.f32 %v3381, %v3344
    %v3417 = vsub.f32 %v3415, %v3416
    %v3418 = vmul.f32 %v3356, %v3379
    %v3419 = vmul.f32 %v3381, %v3359
    %v3420 = vadd.f32 %v3418, %v3419
    %v3421 = vmul.f32 %v3359, %v3379
    %v3422 = vmul.f32 %v3381, %v3356
    %v3423 = vsub.f32 %v3421, %v3422
    %v3424 = vmul.f32 %v3368, %v3379
    %v3425 = vmul.f32 %v3381, %v3371
    %v3426 = vadd.f32 %v3424, %v3425
    %v3427 = vmul.f32 %v3371, %v3379
    %v3428 = vmul.f32 %v3381, %v3368
    %v3429 = vsub.f32 %v3427, %v3428
    %v3430 = vmul.f32 %v3290, %v3379
    %v3431 = vmul.f32 %v3381, %v3293
    %v3432 = vsub.f32 %v3430, %v3431
    %v3433 = vmul.f32 %v3293, %v3379
    %v3434 = vmul.f32 %v3381, %v3290
    %v3435 = vadd.f32 %v3433, %v3434
    %v3436 = vmul.f32 %v3302, %v3379
    %v3437 = vmul.f32 %v3381, %v3305
    %v3438 = vsub.f32 %v3436, %v3437
    %v3439 = vmul.f32 %v3305, %v3379
    %v3440 = vmul.f32 %v3381, %v3302
    %v3441 = vadd.f32 %v3439, %v3440
    %v3442 = vmul.f32 %v3314, %v3379
    %v3443 = vmul.f32 %v3381, %v3317
    %v3444 = vsub.f32 %v3442, %v3443
    %v3445 = vmul.f32 %v3317, %v3379
    %v3446 = vmul.f32 %v3381, %v3314
    %v3447 = vadd.f32 %v3445, %v3446
    %v3448 = vmul.f32 %v3326, %v3379
    %v3449 = vmul.f32 %v3381, %v3329
    %v3450 = vsub.f32 %v3448, %v3449
    %v3451 = vmul.f32 %v3329, %v3379
    %v3452 = vmul.f32 %v3381, %v3326
    %v3453 = vadd.f32 %v3451, %v3452
    %v3454 = vmul.f32 %v3338, %v3379
    %v3455 = vmul.f32 %v3381, %v3341
    %v3456 = vsub.f32 %v3454, %v3455
    %v3457 = vmul.f32 %v3341, %v3379
    %v3458 = vmul.f32 %v3381, %v3338
    %v3459 = vadd.f32 %v3457, %v3458
    %v3460 = vmul.f32 %v3350, %v3379
    %v3461 = vmul.f32 %v3381, %v3353
    %v3462 = vsub.f32 %v3460, %v3461
    %v3463 = vmul.f32 %v3353, %v3379
    %v3464 = vmul.f32 %v3381, %v3350
    %v3465 = vadd.f32 %v3463, %v3464
    %v3466 = vmul.f32 %v3362, %v3379
    %v3467 = vmul.f32 %v3381, %v3365
    %v3468 = vsub.f32 %v3466, %v3467
    %v3469 = vmul.f32 %v3365, %v3379
    %v3470 = vmul.f32 %v3381, %v3362
    %v3471 = vadd.f32 %v3469, %v3470
    %v3472 = vmul.f32 %v3374, %v3379
    %v3473 = vmul.f32 %v3381, %v3377
    %v3474 = vsub.f32 %v3472, %v3473
    %v3475 = vmul.f32 %v3377, %v3379
    %v3476 = vmul.f32 %v3381, %v3374
    %v3477 = vadd.f32 %v3475, %v3476
    %s3478 = sld [smem:[#allocation2 + $0x6e]]
    %v3479 = vstv %s3478
    %s3480 = sld [smem:[#allocation2 + $0x6f]]
    %v3481 = vstv %s3480
    %v3482 = vmul.f32 %v3479, %v3384
    %v3483 = vmul.f32 %v3481, %v3393
    %v3484 = vadd.f32 %v3482, %v3483
    %v3485 = vmul.f32 %v3479, %v3387
    %v3486 = vmul.f32 %v3481, %v3390
    %v3487 = vsub.f32 %v3485, %v3486
    %v3488 = vmul.f32 %v3479, %v3390
    %v3489 = vmul.f32 %v3481, %v3387
    %v3490 = vadd.f32 %v3488, %v3489
    %v3491 = vmul.f32 %v3479, %v3393
    %v3492 = vmul.f32 %v3481, %v3384
    %v3493 = vsub.f32 %v3491, %v3492
    %v3494 = vmul.f32 %v3479, %v3396
    %v3495 = vmul.f32 %v3481, %v3405
    %v3496 = vadd.f32 %v3494, %v3495
    %v3497 = vmul.f32 %v3479, %v3399
    %v3498 = vmul.f32 %v3481, %v3402
    %v3499 = vsub.f32 %v3497, %v3498
    %v3500 = vmul.f32 %v3479, %v3402
    %v3501 = vmul.f32 %v3481, %v3399
    %v3502 = vadd.f32 %v3500, %v3501
    %v3503 = vmul.f32 %v3479, %v3405
    %v3504 = vmul.f32 %v3481, %v3396
    %v3505 = vsub.f32 %v3503, %v3504
    %v3506 = vmul.f32 %v3479, %v3408
    %v3507 = vmul.f32 %v3481, %v3417
    %v3508 = vadd.f32 %v3506, %v3507
    %v3509 = vmul.f32 %v3479, %v3411
    %v3510 = vmul.f32 %v3481, %v3414
    %v3511 = vsub.f32 %v3509, %v3510
    %v3512 = vmul.f32 %v3479, %v3414
    %v3513 = vmul.f32 %v3481, %v3411
    %v3514 = vadd.f32 %v3512, %v3513
    %v3515 = vmul.f32 %v3479, %v3417
    %v3516 = vmul.f32 %v3481, %v3408
    %v3517 = vsub.f32 %v3515, %v3516
    %v3518 = vmul.f32 %v3479, %v3420
    %v3519 = vmul.f32 %v3481, %v3429
    %v3520 = vadd.f32 %v3518, %v3519
    %v3521 = vmul.f32 %v3479, %v3423
    %v3522 = vmul.f32 %v3481, %v3426
    %v3523 = vsub.f32 %v3521, %v3522
    %v3524 = vmul.f32 %v3479, %v3426
    %v3525 = vmul.f32 %v3481, %v3423
    %v3526 = vadd.f32 %v3524, %v3525
    %v3527 = vmul.f32 %v3479, %v3429
    %v3528 = vmul.f32 %v3481, %v3420
    %v3529 = vsub.f32 %v3527, %v3528
    %v3530 = vmul.f32 %v3479, %v3432
    %v3531 = vmul.f32 %v3481, %v3441
    %v3532 = vadd.f32 %v3530, %v3531
    %v3533 = vmul.f32 %v3479, %v3435
    %v3534 = vmul.f32 %v3481, %v3438
    %v3535 = vsub.f32 %v3533, %v3534
    %v3536 = vmul.f32 %v3479, %v3438
    %v3537 = vmul.f32 %v3481, %v3435
    %v3538 = vadd.f32 %v3536, %v3537
    %v3539 = vmul.f32 %v3479, %v3441
    %v3540 = vmul.f32 %v3481, %v3432
    %v3541 = vsub.f32 %v3539, %v3540
    %v3542 = vmul.f32 %v3479, %v3444
    %v3543 = vmul.f32 %v3481, %v3453
    %v3544 = vadd.f32 %v3542, %v3543
    %v3545 = vmul.f32 %v3479, %v3447
    %v3546 = vmul.f32 %v3481, %v3450
    %v3547 = vsub.f32 %v3545, %v3546
    %v3548 = vmul.f32 %v3479, %v3450
    %v3549 = vmul.f32 %v3481, %v3447
    %v3550 = vadd.f32 %v3548, %v3549
    %v3551 = vmul.f32 %v3479, %v3453
    %v3552 = vmul.f32 %v3481, %v3444
    %v3553 = vsub.f32 %v3551, %v3552
    %v3554 = vmul.f32 %v3479, %v3456
    %v3555 = vmul.f32 %v3481, %v3465
    %v3556 = vadd.f32 %v3554, %v3555
    %v3557 = vmul.f32 %v3479, %v3459
    %v3558 = vmul.f32 %v3481, %v3462
    %v3559 = vsub.f32 %v3557, %v3558
    %v3560 = vmul.f32 %v3479, %v3462
    %v3561 = vmul.f32 %v3481, %v3459
    %v3562 = vadd.f32 %v3560, %v3561
    %v3563 = vmul.f32 %v3479, %v3465
    %v3564 = vmul.f32 %v3481, %v3456
    %v3565 = vsub.f32 %v3563, %v3564
    %v3566 = vmul.f32 %v3479, %v3468
    %v3567 = vmul.f32 %v3481, %v3477
    %v3568 = vadd.f32 %v3566, %v3567
    %v3569 = vmul.f32 %v3479, %v3471
    %v3570 = vmul.f32 %v3481, %v3474
    %v3571 = vsub.f32 %v3569, %v3570
    %v3572 = vmul.f32 %v3479, %v3474
    %v3573 = vmul.f32 %v3481, %v3471
    %v3574 = vadd.f32 %v3572, %v3573
    %v3575 = vmul.f32 %v3479, %v3477
    %v3576 = vmul.f32 %v3481, %v3468
    %v3577 = vsub.f32 %v3575, %v3576
    %s3578 = sld [smem:[#allocation2 + $0x54]]
    %v3579 = vstv %s3578
    %s3580 = sld [smem:[#allocation2 + $0x55]]
    %v3581 = vstv %s3580
    %v3582 = vmul.f32 %v3579, %v3490
    %v3583 = vmul.f32 %v3581, %v3541
    %v3584 = vadd.f32 %v3582, %v3583
    %v3585 = vmul.f32 %v3579, %v3493
    %v3586 = vmul.f32 %v3581, %v3538
    %v3587 = vsub.f32 %v3585, %v3586
    %v3588 = vmul.f32 %v3579, %v3538
    %v3589 = vmul.f32 %v3581, %v3493
    %v3590 = vadd.f32 %v3588, %v3589
    %v3591 = vmul.f32 %v3579, %v3541
    %v3592 = vmul.f32 %v3581, %v3490
    %v3593 = vsub.f32 %v3591, %v3592
    %v3594 = vmul.f32 %v3579, %v3502
    %v3595 = vmul.f32 %v3581, %v3553
    %v3596 = vadd.f32 %v3594, %v3595
    %v3597 = vmul.f32 %v3579, %v3505
    %v3598 = vmul.f32 %v3581, %v3550
    %v3599 = vsub.f32 %v3597, %v3598
    %v3600 = vmul.f32 %v3579, %v3550
    %v3601 = vmul.f32 %v3581, %v3505
    %v3602 = vadd.f32 %v3600, %v3601
    %v3603 = vmul.f32 %v3579, %v3553
    %v3604 = vmul.f32 %v3581, %v3502
    %v3605 = vsub.f32 %v3603, %v3604
    %v3606 = vmul.f32 %v3579, %v3514
    %v3607 = vmul.f32 %v3581, %v3565
    %v3608 = vadd.f32 %v3606, %v3607
    %v3609 = vmul.f32 %v3579, %v3517
    %v3610 = vmul.f32 %v3581, %v3562
    %v3611 = vsub.f32 %v3609, %v3610
    %v3612 = vmul.f32 %v3579, %v3562
    %v3613 = vmul.f32 %v3581, %v3517
    %v3614 = vadd.f32 %v3612, %v3613
    %v3615 = vmul.f32 %v3579, %v3565
    %v3616 = vmul.f32 %v3581, %v3514
    %v3617 = vsub.f32 %v3615, %v3616
    %v3618 = vmul.f32 %v3579, %v3526
    %v3619 = vmul.f32 %v3581, %v3577
    %v3620 = vadd.f32 %v3618, %v3619
    %v3621 = vmul.f32 %v3579, %v3529
    %v3622 = vmul.f32 %v3581, %v3574
    %v3623 = vsub.f32 %v3621, %v3622
    %v3624 = vmul.f32 %v3579, %v3574
    %v3625 = vmul.f32 %v3581, %v3529
    %v3626 = vadd.f32 %v3624, %v3625
    %v3627 = vmul.f32 %v3579, %v3577
    %v3628 = vmul.f32 %v3581, %v3526
    %v3629 = vsub.f32 %v3627, %v3628
    %v3630 = vmul.f32 %v3484, %v3484
    %v3631 = vmul.f32 %v3487, %v3487
    %v3632 = vadd.f32 %v3630, %v3631
    %v3633 = vmul.f32 %v3584, %v3584
    %v3634 = vmul.f32 %v3587, %v3587
    %v3635 = vadd.f32 %v3633, %v3634
    %v3636 = vadd.f32 %v3632, %v3635
    %v3637 = vmul.f32 %v3496, %v3496
    %v3638 = vmul.f32 %v3499, %v3499
    %v3639 = vadd.f32 %v3637, %v3638
    %v3640 = vadd.f32 %v3636, %v3639
    %v3641 = vmul.f32 %v3596, %v3596
    %v3642 = vmul.f32 %v3599, %v3599
    %v3643 = vadd.f32 %v3641, %v3642
    %v3644 = vadd.f32 %v3640, %v3643
    %v3645 = vmul.f32 %v3508, %v3508
    %v3646 = vmul.f32 %v3511, %v3511
    %v3647 = vadd.f32 %v3645, %v3646
    %v3648 = vadd.f32 %v3644, %v3647
    %v3649 = vmul.f32 %v3608, %v3608
    %v3650 = vmul.f32 %v3611, %v3611
    %v3651 = vadd.f32 %v3649, %v3650
    %v3652 = vadd.f32 %v3648, %v3651
    %v3653 = vmul.f32 %v3520, %v3520
    %v3654 = vmul.f32 %v3523, %v3523
    %v3655 = vadd.f32 %v3653, %v3654
    %v3656 = vadd.f32 %v3652, %v3655
    %v3657 = vmul.f32 %v3620, %v3620
    %v3658 = vmul.f32 %v3623, %v3623
    %v3659 = vadd.f32 %v3657, %v3658
    %v3660 = vadd.f32 %v3656, %v3659
    %v3661 = vmul.f32 %v3532, %v3532
    %v3662 = vmul.f32 %v3535, %v3535
    %v3663 = vadd.f32 %v3661, %v3662
    %v3664 = vsub.f32 %v3660, %v3663
    %v3665 = vmul.f32 %v3590, %v3590
    %v3666 = vmul.f32 %v3593, %v3593
    %v3667 = vadd.f32 %v3665, %v3666
    %v3668 = vsub.f32 %v3664, %v3667
    %v3669 = vmul.f32 %v3544, %v3544
    %v3670 = vmul.f32 %v3547, %v3547
    %v3671 = vadd.f32 %v3669, %v3670
    %v3672 = vsub.f32 %v3668, %v3671
    %v3673 = vmul.f32 %v3602, %v3602
    %v3674 = vmul.f32 %v3605, %v3605
    %v3675 = vadd.f32 %v3673, %v3674
    %v3676 = vsub.f32 %v3672, %v3675
    %v3677 = vmul.f32 %v3556, %v3556
    %v3678 = vmul.f32 %v3559, %v3559
    %v3679 = vadd.f32 %v3677, %v3678
    %v3680 = vsub.f32 %v3676, %v3679
    %v3681 = vmul.f32 %v3614, %v3614
    %v3682 = vmul.f32 %v3617, %v3617
    %v3683 = vadd.f32 %v3681, %v3682
    %v3684 = vsub.f32 %v3680, %v3683
    %v3685 = vmul.f32 %v3568, %v3568
    %v3686 = vmul.f32 %v3571, %v3571
    %v3687 = vadd.f32 %v3685, %v3686
    %v3688 = vsub.f32 %v3684, %v3687
    %v3689 = vmul.f32 %v3626, %v3626
    %v3690 = vmul.f32 %v3629, %v3629
    %v3691 = vadd.f32 %v3689, %v3690
    %v3692 = vsub.f32 %v3688, %v3691
    %v3693 = vadd.f32 %v3692, 1.0
    %v3694 = vmul.f32 %v3693, 0.5
    %3695 = vst [vmem:[#allocation7] sm:$0xff] %v3694
    // Predicated region
    $region18: #{tpu_custom_call.1} parent=1 // pred_check
      _
    $region19: #{tpu_custom_call.1} parent=1 // pred_check_branch
      %3697 = sbr.rel (0) target = $region21
    $region20: #{tpu_custom_call.1} parent=1 // pred_region
      %s3699 = ssub.s32 128, 128
      %3700 = vsyncadd [#allocation4], %s3699
      %s3702 = sshll.u32 [#allocation7], 4
      %s3703 = int_to_ptr.vmem [resolvable:$true] %s3702
      %3705 = dma.vmem_to_hbm [thread:$0]  %s3703, 128, %s2, [#allocation4]
    $region21: #{tpu_custom_call.1} parent=1 // pred_fallthru
      _
    // Predicated region
    $region22: #{tpu_custom_call.1} parent=1 // pred_check
      _
    $region23: #{tpu_custom_call.1} parent=1 // pred_check_branch
      %3707 = sbr.rel (0) target = $region25
    $region24: #{tpu_custom_call.1} parent=1 // pred_region
      %3708 = dma.done [#allocation4], 128
    $region25: #{tpu_custom_call.1} parent=1 // pred_fallthru
      _
    %3709 = vsyncpa [#allocation3], 1
    %3710 = vsyncpa [#allocation4], 1
    %3711 = vsyncpa [#allocation5], 1

</llo_original>
